<compile_context>
chip_gen: v5e
topology: v5e:2x2
jax: 0.10.0
libtpu: 0.0.40
codegen_flags: <defaults>
</compile_context>

<pallas_src>
import functools

import jax
import jax.numpy as jnp
from jax import lax
from jax.experimental import pallas as pl
from jax.experimental.pallas import tpu as pltpu


def _round_up(x, m):
    return (x + m - 1) // m * m


def _cdiv(a, b):
    return (a + b - 1) // b


# ------------------------------------------------------------------
# Pallas kernels
# ------------------------------------------------------------------
def pointnet_feat_kernel(x_ref,
                         w1t_ref, t1_ref,
                         w2_ref, t2_ref,
                         w3_ref, t3_ref,
                         out_ref,
                         h2_ref):
    """Shared per-point MLP + running max over point tiles.

    x_ref:   (1, C, TN)   f32   native NCW tile (lane-dense along points)
    w1t_ref: (64, C)      f32   conv1 weight, BN scale folded, pre-transposed
    w2_ref:  (64, 128)    bf16  conv2 weight, BN scale folded
    w3_ref:  (128, 1024)  bf16  conv3 weight, BN scale folded
    tK_ref:  (1, Cout)    f32   fused BatchNorm shift (conv bias folded in)
    out_ref: (1, 1, 1024) f32   running max, resident across the point axis
    h2_ref:  (TN, 128)    bf16  scratch staging of layer-2 activations
    """
    j = pl.program_id(2)

    x = x_ref[0]                       # (C, TN)
    w1t = w1t_ref[...]                 # (64, C)

    # Layer 1 (C -> 64) on the VPU: C broadcast FMAs in (64, TN) orientation.
    h1t = w1t[:, 0:1] * x[0:1, :]
    for c in range(1, x.shape[0]):
        h1t = h1t + w1t[:, c:c + 1] * x[c:c + 1, :]
    h1 = h1t.T                                                   # (TN, 64)
    h1 = jnp.maximum(h1 + t1_ref[...], 0.0)                      # relu(bn1(conv1))

    # Layer 2 (64 -> 128) on the MXU: bf16 inputs, f32 accumulate.
    h2 = jnp.dot(h1.astype(jnp.bfloat16), w2_ref[...],
                 preferred_element_type=jnp.float32)
    h2 = jnp.maximum(h2 + t2_ref[...], 0.0)                      # relu(bn2(conv2))
    h2_ref[...] = h2.astype(jnp.bfloat16)

    # Layer 3 (128 -> 1024), chunked over rows: matmul + bn3 shift + row-max
    # fused per chunk so the (TN, 1024) f32 activation never hits VMEM.
    w3 = w3_ref[...]                                             # (128, 1024) bf16
    t3 = t3_ref[...]                                             # (1, 1024)
    tn = h2_ref.shape[0]
    rb = 256 if tn % 256 == 0 else 128
    n_rb = tn // rb

    def body(i, running):
        start = pl.multiple_of(i * rb, rb)
        rows = h2_ref[pl.ds(start, rb), :]                       # (rb, 128) bf16
        c = jnp.dot(rows, w3, preferred_element_type=jnp.float32) + t3
        return jnp.maximum(running, jnp.max(c, axis=0, keepdims=True))

    tile_max = lax.fori_loop(
        0, n_rb, body, jnp.full((1, 1024), -jnp.inf, jnp.float32))

    @pl.when(j == 0)
    def _():
        out_ref[0] = tile_max

    @pl.when(j > 0)
    def _():
        out_ref[0] = jnp.maximum(out_ref[0], tile_max)


def head_kernel(f_ref,
                wf1_ref, tf1_ref,
                wf2_ref, tf2_ref,
                wp_ref, bp_ref,
                out_ref):
    """FC head 1024 -> 512 -> 256 -> 12 (BN scale folded, shift+ReLU here).

    The final layer is zero-padded to 128 output lanes so the store is
    lane-dense / unmasked; the wrapper slices [:, :12].
    """
    f = f_ref[...].astype(jnp.bfloat16)                           # (B, 1024)

    h = jnp.dot(f, wf1_ref[...], preferred_element_type=jnp.float32)
    h = jnp.maximum(h + tf1_ref[...], 0.0)                        # relu(bn_fc1(fc1))

    h = jnp.dot(h.astype(jnp.bfloat16), wf2_ref[...],
                preferred_element_type=jnp.float32)
    h = jnp.maximum(h + tf2_ref[...], 0.0)                        # relu(bn_fc2(fc2))

    out_ref[...] = (jnp.dot(h.astype(jnp.bfloat16), wp_ref[...],
                            preferred_element_type=jnp.float32)
                    + bp_ref[...])                                # fc_param (padded)


# ------------------------------------------------------------------
# Glue (plain JAX)
# ------------------------------------------------------------------
def symmetric_orthogonalization(x):
    """Maps [B, 9] onto SO(3) via SVD, matching the PyTorch reference."""
    # TODO(synk): torch.svd / torch.det have no Pallas primitive; plain JAX.
    m = x.reshape(-1, 3, 3)
    u, s, vh = jnp.linalg.svd(m, full_matrices=False)
    det = jnp.linalg.det(jnp.matmul(u, vh)).reshape(-1, 1, 1)
    vt = jnp.concatenate([vh[:, :2, :], vh[:, -1:, :] * det], axis=1)
    return jnp.matmul(u, vt)


def _fuse_bn(bias, gamma, beta, mean, var, eps=1e-5):
    """Fold (linear/conv bias, BatchNorm eval-mode) into per-channel scale/shift."""
    scale = gamma * jax.lax.rsqrt(var + eps)
    shift = (bias - mean) * scale + beta
    return scale[None, :], shift[None, :]


def init_params(key, channel=3):
    ks = jax.random.split(key, 24)
    p = {}

    def lin(k, fi, fo, scale=0.1):
        return scale * jax.random.normal(k, (fi, fo), jnp.float32)

    def bn(k, c):
        k1, k2, k3 = jax.random.split(k, 3)
        gamma = 1.0 + 0.1 * jax.random.normal(k1, (c,), jnp.float32)
        beta = 0.05 * jax.random.normal(k2, (c,), jnp.float32)
        mean = 0.01 * jax.random.normal(k3, (c,), jnp.float32)
        var = jnp.ones((c,), jnp.float32)
        return gamma, beta, mean, var

    p["w1"] = lin(ks[0], channel, 64)
    p["b1"] = 0.02 * jax.random.normal(ks[1], (64,), jnp.float32)
    p["bn1"] = bn(ks[2], 64)
    p["w2"] = lin(ks[3], 64, 128)
    p["b2"] = 0.02 * jax.random.normal(ks[4], (128,), jnp.float32)
    p["bn2"] = bn(ks[5], 128)
    p["w3"] = lin(ks[6], 128, 1024)
    p["b3"] = 0.02 * jax.random.normal(ks[7], (1024,), jnp.float32)
    p["bn3"] = bn(ks[8], 1024)

    p["wf1"] = lin(ks[9], 1024, 512, 0.03)
    p["bf1"] = 0.02 * jax.random.normal(ks[10], (512,), jnp.float32)
    p["bnf1"] = bn(ks[11], 512)
    p["wf2"] = lin(ks[12], 512, 256, 0.05)
    p["bf2"] = 0.02 * jax.random.normal(ks[13], (256,), jnp.float32)
    p["bnf2"] = bn(ks[14], 256)
    p["wp"] = lin(ks[15], 256, 12, 0.1)
    p["bp"] = 0.02 * jax.random.normal(ks[16], (12,), jnp.float32)
    # fc_trivial (256->16) exists in the module but is unused in forward().
    return p


def prepare_params(p):
    """Fuse BN: fold scale into weight columns (f32, pre bf16-cast), keep shift.
    Pre-transpose conv1, cast MXU weights to bf16, pad head to 128 lanes."""
    s1, t1 = _fuse_bn(p["b1"], *p["bn1"])
    s2, t2 = _fuse_bn(p["b2"], *p["bn2"])
    s3, t3 = _fuse_bn(p["b3"], *p["bn3"])
    sf1, tf1 = _fuse_bn(p["bf1"], *p["bnf1"])
    sf2, tf2 = _fuse_bn(p["bf2"], *p["bnf2"])
    bf16 = jnp.bfloat16
    w1t = (p["w1"] * s1).T                                   # (64, C)  f32
    w2 = (p["w2"] * s2).astype(bf16)                         # (64, 128)
    w3 = (p["w3"] * s3).astype(bf16)                         # (128, 1024)
    wf1 = (p["wf1"] * sf1).astype(bf16)                      # (1024, 512)
    wf2 = (p["wf2"] * sf2).astype(bf16)                      # (512, 256)
    wp_pad = jnp.zeros((256, 128), jnp.float32).at[:, :12].set(p["wp"]).astype(bf16)
    bp_pad = jnp.zeros((1, 128), jnp.float32).at[0, :12].set(p["bp"])
    return dict(
        w1t=w1t, t1=t1,
        w2=w2, t2=t2,
        w3=w3, t3=t3,
        wf1=wf1, tf1=tf1,
        wf2=wf2, tf2=tf2,
        wp=wp_pad, bp=bp_pad,
    )


@functools.partial(jax.jit, static_argnames=("tile_n",))
def pointnet_rot9d(x_bcn, q, tile_n=2048):
    """x_bcn: [B, C, N] float32 (PyTorch NCW). Returns [B, 4, 4]."""
    B, C, N = x_bcn.shape

    # ---- tile selection ----
    # Large lane-dense point tiles (multiple of 128) to amortize the ~0.35us
    # per-grid-step overhead; tile count chosen to minimize padding.  For B==1
    # always split the point reduction two ways so a v7x second TensorCore has
    # work (padding is by repeating the last point, which is max-invariant).
    tn_cap = _round_up(tile_n, 128)
    base_tiles = _cdiv(N, tn_cap)
    if B < 2:
        n_tiles = max(2, 2 * _cdiv(base_tiles, 2))   # even so the S=2 split is clean
        S = 2
    else:
        n_tiles = base_tiles
        S = 1
    tn = _round_up(_cdiv(N, n_tiles), 128)
    n_pad = n_tiles * tn
    T = n_tiles // S

    if n_pad != N:
        # Pad by repeating the last point: invariant under the max-pool.
        tail = jnp.broadcast_to(x_bcn[:, :, -1:], (B, C, n_pad - N))
        x_bcn = jnp.concatenate([x_bcn, tail], axis=2)

    # ---- Kernel 1: shared MLP + running max over points ----
    feat_part = pl.pallas_call(
        pointnet_feat_kernel,
        out_shape=jax.ShapeDtypeStruct((B * S, 1, 1024), jnp.float32),
        grid_spec=pltpu.PrefetchScalarGridSpec(
            num_scalar_prefetch=0,
            grid=(B, S, T),
            in_specs=[
                pl.BlockSpec((1, C, tn), lambda b, s, j: (b, 0, s * T + j)),
                pl.BlockSpec((64, C), lambda b, s, j: (0, 0)),
                pl.BlockSpec((1, 64), lambda b, s, j: (0, 0)),
                pl.BlockSpec((64, 128), lambda b, s, j: (0, 0)),
                pl.BlockSpec((1, 128), lambda b, s, j: (0, 0)),
                pl.BlockSpec((128, 1024), lambda b, s, j: (0, 0)),
                pl.BlockSpec((1, 1024), lambda b, s, j: (0, 0)),
            ],
            out_specs=pl.BlockSpec((1, 1, 1024),
                                   lambda b, s, j: (b * S + s, 0, 0)),
            scratch_shapes=[pltpu.VMEM((tn, 128), jnp.bfloat16)],
        ),
        compiler_params=pltpu.CompilerParams(
            dimension_semantics=("parallel", "parallel", "arbitrary"),
            vmem_limit_bytes=32 * 1024 * 1024),
    )(x_bcn, q["w1t"], q["t1"],
      q["w2"], q["t2"],
      q["w3"], q["t3"])

    feat = jnp.max(feat_part.reshape(B, S, 1024), axis=1)        # [B, 1024]

    # ---- Kernel 2: FC head -> 12 params (padded to 128 lanes) ----
    vmem_spec = pl.BlockSpec(memory_space=pltpu.MemorySpace.VMEM)
    out_pad = pl.pallas_call(
        head_kernel,
        out_shape=jax.ShapeDtypeStruct((B, 128), jnp.float32),
        in_specs=[vmem_spec] * 7,
        out_specs=vmem_spec,
        compiler_params=pltpu.CompilerParams(
            vmem_limit_bytes=32 * 1024 * 1024),
    )(feat, q["wf1"], q["tf1"],
      q["wf2"], q["tf2"], q["wp"], q["bp"])
    out12 = out_pad[:, :12]

    # ---- Glue: SVD orthogonalization + 4x4 assembly ----
    Rparam = out12[:, :9]
    t = out12[:, 9:].reshape(-1, 3, 1)
    R = symmetric_orthogonalization(Rparam)                      # [B, 3, 3]
    transformation = jnp.concatenate([R, t], axis=2)             # [B, 3, 4]
    pad = jnp.tile(jnp.array([0.0, 0.0, 0.0, 1.0], dtype=jnp.float32),
                   (B, 1)).reshape(-1, 1, 4)
    return jnp.concatenate([transformation, pad], axis=1)        # [B, 4, 4]


# ------------------------------------------------------------------
# Pure-JAX reference (same fused-BN / bf16 math) for a sanity check
# ------------------------------------------------------------------
def _ref_forward(x_bcn, q):
    B = x_bcn.shape[0]
    x = jnp.transpose(x_bcn, (0, 2, 1))                          # [B, N, C]
    h = jnp.einsum("bnc,oc->bno", x, q["w1t"],
                   precision=jax.lax.Precision.HIGHEST)
    h = jnp.maximum(h + q["t1"], 0.0)
    h = jnp.dot(h.astype(jnp.bfloat16), q["w2"],
                preferred_element_type=jnp.float32)
    h = jnp.maximum(h + q["t2"], 0.0)
    h = jnp.dot(h.astype(jnp.bfloat16), q["w3"],
                preferred_element_type=jnp.float32)
    h = h + q["t3"]
    f = jnp.max(h, axis=1)                                       # [B, 1024]
    g = jnp.dot(f.astype(jnp.bfloat16), q["wf1"],
                preferred_element_type=jnp.float32)
    g = jnp.maximum(g + q["tf1"], 0.0)
    g = jnp.dot(g.astype(jnp.bfloat16), q["wf2"],
                preferred_element_type=jnp.float32)
    g = jnp.maximum(g + q["tf2"], 0.0)
    out12 = (jnp.dot(g.astype(jnp.bfloat16), q["wp"],
                     preferred_element_type=jnp.float32) + q["bp"])[:, :12]
    R = symmetric_orthogonalization(out12[:, :9])
    t = out12[:, 9:].reshape(-1, 3, 1)
    tr = jnp.concatenate([R, t], axis=2)
    pad = jnp.tile(jnp.array([0.0, 0.0, 0.0, 1.0], jnp.float32),
                   (B, 1)).reshape(-1, 1, 4)
    return jnp.concatenate([tr, pad], axis=1)


if __name__ == "__main__":
    key = jax.random.PRNGKey(0)
    k_param, k_x1, k_x2 = jax.random.split(key, 3)

    C = 3
    params = init_params(k_param, channel=C)
    prep = prepare_params(params)

    # Case 1: B=2, ragged point count (exercises tail padding + tile sizing).
    B1, N1 = 2, 1000
    x1 = jax.random.normal(k_x1, (B1, C, N1), jnp.float32)
    out1 = jax.block_until_ready(pointnet_rot9d(x1, prep))
    ref1 = jax.block_until_ready(_ref_forward(x1, prep))
    assert out1.shape == (B1, 4, 4), out1.shape
    assert jnp.allclose(out1, ref1, atol=1e-2, rtol=1e-2), (out1, ref1)

    # Case 2: B=1 (exercises the forced 2-way point split used for v7x dual-TC).
    B2, N2 = 1, 1024
    x2 = jax.random.normal(k_x2, (B2, C, N2), jnp.float32)
    out2 = jax.block_until_ready(pointnet_rot9d(x2, prep))
    ref2 = jax.block_until_ready(_ref_forward(x2, prep))
    assert out2.shape == (B2, 4, 4), out2.shape
    assert jnp.allclose(out2, ref2, atol=1e-2, rtol=1e-2), (out2, ref2)

    print("KERNEL_OK")
</pallas_src>

<mosaic_0001>
module attributes {stable_mosaic.version = 11 : i64} {
  func.func @pointnet_feat_kernel(%arg0: i32, %arg1: i32, %arg2: i32, %arg3: memref<1x3x1024xf32, #tpu.memory_space<vmem>>, %arg4: memref<64x3xf32, #tpu.memory_space<vmem>>, %arg5: memref<1x64xf32, #tpu.memory_space<vmem>>, %arg6: memref<64x128xbf16, #tpu.memory_space<vmem>>, %arg7: memref<1x128xf32, #tpu.memory_space<vmem>>, %arg8: memref<128x1024xbf16, #tpu.memory_space<vmem>>, %arg9: memref<1x1024xf32, #tpu.memory_space<vmem>>, %arg10: memref<1x1x1024xf32, #tpu.memory_space<vmem>>, %arg11: memref<1024x128xbf16, #tpu.memory_space<vmem>>) attributes {dimension_semantics = [#tpu.dimension_semantics<parallel>, #tpu.dimension_semantics<parallel>, #tpu.dimension_semantics<arbitrary>], iteration_bounds = array<i64: 2, 1, 1>, scalar_prefetch = 0 : i64, scratch_operands = 1 : i64, tpu.core_type = #tpu.core_type<tc>, window_params = [{transform_indices = @transform_0, window_bounds = array<i64: 1, 3, 1024>}, {pipeline_mode = #tpu.pipeline_mode<synchronous>, transform_indices = @transform_1, window_bounds = array<i64: 64, 3>}, {pipeline_mode = #tpu.pipeline_mode<synchronous>, transform_indices = @transform_2, window_bounds = array<i64: 1, 64>}, {pipeline_mode = #tpu.pipeline_mode<synchronous>, transform_indices = @transform_3, window_bounds = array<i64: 64, 128>}, {pipeline_mode = #tpu.pipeline_mode<synchronous>, transform_indices = @transform_4, window_bounds = array<i64: 1, 128>}, {pipeline_mode = #tpu.pipeline_mode<synchronous>, transform_indices = @transform_5, window_bounds = array<i64: 128, 1024>}, {pipeline_mode = #tpu.pipeline_mode<synchronous>, transform_indices = @transform_6, window_bounds = array<i64: 1, 1024>}, {transform_indices = @transform_7, window_bounds = array<i64: 1, 1, 1024>}]} {
    %c0 = arith.constant 0 : index
    %c0_0 = arith.constant 0 : index
    %c0_1 = arith.constant 0 : index
    %0 = vector.load %arg3[%c0, %c0_0, %c0_1] : memref<1x3x1024xf32, #tpu.memory_space<vmem>>, vector<1x3x1024xf32>
    %1 = vector.shape_cast %0 : vector<1x3x1024xf32> to vector<3x1024xf32>
    %c0_2 = arith.constant 0 : index
    %c0_3 = arith.constant 0 : index
    %2 = vector.load %arg4[%c0_2, %c0_3] : memref<64x3xf32, #tpu.memory_space<vmem>>, vector<64x3xf32>
    %3 = vector.extract_strided_slice %2 {offsets = [0, 0], sizes = [64, 1], strides = [1, 1]} : vector<64x3xf32> to vector<64x1xf32>
    %4 = vector.extract_strided_slice %1 {offsets = [0, 0], sizes = [1, 1024], strides = [1, 1]} : vector<3x1024xf32> to vector<1x1024xf32>
    %5 = vector.broadcast %3 : vector<64x1xf32> to vector<64x1024xf32>
    %6 = vector.broadcast %4 : vector<1x1024xf32> to vector<64x1024xf32>
    %7 = arith.mulf %5, %6 : vector<64x1024xf32>
    %8 = vector.extract_strided_slice %2 {offsets = [0, 1], sizes = [64, 1], strides = [1, 1]} : vector<64x3xf32> to vector<64x1xf32>
    %9 = vector.extract_strided_slice %1 {offsets = [1, 0], sizes = [1, 1024], strides = [1, 1]} : vector<3x1024xf32> to vector<1x1024xf32>
    %10 = vector.broadcast %8 : vector<64x1xf32> to vector<64x1024xf32>
    %11 = vector.broadcast %9 : vector<1x1024xf32> to vector<64x1024xf32>
    %12 = arith.mulf %10, %11 : vector<64x1024xf32>
    %13 = arith.addf %7, %12 : vector<64x1024xf32>
    %14 = vector.extract_strided_slice %2 {offsets = [0, 2], sizes = [64, 1], strides = [1, 1]} : vector<64x3xf32> to vector<64x1xf32>
    %15 = vector.extract_strided_slice %1 {offsets = [2, 0], sizes = [1, 1024], strides = [1, 1]} : vector<3x1024xf32> to vector<1x1024xf32>
    %16 = vector.broadcast %14 : vector<64x1xf32> to vector<64x1024xf32>
    %17 = vector.broadcast %15 : vector<1x1024xf32> to vector<64x1024xf32>
    %18 = arith.mulf %16, %17 : vector<64x1024xf32>
    %19 = arith.addf %13, %18 : vector<64x1024xf32>
    %20 = tpu.transpose %19, [1, 0] : vector<64x1024xf32> -> vector<1024x64xf32>
    %c0_4 = arith.constant 0 : index
    %c0_5 = arith.constant 0 : index
    %21 = vector.load %arg5[%c0_4, %c0_5] : memref<1x64xf32, #tpu.memory_space<vmem>>, vector<1x64xf32>
    %22 = vector.broadcast %21 : vector<1x64xf32> to vector<1024x64xf32>
    %23 = arith.addf %20, %22 : vector<1024x64xf32>
    %cst = arith.constant 0.000000e+00 : f32
    %24 = vector.broadcast %cst : f32 to vector<1024x64xf32>
    %25 = arith.maximumf %23, %24 : vector<1024x64xf32>
    %26 = arith.truncf %25 : vector<1024x64xf32> to vector<1024x64xbf16>
    %c0_6 = arith.constant 0 : index
    %c0_7 = arith.constant 0 : index
    %27 = vector.load %arg6[%c0_6, %c0_7] : memref<64x128xbf16, #tpu.memory_space<vmem>>, vector<64x128xbf16>
    %cst_8 = arith.constant dense<0.000000e+00> : vector<1024x128xf32>
    %28 = tpu.matmul %26, %27, %cst_8 {dimension_numbers = #tpu.dot_dimension_numbers<[1], [0], [0], [1], [0, 0, 1, 1], [], []>} : vector<1024x64xbf16>, vector<64x128xbf16>, vector<1024x128xf32> -> vector<1024x128xf32>
    %c0_9 = arith.constant 0 : index
    %c0_10 = arith.constant 0 : index
    %29 = vector.load %arg7[%c0_9, %c0_10] : memref<1x128xf32, #tpu.memory_space<vmem>>, vector<1x128xf32>
    %30 = vector.broadcast %29 : vector<1x128xf32> to vector<1024x128xf32>
    %31 = arith.addf %28, %30 : vector<1024x128xf32>
    %cst_11 = arith.constant 0.000000e+00 : f32
    %32 = vector.broadcast %cst_11 : f32 to vector<1024x128xf32>
    %33 = arith.maximumf %31, %32 : vector<1024x128xf32>
    %34 = arith.truncf %33 : vector<1024x128xf32> to vector<1024x128xbf16>
    %c0_12 = arith.constant 0 : index
    %c0_13 = arith.constant 0 : index
    %35 = vector.load %arg11[%c0_12, %c0_13] : memref<1024x128xbf16, #tpu.memory_space<vmem>>, vector<1024x128xbf16>
    tpu.vector_store %arg11[%c0_12, %c0_13], %34 {strides = array<i32>} : memref<1024x128xbf16, #tpu.memory_space<vmem>>, vector<1024x128xbf16>,
    %c0_14 = arith.constant 0 : index
    %c0_15 = arith.constant 0 : index
    %36 = vector.load %arg8[%c0_14, %c0_15] : memref<128x1024xbf16, #tpu.memory_space<vmem>>, vector<128x1024xbf16>
    %c0_16 = arith.constant 0 : index
    %c0_17 = arith.constant 0 : index
    %37 = vector.load %arg9[%c0_16, %c0_17] : memref<1x1024xf32, #tpu.memory_space<vmem>>, vector<1x1024xf32>
    %cst_18 = arith.constant 0xFF800000 : f32
    %38 = vector.broadcast %cst_18 : f32 to vector<1x1024xf32>
    %c0_i32 = arith.constant 0 : i32
    %c4_i32 = arith.constant 4 : i32
    %39 = arith.addi %c0_i32, %c4_i32 : i32
    %c1_i32 = arith.constant 1 : i32
    %40 = scf.for %arg12 = %c0_i32 to %39 step %c1_i32 iter_args(%arg13 = %38) -> (vector<1x1024xf32>)  : i32 {
      %c256_i32 = arith.constant 256 : i32
      %47 = arith.muli %arg12, %c256_i32 : i32
      %48 = tpu.assume_multiple %47, 256 : i32
      %49 = arith.index_cast %48 : i32 to index
      %c0_24 = arith.constant 0 : index
      %50 = vector.load %arg11[%49, %c0_24] : memref<1024x128xbf16, #tpu.memory_space<vmem>>, vector<256x128xbf16>
      %cst_25 = arith.constant dense<0.000000e+00> : vector<256x1024xf32>
      %51 = tpu.matmul %50, %36, %cst_25 {dimension_numbers = #tpu.dot_dimension_numbers<[1], [0], [0], [1], [0, 0, 1, 1], [], []>} : vector<256x128xbf16>, vector<128x1024xbf16>, vector<256x1024xf32> -> vector<256x1024xf32>
      %52 = vector.broadcast %37 : vector<1x1024xf32> to vector<256x1024xf32>
      %53 = arith.addf %51, %52 : vector<256x1024xf32>
      %cst_26 = arith.constant dense<0xFF800000> : vector<1024xf32>
      %54 = vector.multi_reduction <maximumf>, %53, %cst_26 [0] : vector<256x1024xf32> to vector<1024xf32>
      %55 = vector.shape_cast %54 : vector<1024xf32> to vector<1x1024xf32>
      %56 = arith.maximumf %arg13, %55 : vector<1x1024xf32>
      scf.yield %56 : vector<1x1024xf32>
    }
    %c4_i32_19 = arith.constant 4 : i32
    %c0_i32_20 = arith.constant 0 : i32
    %41 = arith.cmpi eq, %arg2, %c0_i32_20 : i32
    %42 = arith.extui %41 : i1 to i32
    %c0_i32_21 = arith.constant 0 : i32
    %43 = arith.cmpi ne, %42, %c0_i32_21 : i32
    scf.if %43 {
      %c0_24 = arith.constant 0 : index
      %c0_25 = arith.constant 0 : index
      %c0_26 = arith.constant 0 : index
      %47 = vector.load %arg10[%c0_24, %c0_25, %c0_26] : memref<1x1x1024xf32, #tpu.memory_space<vmem>>, vector<1x1x1024xf32>
      %48 = vector.shape_cast %47 : vector<1x1x1024xf32> to vector<1x1024xf32>
      %49 = vector.shape_cast %40 : vector<1x1024xf32> to vector<1x1x1024xf32>
      tpu.vector_store %arg10[%c0_24, %c0_25, %c0_26], %49 {strides = array<i32>} : memref<1x1x1024xf32, #tpu.memory_space<vmem>>, vector<1x1x1024xf32>,
    } else {
    }
    %c0_i32_22 = arith.constant 0 : i32
    %44 = arith.cmpi sgt, %arg2, %c0_i32_22 : i32
    %45 = arith.extui %44 : i1 to i32
    %c0_i32_23 = arith.constant 0 : i32
    %46 = arith.cmpi ne, %45, %c0_i32_23 : i32
    scf.if %46 {
      %c0_24 = arith.constant 0 : index
      %c0_25 = arith.constant 0 : index
      %c0_26 = arith.constant 0 : index
      %47 = vector.load %arg10[%c0_24, %c0_25, %c0_26] : memref<1x1x1024xf32, #tpu.memory_space<vmem>>, vector<1x1x1024xf32>
      %48 = vector.shape_cast %47 : vector<1x1x1024xf32> to vector<1x1024xf32>
      %49 = arith.maximumf %48, %40 : vector<1x1024xf32>
      %c0_27 = arith.constant 0 : index
      %c0_28 = arith.constant 0 : index
      %c0_29 = arith.constant 0 : index
      %50 = vector.load %arg10[%c0_27, %c0_28, %c0_29] : memref<1x1x1024xf32, #tpu.memory_space<vmem>>, vector<1x1x1024xf32>
      %51 = vector.shape_cast %50 : vector<1x1x1024xf32> to vector<1x1024xf32>
      %52 = vector.shape_cast %49 : vector<1x1024xf32> to vector<1x1x1024xf32>
      tpu.vector_store %arg10[%c0_27, %c0_28, %c0_29], %52 {strides = array<i32>} : memref<1x1x1024xf32, #tpu.memory_space<vmem>>, vector<1x1x1024xf32>,
    } else {
    }
    return
  }
  func.func @transform_0(%arg0: i32, %arg1: i32, %arg2: i32) -> (i32, i32, i32) {
    %c1_i32 = arith.constant 1 : i32
    %0 = arith.muli %arg1, %c1_i32 : i32
    %1 = arith.addi %0, %arg2 : i32
    %c0_i32 = arith.constant 0 : i32
    %c0_i32_0 = arith.constant 0 : i32
    return %arg0, %c0_i32, %1 : i32, i32, i32
  }
  func.func @transform_1(%arg0: i32, %arg1: i32, %arg2: i32) -> (i32, i32) {
    %c0_i32 = arith.constant 0 : i32
    %c0_i32_0 = arith.constant 0 : i32
    %c0_i32_1 = arith.constant 0 : i32
    return %c0_i32, %c0_i32_0 : i32, i32
  }
  func.func @transform_2(%arg0: i32, %arg1: i32, %arg2: i32) -> (i32, i32) {
    %c0_i32 = arith.constant 0 : i32
    %c0_i32_0 = arith.constant 0 : i32
    %c0_i32_1 = arith.constant 0 : i32
    return %c0_i32, %c0_i32_0 : i32, i32
  }
  func.func @transform_3(%arg0: i32, %arg1: i32, %arg2: i32) -> (i32, i32) {
    %c0_i32 = arith.constant 0 : i32
    %c0_i32_0 = arith.constant 0 : i32
    %c0_i32_1 = arith.constant 0 : i32
    return %c0_i32, %c0_i32_0 : i32, i32
  }
  func.func @transform_4(%arg0: i32, %arg1: i32, %arg2: i32) -> (i32, i32) {
    %c0_i32 = arith.constant 0 : i32
    %c0_i32_0 = arith.constant 0 : i32
    %c0_i32_1 = arith.constant 0 : i32
    return %c0_i32, %c0_i32_0 : i32, i32
  }
  func.func @transform_5(%arg0: i32, %arg1: i32, %arg2: i32) -> (i32, i32) {
    %c0_i32 = arith.constant 0 : i32
    %c0_i32_0 = arith.constant 0 : i32
    %c0_i32_1 = arith.constant 0 : i32
    return %c0_i32, %c0_i32_0 : i32, i32
  }
  func.func @transform_6(%arg0: i32, %arg1: i32, %arg2: i32) -> (i32, i32) {
    %c0_i32 = arith.constant 0 : i32
    %c0_i32_0 = arith.constant 0 : i32
    %c0_i32_1 = arith.constant 0 : i32
    return %c0_i32, %c0_i32_0 : i32, i32
  }
  func.func @transform_7(%arg0: i32, %arg1: i32, %arg2: i32) -> (i32, i32, i32) {
    %c1_i32 = arith.constant 1 : i32
    %0 = arith.muli %arg0, %c1_i32 : i32
    %1 = arith.addi %0, %arg1 : i32
    %c0_i32 = arith.constant 0 : i32
    %c0_i32_0 = arith.constant 0 : i32
    %c0_i32_1 = arith.constant 0 : i32
    return %1, %c0_i32, %c0_i32_0 : i32, i32, i32
  }
}

module attributes {stable_mosaic.version = 11 : i64} {
  func.func @head_kernel(%arg0: memref<2x1024xf32, #tpu.memory_space<vmem>>, %arg1: memref<1024x512xbf16, #tpu.memory_space<vmem>>, %arg2: memref<1x512xf32, #tpu.memory_space<vmem>>, %arg3: memref<512x256xbf16, #tpu.memory_space<vmem>>, %arg4: memref<1x256xf32, #tpu.memory_space<vmem>>, %arg5: memref<256x128xbf16, #tpu.memory_space<vmem>>, %arg6: memref<1x128xf32, #tpu.memory_space<vmem>>, %arg7: memref<2x128xf32, #tpu.memory_space<vmem>>) attributes {dimension_semantics = [], scalar_prefetch = 0 : i64, scratch_operands = 0 : i64, tpu.core_type = #tpu.core_type<tc>} {
    %c0 = arith.constant 0 : index
    %c0_0 = arith.constant 0 : index
    %0 = vector.load %arg0[%c0, %c0_0] : memref<2x1024xf32, #tpu.memory_space<vmem>>, vector<2x1024xf32>
    %1 = arith.truncf %0 : vector<2x1024xf32> to vector<2x1024xbf16>
    %c0_1 = arith.constant 0 : index
    %c0_2 = arith.constant 0 : index
    %2 = vector.load %arg1[%c0_1, %c0_2] : memref<1024x512xbf16, #tpu.memory_space<vmem>>, vector<1024x512xbf16>
    %cst = arith.constant dense<0.000000e+00> : vector<2x512xf32>
    %3 = tpu.matmul %1, %2, %cst {dimension_numbers = #tpu.dot_dimension_numbers<[1], [0], [0], [1], [0, 0, 1, 1], [], []>} : vector<2x1024xbf16>, vector<1024x512xbf16>, vector<2x512xf32> -> vector<2x512xf32>
    %c0_3 = arith.constant 0 : index
    %c0_4 = arith.constant 0 : index
    %4 = vector.load %arg2[%c0_3, %c0_4] : memref<1x512xf32, #tpu.memory_space<vmem>>, vector<1x512xf32>
    %5 = vector.broadcast %4 : vector<1x512xf32> to vector<2x512xf32>
    %6 = arith.addf %3, %5 : vector<2x512xf32>
    %cst_5 = arith.constant 0.000000e+00 : f32
    %7 = vector.broadcast %cst_5 : f32 to vector<2x512xf32>
    %8 = arith.maximumf %6, %7 : vector<2x512xf32>
    %9 = arith.truncf %8 : vector<2x512xf32> to vector<2x512xbf16>
    %c0_6 = arith.constant 0 : index
    %c0_7 = arith.constant 0 : index
    %10 = vector.load %arg3[%c0_6, %c0_7] : memref<512x256xbf16, #tpu.memory_space<vmem>>, vector<512x256xbf16>
    %cst_8 = arith.constant dense<0.000000e+00> : vector<2x256xf32>
    %11 = tpu.matmul %9, %10, %cst_8 {dimension_numbers = #tpu.dot_dimension_numbers<[1], [0], [0], [1], [0, 0, 1, 1], [], []>} : vector<2x512xbf16>, vector<512x256xbf16>, vector<2x256xf32> -> vector<2x256xf32>
    %c0_9 = arith.constant 0 : index
    %c0_10 = arith.constant 0 : index
    %12 = vector.load %arg4[%c0_9, %c0_10] : memref<1x256xf32, #tpu.memory_space<vmem>>, vector<1x256xf32>
    %13 = vector.broadcast %12 : vector<1x256xf32> to vector<2x256xf32>
    %14 = arith.addf %11, %13 : vector<2x256xf32>
    %cst_11 = arith.constant 0.000000e+00 : f32
    %15 = vector.broadcast %cst_11 : f32 to vector<2x256xf32>
    %16 = arith.maximumf %14, %15 : vector<2x256xf32>
    %17 = arith.truncf %16 : vector<2x256xf32> to vector<2x256xbf16>
    %c0_12 = arith.constant 0 : index
    %c0_13 = arith.constant 0 : index
    %18 = vector.load %arg5[%c0_12, %c0_13] : memref<256x128xbf16, #tpu.memory_space<vmem>>, vector<256x128xbf16>
    %cst_14 = arith.constant dense<0.000000e+00> : vector<2x128xf32>
    %19 = tpu.matmul %17, %18, %cst_14 {dimension_numbers = #tpu.dot_dimension_numbers<[1], [0], [0], [1], [0, 0, 1, 1], [], []>} : vector<2x256xbf16>, vector<256x128xbf16>, vector<2x128xf32> -> vector<2x128xf32>
    %c0_15 = arith.constant 0 : index
    %c0_16 = arith.constant 0 : index
    %20 = vector.load %arg6[%c0_15, %c0_16] : memref<1x128xf32, #tpu.memory_space<vmem>>, vector<1x128xf32>
    %21 = vector.broadcast %20 : vector<1x128xf32> to vector<2x128xf32>
    %22 = arith.addf %19, %21 : vector<2x128xf32>
    %c0_17 = arith.constant 0 : index
    %c0_18 = arith.constant 0 : index
    %23 = vector.load %arg7[%c0_17, %c0_18] : memref<2x128xf32, #tpu.memory_space<vmem>>, vector<2x128xf32>
    tpu.vector_store %arg7[%c0_17, %c0_18], %22 {strides = array<i32>} : memref<2x128xf32, #tpu.memory_space<vmem>>, vector<2x128xf32>,
    return
  }
}

</mosaic_0001>

<llo_original>
// kernel: custom-call.57
$region0: #{custom-call.57}
  %s0 = inlined_call_operand.vmem [shape: f32[2,6,3], index: 0, kind: input, shape index: {}]
  %s1 = inlined_call_operand.vmem [shape: f32[2,6,3], index: 1, kind: output, shape index: {0}]
  %s2 = inlined_call_operand.vmem [shape: f32[2,3], index: 2, kind: output, shape index: {1}]
  %3 = xla_tuple %s1, %s2
  $region1: #{custom-call.57} parent=0
    #allocation0 [shape = 'u8[8192]{0}', space=vmem, size = 0x2000, scoped, tag = 'operand span for operand 0']
    #allocation1 [shape = 'u8[8192]{0}', space=vmem, size = 0x2000, scoped, tag = 'operand span for operand 1']
    #allocation2 [shape = 'u8[4096]{0}', space=vmem, size = 0x1000, scoped, tag = 'operand span for operand 2']
    #allocation3 [shape = 'u8[2048]{0}', space=vmem, size = 0x800, scoped, tag = 'packed  for operand 2']
    loop: start=0, step=1, limit=4
    $region2: #{custom-call.57} parent=1 // loop_pre_header
      _
    $region3: #{custom-call.57} parent=1 // loop_header
      %s5 = sphi 0, %s9
      %p6 = scmp.ge.s32.totalorder %s5, 4
      %s12 = sphi 0, %s31
      %s13 = sphi 0, %s27
      %s14 = sphi 0, %s23
      %s15 = sphi 0, %s12
      %s16 = sphi 0, %s13
      %s17 = sphi 0, %s14
      %s18 = sphi 0, %s15
      %s19 = sphi 0, %s16
      %s20 = sphi 0, %s17
      %s46 = sphi 0, %s48
      %s49 = sphi 0, %s46
      %s50 = sphi 0, %s49
      %s66 = sphi 0, %s50
    $region4: #{custom-call.57} parent=1 // loop_header_branch
      %8 = sbr.rel (%p6) target = $region8
    $region5: #{custom-call.57} parent=1 // loop_body
      %s10 = ssub.s32 %s5, 1
      %s11 = ssub.s32 %s5, 2
      %s21 = sadd.s32 1, %s14
      %p22 = scmp.ge.s32.totalorder %s21, 1
      %s23 = scalar_select %p22, 0, %s21
      %s24 = sadd.s32 1, %s13
      %s25 = scalar_select %p22, %s24, %s13
      %p26 = scmp.ge.s32.totalorder %s25, 1
      %s27 = scalar_select %p26, 0, %s25
      %s28 = sadd.s32 1, %s12
      %s29 = scalar_select %p26, %s28, %s12
      %p30 = scmp.ge.s32.totalorder %s29, 2
      %s31 = scalar_select %p30, 0, %s29
      %p32 = scmp.lt.s32.totalorder %s12, 0
      %s33 = ssub.s32 0, %s12
      %s34 = scalar_select %p32, %s33, %s12
      %s35 = sshrl.u32 %s34, 3
      %s36 = ssub.s32 0, %s35
      %s37 = scalar_select %p32, %s36, %s35
      %p38 = scmp.lt.s32.totalorder %s31, 0
      %s39 = ssub.s32 0, %s31
      %s40 = scalar_select %p38, %s39, %s31
      %s41 = sshrl.u32 %s40, 3
      %s42 = ssub.s32 0, %s41
      %s43 = scalar_select %p38, %s42, %s41
      %s44 = ssub.s32 %s37, %s43
      %p45 = scmp.eq.s32.totalorder %s44, 0
      %s47 = sadd.s32 %s46, 1
      %s48 = scalar_select %p45, %s46, %s47
      %p51 = pneg %p45
      %p52 = scmp.eq.s32.totalorder %s5, 1
      %p53 = por %p51, %p52
      %p54 = scmp.ne.s32.totalorder %s46, %s49
      %p55 = scmp.eq.s32.totalorder %s5, 0
      %p56 = por %p54, %p55
      %p57 = scmp.ne.s32.totalorder %s46, %s49
      %p58 = scmp.eq.s32.totalorder %s10, 1
      %p59 = por %p57, %p58
      %p60 = scmp.ne.s32.totalorder %s49, %s50
      %p61 = scmp.eq.s32.totalorder %s10, 0
      %p62 = por %p60, %p61
      %p63 = scmp.ne.s32.totalorder %s49, %s50
      %p64 = scmp.eq.s32.totalorder %s11, 1
      %p65 = por %p63, %p64
      %p67 = scmp.ne.s32.totalorder %s50, %s66
      %p68 = scmp.eq.s32.totalorder %s11, 0
      %p69 = por %p67, %p68
      %p70 = scmp.le.s32.totalorder 1, %s5
      %p71 = scmp.lt.s32.totalorder %s5, 3
      %p72 = pnand %p70, %p71
      %p73 = pneg %p72
      // Predicated region
      $region9: #{custom-call.57} parent=5 // pred_check
        _
      $region10: #{custom-call.57} parent=5 // pred_check_branch
        %75 = sbr.rel (%p72) target = $region12
      $region11: #{custom-call.57} parent=5 // pred_region
        %s76 = ssub.s32 %s5, 1
      $region12: #{custom-call.57} parent=5 // pred_fallthru
        _
      %p77 = scmp.lt.s32.totalorder %s5, 2
      // Predicated region
      $region13: #{custom-call.57} parent=5 // pred_check
        %p78 = pneg %p77
      $region14: #{custom-call.57} parent=5 // pred_check_branch
        %80 = sbr.rel (%p78) target = $region16
      $region15: #{custom-call.57} parent=5 // pred_region
        %s81 = sand.u32 %s5, 1
        %s82 = sand.u32 %s5, 1
        %s83 = smul.addr %s82, 8
        %s84 = scalar_lea.vmem [#allocation0], %s83
        %s85 = sadd.s32 %s14, %s13
        %s86 = sadd.s32 %s85, %s12
        %s87 = smul.addr %s86, 8
        %s88 = scalar_lea.vmem %s0, %s87
        // Predicated region
        $region17: #{custom-call.57} parent=15 // pred_check
          _
        $region18: #{custom-call.57} parent=15 // pred_check_branch
          %90 = sbr.rel (0) target = $region20
        $region19: #{custom-call.57} parent=15 // pred_region
          // Predicated region
          $region21: #{custom-call.57} parent=19 // pred_check
            _
          $region22: #{custom-call.57} parent=19 // pred_check_branch
            %92 = sbr.rel (0) target = $region24
          $region23: #{custom-call.57} parent=19 // pred_region
            // Predicated region
            $region36: #{custom-call.57} parent=23 // pred_check
              _
            $region37: #{custom-call.57} parent=23 // pred_check_branch
              %108 = sbr.rel (0) target = $region39
            $region38: #{custom-call.57} parent=23 // pred_region
              loop: start=0, step=1, limit=1
              $region40: #{custom-call.57} parent=38 // loop_pre_header
                _
              $region41: #{custom-call.57} parent=38 // loop_header
                %s110 = sphi 0, %s114
                %p111 = scmp.ge.s32.totalorder %s110, 1
                %s115 = sphi %s88, %s88
                %s116 = sphi %s84, %s84
              $region42: #{custom-call.57} parent=38 // loop_header_branch
                %113 = sbr.rel (%p111) target = $region46
              $region43: #{custom-call.57} parent=38 // loop_body
                %v117 = vld [vmem:[%s115] sm:$0xff]
                %118 = vst [vmem:[%s116] sm:$0xff] %v117
              $region44: #{custom-call.57} parent=38 // loop_footer
                %s114 = sadd.s32 1, %s110
              $region45: #{custom-call.57} parent=38 // loop_footer_branch
                %109 = sbr.rel target = $region41
              $region46: #{custom-call.57} parent=38 // loop_exit
                _
            $region39: #{custom-call.57} parent=23 // pred_fallthru
              _
            // Predicated region
            $region47: #{custom-call.57} parent=23 // pred_check
              _
            $region48: #{custom-call.57} parent=23 // pred_check_branch
              %120 = sbr.rel target = $region50
            $region49: #{custom-call.57} parent=23 // pred_region
              _
            $region50: #{custom-call.57} parent=23 // pred_fallthru
              _
          $region24: #{custom-call.57} parent=19 // pred_fallthru
            _
          // Predicated region
          $region25: #{custom-call.57} parent=19 // pred_check
            _
          $region26: #{custom-call.57} parent=19 // pred_check_branch
            %94 = sbr.rel target = $region28
          $region27: #{custom-call.57} parent=19 // pred_region
            %s96 = ssub.s32 256, 1
            loop: start=0, step=1, limit=1
            $region29: #{custom-call.57} parent=27 // loop_pre_header
              _
            $region30: #{custom-call.57} parent=27 // loop_header
              %s98 = sphi 0, %s102
              %p99 = scmp.ge.s32.totalorder %s98, 1
              %s103 = sphi %s88, %s88
              %s104 = sphi %s84, %s84
            $region31: #{custom-call.57} parent=27 // loop_header_branch
              %101 = sbr.rel (%p99) target = $region35
            $region32: #{custom-call.57} parent=27 // loop_body
              %v105 = vld [vmem:[%s103] sm:%s96]
              %106 = vst [vmem:[%s104] sm:%s96] %v105
            $region33: #{custom-call.57} parent=27 // loop_footer
              %s102 = sadd.s32 1, %s98
            $region34: #{custom-call.57} parent=27 // loop_footer_branch
              %97 = sbr.rel target = $region30
            $region35: #{custom-call.57} parent=27 // loop_exit
              _
          $region28: #{custom-call.57} parent=19 // pred_fallthru
            _
        $region20: #{custom-call.57} parent=15 // pred_fallthru
          _
        %121 = vnop
      $region16: #{custom-call.57} parent=5 // pred_fallthru
        _
      %p122 = scmp.le.s32.totalorder 1, %s5
      %p123 = scmp.lt.s32.totalorder %s5, 3
      %p124 = pnand %p122, %p123
      %p125 = pneg %p124
      // Predicated region
      $region51: #{custom-call.57} parent=5 // pred_check
        _
      $region52: #{custom-call.57} parent=5 // pred_check_branch
        %127 = sbr.rel (%p124) target = $region54
      $region53: #{custom-call.57} parent=5 // pred_region
        #allocation4 [shape = 'f32[6,128]{1,0}', space=vmem, size = 0x1000, scoped, tag = 'scratch for Householder reflectors']
        %s128 = ssub.s32 %s5, 1
        %s129 = sand.u32 %s10, 1
        %s130 = sand.u32 %s10, 1
        %s131 = smul.addr %s130, 8
        %s132 = scalar_lea.vmem [#allocation0], %s131
        %s133 = sand.u32 %s10, 1
        %s134 = sand.u32 %s10, 1
        %s135 = smul.addr %s134, 8
        %s136 = scalar_lea.vmem [#allocation0], %s135
        %s137 = sand.u32 %s10, 1
        %s138 = sand.u32 %s10, 1
        %s139 = smul.addr %s138, 8
        %s140 = scalar_lea.vmem [#allocation1], %s139
        %p141 = pneg %p62
        %p142 = pneg %p59
        %s143 = sand.u32 %s49, 1
        %s144 = sand.u32 %s49, 1
        %s145 = smul.addr %s144, 2
        %s146 = scalar_lea.vmem [#allocation3], %s145
        %p147 = scmp.lt.s32.totalorder %s15, 0
        %s148 = ssub.s32 0, %s15
        %s149 = scalar_select %p147, %s148, %s15
        %s150 = sshrl.u32 %s149, 3
        %s151 = ssub.s32 0, %s150
        %s152 = scalar_select %p147, %s151, %s150
        %s153 = sand.u32 %s15, 7
        %s154 = scalar_lea.vmem [#allocation2], %s153
        %v155 = vld [vmem:[%s132] sm:$0xff]
        %156 = vst [vmem:[%s140] sm:$0xff] %v155
        %157 = vst [vmem:[%s154] sm:$0x1] 0.0
        loop: start=0, step=1, limit=3
        $region55: #{custom-call.57} parent=53 // loop_pre_header
          _
        $region56: #{custom-call.57} parent=53 // loop_header
          %s159 = sphi 0, %s163
          %p160 = scmp.ge.s32.totalorder %s159, 3
        $region57: #{custom-call.57} parent=53 // loop_header_branch
          %162 = sbr.rel (%p160) target = $region61
        $region58: #{custom-call.57} parent=53 // loop_body
          %v164 = vld [vmem:[%s140] sm:$0xff]
          %v165 = vlaneseq
          %v166 = vshrl.u32 %v165, 7
          %v168 = vstv %s159
          %vm169 = vcmp.gt.s32.totalorder %v166, %v168
          %vm170 = vcmp.lt.s32.totalorder %v166, 6
          %vm171 = vmand %vm169, %vm170
          %v172 = vsel %vm171, %v164, 0.0
          %v173 = vmul.f32 %v172, %v172
          %v174 = vrot.slane %v173, 4
          %v175 = vadd.f32 %v173, %v174
          %v176 = vrot.slane %v175, 2
          %v177 = vadd.f32 %v175, %v176
          %v178 = vrot.slane %v177, 1
          %v179 = vadd.f32 %v177, %v178
          %v180 = vrsqrt.pop %v179
          %v181 = vmul.f32 %v180, %v179
          %v182 = vmul.f32 %v181, %v180
          %v183 = vmul.f32 0.5, %v182
          %v184 = vsub.f32 1.5, %v183
          %v185 = vmul.f32 %v180, %v184
          %v186 = vmul.f32 %v179, %v185
          %vm187 = vcmp.eq.f32.partialorder %v179, inf
          %v188 = vsel %vm187, %v179, %v186
          %vm189 = vcmp.eq.f32.partialorder %v179, 0.0
          %v190 = vand.u32 %v179, 2147483648
          %v191 = vsel %vm189, %v190, %v188
          %vm192 = vcmp.eq.f32.partialorder %v179, 0.0
          %s193 = sshrl.u32 %s159, 3
          %s194 = sand.u32 %s159, 7
          %s195 = smul.addr %s193, 8
          %s196 = sadd.s32 %s194, %s195
          %s197 = scalar_lea.vmem %s140, %s196 [#allocation1]
          %v198 = vld [vmem:[%s197] ss:$0 sm:$0xff]
          %v199 = vand.u32 2147483647, %v198
          %v200 = vmax.f32 %v199, 0.0
          %v201 = vand.u32 2147483647, %v191
          %v202 = vmax.f32 %v200, %v201
          %v203 = vrcp.pop %v202
          %v204 = vmul.f32 %v202, %v203
          %v205 = vsub.f32 1.0, %v204
          %v206 = vmul.f32 %v203, %v205
          %v207 = vadd.f32 %v203, %v206
          %vm208 = vweird.f32 %v202
          %vm209 = vweird.f32 %v203
          %vm210 = vmor %vm208, %vm209
          %v211 = vsel %vm210, %v203, %v207
          %v212 = vand.u32 2147483647, %v202
          %vm213 = vcmp.eq.f32.partialorder %v212, 8.507059e+37
          %v214 = vand.u32 %v202, 2147483648
          %v215 = vor.u32 1.1754944e-38, %v214
          %v216 = vsel %vm213, %v215, %v211
          %v217 = vmul.f32 %v199, %v216
          %v218 = vmul.f32 %v217, %v217
          %v219 = vrcp.pop %v202
          %v220 = vmul.f32 %v202, %v219
          %v221 = vsub.f32 1.0, %v220
          %v222 = vmul.f32 %v219, %v221
          %v223 = vadd.f32 %v219, %v222
          %vm224 = vweird.f32 %v202
          %vm225 = vweird.f32 %v219
          %vm226 = vmor %vm224, %vm225
          %v227 = vsel %vm226, %v219, %v223
          %v228 = vand.u32 2147483647, %v202
          %vm229 = vcmp.eq.f32.partialorder %v228, 8.507059e+37
          %v230 = vand.u32 %v202, 2147483648
          %v231 = vor.u32 1.1754944e-38, %v230
          %v232 = vsel %vm229, %v231, %v227
          %v233 = vmul.f32 0.0, %v232
          %v234 = vmul.f32 %v233, %v233
          %v235 = vadd.f32 %v218, %v234
          %v236 = vrcp.pop %v202
          %v237 = vmul.f32 %v202, %v236
          %v238 = vsub.f32 1.0, %v237
          %v239 = vmul.f32 %v236, %v238
          %v240 = vadd.f32 %v236, %v239
          %vm241 = vweird.f32 %v202
          %vm242 = vweird.f32 %v236
          %vm243 = vmor %vm241, %vm242
          %v244 = vsel %vm243, %v236, %v240
          %v245 = vand.u32 2147483647, %v202
          %vm246 = vcmp.eq.f32.partialorder %v245, 8.507059e+37
          %v247 = vand.u32 %v202, 2147483648
          %v248 = vor.u32 1.1754944e-38, %v247
          %v249 = vsel %vm246, %v248, %v244
          %v250 = vmul.f32 %v201, %v249
          %v251 = vmul.f32 %v250, %v250
          %v252 = vadd.f32 %v235, %v251
          %vm253 = vcmp.eq.f32.partialorder %v202, 0.0
          %v254 = vrsqrt.pop %v252
          %v255 = vmul.f32 %v254, %v252
          %v256 = vmul.f32 %v255, %v254
          %v257 = vmul.f32 0.5, %v256
          %v258 = vsub.f32 1.5, %v257
          %v259 = vmul.f32 %v254, %v258
          %v260 = vmul.f32 %v252, %v259
          %vm261 = vcmp.eq.f32.partialorder %v252, inf
          %v262 = vsel %vm261, %v252, %v260
          %vm263 = vcmp.eq.f32.partialorder %v252, 0.0
          %v264 = vand.u32 %v252, 2147483648
          %v265 = vsel %vm263, %v264, %v262
          %v266 = vmul.f32 %v202, %v265
          %v267 = vsel %vm253, 0.0, %v266
          %vm268 = vcmp.lt.f32.partialorder %v198, 0.0
          %v269 = vxor.u32 %v267, 2147483648
          %v270 = vsel %vm268, %v267, %v269
          %v271 = vsub.f32 %v270, %v198
          %v272 = vrcp.pop %v270
          %v273 = vmul.f32 %v270, %v272
          %v274 = vsub.f32 1.0, %v273
          %v275 = vmul.f32 %v272, %v274
          %v276 = vadd.f32 %v272, %v275
          %vm277 = vweird.f32 %v270
          %vm278 = vweird.f32 %v272
          %vm279 = vmor %vm277, %vm278
          %v280 = vsel %vm279, %v272, %v276
          %v281 = vand.u32 2147483647, %v270
          %vm282 = vcmp.eq.f32.partialorder %v281, 8.507059e+37
          %v283 = vand.u32 %v270, 2147483648
          %v284 = vor.u32 1.1754944e-38, %v283
          %v285 = vsel %vm282, %v284, %v280
          %v286 = vmul.f32 %v271, %v285
          %v287 = vsel %vm192, %v198, %v270
          %v288 = vsel %vm192, 0.0, %v286
          %v289 = vsub.f32 %v198, %v287
          %s290 = smov %s140
          %v291 = vlaneseq
          %v292 = vshrl.u32 %v291, 7
          %v293 = vmov %v292
          %v294 = vld [vmem:[%s290] sm:$0xff]
          %v296 = vstv %s159
          %vm297 = vcmp.gt.s32.totalorder %v293, %v296
          %vm298 = vcmp.lt.s32.totalorder %v293, 6
          %vm299 = vmand %vm297, %vm298
          %v300 = vsel %vm299, %v294, 0.0
          %v301 = vrcp.pop %v289
          %v302 = vmul.f32 %v289, %v301
          %v303 = vsub.f32 1.0, %v302
          %v304 = vmul.f32 %v301, %v303
          %v305 = vadd.f32 %v301, %v304
          %vm306 = vweird.f32 %v289
          %vm307 = vweird.f32 %v301
          %vm308 = vmor %vm306, %vm307
          %v309 = vsel %vm308, %v301, %v305
          %v310 = vand.u32 2147483647, %v289
          %vm311 = vcmp.eq.f32.partialorder %v310, 8.507059e+37
          %v312 = vand.u32 %v289, 2147483648
          %v313 = vor.u32 1.1754944e-38, %v312
          %v314 = vsel %vm311, %v313, %v309
          %v315 = vmul.f32 %v300, %v314
          %v316 = vsel %vm192, 0.0, %v315
          %v317 = vstv %s159
          %v318 = vlaneseq
          %v319 = vand.u32 %v318, 127
          %vm320 = vcmp.eq.s32.totalorder %v319, %v317
          %v321 = vsel %vm320, %v316, 0.0
          %322 = vadd.xlane.f32.xlu0 %v321
          %v323 = vpop.xlane.xlu0 %322
          %324 = vst [vmem:[#allocation4] sm:$0xff] %v323
          %s325 = scalar_lea.vmem [#allocation4], %s159
          %326 = vst [vmem:[%s325] sm:$0x1] 1.0
          %v327 = vstv %s159
          %v328 = vlaneseq
          %v329 = vand.u32 %v328, 127
          %vm330 = vcmp.eq.s32.totalorder %v329, %v327
          %v331 = vsel %vm330, %v288, 0.0
          %332 = vadd.xlane.f32.xlu0 %v331
          %v333 = vpop.xlane.xlu0 %332
          %v334 = vstv %s159
          %v335 = vlaneseq
          %v336 = vand.u32 %v335, 127
          %vm337 = vcmp.eq.s32.totalorder %v336, %v334
          %v338 = vld [vmem:[%s154] ss:$0 sm:$0xff]
          %v339 = vsel %vm337, %v333, %v338
          %340 = vst [vmem:[%s154] sm:$0x1] %v339
          %s341 = smov %s140
          %s342 = smov [#allocation4]
          %v343 = vlaneseq
          %v344 = vshrl.u32 %v343, 7
          %v345 = vmov %v344
          %v347 = vld [vmem:[%s342] sm:$0xff]
          %v348 = vld [vmem:[%s341] sm:$0xff]
          %v349 = vmul.f32 %v347, %v348
          %vm350 = vcmp.lt.s32.totalorder %v345, 6
          %v351 = vsel %vm350, %v349, 0.0
          %v352 = vrot.slane %v351, 4
          %v353 = vadd.f32 %v351, %v352
          %v354 = vrot.slane %v353, 2
          %v355 = vadd.f32 %v353, %v354
          %v356 = vrot.slane %v355, 1
          %v357 = vadd.f32 %v355, %v356
          %s358 = smov %s341
          %s359 = smov %s342
          %v360 = vlaneseq
          %v361 = vshrl.u32 %v360, 7
          %v362 = vmov %v361
          %v363 = vmul.f32 %v357, %v333
          %v365 = vlaneseq
          %v366 = vand.u32 %v365, 127
          %v367 = vld [vmem:[%s359] sm:$0xff]
          %v368 = vmul.f32 %v367, %v363
          %v369 = vld [vmem:[%s358] sm:$0xff]
          %v370 = vstv %s159
          %vm371 = vcmp.gt.s32.totalorder %v366, %v370
          %v372 = vsub.f32 %v369, %v368
          %v373 = vsel %vm371, %v372, %v369
          %v374 = vstv %s159
          %v375 = vlaneseq
          %v376 = vand.u32 %v375, 127
          %vm377 = vcmp.eq.s32.totalorder %v376, %v374
          %v378 = vstv %s159
          %vm379 = vcmp.ge.s32.totalorder %v362, %v378
          %vm380 = vmand %vm377, %vm379
          %v381 = vsel %vm380, %v367, %v373
          %382 = vst [vmem:[%s358] sm:$0xff] %v381
          %s383 = scalar_lea.vmem %s358, %s159
          %v384 = vld [vmem:[%s383] ss:$0 sm:$0xff]
          %v385 = vstv %s159
          %v386 = vlaneseq
          %v387 = vand.u32 %v386, 127
          %vm388 = vcmp.eq.s32.totalorder %v387, %v385
          %v389 = vsel %vm388, %v287, %v384
          %390 = vst [vmem:[%s383] sm:$0x1] %v389
        $region59: #{custom-call.57} parent=53 // loop_footer
          %s163 = sadd.s32 1, %s159
        $region60: #{custom-call.57} parent=53 // loop_footer_branch
          %158 = sbr.rel target = $region56
        $region61: #{custom-call.57} parent=53 // loop_exit
          _
        %s392 = ssub.s32 4, 1
        %v393 = vld [vmem:[#allocation2] sm:%s392]
        %s395 = ssub.s32 4, 1
        %396 = vst [vmem:[%s146] sm:%s395] %v393
        %s397 = sand.u32 %s10, 1
        %s398 = sand.u32 %s10, 1
        %s399 = smul.addr %s398, 8
        %s400 = scalar_lea.vmem [#allocation1], %s399
        %s401 = sand.u32 %s49, 1
        %s402 = sand.u32 %s49, 1
        %s403 = smul.addr %s402, 2
        %s404 = scalar_lea.vmem [#allocation3], %s403
        %s405 = sadd.s32 %s17, %s16
        %s406 = sadd.s32 %s405, %s15
        %s407 = smul.addr %s406, 8
        %s408 = scalar_lea.vmem %s1, %s407
        // Predicated region
        $region62: #{custom-call.57} parent=53 // pred_check
          _
        $region63: #{custom-call.57} parent=53 // pred_check_branch
          %410 = sbr.rel (0) target = $region65
        $region64: #{custom-call.57} parent=53 // pred_region
          // Predicated region
          $region66: #{custom-call.57} parent=64 // pred_check
            _
          $region67: #{custom-call.57} parent=64 // pred_check_branch
            %412 = sbr.rel (0) target = $region69
          $region68: #{custom-call.57} parent=64 // pred_region
            // Predicated region
            $region81: #{custom-call.57} parent=68 // pred_check
              _
            $region82: #{custom-call.57} parent=68 // pred_check_branch
              %428 = sbr.rel (0) target = $region84
            $region83: #{custom-call.57} parent=68 // pred_region
              loop: start=0, step=1, limit=1
              $region85: #{custom-call.57} parent=83 // loop_pre_header
                _
              $region86: #{custom-call.57} parent=83 // loop_header
                %s430 = sphi 0, %s434
                %p431 = scmp.ge.s32.totalorder %s430, 1
                %s435 = sphi %s400, %s400
                %s436 = sphi %s408, %s408
              $region87: #{custom-call.57} parent=83 // loop_header_branch
                %433 = sbr.rel (%p431) target = $region91
              $region88: #{custom-call.57} parent=83 // loop_body
                %v437 = vld [vmem:[%s435] sm:$0xff]
                %438 = vst [vmem:[%s436] sm:$0xff] %v437
              $region89: #{custom-call.57} parent=83 // loop_footer
                %s434 = sadd.s32 1, %s430
              $region90: #{custom-call.57} parent=83 // loop_footer_branch
                %429 = sbr.rel target = $region86
              $region91: #{custom-call.57} parent=83 // loop_exit
                _
            $region84: #{custom-call.57} parent=68 // pred_fallthru
              _
            // Predicated region
            $region92: #{custom-call.57} parent=68 // pred_check
              _
            $region93: #{custom-call.57} parent=68 // pred_check_branch
              %440 = sbr.rel target = $region95
            $region94: #{custom-call.57} parent=68 // pred_region
              _
            $region95: #{custom-call.57} parent=68 // pred_fallthru
              _
          $region69: #{custom-call.57} parent=64 // pred_fallthru
            _
          // Predicated region
          $region70: #{custom-call.57} parent=64 // pred_check
            _
          $region71: #{custom-call.57} parent=64 // pred_check_branch
            %414 = sbr.rel target = $region73
          $region72: #{custom-call.57} parent=64 // pred_region
            %s416 = ssub.s32 256, 1
            loop: start=0, step=1, limit=1
            $region74: #{custom-call.57} parent=72 // loop_pre_header
              _
            $region75: #{custom-call.57} parent=72 // loop_header
              %s418 = sphi 0, %s422
              %p419 = scmp.ge.s32.totalorder %s418, 1
              %s423 = sphi %s400, %s400
              %s424 = sphi %s408, %s408
            $region76: #{custom-call.57} parent=72 // loop_header_branch
              %421 = sbr.rel (%p419) target = $region80
            $region77: #{custom-call.57} parent=72 // loop_body
              %v425 = vld [vmem:[%s423] sm:%s416]
              %426 = vst [vmem:[%s424] sm:%s416] %v425
            $region78: #{custom-call.57} parent=72 // loop_footer
              %s422 = sadd.s32 1, %s418
            $region79: #{custom-call.57} parent=72 // loop_footer_branch
              %417 = sbr.rel target = $region75
            $region80: #{custom-call.57} parent=72 // loop_exit
              _
          $region73: #{custom-call.57} parent=64 // pred_fallthru
            _
        $region65: #{custom-call.57} parent=53 // pred_fallthru
          _
        %441 = vnop
        // Predicated region
        $region96: #{custom-call.57} parent=53 // pred_check
          %p442 = pneg %p59
        $region97: #{custom-call.57} parent=53 // pred_check_branch
          %444 = sbr.rel (%p442) target = $region99
        $region98: #{custom-call.57} parent=53 // pred_region
          %p445 = scmp.lt.s32.totalorder %s15, 0
          %s446 = ssub.s32 0, %s15
          %s447 = scalar_select %p445, %s446, %s15
          %s448 = sshrl.u32 %s447, 3
          %s449 = ssub.s32 0, %s448
          %s450 = scalar_select %p445, %s449, %s448
          %s451 = smul.addr %s450, 2
          %s452 = scalar_lea.vmem %s2, %s451
          // Predicated region
          $region100: #{custom-call.57} parent=98 // pred_check
            _
          $region101: #{custom-call.57} parent=98 // pred_check_branch
            %454 = sbr.rel (0) target = $region103
          $region102: #{custom-call.57} parent=98 // pred_region
            // Predicated region
            $region104: #{custom-call.57} parent=102 // pred_check
              _
            $region105: #{custom-call.57} parent=102 // pred_check_branch
              %456 = sbr.rel target = $region107
            $region106: #{custom-call.57} parent=102 // pred_region
              // Predicated region
              $region119: #{custom-call.57} parent=106 // pred_check
                _
              $region120: #{custom-call.57} parent=106 // pred_check_branch
                %472 = sbr.rel (0) target = $region122
              $region121: #{custom-call.57} parent=106 // pred_region
                %s474 = ssub.s32 4, 1
                loop: start=0, step=1, limit=1
                $region123: #{custom-call.57} parent=121 // loop_pre_header
                  _
                $region124: #{custom-call.57} parent=121 // loop_header
                  %s476 = sphi 0, %s480
                  %p477 = scmp.ge.s32.totalorder %s476, 1
                  %s481 = sphi %s404, %s404
                  %s482 = sphi %s452, %s452
                $region125: #{custom-call.57} parent=121 // loop_header_branch
                  %479 = sbr.rel (%p477) target = $region129
                $region126: #{custom-call.57} parent=121 // loop_body
                  %v483 = vld [vmem:[%s481] sm:%s474]
                  %484 = vst [vmem:[%s482] sm:%s474] %v483
                $region127: #{custom-call.57} parent=121 // loop_footer
                  %s480 = sadd.s32 1, %s476
                $region128: #{custom-call.57} parent=121 // loop_footer_branch
                  %475 = sbr.rel target = $region124
                $region129: #{custom-call.57} parent=121 // loop_exit
                  _
              $region122: #{custom-call.57} parent=106 // pred_fallthru
                _
            $region107: #{custom-call.57} parent=102 // pred_fallthru
              _
            // Predicated region
            $region108: #{custom-call.57} parent=102 // pred_check
              _
            $region109: #{custom-call.57} parent=102 // pred_check_branch
              %458 = sbr.rel (0) target = $region111
            $region110: #{custom-call.57} parent=102 // pred_region
              %s460 = ssub.s32 4, 1
              loop: start=0, step=1, limit=1
              $region112: #{custom-call.57} parent=110 // loop_pre_header
                _
              $region113: #{custom-call.57} parent=110 // loop_header
                %s462 = sphi 0, %s466
                %p463 = scmp.ge.s32.totalorder %s462, 1
                %s467 = sphi %s404, %s404
                %s468 = sphi %s452, %s452
              $region114: #{custom-call.57} parent=110 // loop_header_branch
                %465 = sbr.rel (%p463) target = $region118
              $region115: #{custom-call.57} parent=110 // loop_body
                %v469 = vld [vmem:[%s467] sm:%s460]
                %470 = vst [vmem:[%s468] sm:%s460] %v469
              $region116: #{custom-call.57} parent=110 // loop_footer
                %s466 = sadd.s32 1, %s462
              $region117: #{custom-call.57} parent=110 // loop_footer_branch
                %461 = sbr.rel target = $region113
              $region118: #{custom-call.57} parent=110 // loop_exit
                _
            $region111: #{custom-call.57} parent=102 // pred_fallthru
              _
          $region103: #{custom-call.57} parent=98 // pred_fallthru
            _
          %485 = vnop
        $region99: #{custom-call.57} parent=53 // pred_fallthru
          _
      $region54: #{custom-call.57} parent=5 // pred_fallthru
        _
      %p486 = scmp.le.s32.totalorder 2, %s5
      // Predicated region
      $region130: #{custom-call.57} parent=5 // pred_check
        %p487 = pneg %p486
      $region131: #{custom-call.57} parent=5 // pred_check_branch
        %489 = sbr.rel (%p487) target = $region133
      $region132: #{custom-call.57} parent=5 // pred_region
        %s490 = ssub.s32 %s5, 2
        %s491 = sand.u32 %s11, 1
        %s492 = sand.u32 %s11, 1
        %s493 = smul.addr %s492, 8
        %s494 = scalar_lea.vmem [#allocation1], %s493
        // Predicated region
        $region134: #{custom-call.57} parent=132 // pred_check
          %p495 = pneg %p65
        $region135: #{custom-call.57} parent=132 // pred_check_branch
          %497 = sbr.rel (%p495) target = $region137
        $region136: #{custom-call.57} parent=132 // pred_region
          %s498 = sand.u32 %s50, 1
          %s499 = sand.u32 %s50, 1
          %s500 = smul.addr %s499, 2
          %s501 = scalar_lea.vmem [#allocation3], %s500
        $region137: #{custom-call.57} parent=132 // pred_fallthru
          _
      $region133: #{custom-call.57} parent=5 // pred_fallthru
        _
    $region6: #{custom-call.57} parent=1 // loop_footer
      %s9 = sadd.s32 1, %s5
    $region7: #{custom-call.57} parent=1 // loop_footer_branch
      %4 = sbr.rel target = $region3
    $region8: #{custom-call.57} parent=1 // loop_exit
      _

// kernel: custom-call.58
$region0: #{custom-call.58}
  %s0 = inlined_call_operand.vmem [shape: f32[2,3,3], index: 0, kind: input, shape index: {}]
  %s1 = inlined_call_operand.vmem [shape: f32[2,3,3], index: 1, kind: output, shape index: {}]
  $region1: #{custom-call.58} parent=0
    #allocation0 [shape = 'u8[4096]{0}', space=vmem, size = 0x1000, scoped, tag = 'operand span for operand 0']
    #allocation1 [shape = 'u8[4096]{0}', space=vmem, size = 0x1000, scoped, tag = 'packed  for operand 0']
    #allocation2 [shape = 'u8[4096]{0}', space=vmem, size = 0x1000, scoped, tag = 'operand span for operand 1']
    #allocation3 [shape = 'u8[4096]{0}', space=vmem, size = 0x1000, scoped, tag = 'packed  for operand 1']
    loop: start=0, step=1, limit=4
    $region2: #{custom-call.58} parent=1 // loop_pre_header
      _
    $region3: #{custom-call.58} parent=1 // loop_header
      %s3 = sphi 0, %s7
      %p4 = scmp.ge.s32.totalorder %s3, 4
    $region4: #{custom-call.58} parent=1 // loop_header_branch
      %6 = sbr.rel (%p4) target = $region8
    $region5: #{custom-call.58} parent=1 // loop_body
      %s8 = ssub.s32 %s3, 1
      %s9 = ssub.s32 %s3, 2
      %s10 = sadd.s32 %s3, 1
      %p11 = scmp.le.s32.totalorder 1, %s3
      %p12 = scmp.lt.s32.totalorder %s3, 3
      %p13 = pnand %p11, %p12
      %p14 = pneg %p13
      // Predicated region
      $region9: #{custom-call.58} parent=5 // pred_check
        _
      $region10: #{custom-call.58} parent=5 // pred_check_branch
        %16 = sbr.rel (%p13) target = $region12
      $region11: #{custom-call.58} parent=5 // pred_region
        %s17 = ssub.s32 %s3, 1
      $region12: #{custom-call.58} parent=5 // pred_fallthru
        _
      %p18 = scmp.lt.s32.totalorder %s3, 2
      // Predicated region
      $region13: #{custom-call.58} parent=5 // pred_check
        %p19 = pneg %p18
      $region14: #{custom-call.58} parent=5 // pred_check_branch
        %21 = sbr.rel (%p19) target = $region16
      $region15: #{custom-call.58} parent=5 // pred_region
        %s22 = sand.u32 %s3, 1
        %s23 = sand.u32 %s3, 1
        %s24 = smul.addr %s23, 4
        %s25 = scalar_lea.vmem [#allocation1], %s24
        %s26 = smul.addr %s3, 4
        %s27 = scalar_lea.vmem %s0, %s26
        // Predicated region
        $region17: #{custom-call.58} parent=15 // pred_check
          _
        $region18: #{custom-call.58} parent=15 // pred_check_branch
          %29 = sbr.rel (0) target = $region20
        $region19: #{custom-call.58} parent=15 // pred_region
          // Predicated region
          $region21: #{custom-call.58} parent=19 // pred_check
            _
          $region22: #{custom-call.58} parent=19 // pred_check_branch
            %31 = sbr.rel target = $region24
          $region23: #{custom-call.58} parent=19 // pred_region
            // Predicated region
            $region36: #{custom-call.58} parent=23 // pred_check
              _
            $region37: #{custom-call.58} parent=23 // pred_check_branch
              %47 = sbr.rel (0) target = $region39
            $region38: #{custom-call.58} parent=23 // pred_region
              %s49 = ssub.s32 16, 1
              loop: start=0, step=1, limit=1
              $region40: #{custom-call.58} parent=38 // loop_pre_header
                _
              $region41: #{custom-call.58} parent=38 // loop_header
                %s51 = sphi 0, %s55
                %p52 = scmp.ge.s32.totalorder %s51, 1
                %s56 = sphi %s27, %s27
                %s57 = sphi %s25, %s25
              $region42: #{custom-call.58} parent=38 // loop_header_branch
                %54 = sbr.rel (%p52) target = $region46
              $region43: #{custom-call.58} parent=38 // loop_body
                %v58 = vld [vmem:[%s56] sm:%s49]
                %59 = vst [vmem:[%s57] sm:%s49] %v58
              $region44: #{custom-call.58} parent=38 // loop_footer
                %s55 = sadd.s32 1, %s51
              $region45: #{custom-call.58} parent=38 // loop_footer_branch
                %50 = sbr.rel target = $region41
              $region46: #{custom-call.58} parent=38 // loop_exit
                _
            $region39: #{custom-call.58} parent=23 // pred_fallthru
              _
          $region24: #{custom-call.58} parent=19 // pred_fallthru
            _
          // Predicated region
          $region25: #{custom-call.58} parent=19 // pred_check
            _
          $region26: #{custom-call.58} parent=19 // pred_check_branch
            %33 = sbr.rel (0) target = $region28
          $region27: #{custom-call.58} parent=19 // pred_region
            %s35 = ssub.s32 16, 1
            loop: start=0, step=1, limit=1
            $region29: #{custom-call.58} parent=27 // loop_pre_header
              _
            $region30: #{custom-call.58} parent=27 // loop_header
              %s37 = sphi 0, %s41
              %p38 = scmp.ge.s32.totalorder %s37, 1
              %s42 = sphi %s27, %s27
              %s43 = sphi %s25, %s25
            $region31: #{custom-call.58} parent=27 // loop_header_branch
              %40 = sbr.rel (%p38) target = $region35
            $region32: #{custom-call.58} parent=27 // loop_body
              %v44 = vld [vmem:[%s42] sm:%s35]
              %45 = vst [vmem:[%s43] sm:%s35] %v44
            $region33: #{custom-call.58} parent=27 // loop_footer
              %s41 = sadd.s32 1, %s37
            $region34: #{custom-call.58} parent=27 // loop_footer_branch
              %36 = sbr.rel target = $region30
            $region35: #{custom-call.58} parent=27 // loop_exit
              _
          $region28: #{custom-call.58} parent=19 // pred_fallthru
            _
        $region20: #{custom-call.58} parent=15 // pred_fallthru
          _
        %60 = vnop
      $region16: #{custom-call.58} parent=5 // pred_fallthru
        _
      %p61 = scmp.le.s32.totalorder 1, %s3
      %p62 = scmp.lt.s32.totalorder %s3, 3
      %p63 = pnand %p61, %p62
      %p64 = pneg %p63
      // Predicated region
      $region47: #{custom-call.58} parent=5 // pred_check
        _
      $region48: #{custom-call.58} parent=5 // pred_check_branch
        %66 = sbr.rel (%p63) target = $region50
      $region49: #{custom-call.58} parent=5 // pred_region
        %s67 = ssub.s32 %s3, 1
        %s68 = sand.u32 %s8, 1
        %s69 = sand.u32 %s8, 1
        %s70 = smul.addr %s69, 4
        %s71 = scalar_lea.vmem [#allocation1], %s70
        %s72 = sand.u32 %s8, 1
        %s73 = sand.u32 %s8, 1
        %s74 = smul.addr %s73, 4
        %s75 = scalar_lea.vmem [#allocation1], %s74
        %s76 = sand.u32 %s8, 1
        %s77 = sand.u32 %s8, 1
        %s78 = smul.addr %s77, 4
        %s79 = scalar_lea.vmem [#allocation3], %s78
        %s81 = ssub.s32 16, 1
        %v82 = vld [vmem:[%s75] sm:%s81]
        %83 = vst [vmem:[#allocation0] sm:%s81] %v82
        %v84 = vlaneseq
        %v85 = vand.u32 %v84, 127
        %v86 = vlaneseq
        %v87 = vshrl.u32 %v86, 7
        %vm89 = vcmp.eq.s32.totalorder %v85, %v87
        %v90 = vld [vmem:[#allocation0] sm:$0xff]
        %v91 = vlaneseq
        %v92 = vand.u32 %v91, 127
        %vm93 = vcmp.eq.s32.totalorder %v92, 0
        %v94 = vsel %vm93, %v90, 1.0
        %v95 = vsel %vm89, %v94, 0.0
        %s96 = scalar_lea.vmem [#allocation0], 1
        %v97 = vld [vmem:[%s96] ss:$0 sm:$0xff]
        %vm98 = vcmask 23552
        %v99 = vsel %vm98, %v97, 0.0
        %v100 = vlaneseq
        %v101 = vand.u32 %v100, 127
        %vm102 = vcmp.eq.s32.totalorder %v101, 1
        %v103 = vmul.f32 %v99, %v95
        %104 = vadd.xlane.f32.xlu0 %v103
        %v105 = vpop.xlane.xlu0 %104
        %v106 = vsel %vm102, %v105, %v95
        %s107 = scalar_lea.vmem [#allocation0], 2
        %v108 = vld [vmem:[%s107] ss:$0 sm:$0xff]
        %vm109 = vcmask 23552
        %v110 = vsel %vm109, %v108, 0.0
        %v111 = vlaneseq
        %v112 = vand.u32 %v111, 127
        %vm113 = vcmp.eq.s32.totalorder %v112, 2
        %v114 = vmul.f32 %v110, %v106
        %115 = vadd.xlane.f32.xlu0 %v114
        %v116 = vpop.xlane.xlu0 %115
        %v117 = vsel %vm113, %v116, %v106
        %118 = vst [vmem:[#allocation2] sm:$0xff] %v117
        %s120 = ssub.s32 16, 1
        %v121 = vld [vmem:[#allocation2] sm:%s120]
        %s123 = ssub.s32 16, 1
        %124 = vst [vmem:[%s79] sm:%s123] %v121
        %s125 = sand.u32 %s8, 1
        %s126 = sand.u32 %s8, 1
        %s127 = smul.addr %s126, 4
        %s128 = scalar_lea.vmem [#allocation3], %s127
        %s129 = smul.addr %s8, 4
        %s130 = scalar_lea.vmem %s1, %s129
        // Predicated region
        $region51: #{custom-call.58} parent=49 // pred_check
          _
        $region52: #{custom-call.58} parent=49 // pred_check_branch
          %132 = sbr.rel (0) target = $region54
        $region53: #{custom-call.58} parent=49 // pred_region
          // Predicated region
          $region55: #{custom-call.58} parent=53 // pred_check
            _
          $region56: #{custom-call.58} parent=53 // pred_check_branch
            %134 = sbr.rel target = $region58
          $region57: #{custom-call.58} parent=53 // pred_region
            // Predicated region
            $region70: #{custom-call.58} parent=57 // pred_check
              _
            $region71: #{custom-call.58} parent=57 // pred_check_branch
              %150 = sbr.rel (0) target = $region73
            $region72: #{custom-call.58} parent=57 // pred_region
              %s152 = ssub.s32 16, 1
              loop: start=0, step=1, limit=1
              $region74: #{custom-call.58} parent=72 // loop_pre_header
                _
              $region75: #{custom-call.58} parent=72 // loop_header
                %s154 = sphi 0, %s158
                %p155 = scmp.ge.s32.totalorder %s154, 1
                %s159 = sphi %s128, %s128
                %s160 = sphi %s130, %s130
              $region76: #{custom-call.58} parent=72 // loop_header_branch
                %157 = sbr.rel (%p155) target = $region80
              $region77: #{custom-call.58} parent=72 // loop_body
                %v161 = vld [vmem:[%s159] sm:%s152]
                %162 = vst [vmem:[%s160] sm:%s152] %v161
              $region78: #{custom-call.58} parent=72 // loop_footer
                %s158 = sadd.s32 1, %s154
              $region79: #{custom-call.58} parent=72 // loop_footer_branch
                %153 = sbr.rel target = $region75
              $region80: #{custom-call.58} parent=72 // loop_exit
                _
            $region73: #{custom-call.58} parent=57 // pred_fallthru
              _
          $region58: #{custom-call.58} parent=53 // pred_fallthru
            _
          // Predicated region
          $region59: #{custom-call.58} parent=53 // pred_check
            _
          $region60: #{custom-call.58} parent=53 // pred_check_branch
            %136 = sbr.rel (0) target = $region62
          $region61: #{custom-call.58} parent=53 // pred_region
            %s138 = ssub.s32 16, 1
            loop: start=0, step=1, limit=1
            $region63: #{custom-call.58} parent=61 // loop_pre_header
              _
            $region64: #{custom-call.58} parent=61 // loop_header
              %s140 = sphi 0, %s144
              %p141 = scmp.ge.s32.totalorder %s140, 1
              %s145 = sphi %s128, %s128
              %s146 = sphi %s130, %s130
            $region65: #{custom-call.58} parent=61 // loop_header_branch
              %143 = sbr.rel (%p141) target = $region69
            $region66: #{custom-call.58} parent=61 // loop_body
              %v147 = vld [vmem:[%s145] sm:%s138]
              %148 = vst [vmem:[%s146] sm:%s138] %v147
            $region67: #{custom-call.58} parent=61 // loop_footer
              %s144 = sadd.s32 1, %s140
            $region68: #{custom-call.58} parent=61 // loop_footer_branch
              %139 = sbr.rel target = $region64
            $region69: #{custom-call.58} parent=61 // loop_exit
              _
          $region62: #{custom-call.58} parent=53 // pred_fallthru
            _
        $region54: #{custom-call.58} parent=49 // pred_fallthru
          _
        %163 = vnop
      $region50: #{custom-call.58} parent=5 // pred_fallthru
        _
      %p164 = scmp.le.s32.totalorder 2, %s3
      // Predicated region
      $region81: #{custom-call.58} parent=5 // pred_check
        %p165 = pneg %p164
      $region82: #{custom-call.58} parent=5 // pred_check_branch
        %167 = sbr.rel (%p165) target = $region84
      $region83: #{custom-call.58} parent=5 // pred_region
        %s168 = ssub.s32 %s3, 2
        %s169 = sand.u32 %s9, 1
        %s170 = sand.u32 %s9, 1
        %s171 = smul.addr %s170, 4
        %s172 = scalar_lea.vmem [#allocation3], %s171
      $region84: #{custom-call.58} parent=5 // pred_fallthru
        _
    $region6: #{custom-call.58} parent=1 // loop_footer
      %s7 = sadd.s32 1, %s3
    $region7: #{custom-call.58} parent=1 // loop_footer_branch
      %2 = sbr.rel target = $region3
    $region8: #{custom-call.58} parent=1 // loop_exit
      _

// kernel: custom-call.50
$region0: #{custom-call.50}
  %s0 = inlined_call_operand.hbm [shape: pred[2], index: 0, kind: output, shape index: {}]

// kernel: custom-call.55
$region0: #{custom-call.55}
  %s0 = inlined_call_operand.vmem [shape: f32[2,3,3], index: 0, kind: input, shape index: {}]
  %s1 = inlined_call_operand.vmem [shape: f32[2,3,3], index: 1, kind: output, shape index: {}]
  $region1: #{custom-call.55} parent=0
    #allocation0 [shape = 'u8[4096]{0}', space=vmem, size = 0x1000, scoped, tag = 'operand span for operand 0']
    #allocation1 [shape = 'u8[4096]{0}', space=vmem, size = 0x1000, scoped, tag = 'packed  for operand 0']
    #allocation2 [shape = 'u8[4096]{0}', space=vmem, size = 0x1000, scoped, tag = 'operand span for operand 1']
    #allocation3 [shape = 'u8[4096]{0}', space=vmem, size = 0x1000, scoped, tag = 'packed  for operand 1']
    loop: start=0, step=1, limit=4
    $region2: #{custom-call.55} parent=1 // loop_pre_header
      _
    $region3: #{custom-call.55} parent=1 // loop_header
      %s3 = sphi 0, %s7
      %p4 = scmp.ge.s32.totalorder %s3, 4
      %s10 = sphi 0, %s29
      %s11 = sphi 0, %s25
      %s12 = sphi 0, %s21
      %s13 = sphi 0, %s10
      %s14 = sphi 0, %s11
      %s15 = sphi 0, %s12
      %s16 = sphi 0, %s13
      %s17 = sphi 0, %s14
      %s18 = sphi 0, %s15
    $region4: #{custom-call.55} parent=1 // loop_header_branch
      %6 = sbr.rel (%p4) target = $region8
    $region5: #{custom-call.55} parent=1 // loop_body
      %s8 = ssub.s32 %s3, 1
      %s9 = ssub.s32 %s3, 2
      %s19 = sadd.s32 1, %s12
      %p20 = scmp.ge.s32.totalorder %s19, 1
      %s21 = scalar_select %p20, 0, %s19
      %s22 = sadd.s32 1, %s11
      %s23 = scalar_select %p20, %s22, %s11
      %p24 = scmp.ge.s32.totalorder %s23, 1
      %s25 = scalar_select %p24, 0, %s23
      %s26 = sadd.s32 1, %s10
      %s27 = scalar_select %p24, %s26, %s10
      %p28 = scmp.ge.s32.totalorder %s27, 2
      %s29 = scalar_select %p28, 0, %s27
      %p30 = scmp.le.s32.totalorder 1, %s3
      %p31 = scmp.lt.s32.totalorder %s3, 3
      %p32 = pnand %p30, %p31
      %p33 = pneg %p32
      // Predicated region
      $region9: #{custom-call.55} parent=5 // pred_check
        _
      $region10: #{custom-call.55} parent=5 // pred_check_branch
        %35 = sbr.rel (%p32) target = $region12
      $region11: #{custom-call.55} parent=5 // pred_region
        %s36 = ssub.s32 %s3, 1
      $region12: #{custom-call.55} parent=5 // pred_fallthru
        _
      %p37 = scmp.lt.s32.totalorder %s3, 2
      // Predicated region
      $region13: #{custom-call.55} parent=5 // pred_check
        %p38 = pneg %p37
      $region14: #{custom-call.55} parent=5 // pred_check_branch
        %40 = sbr.rel (%p38) target = $region16
      $region15: #{custom-call.55} parent=5 // pred_region
        %s41 = sand.u32 %s3, 1
        %s42 = sand.u32 %s3, 1
        %s43 = smul.addr %s42, 4
        %s44 = scalar_lea.vmem [#allocation1], %s43
        %s45 = sadd.s32 %s12, %s11
        %s46 = sadd.s32 %s45, %s10
        %s47 = smul.addr %s46, 4
        %s48 = scalar_lea.vmem %s0, %s47
        // Predicated region
        $region17: #{custom-call.55} parent=15 // pred_check
          _
        $region18: #{custom-call.55} parent=15 // pred_check_branch
          %50 = sbr.rel (0) target = $region20
        $region19: #{custom-call.55} parent=15 // pred_region
          // Predicated region
          $region21: #{custom-call.55} parent=19 // pred_check
            _
          $region22: #{custom-call.55} parent=19 // pred_check_branch
            %52 = sbr.rel target = $region24
          $region23: #{custom-call.55} parent=19 // pred_region
            // Predicated region
            $region36: #{custom-call.55} parent=23 // pred_check
              _
            $region37: #{custom-call.55} parent=23 // pred_check_branch
              %68 = sbr.rel (0) target = $region39
            $region38: #{custom-call.55} parent=23 // pred_region
              %s70 = ssub.s32 16, 1
              loop: start=0, step=1, limit=1
              $region40: #{custom-call.55} parent=38 // loop_pre_header
                _
              $region41: #{custom-call.55} parent=38 // loop_header
                %s72 = sphi 0, %s76
                %p73 = scmp.ge.s32.totalorder %s72, 1
                %s77 = sphi %s48, %s48
                %s78 = sphi %s44, %s44
              $region42: #{custom-call.55} parent=38 // loop_header_branch
                %75 = sbr.rel (%p73) target = $region46
              $region43: #{custom-call.55} parent=38 // loop_body
                %v79 = vld [vmem:[%s77] sm:%s70]
                %80 = vst [vmem:[%s78] sm:%s70] %v79
              $region44: #{custom-call.55} parent=38 // loop_footer
                %s76 = sadd.s32 1, %s72
              $region45: #{custom-call.55} parent=38 // loop_footer_branch
                %71 = sbr.rel target = $region41
              $region46: #{custom-call.55} parent=38 // loop_exit
                _
            $region39: #{custom-call.55} parent=23 // pred_fallthru
              _
          $region24: #{custom-call.55} parent=19 // pred_fallthru
            _
          // Predicated region
          $region25: #{custom-call.55} parent=19 // pred_check
            _
          $region26: #{custom-call.55} parent=19 // pred_check_branch
            %54 = sbr.rel (0) target = $region28
          $region27: #{custom-call.55} parent=19 // pred_region
            %s56 = ssub.s32 16, 1
            loop: start=0, step=1, limit=1
            $region29: #{custom-call.55} parent=27 // loop_pre_header
              _
            $region30: #{custom-call.55} parent=27 // loop_header
              %s58 = sphi 0, %s62
              %p59 = scmp.ge.s32.totalorder %s58, 1
              %s63 = sphi %s48, %s48
              %s64 = sphi %s44, %s44
            $region31: #{custom-call.55} parent=27 // loop_header_branch
              %61 = sbr.rel (%p59) target = $region35
            $region32: #{custom-call.55} parent=27 // loop_body
              %v65 = vld [vmem:[%s63] sm:%s56]
              %66 = vst [vmem:[%s64] sm:%s56] %v65
            $region33: #{custom-call.55} parent=27 // loop_footer
              %s62 = sadd.s32 1, %s58
            $region34: #{custom-call.55} parent=27 // loop_footer_branch
              %57 = sbr.rel target = $region30
            $region35: #{custom-call.55} parent=27 // loop_exit
              _
          $region28: #{custom-call.55} parent=19 // pred_fallthru
            _
        $region20: #{custom-call.55} parent=15 // pred_fallthru
          _
        %81 = vnop
      $region16: #{custom-call.55} parent=5 // pred_fallthru
        _
      %p82 = scmp.le.s32.totalorder 1, %s3
      %p83 = scmp.lt.s32.totalorder %s3, 3
      %p84 = pnand %p82, %p83
      %p85 = pneg %p84
      // Predicated region
      $region47: #{custom-call.55} parent=5 // pred_check
        _
      $region48: #{custom-call.55} parent=5 // pred_check_branch
        %87 = sbr.rel (%p84) target = $region50
      $region49: #{custom-call.55} parent=5 // pred_region
        %s88 = ssub.s32 %s3, 1
        %s89 = sand.u32 %s8, 1
        %s90 = sand.u32 %s8, 1
        %s91 = smul.addr %s90, 4
        %s92 = scalar_lea.vmem [#allocation1], %s91
        %s93 = sand.u32 %s8, 1
        %s94 = sand.u32 %s8, 1
        %s95 = smul.addr %s94, 4
        %s96 = scalar_lea.vmem [#allocation1], %s95
        %s97 = sand.u32 %s8, 1
        %s98 = sand.u32 %s8, 1
        %s99 = smul.addr %s98, 4
        %s100 = scalar_lea.vmem [#allocation3], %s99
        %s102 = ssub.s32 16, 1
        %v103 = vld [vmem:[%s96] sm:%s102]
        %104 = vst [vmem:[#allocation0] sm:%s102] %v103
        %105 = vst [vmem:[#allocation2] sm:$0xff] 0.0
        %vm106 = vcmask 7168
        %v107 = vld [vmem:[#allocation2] ss:$0 sm:$0xff]
        %v108 = vld [vmem:[#allocation0] ss:$0 sm:$0xff]
        %v109 = vmul.f32 %v107, %v107
        %110 = vadd.xlane.f32.xlu0 %v109
        %v111 = vpop.xlane.xlu0 %110
        %v112 = vsub.f32 %v108, %v111
        %v113 = vrsqrt.pop %v112
        %v114 = vmul.f32 %v113, %v112
        %v115 = vmul.f32 %v114, %v113
        %v116 = vmul.f32 0.5, %v115
        %v117 = vsub.f32 1.5, %v116
        %v118 = vmul.f32 %v113, %v117
        %vm119 = vweird.f32 %v112
        %vm120 = vweird.f32 %v113
        %vm121 = vmor %vm119, %vm120
        %v122 = vsel %vm121, %v113, %v118
        %v123 = vld [vmem:[#allocation0] sm:$0xff]
        %v124 = vld [vmem:[#allocation2] sm:$0xff]
        %v125 = vmul.f32 %v124, %v107
        %126 = vadd.xlane.f32.xlu0 %v125
        %v127 = vpop.xlane.xlu0 %126
        %v128 = vsub.f32 %v123, %v127
        %v129 = vmul.f32 %v128, %v122
        %v130 = vsel %vm106, %v129, 0.0
        %v131 = vadd.f32 %v124, %v130
        %132 = vst [vmem:[#allocation2] sm:$0xff] %v131
        %vm133 = vcmask 15368
        %s134 = scalar_lea.vmem [#allocation2], 1
        %v135 = vld [vmem:[%s134] ss:$0 sm:$0xff]
        %s136 = scalar_lea.vmem [#allocation0], 1
        %v137 = vld [vmem:[%s136] ss:$0 sm:$0xff]
        %v138 = vmul.f32 %v135, %v135
        %139 = vadd.xlane.f32.xlu0 %v138
        %v140 = vpop.xlane.xlu0 %139
        %v141 = vsub.f32 %v137, %v140
        %v142 = vrsqrt.pop %v141
        %v143 = vmul.f32 %v142, %v141
        %v144 = vmul.f32 %v143, %v142
        %v145 = vmul.f32 0.5, %v144
        %v146 = vsub.f32 1.5, %v145
        %v147 = vmul.f32 %v142, %v146
        %vm148 = vweird.f32 %v141
        %vm149 = vweird.f32 %v142
        %vm150 = vmor %vm148, %vm149
        %v151 = vsel %vm150, %v142, %v147
        %v152 = vld [vmem:[#allocation0] sm:$0xff]
        %v153 = vld [vmem:[#allocation2] sm:$0xff]
        %v154 = vmul.f32 %v153, %v135
        %155 = vadd.xlane.f32.xlu0 %v154
        %v156 = vpop.xlane.xlu0 %155
        %v157 = vsub.f32 %v152, %v156
        %v158 = vmul.f32 %v157, %v151
        %vm159 = vcmask 1047553
        %vm160 = vmand %vm133, %vm159
        %v161 = vsel %vm160, %v158, 0.0
        %v162 = vadd.f32 %v153, %v161
        %163 = vst [vmem:[#allocation2] sm:$0xff] %v162
        %vm164 = vcmask 23568
        %s165 = scalar_lea.vmem [#allocation2], 2
        %v166 = vld [vmem:[%s165] ss:$0 sm:$0xff]
        %s167 = scalar_lea.vmem [#allocation0], 2
        %v168 = vld [vmem:[%s167] ss:$0 sm:$0xff]
        %v169 = vmul.f32 %v166, %v166
        %170 = vadd.xlane.f32.xlu0 %v169
        %v171 = vpop.xlane.xlu0 %170
        %v172 = vsub.f32 %v168, %v171
        %v173 = vrsqrt.pop %v172
        %v174 = vmul.f32 %v173, %v172
        %v175 = vmul.f32 %v174, %v173
        %v176 = vmul.f32 0.5, %v175
        %v177 = vsub.f32 1.5, %v176
        %v178 = vmul.f32 %v173, %v177
        %vm179 = vweird.f32 %v172
        %vm180 = vweird.f32 %v173
        %vm181 = vmor %vm179, %vm180
        %v182 = vsel %vm181, %v173, %v178
        %v183 = vld [vmem:[#allocation0] sm:$0xff]
        %v184 = vld [vmem:[#allocation2] sm:$0xff]
        %v185 = vmul.f32 %v184, %v166
        %186 = vadd.xlane.f32.xlu0 %v185
        %v187 = vpop.xlane.xlu0 %186
        %v188 = vsub.f32 %v183, %v187
        %v189 = vmul.f32 %v188, %v182
        %vm190 = vcmask 1047554
        %vm191 = vmand %vm164, %vm190
        %v192 = vsel %vm191, %v189, 0.0
        %v193 = vadd.f32 %v184, %v192
        %194 = vst [vmem:[#allocation2] sm:$0xff] %v193
        %s196 = ssub.s32 16, 1
        %v197 = vld [vmem:[#allocation2] sm:%s196]
        %s199 = ssub.s32 16, 1
        %200 = vst [vmem:[%s100] sm:%s199] %v197
        %s201 = sand.u32 %s8, 1
        %s202 = sand.u32 %s8, 1
        %s203 = smul.addr %s202, 4
        %s204 = scalar_lea.vmem [#allocation3], %s203
        %s205 = sadd.s32 %s15, %s14
        %s206 = sadd.s32 %s205, %s13
        %s207 = smul.addr %s206, 4
        %s208 = scalar_lea.vmem %s1, %s207
        // Predicated region
        $region51: #{custom-call.55} parent=49 // pred_check
          _
        $region52: #{custom-call.55} parent=49 // pred_check_branch
          %210 = sbr.rel (0) target = $region54
        $region53: #{custom-call.55} parent=49 // pred_region
          // Predicated region
          $region55: #{custom-call.55} parent=53 // pred_check
            _
          $region56: #{custom-call.55} parent=53 // pred_check_branch
            %212 = sbr.rel target = $region58
          $region57: #{custom-call.55} parent=53 // pred_region
            // Predicated region
            $region70: #{custom-call.55} parent=57 // pred_check
              _
            $region71: #{custom-call.55} parent=57 // pred_check_branch
              %228 = sbr.rel (0) target = $region73
            $region72: #{custom-call.55} parent=57 // pred_region
              %s230 = ssub.s32 16, 1
              loop: start=0, step=1, limit=1
              $region74: #{custom-call.55} parent=72 // loop_pre_header
                _
              $region75: #{custom-call.55} parent=72 // loop_header
                %s232 = sphi 0, %s236
                %p233 = scmp.ge.s32.totalorder %s232, 1
                %s237 = sphi %s204, %s204
                %s238 = sphi %s208, %s208
              $region76: #{custom-call.55} parent=72 // loop_header_branch
                %235 = sbr.rel (%p233) target = $region80
              $region77: #{custom-call.55} parent=72 // loop_body
                %v239 = vld [vmem:[%s237] sm:%s230]
                %240 = vst [vmem:[%s238] sm:%s230] %v239
              $region78: #{custom-call.55} parent=72 // loop_footer
                %s236 = sadd.s32 1, %s232
              $region79: #{custom-call.55} parent=72 // loop_footer_branch
                %231 = sbr.rel target = $region75
              $region80: #{custom-call.55} parent=72 // loop_exit
                _
            $region73: #{custom-call.55} parent=57 // pred_fallthru
              _
          $region58: #{custom-call.55} parent=53 // pred_fallthru
            _
          // Predicated region
          $region59: #{custom-call.55} parent=53 // pred_check
            _
          $region60: #{custom-call.55} parent=53 // pred_check_branch
            %214 = sbr.rel (0) target = $region62
          $region61: #{custom-call.55} parent=53 // pred_region
            %s216 = ssub.s32 16, 1
            loop: start=0, step=1, limit=1
            $region63: #{custom-call.55} parent=61 // loop_pre_header
              _
            $region64: #{custom-call.55} parent=61 // loop_header
              %s218 = sphi 0, %s222
              %p219 = scmp.ge.s32.totalorder %s218, 1
              %s223 = sphi %s204, %s204
              %s224 = sphi %s208, %s208
            $region65: #{custom-call.55} parent=61 // loop_header_branch
              %221 = sbr.rel (%p219) target = $region69
            $region66: #{custom-call.55} parent=61 // loop_body
              %v225 = vld [vmem:[%s223] sm:%s216]
              %226 = vst [vmem:[%s224] sm:%s216] %v225
            $region67: #{custom-call.55} parent=61 // loop_footer
              %s222 = sadd.s32 1, %s218
            $region68: #{custom-call.55} parent=61 // loop_footer_branch
              %217 = sbr.rel target = $region64
            $region69: #{custom-call.55} parent=61 // loop_exit
              _
          $region62: #{custom-call.55} parent=53 // pred_fallthru
            _
        $region54: #{custom-call.55} parent=49 // pred_fallthru
          _
        %241 = vnop
      $region50: #{custom-call.55} parent=5 // pred_fallthru
        _
      %p242 = scmp.le.s32.totalorder 2, %s3
      // Predicated region
      $region81: #{custom-call.55} parent=5 // pred_check
        %p243 = pneg %p242
      $region82: #{custom-call.55} parent=5 // pred_check_branch
        %245 = sbr.rel (%p243) target = $region84
      $region83: #{custom-call.55} parent=5 // pred_region
        %s246 = ssub.s32 %s3, 2
        %s247 = sand.u32 %s9, 1
        %s248 = sand.u32 %s9, 1
        %s249 = smul.addr %s248, 4
        %s250 = scalar_lea.vmem [#allocation3], %s249
      $region84: #{custom-call.55} parent=5 // pred_fallthru
        _
    $region6: #{custom-call.55} parent=1 // loop_footer
      %s7 = sadd.s32 1, %s3
    $region7: #{custom-call.55} parent=1 // loop_footer_branch
      %2 = sbr.rel target = $region3
    $region8: #{custom-call.55} parent=1 // loop_exit
      _

// kernel: custom-call.56
$region0: #{custom-call.56}
  %s0 = inlined_call_operand.vmem [shape: f32[2,1,3,3], index: 0, kind: input, shape index: {}]
  %s1 = inlined_call_operand.vmem [shape: f32[2,1,3,3], index: 1, kind: output, shape index: {}]
  $region1: #{custom-call.56} parent=0
    #allocation0 [shape = 'u8[4096]{0}', space=vmem, size = 0x1000, scoped, tag = 'operand span for operand 0']
    #allocation1 [shape = 'u8[4096]{0}', space=vmem, size = 0x1000, scoped, tag = 'packed  for operand 0']
    #allocation2 [shape = 'u8[4096]{0}', space=vmem, size = 0x1000, scoped, tag = 'operand span for operand 1']
    #allocation3 [shape = 'u8[4096]{0}', space=vmem, size = 0x1000, scoped, tag = 'packed  for operand 1']
    loop: start=0, step=1, limit=4
    $region2: #{custom-call.56} parent=1 // loop_pre_header
      _
    $region3: #{custom-call.56} parent=1 // loop_header
      %s3 = sphi 0, %s7
      %p4 = scmp.ge.s32.totalorder %s3, 4
      %s10 = sphi 0, %s36
      %s11 = sphi 0, %s32
      %s12 = sphi 0, %s28
      %s13 = sphi 0, %s24
      %s14 = sphi 0, %s10
      %s15 = sphi 0, %s11
      %s16 = sphi 0, %s12
      %s17 = sphi 0, %s13
      %s18 = sphi 0, %s14
      %s19 = sphi 0, %s15
      %s20 = sphi 0, %s16
      %s21 = sphi 0, %s17
    $region4: #{custom-call.56} parent=1 // loop_header_branch
      %6 = sbr.rel (%p4) target = $region8
    $region5: #{custom-call.56} parent=1 // loop_body
      %s8 = ssub.s32 %s3, 1
      %s9 = ssub.s32 %s3, 2
      %s22 = sadd.s32 1, %s13
      %p23 = scmp.ge.s32.totalorder %s22, 1
      %s24 = scalar_select %p23, 0, %s22
      %s25 = sadd.s32 1, %s12
      %s26 = scalar_select %p23, %s25, %s12
      %p27 = scmp.ge.s32.totalorder %s26, 1
      %s28 = scalar_select %p27, 0, %s26
      %s29 = sadd.s32 1, %s11
      %s30 = scalar_select %p27, %s29, %s11
      %p31 = scmp.ge.s32.totalorder %s30, 1
      %s32 = scalar_select %p31, 0, %s30
      %s33 = sadd.s32 1, %s10
      %s34 = scalar_select %p31, %s33, %s10
      %p35 = scmp.ge.s32.totalorder %s34, 2
      %s36 = scalar_select %p35, 0, %s34
      %p37 = scmp.le.s32.totalorder 1, %s3
      %p38 = scmp.lt.s32.totalorder %s3, 3
      %p39 = pnand %p37, %p38
      %p40 = pneg %p39
      // Predicated region
      $region9: #{custom-call.56} parent=5 // pred_check
        _
      $region10: #{custom-call.56} parent=5 // pred_check_branch
        %42 = sbr.rel (%p39) target = $region12
      $region11: #{custom-call.56} parent=5 // pred_region
        %s43 = ssub.s32 %s3, 1
      $region12: #{custom-call.56} parent=5 // pred_fallthru
        _
      %p44 = scmp.lt.s32.totalorder %s3, 2
      // Predicated region
      $region13: #{custom-call.56} parent=5 // pred_check
        %p45 = pneg %p44
      $region14: #{custom-call.56} parent=5 // pred_check_branch
        %47 = sbr.rel (%p45) target = $region16
      $region15: #{custom-call.56} parent=5 // pred_region
        %s48 = sand.u32 %s3, 1
        %s49 = sand.u32 %s3, 1
        %s50 = smul.addr %s49, 4
        %s51 = scalar_lea.vmem [#allocation1], %s50
        %s52 = sadd.s32 %s13, %s12
        %s53 = sadd.s32 %s52, %s11
        %s54 = sadd.s32 %s53, %s10
        %s55 = smul.addr %s54, 4
        %s56 = scalar_lea.vmem %s0, %s55
        // Predicated region
        $region17: #{custom-call.56} parent=15 // pred_check
          _
        $region18: #{custom-call.56} parent=15 // pred_check_branch
          %58 = sbr.rel (0) target = $region20
        $region19: #{custom-call.56} parent=15 // pred_region
          // Predicated region
          $region21: #{custom-call.56} parent=19 // pred_check
            _
          $region22: #{custom-call.56} parent=19 // pred_check_branch
            %60 = sbr.rel target = $region24
          $region23: #{custom-call.56} parent=19 // pred_region
            // Predicated region
            $region36: #{custom-call.56} parent=23 // pred_check
              _
            $region37: #{custom-call.56} parent=23 // pred_check_branch
              %76 = sbr.rel (0) target = $region39
            $region38: #{custom-call.56} parent=23 // pred_region
              %s78 = ssub.s32 16, 1
              loop: start=0, step=1, limit=1
              $region40: #{custom-call.56} parent=38 // loop_pre_header
                _
              $region41: #{custom-call.56} parent=38 // loop_header
                %s80 = sphi 0, %s84
                %p81 = scmp.ge.s32.totalorder %s80, 1
                %s85 = sphi %s56, %s56
                %s86 = sphi %s51, %s51
              $region42: #{custom-call.56} parent=38 // loop_header_branch
                %83 = sbr.rel (%p81) target = $region46
              $region43: #{custom-call.56} parent=38 // loop_body
                %v87 = vld [vmem:[%s85] sm:%s78]
                %88 = vst [vmem:[%s86] sm:%s78] %v87
              $region44: #{custom-call.56} parent=38 // loop_footer
                %s84 = sadd.s32 1, %s80
              $region45: #{custom-call.56} parent=38 // loop_footer_branch
                %79 = sbr.rel target = $region41
              $region46: #{custom-call.56} parent=38 // loop_exit
                _
            $region39: #{custom-call.56} parent=23 // pred_fallthru
              _
          $region24: #{custom-call.56} parent=19 // pred_fallthru
            _
          // Predicated region
          $region25: #{custom-call.56} parent=19 // pred_check
            _
          $region26: #{custom-call.56} parent=19 // pred_check_branch
            %62 = sbr.rel (0) target = $region28
          $region27: #{custom-call.56} parent=19 // pred_region
            %s64 = ssub.s32 16, 1
            loop: start=0, step=1, limit=1
            $region29: #{custom-call.56} parent=27 // loop_pre_header
              _
            $region30: #{custom-call.56} parent=27 // loop_header
              %s66 = sphi 0, %s70
              %p67 = scmp.ge.s32.totalorder %s66, 1
              %s71 = sphi %s56, %s56
              %s72 = sphi %s51, %s51
            $region31: #{custom-call.56} parent=27 // loop_header_branch
              %69 = sbr.rel (%p67) target = $region35
            $region32: #{custom-call.56} parent=27 // loop_body
              %v73 = vld [vmem:[%s71] sm:%s64]
              %74 = vst [vmem:[%s72] sm:%s64] %v73
            $region33: #{custom-call.56} parent=27 // loop_footer
              %s70 = sadd.s32 1, %s66
            $region34: #{custom-call.56} parent=27 // loop_footer_branch
              %65 = sbr.rel target = $region30
            $region35: #{custom-call.56} parent=27 // loop_exit
              _
          $region28: #{custom-call.56} parent=19 // pred_fallthru
            _
        $region20: #{custom-call.56} parent=15 // pred_fallthru
          _
        %89 = vnop
      $region16: #{custom-call.56} parent=5 // pred_fallthru
        _
      %p90 = scmp.le.s32.totalorder 1, %s3
      %p91 = scmp.lt.s32.totalorder %s3, 3
      %p92 = pnand %p90, %p91
      %p93 = pneg %p92
      // Predicated region
      $region47: #{custom-call.56} parent=5 // pred_check
        _
      $region48: #{custom-call.56} parent=5 // pred_check_branch
        %95 = sbr.rel (%p92) target = $region50
      $region49: #{custom-call.56} parent=5 // pred_region
        #allocation4 [shape = 'f32[3,3]{1,0}', space=vmem, size = 0x1000, scoped, tag = 'rescaled input a']
        %s96 = ssub.s32 %s3, 1
        %s97 = sand.u32 %s8, 1
        %s98 = sand.u32 %s8, 1
        %s99 = smul.addr %s98, 4
        %s100 = scalar_lea.vmem [#allocation1], %s99
        %s101 = sand.u32 %s8, 1
        %s102 = sand.u32 %s8, 1
        %s103 = smul.addr %s102, 4
        %s104 = scalar_lea.vmem [#allocation1], %s103
        %s105 = sand.u32 %s8, 1
        %s106 = sand.u32 %s8, 1
        %s107 = smul.addr %s106, 4
        %s108 = scalar_lea.vmem [#allocation3], %s107
        %s110 = ssub.s32 16, 1
        %v111 = vld [vmem:[%s104] sm:%s110]
        %112 = vst [vmem:[#allocation0] sm:%s110] %v111
        %v113 = vlaneseq
        %v114 = vand.u32 %v113, 127
        %vm115 = vcmp.lt.s32.totalorder %v114, 3
        %v116 = vlaneseq
        %v117 = vshrl.u32 %v116, 7
        %vm119 = vcmp.eq.s32.totalorder %v117, %v114
        %v120 = vld [vmem:[#allocation0] sm:$0xff]
        %v121 = vsel %vm119, %v120, 0.0
        %122 = vadd.xlane.f32.xlu0 %v121
        %v123 = vpop.xlane.xlu0 %122
        %vm124 = vcmp.ge.s32.totalorder %v117, %v114
        %vm125 = vmand %vm124, %vm115
        %v126 = vsel %vm125, %v120, 0.0
        %v127 = vrcp.pop %v123
        %v128 = vmul.f32 %v123, %v127
        %v129 = vsub.f32 1.0, %v128
        %v130 = vmul.f32 %v127, %v129
        %v131 = vadd.f32 %v127, %v130
        %vm132 = vweird.f32 %v123
        %vm133 = vweird.f32 %v127
        %vm134 = vmor %vm132, %vm133
        %v135 = vsel %vm134, %v127, %v131
        %v136 = vand.u32 2147483647, %v123
        %vm137 = vcmp.eq.f32.partialorder %v136, 8.507059e+37
        %v138 = vand.u32 %v123, 2147483648
        %v139 = vor.u32 1.1754944e-38, %v138
        %v140 = vsel %vm137, %v139, %v135
        %v141 = vmul.f32 %v126, %v140
        %142 = vst [vmem:[#allocation4] sm:$0xff] %v141
        %v143 = vlaneseq
        %v144 = vand.u32 %v143, 127
        %v145 = vlaneseq
        %v146 = vshrl.u32 %v145, 7
        %vm148 = vcmp.eq.s32.totalorder %v144, %v146
        %v149 = vlaneseq
        %v150 = vand.u32 %v149, 127
        %vm151 = vcmp.eq.s32.totalorder %v150, 0
        %v152 = vsel %vm151, 1.0, -1.0
        %v153 = vsel %vm148, %v152, 0.0
        %s154 = scalar_lea.vmem [#allocation4], 1
        %v155 = vld [vmem:[%s154] ss:$0 sm:$0xff]
        %v156 = vxor.u32 %v155, 2147483648
        %v157 = vlaneseq
        %v158 = vand.u32 %v157, 127
        %vm159 = vcmp.eq.s32.totalorder %v158, 1
        %v160 = vmul.f32 %v156, %v153
        %161 = vadd.xlane.f32.xlu0 %v160
        %v162 = vpop.xlane.xlu0 %161
        %v163 = vsel %vm159, %v162, %v153
        %s164 = scalar_lea.vmem [#allocation4], 2
        %v165 = vld [vmem:[%s164] ss:$0 sm:$0xff]
        %v166 = vxor.u32 %v165, 2147483648
        %v167 = vlaneseq
        %v168 = vand.u32 %v167, 127
        %vm169 = vcmp.eq.s32.totalorder %v168, 2
        %v170 = vmul.f32 %v166, %v163
        %171 = vadd.xlane.f32.xlu0 %v170
        %v172 = vpop.xlane.xlu0 %171
        %v173 = vsel %vm169, %v172, %v163
        %v174 = vrcp.pop %v123
        %v175 = vmul.f32 %v123, %v174
        %v176 = vsub.f32 1.0, %v175
        %v177 = vmul.f32 %v174, %v176
        %v178 = vadd.f32 %v174, %v177
        %vm179 = vweird.f32 %v123
        %vm180 = vweird.f32 %v174
        %vm181 = vmor %vm179, %vm180
        %v182 = vsel %vm181, %v174, %v178
        %v183 = vand.u32 2147483647, %v123
        %vm184 = vcmp.eq.f32.partialorder %v183, 8.507059e+37
        %v185 = vand.u32 %v123, 2147483648
        %v186 = vor.u32 1.1754944e-38, %v185
        %v187 = vsel %vm184, %v186, %v182
        %v188 = vmul.f32 %v173, %v187
        %vm189 = vweird.f32 %v123
        %v190 = vsel %vm189, %v173, %v188
        %191 = vst [vmem:[#allocation2] sm:$0xff] %v190
        %s193 = ssub.s32 16, 1
        %v194 = vld [vmem:[#allocation2] sm:%s193]
        %s196 = ssub.s32 16, 1
        %197 = vst [vmem:[%s108] sm:%s196] %v194
        %s198 = sand.u32 %s8, 1
        %s199 = sand.u32 %s8, 1
        %s200 = smul.addr %s199, 4
        %s201 = scalar_lea.vmem [#allocation3], %s200
        %s202 = sadd.s32 %s17, %s16
        %s203 = sadd.s32 %s202, %s15
        %s204 = sadd.s32 %s203, %s14
        %s205 = smul.addr %s204, 4
        %s206 = scalar_lea.vmem %s1, %s205
        // Predicated region
        $region51: #{custom-call.56} parent=49 // pred_check
          _
        $region52: #{custom-call.56} parent=49 // pred_check_branch
          %208 = sbr.rel (0) target = $region54
        $region53: #{custom-call.56} parent=49 // pred_region
          // Predicated region
          $region55: #{custom-call.56} parent=53 // pred_check
            _
          $region56: #{custom-call.56} parent=53 // pred_check_branch
            %210 = sbr.rel target = $region58
          $region57: #{custom-call.56} parent=53 // pred_region
            // Predicated region
            $region70: #{custom-call.56} parent=57 // pred_check
              _
            $region71: #{custom-call.56} parent=57 // pred_check_branch
              %226 = sbr.rel (0) target = $region73
            $region72: #{custom-call.56} parent=57 // pred_region
              %s228 = ssub.s32 16, 1
              loop: start=0, step=1, limit=1
              $region74: #{custom-call.56} parent=72 // loop_pre_header
                _
              $region75: #{custom-call.56} parent=72 // loop_header
                %s230 = sphi 0, %s234
                %p231 = scmp.ge.s32.totalorder %s230, 1
                %s235 = sphi %s201, %s201
                %s236 = sphi %s206, %s206
              $region76: #{custom-call.56} parent=72 // loop_header_branch
                %233 = sbr.rel (%p231) target = $region80
              $region77: #{custom-call.56} parent=72 // loop_body
                %v237 = vld [vmem:[%s235] sm:%s228]
                %238 = vst [vmem:[%s236] sm:%s228] %v237
              $region78: #{custom-call.56} parent=72 // loop_footer
                %s234 = sadd.s32 1, %s230
              $region79: #{custom-call.56} parent=72 // loop_footer_branch
                %229 = sbr.rel target = $region75
              $region80: #{custom-call.56} parent=72 // loop_exit
                _
            $region73: #{custom-call.56} parent=57 // pred_fallthru
              _
          $region58: #{custom-call.56} parent=53 // pred_fallthru
            _
          // Predicated region
          $region59: #{custom-call.56} parent=53 // pred_check
            _
          $region60: #{custom-call.56} parent=53 // pred_check_branch
            %212 = sbr.rel (0) target = $region62
          $region61: #{custom-call.56} parent=53 // pred_region
            %s214 = ssub.s32 16, 1
            loop: start=0, step=1, limit=1
            $region63: #{custom-call.56} parent=61 // loop_pre_header
              _
            $region64: #{custom-call.56} parent=61 // loop_header
              %s216 = sphi 0, %s220
              %p217 = scmp.ge.s32.totalorder %s216, 1
              %s221 = sphi %s201, %s201
              %s222 = sphi %s206, %s206
            $region65: #{custom-call.56} parent=61 // loop_header_branch
              %219 = sbr.rel (%p217) target = $region69
            $region66: #{custom-call.56} parent=61 // loop_body
              %v223 = vld [vmem:[%s221] sm:%s214]
              %224 = vst [vmem:[%s222] sm:%s214] %v223
            $region67: #{custom-call.56} parent=61 // loop_footer
              %s220 = sadd.s32 1, %s216
            $region68: #{custom-call.56} parent=61 // loop_footer_branch
              %215 = sbr.rel target = $region64
            $region69: #{custom-call.56} parent=61 // loop_exit
              _
          $region62: #{custom-call.56} parent=53 // pred_fallthru
            _
        $region54: #{custom-call.56} parent=49 // pred_fallthru
          _
        %239 = vnop
      $region50: #{custom-call.56} parent=5 // pred_fallthru
        _
      %p240 = scmp.le.s32.totalorder 2, %s3
      // Predicated region
      $region81: #{custom-call.56} parent=5 // pred_check
        %p241 = pneg %p240
      $region82: #{custom-call.56} parent=5 // pred_check_branch
        %243 = sbr.rel (%p241) target = $region84
      $region83: #{custom-call.56} parent=5 // pred_region
        %s244 = ssub.s32 %s3, 2
        %s245 = sand.u32 %s9, 1
        %s246 = sand.u32 %s9, 1
        %s247 = smul.addr %s246, 4
        %s248 = scalar_lea.vmem [#allocation3], %s247
      $region84: #{custom-call.56} parent=5 // pred_fallthru
        _
    $region6: #{custom-call.56} parent=1 // loop_footer
      %s7 = sadd.s32 1, %s3
    $region7: #{custom-call.56} parent=1 // loop_footer_branch
      %2 = sbr.rel target = $region3
    $region8: #{custom-call.56} parent=1 // loop_exit
      _

// kernel: pointnet_rot9d.2
$region0: #{pointnet_rot9d.2}
  #allocation0 [shape = 'u32[]', space=smem, size = 0x4, offset = 0x4, fixed_abs, tag = 'smem constant byte address 0x4 - core index']
  #allocation1 [shape = 'u32[72,128]{1,0:T(1,128)}', space=vmem, size = 0x9000, scoped, tag = 'internal scratch']
  #allocation2 [shape = 'bf16[1024,128]{1,0:T(8,128)(2,1)}', space=vmem, size = 0x40000, scoped, tag = 'scratch operand']
  %s0 = inlined_call_operand.vmem [shape: f32[2,3,1024], index: 0, kind: input, shape index: {}]
  %s1 = inlined_call_operand.vmem [shape: f32[64,3], index: 1, kind: input, shape index: {}]
  %s2 = inlined_call_operand.vmem [shape: f32[1,64], index: 2, kind: input, shape index: {}]
  %s3 = inlined_call_operand.vmem [shape: bf16[64,128], index: 3, kind: input, shape index: {}]
  %s4 = inlined_call_operand.vmem [shape: f32[1,128], index: 4, kind: input, shape index: {}]
  %s5 = inlined_call_operand.hbm [shape: bf16[128,1024], index: 5, kind: input, shape index: {}]
  %s6 = inlined_call_operand.vmem [shape: f32[1,1024], index: 6, kind: input, shape index: {}]
  %s7 = inlined_call_operand.vmem [shape: f32[2,1,1024], index: 7, kind: output, shape index: {}]
  %s8 = sld [smem:[#allocation0]]
  $region80: #{pointnet_rot9d.2} parent=0
    _
  %s10 = ssub.s32 1, %s8
  %s11 = scalar_select 0, %s10, %s8
  $region1: #{pointnet_rot9d.2} parent=0
    #allocation3 [shape = 'u8[262144]{0}', space=vmem, size = 0x40000, scoped, tag = 'input window, operand 5, single buffered']
    #allocation4 [shape = 's32[2]{0}', space=sflag, size = 0x8, scoped, tag = 'scoped memory for pointnet_rot9d.2']
    %12 = vsyncpa [#allocation4], 0
    loop: start=0, step=1, limit=4
    $region2: #{pointnet_rot9d.2} parent=1 // loop_pre_header
      _
    $region3: #{pointnet_rot9d.2} parent=1 // loop_header
      %s14 = sphi 0, %s18
      %p15 = scmp.ge.s32.totalorder %s14, 4
      %s21 = sphi 0, %s40
      %s22 = sphi 0, %s36
      %s23 = sphi 0, %s32
      %s24 = sphi 0, %s21
      %s25 = sphi 0, %s22
      %s26 = sphi 0, %s23
      %s27 = sphi 0, %s24
      %s28 = sphi 0, %s25
      %s29 = sphi 0, %s26
      %s47 = sphi 0, %s49
      %s50 = sphi 0, %s47
      %s51 = sphi 0, %s50
      %s67 = sphi 0, %s51
      %s71 = sphi 0, %s71
      %s73 = sphi 0, %s71
      %s74 = sphi 0, %s73
      %s88 = sphi 0, %s74
      %s92 = sphi 0, %s92
      %s94 = sphi 0, %s92
      %s95 = sphi 0, %s94
      %s109 = sphi 0, %s95
      %s113 = sphi 0, %s113
      %s115 = sphi 0, %s113
      %s116 = sphi 0, %s115
      %s130 = sphi 0, %s116
      %s134 = sphi 0, %s134
      %s136 = sphi 0, %s134
      %s137 = sphi 0, %s136
      %s151 = sphi 0, %s137
      %s155 = sphi 0, %s155
      %s157 = sphi 0, %s155
      %s158 = sphi 0, %s157
      %s172 = sphi 0, %s158
      %s176 = sphi 0, %s176
      %s178 = sphi 0, %s176
      %s179 = sphi 0, %s178
      %s193 = sphi 0, %s179
      %s201 = sphi 0, %s203
      %s204 = sphi 0, %s201
      %s205 = sphi 0, %s204
      %s221 = sphi 0, %s205
    $region4: #{pointnet_rot9d.2} parent=1 // loop_header_branch
      %17 = sbr.rel (%p15) target = $region8
    $region5: #{pointnet_rot9d.2} parent=1 // loop_body
      %s19 = ssub.s32 %s14, 1
      %s20 = ssub.s32 %s14, 2
      %s30 = sadd.s32 1, %s23
      %p31 = scmp.ge.s32.totalorder %s30, 1
      %s32 = scalar_select %p31, 0, %s30
      %s33 = sadd.s32 1, %s22
      %s34 = scalar_select %p31, %s33, %s22
      %p35 = scmp.ge.s32.totalorder %s34, 1
      %s36 = scalar_select %p35, 0, %s34
      %s37 = sadd.s32 1, %s21
      %s38 = scalar_select %p35, %s37, %s21
      %p39 = scmp.ge.s32.totalorder %s38, 2
      %s40 = scalar_select %p39, 0, %s38
      %s41 = sadd.s32 %s22, %s23
      %s42 = sadd.s32 %s36, %s32
      %s43 = ssub.s32 %s21, %s40
      %s44 = ssub.s32 %s41, %s42
      %s45 = sor.u32 %s43, %s44
      %p46 = scmp.eq.s32.totalorder %s45, 0
      %s48 = sadd.s32 %s47, 1
      %s49 = scalar_select %p46, %s47, %s48
      %p52 = pneg %p46
      %p53 = scmp.eq.s32.totalorder %s14, 1
      %p54 = por %p52, %p53
      %p55 = scmp.ne.s32.totalorder %s47, %s50
      %p56 = scmp.eq.s32.totalorder %s14, 0
      %p57 = por %p55, %p56
      %p58 = scmp.ne.s32.totalorder %s47, %s50
      %p59 = scmp.eq.s32.totalorder %s19, 1
      %p60 = por %p58, %p59
      %p61 = scmp.ne.s32.totalorder %s50, %s51
      %p62 = scmp.eq.s32.totalorder %s19, 0
      %p63 = por %p61, %p62
      %p64 = scmp.ne.s32.totalorder %s50, %s51
      %p65 = scmp.eq.s32.totalorder %s20, 1
      %p66 = por %p64, %p65
      %p68 = scmp.ne.s32.totalorder %s51, %s67
      %p69 = scmp.eq.s32.totalorder %s20, 0
      %p70 = por %p68, %p69
      %s72 = sadd.s32 %s71, 1
      %p75 = scmp.eq.s32.totalorder %s14, 1
      %p76 = scmp.ne.s32.totalorder %s71, %s73
      %p77 = scmp.eq.s32.totalorder %s14, 0
      %p78 = por %p76, %p77
      %p79 = scmp.ne.s32.totalorder %s71, %s73
      %p80 = scmp.eq.s32.totalorder %s19, 1
      %p81 = por %p79, %p80
      %p82 = scmp.ne.s32.totalorder %s73, %s74
      %p83 = scmp.eq.s32.totalorder %s19, 0
      %p84 = por %p82, %p83
      %p85 = scmp.ne.s32.totalorder %s73, %s74
      %p86 = scmp.eq.s32.totalorder %s20, 1
      %p87 = por %p85, %p86
      %p89 = scmp.ne.s32.totalorder %s74, %s88
      %p90 = scmp.eq.s32.totalorder %s20, 0
      %p91 = por %p89, %p90
      %s93 = sadd.s32 %s92, 1
      %p96 = scmp.eq.s32.totalorder %s14, 1
      %p97 = scmp.ne.s32.totalorder %s92, %s94
      %p98 = scmp.eq.s32.totalorder %s14, 0
      %p99 = por %p97, %p98
      %p100 = scmp.ne.s32.totalorder %s92, %s94
      %p101 = scmp.eq.s32.totalorder %s19, 1
      %p102 = por %p100, %p101
      %p103 = scmp.ne.s32.totalorder %s94, %s95
      %p104 = scmp.eq.s32.totalorder %s19, 0
      %p105 = por %p103, %p104
      %p106 = scmp.ne.s32.totalorder %s94, %s95
      %p107 = scmp.eq.s32.totalorder %s20, 1
      %p108 = por %p106, %p107
      %p110 = scmp.ne.s32.totalorder %s95, %s109
      %p111 = scmp.eq.s32.totalorder %s20, 0
      %p112 = por %p110, %p111
      %s114 = sadd.s32 %s113, 1
      %p117 = scmp.eq.s32.totalorder %s14, 1
      %p118 = scmp.ne.s32.totalorder %s113, %s115
      %p119 = scmp.eq.s32.totalorder %s14, 0
      %p120 = por %p118, %p119
      %p121 = scmp.ne.s32.totalorder %s113, %s115
      %p122 = scmp.eq.s32.totalorder %s19, 1
      %p123 = por %p121, %p122
      %p124 = scmp.ne.s32.totalorder %s115, %s116
      %p125 = scmp.eq.s32.totalorder %s19, 0
      %p126 = por %p124, %p125
      %p127 = scmp.ne.s32.totalorder %s115, %s116
      %p128 = scmp.eq.s32.totalorder %s20, 1
      %p129 = por %p127, %p128
      %p131 = scmp.ne.s32.totalorder %s116, %s130
      %p132 = scmp.eq.s32.totalorder %s20, 0
      %p133 = por %p131, %p132
      %s135 = sadd.s32 %s134, 1
      %p138 = scmp.eq.s32.totalorder %s14, 1
      %p139 = scmp.ne.s32.totalorder %s134, %s136
      %p140 = scmp.eq.s32.totalorder %s14, 0
      %p141 = por %p139, %p140
      %p142 = scmp.ne.s32.totalorder %s134, %s136
      %p143 = scmp.eq.s32.totalorder %s19, 1
      %p144 = por %p142, %p143
      %p145 = scmp.ne.s32.totalorder %s136, %s137
      %p146 = scmp.eq.s32.totalorder %s19, 0
      %p147 = por %p145, %p146
      %p148 = scmp.ne.s32.totalorder %s136, %s137
      %p149 = scmp.eq.s32.totalorder %s20, 1
      %p150 = por %p148, %p149
      %p152 = scmp.ne.s32.totalorder %s137, %s151
      %p153 = scmp.eq.s32.totalorder %s20, 0
      %p154 = por %p152, %p153
      %s156 = sadd.s32 %s155, 1
      %p159 = scmp.eq.s32.totalorder %s14, 1
      %p160 = scmp.ne.s32.totalorder %s155, %s157
      %p161 = scmp.eq.s32.totalorder %s14, 0
      %p162 = por %p160, %p161
      %p163 = scmp.ne.s32.totalorder %s155, %s157
      %p164 = scmp.eq.s32.totalorder %s19, 1
      %p165 = por %p163, %p164
      %p166 = scmp.ne.s32.totalorder %s157, %s158
      %p167 = scmp.eq.s32.totalorder %s19, 0
      %p168 = por %p166, %p167
      %p169 = scmp.ne.s32.totalorder %s157, %s158
      %p170 = scmp.eq.s32.totalorder %s20, 1
      %p171 = por %p169, %p170
      %p173 = scmp.ne.s32.totalorder %s158, %s172
      %p174 = scmp.eq.s32.totalorder %s20, 0
      %p175 = por %p173, %p174
      %s177 = sadd.s32 %s176, 1
      %p180 = scmp.eq.s32.totalorder %s14, 1
      %p181 = scmp.ne.s32.totalorder %s176, %s178
      %p182 = scmp.eq.s32.totalorder %s14, 0
      %p183 = por %p181, %p182
      %p184 = scmp.ne.s32.totalorder %s176, %s178
      %p185 = scmp.eq.s32.totalorder %s19, 1
      %p186 = por %p184, %p185
      %p187 = scmp.ne.s32.totalorder %s178, %s179
      %p188 = scmp.eq.s32.totalorder %s19, 0
      %p189 = por %p187, %p188
      %p190 = scmp.ne.s32.totalorder %s178, %s179
      %p191 = scmp.eq.s32.totalorder %s20, 1
      %p192 = por %p190, %p191
      %p194 = scmp.ne.s32.totalorder %s179, %s193
      %p195 = scmp.eq.s32.totalorder %s20, 0
      %p196 = por %p194, %p195
      %s197 = sadd.s32 %s21, %s22
      %s198 = sadd.s32 %s40, %s36
      %s199 = ssub.s32 %s197, %s198
      %p200 = scmp.eq.s32.totalorder %s199, 0
      %s202 = sadd.s32 %s201, 1
      %s203 = scalar_select %p200, %s201, %s202
      %p206 = pneg %p200
      %p207 = scmp.eq.s32.totalorder %s14, 1
      %p208 = por %p206, %p207
      %p209 = scmp.ne.s32.totalorder %s201, %s204
      %p210 = scmp.eq.s32.totalorder %s14, 0
      %p211 = por %p209, %p210
      %p212 = scmp.ne.s32.totalorder %s201, %s204
      %p213 = scmp.eq.s32.totalorder %s19, 1
      %p214 = por %p212, %p213
      %p215 = scmp.ne.s32.totalorder %s204, %s205
      %p216 = scmp.eq.s32.totalorder %s19, 0
      %p217 = por %p215, %p216
      %p218 = scmp.ne.s32.totalorder %s204, %s205
      %p219 = scmp.eq.s32.totalorder %s20, 1
      %p220 = por %p218, %p219
      %p222 = scmp.ne.s32.totalorder %s205, %s221
      %p223 = scmp.eq.s32.totalorder %s20, 0
      %p224 = por %p222, %p223
      %p225 = scmp.le.s32.totalorder 1, %s14
      %p226 = scmp.lt.s32.totalorder %s14, 3
      %p227 = pnand %p225, %p226
      %p228 = pneg %p227
      // Predicated region
      $region9: #{pointnet_rot9d.2} parent=5 // pred_check
        _
      $region10: #{pointnet_rot9d.2} parent=5 // pred_check_branch
        %230 = sbr.rel (%p227) target = $region12
      $region11: #{pointnet_rot9d.2} parent=5 // pred_region
        %s231 = ssub.s32 %s14, 1
        // Predicated region
        $region13: #{pointnet_rot9d.2} parent=11 // pred_check
          %p232 = pneg %p84
        $region14: #{pointnet_rot9d.2} parent=11 // pred_check_branch
          %234 = sbr.rel (%p232) target = $region16
        $region15: #{pointnet_rot9d.2} parent=11 // pred_region
          _
        $region16: #{pointnet_rot9d.2} parent=11 // pred_fallthru
          _
        // Predicated region
        $region17: #{pointnet_rot9d.2} parent=11 // pred_check
          %p235 = pneg %p105
        $region18: #{pointnet_rot9d.2} parent=11 // pred_check_branch
          %237 = sbr.rel (%p235) target = $region20
        $region19: #{pointnet_rot9d.2} parent=11 // pred_region
          _
        $region20: #{pointnet_rot9d.2} parent=11 // pred_fallthru
          _
        // Predicated region
        $region21: #{pointnet_rot9d.2} parent=11 // pred_check
          %p238 = pneg %p126
        $region22: #{pointnet_rot9d.2} parent=11 // pred_check_branch
          %240 = sbr.rel (%p238) target = $region24
        $region23: #{pointnet_rot9d.2} parent=11 // pred_region
          _
        $region24: #{pointnet_rot9d.2} parent=11 // pred_fallthru
          _
        // Predicated region
        $region25: #{pointnet_rot9d.2} parent=11 // pred_check
          %p241 = pneg %p147
        $region26: #{pointnet_rot9d.2} parent=11 // pred_check_branch
          %243 = sbr.rel (%p241) target = $region28
        $region27: #{pointnet_rot9d.2} parent=11 // pred_region
          _
        $region28: #{pointnet_rot9d.2} parent=11 // pred_fallthru
          _
        // Predicated region
        $region29: #{pointnet_rot9d.2} parent=11 // pred_check
          %p244 = pneg %p168
        $region30: #{pointnet_rot9d.2} parent=11 // pred_check_branch
          %246 = sbr.rel (%p244) target = $region32
        $region31: #{pointnet_rot9d.2} parent=11 // pred_region
          %248 = vsyncadd [#allocation4], 0
          %s249 = sshll.u32 %s5, 4
          %s250 = int_to_ptr.hbm [resolvable:$true] %s249
          %s251 = sshll.u32 [#allocation3], 4
          %s252 = int_to_ptr.vmem [resolvable:$true] %s251
          %257 = dma.hbm_to_vmem [thread:$0]  %s250, 8192, %s252, [#allocation4], 512, 512, 32
        $region32: #{pointnet_rot9d.2} parent=11 // pred_fallthru
          _
        // Predicated region
        $region33: #{pointnet_rot9d.2} parent=11 // pred_check
          %p258 = pneg %p189
        $region34: #{pointnet_rot9d.2} parent=11 // pred_check_branch
          %260 = sbr.rel (%p258) target = $region36
        $region35: #{pointnet_rot9d.2} parent=11 // pred_region
          _
        $region36: #{pointnet_rot9d.2} parent=11 // pred_fallthru
          _
      $region12: #{pointnet_rot9d.2} parent=5 // pred_fallthru
        _
      %p261 = scmp.lt.s32.totalorder %s14, 2
      // Predicated region
      $region37: #{pointnet_rot9d.2} parent=5 // pred_check
        %p262 = pneg %p261
      $region38: #{pointnet_rot9d.2} parent=5 // pred_check_branch
        %264 = sbr.rel (%p262) target = $region40
      $region39: #{pointnet_rot9d.2} parent=5 // pred_region
        // Predicated region
        $region41: #{pointnet_rot9d.2} parent=39 // pred_check
          %p265 = pneg %p57
        $region42: #{pointnet_rot9d.2} parent=39 // pred_check_branch
          %267 = sbr.rel (%p265) target = $region44
        $region43: #{pointnet_rot9d.2} parent=39 // pred_region
          %s268 = sadd.s32 %s22, %s23
          %s269 = smul.u32 8, %s268
          %p270 = scmp.lt.s32.totalorder %s21, 1
          %s271 = scalar_select %p270, %s21, 1
          %p272 = scmp.lt.s32.totalorder %s269, 7
          %s273 = scalar_select %p272, %s269, 7
          %s274 = smul.addr %s271, 8
          %s275 = sadd.s32 %s273, %s274
          %s276 = smul.addr %s275, 4
          %s277 = scalar_lea.vmem %s0, %s276
          %s278 = sadd.s32 %s22, %s23
          %s279 = smul.u32 8, %s278
        $region44: #{pointnet_rot9d.2} parent=39 // pred_fallthru
          _
      $region40: #{pointnet_rot9d.2} parent=5 // pred_fallthru
        _
      %p280 = scmp.le.s32.totalorder 1, %s14
      %p281 = scmp.lt.s32.totalorder %s14, 3
      %p282 = pnand %p280, %p281
      %p283 = pneg %p282
      // Predicated region
      $region45: #{pointnet_rot9d.2} parent=5 // pred_check
        _
      $region46: #{pointnet_rot9d.2} parent=5 // pred_check_branch
        %285 = sbr.rel (%p282) target = $region48
      $region47: #{pointnet_rot9d.2} parent=5 // pred_region
        %s286 = ssub.s32 %s14, 1
        // Predicated region
        $region49: #{pointnet_rot9d.2} parent=47 // pred_check
          %p287 = pneg %p168
        $region50: #{pointnet_rot9d.2} parent=47 // pred_check_branch
          %289 = sbr.rel (%p287) target = $region52
        $region51: #{pointnet_rot9d.2} parent=47 // pred_region
          %291 = dma.done [#allocation4], 8192
        $region52: #{pointnet_rot9d.2} parent=47 // pred_fallthru
          _
        %s292 = sadd.s32 %s25, %s26
        %s293 = smul.u32 8, %s292
        %p294 = scmp.lt.s32.totalorder %s24, 1
        %s295 = scalar_select %p294, %s24, 1
        %p296 = scmp.lt.s32.totalorder %s293, 7
        %s297 = scalar_select %p296, %s293, 7
        %s298 = smul.addr %s295, 8
        %s299 = sadd.s32 %s297, %s298
        %s300 = smul.addr %s299, 4
        %s301 = scalar_lea.vmem %s0, %s300
        %p302 = pneg %p63
        %p303 = pneg %p60
        %p304 = pneg %p84
        %p305 = pneg %p81
        %p306 = pneg %p105
        %p307 = pneg %p102
        %p308 = pneg %p126
        %p309 = pneg %p123
        %p310 = pneg %p147
        %p311 = pneg %p144
        %p312 = pneg %p168
        %p313 = pneg %p165
        %p314 = pneg %p189
        %p315 = pneg %p186
        %p316 = pneg %p217
        %p317 = pneg %p214
        %s318 = sadd.s32 %s24, %s25
        %p319 = scmp.lt.s32.totalorder %s318, 1
        %s320 = scalar_select %p319, %s318, 1
        %s321 = smul.addr %s320, 8
        %s322 = scalar_lea.vmem %s7, %s321
        %s323 = sadd.s32 %s25, %s26
        %s324 = smul.u32 8, %s323
        %p325 = scmp.lt.s32.totalorder %s24, 1
        %s326 = scalar_select %p325, %s24, 1
        %p327 = scmp.lt.s32.totalorder %s324, 7
        %s328 = scalar_select %p327, %s324, 7
        %s329 = smul.addr %s326, 8
        %s330 = sadd.s32 %s328, %s329
        %s331 = smul.addr %s330, 4
        %s332 = scalar_lea.vmem %s0, %s331
        %s333 = sadd.s32 %s25, %s26
        %s334 = smul.u32 8, %s333
        %s335 = sadd.s32 %s24, %s25
        %p336 = scmp.lt.s32.totalorder %s335, 1
        %s337 = scalar_select %p336, %s335, 1
        %s338 = smul.addr %s337, 8
        %s339 = scalar_lea.vmem %s7, %s338
        %s340 = sadd.s32 %s24, %s25
        %v342 = vld [vmem:[%s332] sm:$0x77]
        %v343 = vld [vmem:[%s332 + $0x8] sm:$0x77]
        %v344 = vld [vmem:[%s332 + $0x10] sm:$0x77]
        %v345 = vld [vmem:[%s332 + $0x18] sm:$0x77]
        %v346 = vld [vmem:[%s1] sm:$0xff]
        %v347 = vld [vmem:[%s1 + $0x8] sm:$0xff]
        %v348 = vld [vmem:[%s1 + $0x10] sm:$0xff]
        %v349 = vld [vmem:[%s1 + $0x18] sm:$0xff]
        %v350 = vld [vmem:[%s1 + $0x20] sm:$0xff]
        %v351 = vld [vmem:[%s1 + $0x28] sm:$0xff]
        %v352 = vld [vmem:[%s1 + $0x30] sm:$0xff]
        %v353 = vld [vmem:[%s1 + $0x38] sm:$0xff]
        %355 = vset.pattern.permute.xlu0 0
        %356 = vperm.xlu0 %355, %v346
        %v357 = vpop.permute.xlu0 %356
        %360 = vset.pattern.permute.xlu0 0
        %361 = vperm.xlu0 %360, %v347
        %v362 = vpop.permute.xlu0 %361
        %365 = vset.pattern.permute.xlu0 0
        %366 = vperm.xlu0 %365, %v348
        %v367 = vpop.permute.xlu0 %366
        %370 = vset.pattern.permute.xlu0 0
        %371 = vperm.xlu0 %370, %v349
        %v372 = vpop.permute.xlu0 %371
        %375 = vset.pattern.permute.xlu0 0
        %376 = vperm.xlu0 %375, %v350
        %v377 = vpop.permute.xlu0 %376
        %380 = vset.pattern.permute.xlu0 0
        %381 = vperm.xlu0 %380, %v351
        %v382 = vpop.permute.xlu0 %381
        %385 = vset.pattern.permute.xlu0 0
        %386 = vperm.xlu0 %385, %v352
        %v387 = vpop.permute.xlu0 %386
        %390 = vset.pattern.permute.xlu0 0
        %391 = vperm.xlu0 %390, %v353
        %v392 = vpop.permute.xlu0 %391
        %v398 = vperm.slane %v342, 0
        %v399 = vperm.slane %v342, 4
        %v400 = vperm.slane %v343, 0
        %v401 = vperm.slane %v343, 4
        %v402 = vperm.slane %v344, 0
        %v403 = vperm.slane %v344, 4
        %v404 = vperm.slane %v345, 0
        %v405 = vperm.slane %v345, 4
        %v414 = vperm.slane %v398, 0
        %v415 = vperm.slane %v399, 0
        %v416 = vperm.slane %v400, 0
        %v417 = vperm.slane %v401, 0
        %v418 = vperm.slane %v402, 0
        %v419 = vperm.slane %v403, 0
        %v420 = vperm.slane %v404, 0
        %v421 = vperm.slane %v405, 0
        %v422 = vmul.f32 %v357, %v414
        %v423 = vmul.f32 %v357, %v415
        %v424 = vmul.f32 %v357, %v416
        %v425 = vmul.f32 %v357, %v417
        %v426 = vmul.f32 %v357, %v418
        %v427 = vmul.f32 %v357, %v419
        %v428 = vmul.f32 %v357, %v420
        %v429 = vmul.f32 %v357, %v421
        %v430 = vmul.f32 %v362, %v414
        %v431 = vmul.f32 %v362, %v415
        %v432 = vmul.f32 %v362, %v416
        %v433 = vmul.f32 %v362, %v417
        %v434 = vmul.f32 %v362, %v418
        %v435 = vmul.f32 %v362, %v419
        %v436 = vmul.f32 %v362, %v420
        %v437 = vmul.f32 %v362, %v421
        %v438 = vmul.f32 %v367, %v414
        %v439 = vmul.f32 %v367, %v415
        %v440 = vmul.f32 %v367, %v416
        %v441 = vmul.f32 %v367, %v417
        %v442 = vmul.f32 %v367, %v418
        %v443 = vmul.f32 %v367, %v419
        %v444 = vmul.f32 %v367, %v420
        %v445 = vmul.f32 %v367, %v421
        %v446 = vmul.f32 %v372, %v414
        %v447 = vmul.f32 %v372, %v415
        %v448 = vmul.f32 %v372, %v416
        %v449 = vmul.f32 %v372, %v417
        %v450 = vmul.f32 %v372, %v418
        %v451 = vmul.f32 %v372, %v419
        %v452 = vmul.f32 %v372, %v420
        %v453 = vmul.f32 %v372, %v421
        %v454 = vmul.f32 %v377, %v414
        %v455 = vmul.f32 %v377, %v415
        %v456 = vmul.f32 %v377, %v416
        %v457 = vmul.f32 %v377, %v417
        %v458 = vmul.f32 %v377, %v418
        %v459 = vmul.f32 %v377, %v419
        %v460 = vmul.f32 %v377, %v420
        %v461 = vmul.f32 %v377, %v421
        %v462 = vmul.f32 %v382, %v414
        %v463 = vmul.f32 %v382, %v415
        %v464 = vmul.f32 %v382, %v416
        %v465 = vmul.f32 %v382, %v417
        %v466 = vmul.f32 %v382, %v418
        %v467 = vmul.f32 %v382, %v419
        %v468 = vmul.f32 %v382, %v420
        %v469 = vmul.f32 %v382, %v421
        %v470 = vmul.f32 %v387, %v414
        %v471 = vmul.f32 %v387, %v415
        %v472 = vmul.f32 %v387, %v416
        %v473 = vmul.f32 %v387, %v417
        %v474 = vmul.f32 %v387, %v418
        %v475 = vmul.f32 %v387, %v419
        %v476 = vmul.f32 %v387, %v420
        %v477 = vmul.f32 %v387, %v421
        %v478 = vmul.f32 %v392, %v414
        %v479 = vmul.f32 %v392, %v415
        %v480 = vmul.f32 %v392, %v416
        %v481 = vmul.f32 %v392, %v417
        %v482 = vmul.f32 %v392, %v418
        %v483 = vmul.f32 %v392, %v419
        %v484 = vmul.f32 %v392, %v420
        %v485 = vmul.f32 %v392, %v421
        %486 = vset.pattern.permute.xlu0 1
        %487 = vperm.xlu0 %486, %v346
        %v488 = vpop.permute.xlu0 %487
        %490 = vset.pattern.permute.xlu0 1
        %491 = vperm.xlu0 %490, %v347
        %v492 = vpop.permute.xlu0 %491
        %494 = vset.pattern.permute.xlu0 1
        %495 = vperm.xlu0 %494, %v348
        %v496 = vpop.permute.xlu0 %495
        %498 = vset.pattern.permute.xlu0 1
        %499 = vperm.xlu0 %498, %v349
        %v500 = vpop.permute.xlu0 %499
        %502 = vset.pattern.permute.xlu0 1
        %503 = vperm.xlu0 %502, %v350
        %v504 = vpop.permute.xlu0 %503
        %506 = vset.pattern.permute.xlu0 1
        %507 = vperm.xlu0 %506, %v351
        %v508 = vpop.permute.xlu0 %507
        %510 = vset.pattern.permute.xlu0 1
        %511 = vperm.xlu0 %510, %v352
        %v512 = vpop.permute.xlu0 %511
        %514 = vset.pattern.permute.xlu0 1
        %515 = vperm.xlu0 %514, %v353
        %v516 = vpop.permute.xlu0 %515
        %v518 = vperm.slane %v342, 1
        %v519 = vperm.slane %v342, 5
        %v520 = vperm.slane %v343, 1
        %v521 = vperm.slane %v343, 5
        %v522 = vperm.slane %v344, 1
        %v523 = vperm.slane %v344, 5
        %v524 = vperm.slane %v345, 1
        %v525 = vperm.slane %v345, 5
        %v534 = vperm.slane %v518, 1
        %v535 = vperm.slane %v519, 1
        %v536 = vperm.slane %v520, 1
        %v537 = vperm.slane %v521, 1
        %v538 = vperm.slane %v522, 1
        %v539 = vperm.slane %v523, 1
        %v540 = vperm.slane %v524, 1
        %v541 = vperm.slane %v525, 1
        %v542 = vmul.f32 %v488, %v534
        %v543 = vmul.f32 %v488, %v535
        %v544 = vmul.f32 %v488, %v536
        %v545 = vmul.f32 %v488, %v537
        %v546 = vmul.f32 %v488, %v538
        %v547 = vmul.f32 %v488, %v539
        %v548 = vmul.f32 %v488, %v540
        %v549 = vmul.f32 %v488, %v541
        %v550 = vmul.f32 %v492, %v534
        %v551 = vmul.f32 %v492, %v535
        %v552 = vmul.f32 %v492, %v536
        %v553 = vmul.f32 %v492, %v537
        %v554 = vmul.f32 %v492, %v538
        %v555 = vmul.f32 %v492, %v539
        %v556 = vmul.f32 %v492, %v540
        %v557 = vmul.f32 %v492, %v541
        %v558 = vmul.f32 %v496, %v534
        %v559 = vmul.f32 %v496, %v535
        %v560 = vmul.f32 %v496, %v536
        %v561 = vmul.f32 %v496, %v537
        %v562 = vmul.f32 %v496, %v538
        %v563 = vmul.f32 %v496, %v539
        %v564 = vmul.f32 %v496, %v540
        %v565 = vmul.f32 %v496, %v541
        %v566 = vmul.f32 %v500, %v534
        %v567 = vmul.f32 %v500, %v535
        %v568 = vmul.f32 %v500, %v536
        %v569 = vmul.f32 %v500, %v537
        %v570 = vmul.f32 %v500, %v538
        %v571 = vmul.f32 %v500, %v539
        %v572 = vmul.f32 %v500, %v540
        %v573 = vmul.f32 %v500, %v541
        %v574 = vmul.f32 %v504, %v534
        %v575 = vmul.f32 %v504, %v535
        %v576 = vmul.f32 %v504, %v536
        %v577 = vmul.f32 %v504, %v537
        %v578 = vmul.f32 %v504, %v538
        %v579 = vmul.f32 %v504, %v539
        %v580 = vmul.f32 %v504, %v540
        %v581 = vmul.f32 %v504, %v541
        %v582 = vmul.f32 %v508, %v534
        %v583 = vmul.f32 %v508, %v535
        %v584 = vmul.f32 %v508, %v536
        %v585 = vmul.f32 %v508, %v537
        %v586 = vmul.f32 %v508, %v538
        %v587 = vmul.f32 %v508, %v539
        %v588 = vmul.f32 %v508, %v540
        %v589 = vmul.f32 %v508, %v541
        %v590 = vmul.f32 %v512, %v534
        %v591 = vmul.f32 %v512, %v535
        %v592 = vmul.f32 %v512, %v536
        %v593 = vmul.f32 %v512, %v537
        %v594 = vmul.f32 %v512, %v538
        %v595 = vmul.f32 %v512, %v539
        %v596 = vmul.f32 %v512, %v540
        %v597 = vmul.f32 %v512, %v541
        %v598 = vmul.f32 %v516, %v534
        %v599 = vmul.f32 %v516, %v535
        %v600 = vmul.f32 %v516, %v536
        %v601 = vmul.f32 %v516, %v537
        %v602 = vmul.f32 %v516, %v538
        %v603 = vmul.f32 %v516, %v539
        %v604 = vmul.f32 %v516, %v540
        %v605 = vmul.f32 %v516, %v541
        %v606 = vadd.f32 %v422, %v542
        %v607 = vadd.f32 %v423, %v543
        %v608 = vadd.f32 %v424, %v544
        %v609 = vadd.f32 %v425, %v545
        %v610 = vadd.f32 %v426, %v546
        %v611 = vadd.f32 %v427, %v547
        %v612 = vadd.f32 %v428, %v548
        %v613 = vadd.f32 %v429, %v549
        %v614 = vadd.f32 %v430, %v550
        %v615 = vadd.f32 %v431, %v551
        %v616 = vadd.f32 %v432, %v552
        %v617 = vadd.f32 %v433, %v553
        %v618 = vadd.f32 %v434, %v554
        %v619 = vadd.f32 %v435, %v555
        %v620 = vadd.f32 %v436, %v556
        %v621 = vadd.f32 %v437, %v557
        %v622 = vadd.f32 %v438, %v558
        %v623 = vadd.f32 %v439, %v559
        %v624 = vadd.f32 %v440, %v560
        %v625 = vadd.f32 %v441, %v561
        %v626 = vadd.f32 %v442, %v562
        %v627 = vadd.f32 %v443, %v563
        %v628 = vadd.f32 %v444, %v564
        %v629 = vadd.f32 %v445, %v565
        %v630 = vadd.f32 %v446, %v566
        %v631 = vadd.f32 %v447, %v567
        %v632 = vadd.f32 %v448, %v568
        %v633 = vadd.f32 %v449, %v569
        %v634 = vadd.f32 %v450, %v570
        %v635 = vadd.f32 %v451, %v571
        %v636 = vadd.f32 %v452, %v572
        %v637 = vadd.f32 %v453, %v573
        %v638 = vadd.f32 %v454, %v574
        %v639 = vadd.f32 %v455, %v575
        %v640 = vadd.f32 %v456, %v576
        %v641 = vadd.f32 %v457, %v577
        %v642 = vadd.f32 %v458, %v578
        %v643 = vadd.f32 %v459, %v579
        %v644 = vadd.f32 %v460, %v580
        %v645 = vadd.f32 %v461, %v581
        %v646 = vadd.f32 %v462, %v582
        %v647 = vadd.f32 %v463, %v583
        %v648 = vadd.f32 %v464, %v584
        %v649 = vadd.f32 %v465, %v585
        %v650 = vadd.f32 %v466, %v586
        %v651 = vadd.f32 %v467, %v587
        %v652 = vadd.f32 %v468, %v588
        %v653 = vadd.f32 %v469, %v589
        %v654 = vadd.f32 %v470, %v590
        %v655 = vadd.f32 %v471, %v591
        %v656 = vadd.f32 %v472, %v592
        %v657 = vadd.f32 %v473, %v593
        %v658 = vadd.f32 %v474, %v594
        %v659 = vadd.f32 %v475, %v595
        %v660 = vadd.f32 %v476, %v596
        %v661 = vadd.f32 %v477, %v597
        %v662 = vadd.f32 %v478, %v598
        %v663 = vadd.f32 %v479, %v599
        %v664 = vadd.f32 %v480, %v600
        %v665 = vadd.f32 %v481, %v601
        %v666 = vadd.f32 %v482, %v602
        %v667 = vadd.f32 %v483, %v603
        %v668 = vadd.f32 %v484, %v604
        %v669 = vadd.f32 %v485, %v605
        %670 = vset.pattern.permute.xlu0 2
        %671 = vperm.xlu0 %670, %v346
        %v672 = vpop.permute.xlu0 %671
        %674 = vset.pattern.permute.xlu0 2
        %675 = vperm.xlu0 %674, %v347
        %v676 = vpop.permute.xlu0 %675
        %678 = vset.pattern.permute.xlu0 2
        %679 = vperm.xlu0 %678, %v348
        %v680 = vpop.permute.xlu0 %679
        %682 = vset.pattern.permute.xlu0 2
        %683 = vperm.xlu0 %682, %v349
        %v684 = vpop.permute.xlu0 %683
        %686 = vset.pattern.permute.xlu0 2
        %687 = vperm.xlu0 %686, %v350
        %v688 = vpop.permute.xlu0 %687
        %690 = vset.pattern.permute.xlu0 2
        %691 = vperm.xlu0 %690, %v351
        %v692 = vpop.permute.xlu0 %691
        %694 = vset.pattern.permute.xlu0 2
        %695 = vperm.xlu0 %694, %v352
        %v696 = vpop.permute.xlu0 %695
        %698 = vset.pattern.permute.xlu0 2
        %699 = vperm.xlu0 %698, %v353
        %v700 = vpop.permute.xlu0 %699
        %v702 = vperm.slane %v342, 2
        %v703 = vperm.slane %v342, 6
        %v704 = vperm.slane %v343, 2
        %v705 = vperm.slane %v343, 6
        %v706 = vperm.slane %v344, 2
        %v707 = vperm.slane %v344, 6
        %v708 = vperm.slane %v345, 2
        %v709 = vperm.slane %v345, 6
        %v718 = vperm.slane %v702, 2
        %v719 = vperm.slane %v703, 2
        %v720 = vperm.slane %v704, 2
        %v721 = vperm.slane %v705, 2
        %v722 = vperm.slane %v706, 2
        %v723 = vperm.slane %v707, 2
        %v724 = vperm.slane %v708, 2
        %v725 = vperm.slane %v709, 2
        %v726 = vmul.f32 %v672, %v718
        %v727 = vmul.f32 %v672, %v719
        %v728 = vmul.f32 %v672, %v720
        %v729 = vmul.f32 %v672, %v721
        %v730 = vmul.f32 %v672, %v722
        %v731 = vmul.f32 %v672, %v723
        %v732 = vmul.f32 %v672, %v724
        %v733 = vmul.f32 %v672, %v725
        %v734 = vmul.f32 %v676, %v718
        %v735 = vmul.f32 %v676, %v719
        %v736 = vmul.f32 %v676, %v720
        %v737 = vmul.f32 %v676, %v721
        %v738 = vmul.f32 %v676, %v722
        %v739 = vmul.f32 %v676, %v723
        %v740 = vmul.f32 %v676, %v724
        %v741 = vmul.f32 %v676, %v725
        %v742 = vmul.f32 %v680, %v718
        %v743 = vmul.f32 %v680, %v719
        %v744 = vmul.f32 %v680, %v720
        %v745 = vmul.f32 %v680, %v721
        %v746 = vmul.f32 %v680, %v722
        %v747 = vmul.f32 %v680, %v723
        %v748 = vmul.f32 %v680, %v724
        %v749 = vmul.f32 %v680, %v725
        %v750 = vmul.f32 %v684, %v718
        %v751 = vmul.f32 %v684, %v719
        %v752 = vmul.f32 %v684, %v720
        %v753 = vmul.f32 %v684, %v721
        %v754 = vmul.f32 %v684, %v722
        %v755 = vmul.f32 %v684, %v723
        %v756 = vmul.f32 %v684, %v724
        %v757 = vmul.f32 %v684, %v725
        %v758 = vmul.f32 %v688, %v718
        %v759 = vmul.f32 %v688, %v719
        %v760 = vmul.f32 %v688, %v720
        %v761 = vmul.f32 %v688, %v721
        %v762 = vmul.f32 %v688, %v722
        %v763 = vmul.f32 %v688, %v723
        %v764 = vmul.f32 %v688, %v724
        %v765 = vmul.f32 %v688, %v725
        %v766 = vmul.f32 %v692, %v718
        %v767 = vmul.f32 %v692, %v719
        %v768 = vmul.f32 %v692, %v720
        %v769 = vmul.f32 %v692, %v721
        %v770 = vmul.f32 %v692, %v722
        %v771 = vmul.f32 %v692, %v723
        %v772 = vmul.f32 %v692, %v724
        %v773 = vmul.f32 %v692, %v725
        %v774 = vmul.f32 %v696, %v718
        %v775 = vmul.f32 %v696, %v719
        %v776 = vmul.f32 %v696, %v720
        %v777 = vmul.f32 %v696, %v721
        %v778 = vmul.f32 %v696, %v722
        %v779 = vmul.f32 %v696, %v723
        %v780 = vmul.f32 %v696, %v724
        %v781 = vmul.f32 %v696, %v725
        %v782 = vmul.f32 %v700, %v718
        %v783 = vmul.f32 %v700, %v719
        %v784 = vmul.f32 %v700, %v720
        %v785 = vmul.f32 %v700, %v721
        %v786 = vmul.f32 %v700, %v722
        %v787 = vmul.f32 %v700, %v723
        %v788 = vmul.f32 %v700, %v724
        %v789 = vmul.f32 %v700, %v725
        %v790 = vadd.f32 %v606, %v726
        %v791 = vadd.f32 %v607, %v727
        %v792 = vadd.f32 %v608, %v728
        %v793 = vadd.f32 %v609, %v729
        %v794 = vadd.f32 %v610, %v730
        %v795 = vadd.f32 %v611, %v731
        %v796 = vadd.f32 %v612, %v732
        %v797 = vadd.f32 %v613, %v733
        %v798 = vadd.f32 %v614, %v734
        %v799 = vadd.f32 %v615, %v735
        %v800 = vadd.f32 %v616, %v736
        %v801 = vadd.f32 %v617, %v737
        %v802 = vadd.f32 %v618, %v738
        %v803 = vadd.f32 %v619, %v739
        %v804 = vadd.f32 %v620, %v740
        %v805 = vadd.f32 %v621, %v741
        %v806 = vadd.f32 %v622, %v742
        %v807 = vadd.f32 %v623, %v743
        %v808 = vadd.f32 %v624, %v744
        %v809 = vadd.f32 %v625, %v745
        %v810 = vadd.f32 %v626, %v746
        %v811 = vadd.f32 %v627, %v747
        %v812 = vadd.f32 %v628, %v748
        %v813 = vadd.f32 %v629, %v749
        %v814 = vadd.f32 %v630, %v750
        %v815 = vadd.f32 %v631, %v751
        %v816 = vadd.f32 %v632, %v752
        %v817 = vadd.f32 %v633, %v753
        %v818 = vadd.f32 %v634, %v754
        %v819 = vadd.f32 %v635, %v755
        %v820 = vadd.f32 %v636, %v756
        %v821 = vadd.f32 %v637, %v757
        %v822 = vadd.f32 %v638, %v758
        %v823 = vadd.f32 %v639, %v759
        %v824 = vadd.f32 %v640, %v760
        %v825 = vadd.f32 %v641, %v761
        %v826 = vadd.f32 %v642, %v762
        %v827 = vadd.f32 %v643, %v763
        %v828 = vadd.f32 %v644, %v764
        %v829 = vadd.f32 %v645, %v765
        %v830 = vadd.f32 %v646, %v766
        %v831 = vadd.f32 %v647, %v767
        %v832 = vadd.f32 %v648, %v768
        %v833 = vadd.f32 %v649, %v769
        %v834 = vadd.f32 %v650, %v770
        %v835 = vadd.f32 %v651, %v771
        %v836 = vadd.f32 %v652, %v772
        %v837 = vadd.f32 %v653, %v773
        %v838 = vadd.f32 %v654, %v774
        %v839 = vadd.f32 %v655, %v775
        %v840 = vadd.f32 %v656, %v776
        %v841 = vadd.f32 %v657, %v777
        %v842 = vadd.f32 %v658, %v778
        %v843 = vadd.f32 %v659, %v779
        %v844 = vadd.f32 %v660, %v780
        %v845 = vadd.f32 %v661, %v781
        %v846 = vadd.f32 %v662, %v782
        %v847 = vadd.f32 %v663, %v783
        %v848 = vadd.f32 %v664, %v784
        %v849 = vadd.f32 %v665, %v785
        %v850 = vadd.f32 %v666, %v786
        %v851 = vadd.f32 %v667, %v787
        %v852 = vadd.f32 %v668, %v788
        %v853 = vadd.f32 %v669, %v789
        %854 = vxpose.xlu0.b32.start [1/16] %v790, 128
        %855 = vxpose.xlu0.b32.cont [2/16] %v798, 128
        %856 = vxpose.xlu0.b32.cont [3/16] %v806, 128
        %857 = vxpose.xlu0.b32.cont [4/16] %v814, 128
        %858 = vxpose.xlu0.b32.cont [5/16] %v822, 128
        %859 = vxpose.xlu0.b32.cont [6/16] %v830, 128
        %860 = vxpose.xlu0.b32.cont [7/16] %v838, 128
        %861 = vxpose.xlu0.b32.cont [8/16] %v846, 128
        %862 = vxpose.xlu0.b32.cont [9/16] 0.0, 128
        %863 = vxpose.xlu0.b32.cont [10/16] 0.0, 128
        %864 = vxpose.xlu0.b32.cont [11/16] 0.0, 128
        %865 = vxpose.xlu0.b32.cont [12/16] 0.0, 128
        %866 = vxpose.xlu0.b32.cont [13/16] 0.0, 128
        %867 = vxpose.xlu0.b32.cont [14/16] 0.0, 128
        %868 = vxpose.xlu0.b32.cont [15/16] 0.0, 128
        %869 = vxpose.xlu0.b32.end [16/16] 0.0, 128
        %v870 = vpop.trf.xlu0
        %v871 = vpop.trf.xlu0
        %v872 = vpop.trf.xlu0
        %v873 = vpop.trf.xlu0
        %v874 = vpop.trf.xlu0
        %v875 = vpop.trf.xlu0
        %v876 = vpop.trf.xlu0
        %v877 = vpop.trf.xlu0
        %v878 = vpop.trf.xlu0
        %v879 = vpop.trf.xlu0
        %v880 = vpop.trf.xlu0
        %v881 = vpop.trf.xlu0
        %v882 = vpop.trf.xlu0
        %v883 = vpop.trf.xlu0
        %v884 = vpop.trf.xlu0
        %v885 = vpop.trf.xlu0
        %886 = vxpose.xlu0.b32.start [1/16] %v791, 128
        %887 = vxpose.xlu0.b32.cont [2/16] %v799, 128
        %888 = vxpose.xlu0.b32.cont [3/16] %v807, 128
        %889 = vxpose.xlu0.b32.cont [4/16] %v815, 128
        %890 = vxpose.xlu0.b32.cont [5/16] %v823, 128
        %891 = vxpose.xlu0.b32.cont [6/16] %v831, 128
        %892 = vxpose.xlu0.b32.cont [7/16] %v839, 128
        %893 = vxpose.xlu0.b32.cont [8/16] %v847, 128
        %894 = vxpose.xlu0.b32.cont [9/16] 0.0, 128
        %895 = vxpose.xlu0.b32.cont [10/16] 0.0, 128
        %896 = vxpose.xlu0.b32.cont [11/16] 0.0, 128
        %897 = vxpose.xlu0.b32.cont [12/16] 0.0, 128
        %898 = vxpose.xlu0.b32.cont [13/16] 0.0, 128
        %899 = vxpose.xlu0.b32.cont [14/16] 0.0, 128
        %900 = vxpose.xlu0.b32.cont [15/16] 0.0, 128
        %901 = vxpose.xlu0.b32.end [16/16] 0.0, 128
        %v902 = vpop.trf.xlu0
        %v903 = vpop.trf.xlu0
        %v904 = vpop.trf.xlu0
        %v905 = vpop.trf.xlu0
        %v906 = vpop.trf.xlu0
        %v907 = vpop.trf.xlu0
        %v908 = vpop.trf.xlu0
        %v909 = vpop.trf.xlu0
        %v910 = vpop.trf.xlu0
        %v911 = vpop.trf.xlu0
        %v912 = vpop.trf.xlu0
        %v913 = vpop.trf.xlu0
        %v914 = vpop.trf.xlu0
        %v915 = vpop.trf.xlu0
        %v916 = vpop.trf.xlu0
        %v917 = vpop.trf.xlu0
        %918 = vxpose.xlu0.b32.start [1/16] %v792, 128
        %919 = vxpose.xlu0.b32.cont [2/16] %v800, 128
        %920 = vxpose.xlu0.b32.cont [3/16] %v808, 128
        %921 = vxpose.xlu0.b32.cont [4/16] %v816, 128
        %922 = vxpose.xlu0.b32.cont [5/16] %v824, 128
        %923 = vxpose.xlu0.b32.cont [6/16] %v832, 128
        %924 = vxpose.xlu0.b32.cont [7/16] %v840, 128
        %925 = vxpose.xlu0.b32.cont [8/16] %v848, 128
        %926 = vxpose.xlu0.b32.cont [9/16] 0.0, 128
        %927 = vxpose.xlu0.b32.cont [10/16] 0.0, 128
        %928 = vxpose.xlu0.b32.cont [11/16] 0.0, 128
        %929 = vxpose.xlu0.b32.cont [12/16] 0.0, 128
        %930 = vxpose.xlu0.b32.cont [13/16] 0.0, 128
        %931 = vxpose.xlu0.b32.cont [14/16] 0.0, 128
        %932 = vxpose.xlu0.b32.cont [15/16] 0.0, 128
        %933 = vxpose.xlu0.b32.end [16/16] 0.0, 128
        %v934 = vpop.trf.xlu0
        %v935 = vpop.trf.xlu0
        %v936 = vpop.trf.xlu0
        %v937 = vpop.trf.xlu0
        %v938 = vpop.trf.xlu0
        %v939 = vpop.trf.xlu0
        %v940 = vpop.trf.xlu0
        %v941 = vpop.trf.xlu0
        %v942 = vpop.trf.xlu0
        %v943 = vpop.trf.xlu0
        %v944 = vpop.trf.xlu0
        %v945 = vpop.trf.xlu0
        %v946 = vpop.trf.xlu0
        %v947 = vpop.trf.xlu0
        %v948 = vpop.trf.xlu0
        %v949 = vpop.trf.xlu0
        %950 = vxpose.xlu0.b32.start [1/16] %v793, 128
        %951 = vxpose.xlu0.b32.cont [2/16] %v801, 128
        %952 = vxpose.xlu0.b32.cont [3/16] %v809, 128
        %953 = vxpose.xlu0.b32.cont [4/16] %v817, 128
        %954 = vxpose.xlu0.b32.cont [5/16] %v825, 128
        %955 = vxpose.xlu0.b32.cont [6/16] %v833, 128
        %956 = vxpose.xlu0.b32.cont [7/16] %v841, 128
        %957 = vxpose.xlu0.b32.cont [8/16] %v849, 128
        %958 = vxpose.xlu0.b32.cont [9/16] 0.0, 128
        %959 = vxpose.xlu0.b32.cont [10/16] 0.0, 128
        %960 = vxpose.xlu0.b32.cont [11/16] 0.0, 128
        %961 = vxpose.xlu0.b32.cont [12/16] 0.0, 128
        %962 = vxpose.xlu0.b32.cont [13/16] 0.0, 128
        %963 = vxpose.xlu0.b32.cont [14/16] 0.0, 128
        %964 = vxpose.xlu0.b32.cont [15/16] 0.0, 128
        %965 = vxpose.xlu0.b32.end [16/16] 0.0, 128
        %v966 = vpop.trf.xlu0
        %v967 = vpop.trf.xlu0
        %v968 = vpop.trf.xlu0
        %v969 = vpop.trf.xlu0
        %v970 = vpop.trf.xlu0
        %v971 = vpop.trf.xlu0
        %v972 = vpop.trf.xlu0
        %v973 = vpop.trf.xlu0
        %v974 = vpop.trf.xlu0
        %v975 = vpop.trf.xlu0
        %v976 = vpop.trf.xlu0
        %v977 = vpop.trf.xlu0
        %v978 = vpop.trf.xlu0
        %v979 = vpop.trf.xlu0
        %v980 = vpop.trf.xlu0
        %v981 = vpop.trf.xlu0
        %982 = vxpose.xlu0.b32.start [1/16] %v794, 128
        %983 = vxpose.xlu0.b32.cont [2/16] %v802, 128
        %984 = vxpose.xlu0.b32.cont [3/16] %v810, 128
        %985 = vxpose.xlu0.b32.cont [4/16] %v818, 128
        %986 = vxpose.xlu0.b32.cont [5/16] %v826, 128
        %987 = vxpose.xlu0.b32.cont [6/16] %v834, 128
        %988 = vxpose.xlu0.b32.cont [7/16] %v842, 128
        %989 = vxpose.xlu0.b32.cont [8/16] %v850, 128
        %990 = vxpose.xlu0.b32.cont [9/16] 0.0, 128
        %991 = vxpose.xlu0.b32.cont [10/16] 0.0, 128
        %992 = vxpose.xlu0.b32.cont [11/16] 0.0, 128
        %993 = vxpose.xlu0.b32.cont [12/16] 0.0, 128
        %994 = vxpose.xlu0.b32.cont [13/16] 0.0, 128
        %995 = vxpose.xlu0.b32.cont [14/16] 0.0, 128
        %996 = vxpose.xlu0.b32.cont [15/16] 0.0, 128
        %997 = vxpose.xlu0.b32.end [16/16] 0.0, 128
        %v998 = vpop.trf.xlu0
        %v999 = vpop.trf.xlu0
        %v1000 = vpop.trf.xlu0
        %v1001 = vpop.trf.xlu0
        %v1002 = vpop.trf.xlu0
        %v1003 = vpop.trf.xlu0
        %v1004 = vpop.trf.xlu0
        %v1005 = vpop.trf.xlu0
        %v1006 = vpop.trf.xlu0
        %v1007 = vpop.trf.xlu0
        %v1008 = vpop.trf.xlu0
        %v1009 = vpop.trf.xlu0
        %v1010 = vpop.trf.xlu0
        %v1011 = vpop.trf.xlu0
        %v1012 = vpop.trf.xlu0
        %v1013 = vpop.trf.xlu0
        %1014 = vxpose.xlu0.b32.start [1/16] %v795, 128
        %1015 = vxpose.xlu0.b32.cont [2/16] %v803, 128
        %1016 = vxpose.xlu0.b32.cont [3/16] %v811, 128
        %1017 = vxpose.xlu0.b32.cont [4/16] %v819, 128
        %1018 = vxpose.xlu0.b32.cont [5/16] %v827, 128
        %1019 = vxpose.xlu0.b32.cont [6/16] %v835, 128
        %1020 = vxpose.xlu0.b32.cont [7/16] %v843, 128
        %1021 = vxpose.xlu0.b32.cont [8/16] %v851, 128
        %1022 = vxpose.xlu0.b32.cont [9/16] 0.0, 128
        %1023 = vxpose.xlu0.b32.cont [10/16] 0.0, 128
        %1024 = vxpose.xlu0.b32.cont [11/16] 0.0, 128
        %1025 = vxpose.xlu0.b32.cont [12/16] 0.0, 128
        %1026 = vxpose.xlu0.b32.cont [13/16] 0.0, 128
        %1027 = vxpose.xlu0.b32.cont [14/16] 0.0, 128
        %1028 = vxpose.xlu0.b32.cont [15/16] 0.0, 128
        %1029 = vxpose.xlu0.b32.end [16/16] 0.0, 128
        %v1030 = vpop.trf.xlu0
        %v1031 = vpop.trf.xlu0
        %v1032 = vpop.trf.xlu0
        %v1033 = vpop.trf.xlu0
        %v1034 = vpop.trf.xlu0
        %v1035 = vpop.trf.xlu0
        %v1036 = vpop.trf.xlu0
        %v1037 = vpop.trf.xlu0
        %v1038 = vpop.trf.xlu0
        %v1039 = vpop.trf.xlu0
        %v1040 = vpop.trf.xlu0
        %v1041 = vpop.trf.xlu0
        %v1042 = vpop.trf.xlu0
        %v1043 = vpop.trf.xlu0
        %v1044 = vpop.trf.xlu0
        %v1045 = vpop.trf.xlu0
        %1046 = vxpose.xlu0.b32.start [1/16] %v796, 128
        %1047 = vxpose.xlu0.b32.cont [2/16] %v804, 128
        %1048 = vxpose.xlu0.b32.cont [3/16] %v812, 128
        %1049 = vxpose.xlu0.b32.cont [4/16] %v820, 128
        %1050 = vxpose.xlu0.b32.cont [5/16] %v828, 128
        %1051 = vxpose.xlu0.b32.cont [6/16] %v836, 128
        %1052 = vxpose.xlu0.b32.cont [7/16] %v844, 128
        %1053 = vxpose.xlu0.b32.cont [8/16] %v852, 128
        %1054 = vxpose.xlu0.b32.cont [9/16] 0.0, 128
        %1055 = vxpose.xlu0.b32.cont [10/16] 0.0, 128
        %1056 = vxpose.xlu0.b32.cont [11/16] 0.0, 128
        %1057 = vxpose.xlu0.b32.cont [12/16] 0.0, 128
        %1058 = vxpose.xlu0.b32.cont [13/16] 0.0, 128
        %1059 = vxpose.xlu0.b32.cont [14/16] 0.0, 128
        %1060 = vxpose.xlu0.b32.cont [15/16] 0.0, 128
        %1061 = vxpose.xlu0.b32.end [16/16] 0.0, 128
        %v1062 = vpop.trf.xlu0
        %v1063 = vpop.trf.xlu0
        %v1064 = vpop.trf.xlu0
        %v1065 = vpop.trf.xlu0
        %v1066 = vpop.trf.xlu0
        %v1067 = vpop.trf.xlu0
        %v1068 = vpop.trf.xlu0
        %v1069 = vpop.trf.xlu0
        %v1070 = vpop.trf.xlu0
        %v1071 = vpop.trf.xlu0
        %v1072 = vpop.trf.xlu0
        %v1073 = vpop.trf.xlu0
        %v1074 = vpop.trf.xlu0
        %v1075 = vpop.trf.xlu0
        %v1076 = vpop.trf.xlu0
        %v1077 = vpop.trf.xlu0
        %1078 = vxpose.xlu0.b32.start [1/16] %v797, 128
        %1079 = vxpose.xlu0.b32.cont [2/16] %v805, 128
        %1080 = vxpose.xlu0.b32.cont [3/16] %v813, 128
        %1081 = vxpose.xlu0.b32.cont [4/16] %v821, 128
        %1082 = vxpose.xlu0.b32.cont [5/16] %v829, 128
        %1083 = vxpose.xlu0.b32.cont [6/16] %v837, 128
        %1084 = vxpose.xlu0.b32.cont [7/16] %v845, 128
        %1085 = vxpose.xlu0.b32.cont [8/16] %v853, 128
        %1086 = vxpose.xlu0.b32.cont [9/16] 0.0, 128
        %1087 = vxpose.xlu0.b32.cont [10/16] 0.0, 128
        %1088 = vxpose.xlu0.b32.cont [11/16] 0.0, 128
        %1089 = vxpose.xlu0.b32.cont [12/16] 0.0, 128
        %1090 = vxpose.xlu0.b32.cont [13/16] 0.0, 128
        %1091 = vxpose.xlu0.b32.cont [14/16] 0.0, 128
        %1092 = vxpose.xlu0.b32.cont [15/16] 0.0, 128
        %1093 = vxpose.xlu0.b32.end [16/16] 0.0, 128
        %v1094 = vpop.trf.xlu0
        %v1095 = vpop.trf.xlu0
        %v1096 = vpop.trf.xlu0
        %v1097 = vpop.trf.xlu0
        %v1098 = vpop.trf.xlu0
        %v1099 = vpop.trf.xlu0
        %v1100 = vpop.trf.xlu0
        %v1101 = vpop.trf.xlu0
        %v1102 = vpop.trf.xlu0
        %v1103 = vpop.trf.xlu0
        %v1104 = vpop.trf.xlu0
        %v1105 = vpop.trf.xlu0
        %v1106 = vpop.trf.xlu0
        %v1107 = vpop.trf.xlu0
        %v1108 = vpop.trf.xlu0
        %v1109 = vpop.trf.xlu0
        %v1110 = vld [vmem:[%s2] sm:$0x1]
        %v1112 = vperm.slane %v1110, 0
        %v1114 = vadd.f32 %v870, %v1112
        %v1115 = vadd.f32 %v871, %v1112
        %v1116 = vadd.f32 %v872, %v1112
        %v1117 = vadd.f32 %v873, %v1112
        %v1118 = vadd.f32 %v874, %v1112
        %v1119 = vadd.f32 %v875, %v1112
        %v1120 = vadd.f32 %v876, %v1112
        %v1121 = vadd.f32 %v877, %v1112
        %v1122 = vadd.f32 %v878, %v1112
        %v1123 = vadd.f32 %v879, %v1112
        %v1124 = vadd.f32 %v880, %v1112
        %v1125 = vadd.f32 %v881, %v1112
        %v1126 = vadd.f32 %v882, %v1112
        %v1127 = vadd.f32 %v883, %v1112
        %v1128 = vadd.f32 %v884, %v1112
        %v1129 = vadd.f32 %v885, %v1112
        %v1130 = vadd.f32 %v902, %v1112
        %v1131 = vadd.f32 %v903, %v1112
        %v1132 = vadd.f32 %v904, %v1112
        %v1133 = vadd.f32 %v905, %v1112
        %v1134 = vadd.f32 %v906, %v1112
        %v1135 = vadd.f32 %v907, %v1112
        %v1136 = vadd.f32 %v908, %v1112
        %v1137 = vadd.f32 %v909, %v1112
        %v1138 = vadd.f32 %v910, %v1112
        %v1139 = vadd.f32 %v911, %v1112
        %v1140 = vadd.f32 %v912, %v1112
        %v1141 = vadd.f32 %v913, %v1112
        %v1142 = vadd.f32 %v914, %v1112
        %v1143 = vadd.f32 %v915, %v1112
        %v1144 = vadd.f32 %v916, %v1112
        %v1145 = vadd.f32 %v917, %v1112
        %v1146 = vadd.f32 %v934, %v1112
        %v1147 = vadd.f32 %v935, %v1112
        %v1148 = vadd.f32 %v936, %v1112
        %v1149 = vadd.f32 %v937, %v1112
        %v1150 = vadd.f32 %v938, %v1112
        %v1151 = vadd.f32 %v939, %v1112
        %v1152 = vadd.f32 %v940, %v1112
        %v1153 = vadd.f32 %v941, %v1112
        %v1154 = vadd.f32 %v942, %v1112
        %v1155 = vadd.f32 %v943, %v1112
        %v1156 = vadd.f32 %v944, %v1112
        %v1157 = vadd.f32 %v945, %v1112
        %v1158 = vadd.f32 %v946, %v1112
        %v1159 = vadd.f32 %v947, %v1112
        %v1160 = vadd.f32 %v948, %v1112
        %v1161 = vadd.f32 %v949, %v1112
        %v1162 = vadd.f32 %v966, %v1112
        %v1163 = vadd.f32 %v967, %v1112
        %v1164 = vadd.f32 %v968, %v1112
        %v1165 = vadd.f32 %v969, %v1112
        %v1166 = vadd.f32 %v970, %v1112
        %v1167 = vadd.f32 %v971, %v1112
        %v1168 = vadd.f32 %v972, %v1112
        %v1169 = vadd.f32 %v973, %v1112
        %v1170 = vadd.f32 %v974, %v1112
        %v1171 = vadd.f32 %v975, %v1112
        %v1172 = vadd.f32 %v976, %v1112
        %v1173 = vadd.f32 %v977, %v1112
        %v1174 = vadd.f32 %v978, %v1112
        %v1175 = vadd.f32 %v979, %v1112
        %v1176 = vadd.f32 %v980, %v1112
        %v1177 = vadd.f32 %v981, %v1112
        %v1178 = vadd.f32 %v998, %v1112
        %v1179 = vadd.f32 %v999, %v1112
        %v1180 = vadd.f32 %v1000, %v1112
        %v1181 = vadd.f32 %v1001, %v1112
        %v1182 = vadd.f32 %v1002, %v1112
        %v1183 = vadd.f32 %v1003, %v1112
        %v1184 = vadd.f32 %v1004, %v1112
        %v1185 = vadd.f32 %v1005, %v1112
        %v1186 = vadd.f32 %v1006, %v1112
        %v1187 = vadd.f32 %v1007, %v1112
        %v1188 = vadd.f32 %v1008, %v1112
        %v1189 = vadd.f32 %v1009, %v1112
        %v1190 = vadd.f32 %v1010, %v1112
        %v1191 = vadd.f32 %v1011, %v1112
        %v1192 = vadd.f32 %v1012, %v1112
        %v1193 = vadd.f32 %v1013, %v1112
        %v1194 = vadd.f32 %v1030, %v1112
        %v1195 = vadd.f32 %v1031, %v1112
        %v1196 = vadd.f32 %v1032, %v1112
        %v1197 = vadd.f32 %v1033, %v1112
        %v1198 = vadd.f32 %v1034, %v1112
        %v1199 = vadd.f32 %v1035, %v1112
        %v1200 = vadd.f32 %v1036, %v1112
        %v1201 = vadd.f32 %v1037, %v1112
        %v1202 = vadd.f32 %v1038, %v1112
        %v1203 = vadd.f32 %v1039, %v1112
        %v1204 = vadd.f32 %v1040, %v1112
        %v1205 = vadd.f32 %v1041, %v1112
        %v1206 = vadd.f32 %v1042, %v1112
        %v1207 = vadd.f32 %v1043, %v1112
        %v1208 = vadd.f32 %v1044, %v1112
        %v1209 = vadd.f32 %v1045, %v1112
        %v1210 = vadd.f32 %v1062, %v1112
        %v1211 = vadd.f32 %v1063, %v1112
        %v1212 = vadd.f32 %v1064, %v1112
        %v1213 = vadd.f32 %v1065, %v1112
        %v1214 = vadd.f32 %v1066, %v1112
        %v1215 = vadd.f32 %v1067, %v1112
        %v1216 = vadd.f32 %v1068, %v1112
        %v1217 = vadd.f32 %v1069, %v1112
        %v1218 = vadd.f32 %v1070, %v1112
        %v1219 = vadd.f32 %v1071, %v1112
        %v1220 = vadd.f32 %v1072, %v1112
        %v1221 = vadd.f32 %v1073, %v1112
        %v1222 = vadd.f32 %v1074, %v1112
        %v1223 = vadd.f32 %v1075, %v1112
        %v1224 = vadd.f32 %v1076, %v1112
        %v1225 = vadd.f32 %v1077, %v1112
        %v1226 = vadd.f32 %v1094, %v1112
        %v1227 = vadd.f32 %v1095, %v1112
        %v1228 = vadd.f32 %v1096, %v1112
        %v1229 = vadd.f32 %v1097, %v1112
        %v1230 = vadd.f32 %v1098, %v1112
        %v1231 = vadd.f32 %v1099, %v1112
        %v1232 = vadd.f32 %v1100, %v1112
        %v1233 = vadd.f32 %v1101, %v1112
        %v1234 = vadd.f32 %v1102, %v1112
        %v1235 = vadd.f32 %v1103, %v1112
        %v1236 = vadd.f32 %v1104, %v1112
        %v1237 = vadd.f32 %v1105, %v1112
        %v1238 = vadd.f32 %v1106, %v1112
        %v1239 = vadd.f32 %v1107, %v1112
        %v1240 = vadd.f32 %v1108, %v1112
        %v1241 = vadd.f32 %v1109, %v1112
        %v1242 = vmax.f32 %v1114, 0.0
        %v1243 = vmax.f32 %v1115, 0.0
        %v1244 = vmax.f32 %v1116, 0.0
        %v1245 = vmax.f32 %v1117, 0.0
        %v1246 = vmax.f32 %v1118, 0.0
        %v1247 = vmax.f32 %v1119, 0.0
        %v1248 = vmax.f32 %v1120, 0.0
        %v1249 = vmax.f32 %v1121, 0.0
        %v1250 = vmax.f32 %v1122, 0.0
        %v1251 = vmax.f32 %v1123, 0.0
        %v1252 = vmax.f32 %v1124, 0.0
        %v1253 = vmax.f32 %v1125, 0.0
        %v1254 = vmax.f32 %v1126, 0.0
        %v1255 = vmax.f32 %v1127, 0.0
        %v1256 = vmax.f32 %v1128, 0.0
        %v1257 = vmax.f32 %v1129, 0.0
        %v1258 = vmax.f32 %v1130, 0.0
        %v1259 = vmax.f32 %v1131, 0.0
        %v1260 = vmax.f32 %v1132, 0.0
        %v1261 = vmax.f32 %v1133, 0.0
        %v1262 = vmax.f32 %v1134, 0.0
        %v1263 = vmax.f32 %v1135, 0.0
        %v1264 = vmax.f32 %v1136, 0.0
        %v1265 = vmax.f32 %v1137, 0.0
        %v1266 = vmax.f32 %v1138, 0.0
        %v1267 = vmax.f32 %v1139, 0.0
        %v1268 = vmax.f32 %v1140, 0.0
        %v1269 = vmax.f32 %v1141, 0.0
        %v1270 = vmax.f32 %v1142, 0.0
        %v1271 = vmax.f32 %v1143, 0.0
        %v1272 = vmax.f32 %v1144, 0.0
        %v1273 = vmax.f32 %v1145, 0.0
        %v1274 = vmax.f32 %v1146, 0.0
        %v1275 = vmax.f32 %v1147, 0.0
        %v1276 = vmax.f32 %v1148, 0.0
        %v1277 = vmax.f32 %v1149, 0.0
        %v1278 = vmax.f32 %v1150, 0.0
        %v1279 = vmax.f32 %v1151, 0.0
        %v1280 = vmax.f32 %v1152, 0.0
        %v1281 = vmax.f32 %v1153, 0.0
        %v1282 = vmax.f32 %v1154, 0.0
        %v1283 = vmax.f32 %v1155, 0.0
        %v1284 = vmax.f32 %v1156, 0.0
        %v1285 = vmax.f32 %v1157, 0.0
        %v1286 = vmax.f32 %v1158, 0.0
        %v1287 = vmax.f32 %v1159, 0.0
        %v1288 = vmax.f32 %v1160, 0.0
        %v1289 = vmax.f32 %v1161, 0.0
        %v1290 = vmax.f32 %v1162, 0.0
        %v1291 = vmax.f32 %v1163, 0.0
        %v1292 = vmax.f32 %v1164, 0.0
        %v1293 = vmax.f32 %v1165, 0.0
        %v1294 = vmax.f32 %v1166, 0.0
        %v1295 = vmax.f32 %v1167, 0.0
        %v1296 = vmax.f32 %v1168, 0.0
        %v1297 = vmax.f32 %v1169, 0.0
        %v1298 = vmax.f32 %v1170, 0.0
        %v1299 = vmax.f32 %v1171, 0.0
        %v1300 = vmax.f32 %v1172, 0.0
        %v1301 = vmax.f32 %v1173, 0.0
        %v1302 = vmax.f32 %v1174, 0.0
        %v1303 = vmax.f32 %v1175, 0.0
        %v1304 = vmax.f32 %v1176, 0.0
        %v1305 = vmax.f32 %v1177, 0.0
        %v1306 = vmax.f32 %v1178, 0.0
        %v1307 = vmax.f32 %v1179, 0.0
        %v1308 = vmax.f32 %v1180, 0.0
        %v1309 = vmax.f32 %v1181, 0.0
        %v1310 = vmax.f32 %v1182, 0.0
        %v1311 = vmax.f32 %v1183, 0.0
        %v1312 = vmax.f32 %v1184, 0.0
        %v1313 = vmax.f32 %v1185, 0.0
        %v1314 = vmax.f32 %v1186, 0.0
        %v1315 = vmax.f32 %v1187, 0.0
        %v1316 = vmax.f32 %v1188, 0.0
        %v1317 = vmax.f32 %v1189, 0.0
        %v1318 = vmax.f32 %v1190, 0.0
        %v1319 = vmax.f32 %v1191, 0.0
        %v1320 = vmax.f32 %v1192, 0.0
        %v1321 = vmax.f32 %v1193, 0.0
        %v1322 = vmax.f32 %v1194, 0.0
        %v1323 = vmax.f32 %v1195, 0.0
        %v1324 = vmax.f32 %v1196, 0.0
        %v1325 = vmax.f32 %v1197, 0.0
        %v1326 = vmax.f32 %v1198, 0.0
        %v1327 = vmax.f32 %v1199, 0.0
        %v1328 = vmax.f32 %v1200, 0.0
        %v1329 = vmax.f32 %v1201, 0.0
        %v1330 = vmax.f32 %v1202, 0.0
        %v1331 = vmax.f32 %v1203, 0.0
        %v1332 = vmax.f32 %v1204, 0.0
        %v1333 = vmax.f32 %v1205, 0.0
        %v1334 = vmax.f32 %v1206, 0.0
        %v1335 = vmax.f32 %v1207, 0.0
        %v1336 = vmax.f32 %v1208, 0.0
        %v1337 = vmax.f32 %v1209, 0.0
        %v1338 = vmax.f32 %v1210, 0.0
        %v1339 = vmax.f32 %v1211, 0.0
        %v1340 = vmax.f32 %v1212, 0.0
        %v1341 = vmax.f32 %v1213, 0.0
        %v1342 = vmax.f32 %v1214, 0.0
        %v1343 = vmax.f32 %v1215, 0.0
        %v1344 = vmax.f32 %v1216, 0.0
        %v1345 = vmax.f32 %v1217, 0.0
        %v1346 = vmax.f32 %v1218, 0.0
        %v1347 = vmax.f32 %v1219, 0.0
        %v1348 = vmax.f32 %v1220, 0.0
        %v1349 = vmax.f32 %v1221, 0.0
        %v1350 = vmax.f32 %v1222, 0.0
        %v1351 = vmax.f32 %v1223, 0.0
        %v1352 = vmax.f32 %v1224, 0.0
        %v1353 = vmax.f32 %v1225, 0.0
        %v1354 = vmax.f32 %v1226, 0.0
        %v1355 = vmax.f32 %v1227, 0.0
        %v1356 = vmax.f32 %v1228, 0.0
        %v1357 = vmax.f32 %v1229, 0.0
        %v1358 = vmax.f32 %v1230, 0.0
        %v1359 = vmax.f32 %v1231, 0.0
        %v1360 = vmax.f32 %v1232, 0.0
        %v1361 = vmax.f32 %v1233, 0.0
        %v1362 = vmax.f32 %v1234, 0.0
        %v1363 = vmax.f32 %v1235, 0.0
        %v1364 = vmax.f32 %v1236, 0.0
        %v1365 = vmax.f32 %v1237, 0.0
        %v1366 = vmax.f32 %v1238, 0.0
        %v1367 = vmax.f32 %v1239, 0.0
        %v1368 = vmax.f32 %v1240, 0.0
        %v1369 = vmax.f32 %v1241, 0.0
        %v1370 = vpack.c.bf16 %v1243, %v1242
        %v1371 = vpack.c.bf16 %v1245, %v1244
        %v1372 = vpack.c.bf16 %v1247, %v1246
        %v1373 = vpack.c.bf16 %v1249, %v1248
        %v1374 = vpack.c.bf16 %v1251, %v1250
        %v1375 = vpack.c.bf16 %v1253, %v1252
        %v1376 = vpack.c.bf16 %v1255, %v1254
        %v1377 = vpack.c.bf16 %v1257, %v1256
        %v1378 = vpack.c.bf16 %v1259, %v1258
        %v1379 = vpack.c.bf16 %v1261, %v1260
        %v1380 = vpack.c.bf16 %v1263, %v1262
        %v1381 = vpack.c.bf16 %v1265, %v1264
        %v1382 = vpack.c.bf16 %v1267, %v1266
        %v1383 = vpack.c.bf16 %v1269, %v1268
        %v1384 = vpack.c.bf16 %v1271, %v1270
        %v1385 = vpack.c.bf16 %v1273, %v1272
        %v1386 = vpack.c.bf16 %v1275, %v1274
        %v1387 = vpack.c.bf16 %v1277, %v1276
        %v1388 = vpack.c.bf16 %v1279, %v1278
        %v1389 = vpack.c.bf16 %v1281, %v1280
        %v1390 = vpack.c.bf16 %v1283, %v1282
        %v1391 = vpack.c.bf16 %v1285, %v1284
        %v1392 = vpack.c.bf16 %v1287, %v1286
        %v1393 = vpack.c.bf16 %v1289, %v1288
        %v1394 = vpack.c.bf16 %v1291, %v1290
        %v1395 = vpack.c.bf16 %v1293, %v1292
        %v1396 = vpack.c.bf16 %v1295, %v1294
        %v1397 = vpack.c.bf16 %v1297, %v1296
        %v1398 = vpack.c.bf16 %v1299, %v1298
        %v1399 = vpack.c.bf16 %v1301, %v1300
        %v1400 = vpack.c.bf16 %v1303, %v1302
        %v1401 = vpack.c.bf16 %v1305, %v1304
        %v1402 = vpack.c.bf16 %v1307, %v1306
        %v1403 = vpack.c.bf16 %v1309, %v1308
        %v1404 = vpack.c.bf16 %v1311, %v1310
        %v1405 = vpack.c.bf16 %v1313, %v1312
        %v1406 = vpack.c.bf16 %v1315, %v1314
        %v1407 = vpack.c.bf16 %v1317, %v1316
        %v1408 = vpack.c.bf16 %v1319, %v1318
        %v1409 = vpack.c.bf16 %v1321, %v1320
        %v1410 = vpack.c.bf16 %v1323, %v1322
        %v1411 = vpack.c.bf16 %v1325, %v1324
        %v1412 = vpack.c.bf16 %v1327, %v1326
        %v1413 = vpack.c.bf16 %v1329, %v1328
        %v1414 = vpack.c.bf16 %v1331, %v1330
        %v1415 = vpack.c.bf16 %v1333, %v1332
        %v1416 = vpack.c.bf16 %v1335, %v1334
        %v1417 = vpack.c.bf16 %v1337, %v1336
        %v1418 = vpack.c.bf16 %v1339, %v1338
        %v1419 = vpack.c.bf16 %v1341, %v1340
        %v1420 = vpack.c.bf16 %v1343, %v1342
        %v1421 = vpack.c.bf16 %v1345, %v1344
        %v1422 = vpack.c.bf16 %v1347, %v1346
        %v1423 = vpack.c.bf16 %v1349, %v1348
        %v1424 = vpack.c.bf16 %v1351, %v1350
        %v1425 = vpack.c.bf16 %v1353, %v1352
        %v1426 = vpack.c.bf16 %v1355, %v1354
        %v1427 = vpack.c.bf16 %v1357, %v1356
        %v1428 = vpack.c.bf16 %v1359, %v1358
        %v1429 = vpack.c.bf16 %v1361, %v1360
        %v1430 = vpack.c.bf16 %v1363, %v1362
        %v1431 = vpack.c.bf16 %v1365, %v1364
        %v1432 = vpack.c.bf16 %v1367, %v1366
        %v1433 = vpack.c.bf16 %v1369, %v1368
        %v1434 = vld [vmem:[%s3] sm:$0xf]
        %v1435 = vld [vmem:[%s3 + $0x4] sm:$0xf]
        %v1436 = vld [vmem:[%s3 + $0x8] sm:$0xf]
        %v1437 = vld [vmem:[%s3 + $0xc] sm:$0xf]
        %v1438 = vld [vmem:[%s3 + $0x10] sm:$0xf]
        %v1439 = vld [vmem:[%s3 + $0x14] sm:$0xf]
        %v1440 = vld [vmem:[%s3 + $0x18] sm:$0xf]
        %v1441 = vld [vmem:[%s3 + $0x1c] sm:$0xf]
        %v1442 = vld [vmem:[%s4] sm:$0x1]
        %v1444 = vperm.slane %v1442, 0
        %v1454 = vunpack.c.l.b16 %v1434
        %v1455 = vunpack.c.l.b16 %v1435
        %v1456 = vunpack.c.l.b16 %v1436
        %v1457 = vunpack.c.l.b16 %v1437
        %v1458 = vunpack.c.l.b16 %v1438
        %v1459 = vunpack.c.l.b16 %v1439
        %v1460 = vunpack.c.l.b16 %v1440
        %v1461 = vunpack.c.l.b16 %v1441
        %v1462 = vpack.c.b16 %v1455, %v1454
        %v1463 = vpack.c.b16 %v1457, %v1456
        %v1464 = vpack.c.b16 %v1459, %v1458
        %v1465 = vpack.c.b16 %v1461, %v1460
        %vm1470 = vcmask 523264
        %v1472 = vsel %vm1470, %v1370, 0
        %v1475 = vsel %vm1470, %v1371, 0
        %v1478 = vsel %vm1470, %v1372, 0
        %v1481 = vsel %vm1470, %v1373, 0
        %v1484 = vsel %vm1470, %v1374, 0
        %v1487 = vsel %vm1470, %v1375, 0
        %v1490 = vsel %vm1470, %v1376, 0
        %v1493 = vsel %vm1470, %v1377, 0
        %v1496 = vsel %vm1470, %v1378, 0
        %v1499 = vsel %vm1470, %v1379, 0
        %v1502 = vsel %vm1470, %v1380, 0
        %v1505 = vsel %vm1470, %v1381, 0
        %v1508 = vsel %vm1470, %v1382, 0
        %v1511 = vsel %vm1470, %v1383, 0
        %v1514 = vsel %vm1470, %v1384, 0
        %v1517 = vsel %vm1470, %v1385, 0
        %v1520 = vsel %vm1470, %v1386, 0
        %v1523 = vsel %vm1470, %v1387, 0
        %v1526 = vsel %vm1470, %v1388, 0
        %v1529 = vsel %vm1470, %v1389, 0
        %v1532 = vsel %vm1470, %v1390, 0
        %v1535 = vsel %vm1470, %v1391, 0
        %v1538 = vsel %vm1470, %v1392, 0
        %v1541 = vsel %vm1470, %v1393, 0
        %v1544 = vsel %vm1470, %v1394, 0
        %v1547 = vsel %vm1470, %v1395, 0
        %v1550 = vsel %vm1470, %v1396, 0
        %v1553 = vsel %vm1470, %v1397, 0
        %v1556 = vsel %vm1470, %v1398, 0
        %v1559 = vsel %vm1470, %v1399, 0
        %v1562 = vsel %vm1470, %v1400, 0
        %v1565 = vsel %vm1470, %v1401, 0
        %v1568 = vsel %vm1470, %v1402, 0
        %v1571 = vsel %vm1470, %v1403, 0
        %v1574 = vsel %vm1470, %v1404, 0
        %v1577 = vsel %vm1470, %v1405, 0
        %v1580 = vsel %vm1470, %v1406, 0
        %v1583 = vsel %vm1470, %v1407, 0
        %v1586 = vsel %vm1470, %v1408, 0
        %v1589 = vsel %vm1470, %v1409, 0
        %v1592 = vsel %vm1470, %v1410, 0
        %v1595 = vsel %vm1470, %v1411, 0
        %v1598 = vsel %vm1470, %v1412, 0
        %v1601 = vsel %vm1470, %v1413, 0
        %v1604 = vsel %vm1470, %v1414, 0
        %v1607 = vsel %vm1470, %v1415, 0
        %v1610 = vsel %vm1470, %v1416, 0
        %v1613 = vsel %vm1470, %v1417, 0
        %v1616 = vsel %vm1470, %v1418, 0
        %v1619 = vsel %vm1470, %v1419, 0
        %v1622 = vsel %vm1470, %v1420, 0
        %v1625 = vsel %vm1470, %v1421, 0
        %v1628 = vsel %vm1470, %v1422, 0
        %v1631 = vsel %vm1470, %v1423, 0
        %v1634 = vsel %vm1470, %v1424, 0
        %v1637 = vsel %vm1470, %v1425, 0
        %v1640 = vsel %vm1470, %v1426, 0
        %v1643 = vsel %vm1470, %v1427, 0
        %v1646 = vsel %vm1470, %v1428, 0
        %v1649 = vsel %vm1470, %v1429, 0
        %v1652 = vsel %vm1470, %v1430, 0
        %v1655 = vsel %vm1470, %v1431, 0
        %v1658 = vsel %vm1470, %v1432, 0
        %v1661 = vsel %vm1470, %v1433, 0
        %1663 = vmatpush.bf16.msra.mxu0 0
        %1664 = vmatpush.bf16.msra.mxu0 0
        %1665 = vmatpush.bf16.msra.mxu0 0
        %1666 = vmatpush.bf16.msra.mxu0 0
        %1667 = vmatpush.bf16.msra.mxu0 %v1465
        %1668 = vmatpush.bf16.msra.mxu0 %v1464
        %1669 = vmatpush.bf16.msra.mxu0 %v1463
        %1670 = vmatpush.bf16.msra.mxu0 %v1462
        %1671 = vmatmul.bf16.gmra.mxu0 %v1472
        %v1672 = vpop.f32.mrf.mxu0
        %v1673 = vadd.f32 %v1444, %v1672
        %v1674 = vpop.f32.mrf.mxu0
        %v1675 = vadd.f32 %v1444, %v1674
        %1676 = vmatmul.bf16.gmra.mxu0 %v1475
        %v1677 = vpop.f32.mrf.mxu0
        %v1678 = vadd.f32 %v1444, %v1677
        %v1679 = vpop.f32.mrf.mxu0
        %v1680 = vadd.f32 %v1444, %v1679
        %1681 = vmatmul.bf16.gmra.mxu0 %v1478
        %v1682 = vpop.f32.mrf.mxu0
        %v1683 = vadd.f32 %v1444, %v1682
        %v1684 = vpop.f32.mrf.mxu0
        %v1685 = vadd.f32 %v1444, %v1684
        %1686 = vmatmul.bf16.gmra.mxu0 %v1481
        %v1687 = vpop.f32.mrf.mxu0
        %v1688 = vadd.f32 %v1444, %v1687
        %v1689 = vpop.f32.mrf.mxu0
        %v1690 = vadd.f32 %v1444, %v1689
        %1691 = vmatmul.bf16.gmra.mxu0 %v1484
        %v1692 = vpop.f32.mrf.mxu0
        %v1693 = vadd.f32 %v1444, %v1692
        %v1694 = vpop.f32.mrf.mxu0
        %v1695 = vadd.f32 %v1444, %v1694
        %1696 = vmatmul.bf16.gmra.mxu0 %v1487
        %v1697 = vpop.f32.mrf.mxu0
        %v1698 = vadd.f32 %v1444, %v1697
        %v1699 = vpop.f32.mrf.mxu0
        %v1700 = vadd.f32 %v1444, %v1699
        %1701 = vmatmul.bf16.gmra.mxu0 %v1490
        %v1702 = vpop.f32.mrf.mxu0
        %v1703 = vadd.f32 %v1444, %v1702
        %v1704 = vpop.f32.mrf.mxu0
        %v1705 = vadd.f32 %v1444, %v1704
        %1706 = vmatmul.bf16.gmra.mxu0 %v1493
        %v1707 = vpop.f32.mrf.mxu0
        %v1708 = vadd.f32 %v1444, %v1707
        %v1709 = vpop.f32.mrf.mxu0
        %v1710 = vadd.f32 %v1444, %v1709
        %1711 = vmatmul.bf16.gmra.mxu0 %v1496
        %v1712 = vpop.f32.mrf.mxu0
        %v1713 = vadd.f32 %v1444, %v1712
        %v1714 = vpop.f32.mrf.mxu0
        %v1715 = vadd.f32 %v1444, %v1714
        %1716 = vmatmul.bf16.gmra.mxu0 %v1499
        %v1717 = vpop.f32.mrf.mxu0
        %v1718 = vadd.f32 %v1444, %v1717
        %v1719 = vpop.f32.mrf.mxu0
        %v1720 = vadd.f32 %v1444, %v1719
        %1721 = vmatmul.bf16.gmra.mxu0 %v1502
        %v1722 = vpop.f32.mrf.mxu0
        %v1723 = vadd.f32 %v1444, %v1722
        %v1724 = vpop.f32.mrf.mxu0
        %v1725 = vadd.f32 %v1444, %v1724
        %1726 = vmatmul.bf16.gmra.mxu0 %v1505
        %v1727 = vpop.f32.mrf.mxu0
        %v1728 = vadd.f32 %v1444, %v1727
        %v1729 = vpop.f32.mrf.mxu0
        %v1730 = vadd.f32 %v1444, %v1729
        %1731 = vmatmul.bf16.gmra.mxu0 %v1508
        %v1732 = vpop.f32.mrf.mxu0
        %v1733 = vadd.f32 %v1444, %v1732
        %v1734 = vpop.f32.mrf.mxu0
        %v1735 = vadd.f32 %v1444, %v1734
        %1736 = vmatmul.bf16.gmra.mxu0 %v1511
        %v1737 = vpop.f32.mrf.mxu0
        %v1738 = vadd.f32 %v1444, %v1737
        %v1739 = vpop.f32.mrf.mxu0
        %v1740 = vadd.f32 %v1444, %v1739
        %1741 = vmatmul.bf16.gmra.mxu0 %v1514
        %v1742 = vpop.f32.mrf.mxu0
        %v1743 = vadd.f32 %v1444, %v1742
        %v1744 = vpop.f32.mrf.mxu0
        %v1745 = vadd.f32 %v1444, %v1744
        %1746 = vmatmul.bf16.gmra.mxu0 %v1517
        %v1747 = vpop.f32.mrf.mxu0
        %v1748 = vadd.f32 %v1444, %v1747
        %v1749 = vpop.f32.mrf.mxu0
        %v1750 = vadd.f32 %v1444, %v1749
        %1751 = vmatmul.bf16.gmra.mxu0 %v1520
        %v1752 = vpop.f32.mrf.mxu0
        %v1753 = vadd.f32 %v1444, %v1752
        %v1754 = vpop.f32.mrf.mxu0
        %v1755 = vadd.f32 %v1444, %v1754
        %1756 = vmatmul.bf16.gmra.mxu0 %v1523
        %v1757 = vpop.f32.mrf.mxu0
        %v1758 = vadd.f32 %v1444, %v1757
        %v1759 = vpop.f32.mrf.mxu0
        %v1760 = vadd.f32 %v1444, %v1759
        %1761 = vmatmul.bf16.gmra.mxu0 %v1526
        %v1762 = vpop.f32.mrf.mxu0
        %v1763 = vadd.f32 %v1444, %v1762
        %v1764 = vpop.f32.mrf.mxu0
        %v1765 = vadd.f32 %v1444, %v1764
        %1766 = vmatmul.bf16.gmra.mxu0 %v1529
        %v1767 = vpop.f32.mrf.mxu0
        %v1768 = vadd.f32 %v1444, %v1767
        %v1769 = vpop.f32.mrf.mxu0
        %v1770 = vadd.f32 %v1444, %v1769
        %1771 = vmatmul.bf16.gmra.mxu0 %v1532
        %v1772 = vpop.f32.mrf.mxu0
        %v1773 = vadd.f32 %v1444, %v1772
        %v1774 = vpop.f32.mrf.mxu0
        %v1775 = vadd.f32 %v1444, %v1774
        %1776 = vmatmul.bf16.gmra.mxu0 %v1535
        %v1777 = vpop.f32.mrf.mxu0
        %v1778 = vadd.f32 %v1444, %v1777
        %v1779 = vpop.f32.mrf.mxu0
        %v1780 = vadd.f32 %v1444, %v1779
        %1781 = vmatmul.bf16.gmra.mxu0 %v1538
        %v1782 = vpop.f32.mrf.mxu0
        %v1783 = vadd.f32 %v1444, %v1782
        %v1784 = vpop.f32.mrf.mxu0
        %v1785 = vadd.f32 %v1444, %v1784
        %1786 = vmatmul.bf16.gmra.mxu0 %v1541
        %v1787 = vpop.f32.mrf.mxu0
        %v1788 = vadd.f32 %v1444, %v1787
        %v1789 = vpop.f32.mrf.mxu0
        %v1790 = vadd.f32 %v1444, %v1789
        %1791 = vmatmul.bf16.gmra.mxu0 %v1544
        %v1792 = vpop.f32.mrf.mxu0
        %v1793 = vadd.f32 %v1444, %v1792
        %v1794 = vpop.f32.mrf.mxu0
        %v1795 = vadd.f32 %v1444, %v1794
        %1796 = vmatmul.bf16.gmra.mxu0 %v1547
        %v1797 = vpop.f32.mrf.mxu0
        %v1798 = vadd.f32 %v1444, %v1797
        %v1799 = vpop.f32.mrf.mxu0
        %v1800 = vadd.f32 %v1444, %v1799
        %1801 = vmatmul.bf16.gmra.mxu0 %v1550
        %v1802 = vpop.f32.mrf.mxu0
        %v1803 = vadd.f32 %v1444, %v1802
        %v1804 = vpop.f32.mrf.mxu0
        %v1805 = vadd.f32 %v1444, %v1804
        %1806 = vmatmul.bf16.gmra.mxu0 %v1553
        %v1807 = vpop.f32.mrf.mxu0
        %v1808 = vadd.f32 %v1444, %v1807
        %v1809 = vpop.f32.mrf.mxu0
        %v1810 = vadd.f32 %v1444, %v1809
        %1811 = vmatmul.bf16.gmra.mxu0 %v1556
        %v1812 = vpop.f32.mrf.mxu0
        %v1813 = vadd.f32 %v1444, %v1812
        %v1814 = vpop.f32.mrf.mxu0
        %v1815 = vadd.f32 %v1444, %v1814
        %1816 = vmatmul.bf16.gmra.mxu0 %v1559
        %v1817 = vpop.f32.mrf.mxu0
        %v1818 = vadd.f32 %v1444, %v1817
        %v1819 = vpop.f32.mrf.mxu0
        %v1820 = vadd.f32 %v1444, %v1819
        %1821 = vmatmul.bf16.gmra.mxu0 %v1562
        %v1822 = vpop.f32.mrf.mxu0
        %v1823 = vadd.f32 %v1444, %v1822
        %v1824 = vpop.f32.mrf.mxu0
        %v1825 = vadd.f32 %v1444, %v1824
        %1826 = vmatmul.bf16.gmra.mxu0 %v1565
        %v1827 = vpop.f32.mrf.mxu0
        %v1828 = vadd.f32 %v1444, %v1827
        %v1829 = vpop.f32.mrf.mxu0
        %v1830 = vadd.f32 %v1444, %v1829
        %1831 = vmatmul.bf16.gmra.mxu0 %v1568
        %v1832 = vpop.f32.mrf.mxu0
        %v1833 = vadd.f32 %v1444, %v1832
        %v1834 = vpop.f32.mrf.mxu0
        %v1835 = vadd.f32 %v1444, %v1834
        %1836 = vmatmul.bf16.gmra.mxu0 %v1571
        %v1837 = vpop.f32.mrf.mxu0
        %v1838 = vadd.f32 %v1444, %v1837
        %v1839 = vpop.f32.mrf.mxu0
        %v1840 = vadd.f32 %v1444, %v1839
        %1841 = vmatmul.bf16.gmra.mxu0 %v1574
        %v1842 = vpop.f32.mrf.mxu0
        %v1843 = vadd.f32 %v1444, %v1842
        %v1844 = vpop.f32.mrf.mxu0
        %v1845 = vadd.f32 %v1444, %v1844
        %1846 = vmatmul.bf16.gmra.mxu0 %v1577
        %v1847 = vpop.f32.mrf.mxu0
        %v1848 = vadd.f32 %v1444, %v1847
        %v1849 = vpop.f32.mrf.mxu0
        %v1850 = vadd.f32 %v1444, %v1849
        %1851 = vmatmul.bf16.gmra.mxu0 %v1580
        %v1852 = vpop.f32.mrf.mxu0
        %v1853 = vadd.f32 %v1444, %v1852
        %v1854 = vpop.f32.mrf.mxu0
        %v1855 = vadd.f32 %v1444, %v1854
        %1856 = vmatmul.bf16.gmra.mxu0 %v1583
        %v1857 = vpop.f32.mrf.mxu0
        %v1858 = vadd.f32 %v1444, %v1857
        %v1859 = vpop.f32.mrf.mxu0
        %v1860 = vadd.f32 %v1444, %v1859
        %1861 = vmatmul.bf16.gmra.mxu0 %v1586
        %v1862 = vpop.f32.mrf.mxu0
        %v1863 = vadd.f32 %v1444, %v1862
        %v1864 = vpop.f32.mrf.mxu0
        %v1865 = vadd.f32 %v1444, %v1864
        %1866 = vmatmul.bf16.gmra.mxu0 %v1589
        %v1867 = vpop.f32.mrf.mxu0
        %v1868 = vadd.f32 %v1444, %v1867
        %v1869 = vpop.f32.mrf.mxu0
        %v1870 = vadd.f32 %v1444, %v1869
        %1871 = vmatmul.bf16.gmra.mxu0 %v1592
        %v1872 = vpop.f32.mrf.mxu0
        %v1873 = vadd.f32 %v1444, %v1872
        %v1874 = vpop.f32.mrf.mxu0
        %v1875 = vadd.f32 %v1444, %v1874
        %1876 = vmatmul.bf16.gmra.mxu0 %v1595
        %v1877 = vpop.f32.mrf.mxu0
        %v1878 = vadd.f32 %v1444, %v1877
        %v1879 = vpop.f32.mrf.mxu0
        %v1880 = vadd.f32 %v1444, %v1879
        %1881 = vmatmul.bf16.gmra.mxu0 %v1598
        %v1882 = vpop.f32.mrf.mxu0
        %v1883 = vadd.f32 %v1444, %v1882
        %v1884 = vpop.f32.mrf.mxu0
        %v1885 = vadd.f32 %v1444, %v1884
        %1886 = vmatmul.bf16.gmra.mxu0 %v1601
        %v1887 = vpop.f32.mrf.mxu0
        %v1888 = vadd.f32 %v1444, %v1887
        %v1889 = vpop.f32.mrf.mxu0
        %v1890 = vadd.f32 %v1444, %v1889
        %1891 = vmatmul.bf16.gmra.mxu0 %v1604
        %v1892 = vpop.f32.mrf.mxu0
        %v1893 = vadd.f32 %v1444, %v1892
        %v1894 = vpop.f32.mrf.mxu0
        %v1895 = vadd.f32 %v1444, %v1894
        %1896 = vmatmul.bf16.gmra.mxu0 %v1607
        %v1897 = vpop.f32.mrf.mxu0
        %v1898 = vadd.f32 %v1444, %v1897
        %v1899 = vpop.f32.mrf.mxu0
        %v1900 = vadd.f32 %v1444, %v1899
        %1901 = vmatmul.bf16.gmra.mxu0 %v1610
        %v1902 = vpop.f32.mrf.mxu0
        %v1903 = vadd.f32 %v1444, %v1902
        %v1904 = vpop.f32.mrf.mxu0
        %v1905 = vadd.f32 %v1444, %v1904
        %1906 = vmatmul.bf16.gmra.mxu0 %v1613
        %v1907 = vpop.f32.mrf.mxu0
        %v1908 = vadd.f32 %v1444, %v1907
        %v1909 = vpop.f32.mrf.mxu0
        %v1910 = vadd.f32 %v1444, %v1909
        %1911 = vmatmul.bf16.gmra.mxu0 %v1616
        %v1912 = vpop.f32.mrf.mxu0
        %v1913 = vadd.f32 %v1444, %v1912
        %v1914 = vpop.f32.mrf.mxu0
        %v1915 = vadd.f32 %v1444, %v1914
        %1916 = vmatmul.bf16.gmra.mxu0 %v1619
        %v1917 = vpop.f32.mrf.mxu0
        %v1918 = vadd.f32 %v1444, %v1917
        %v1919 = vpop.f32.mrf.mxu0
        %v1920 = vadd.f32 %v1444, %v1919
        %1921 = vmatmul.bf16.gmra.mxu0 %v1622
        %v1922 = vpop.f32.mrf.mxu0
        %v1923 = vadd.f32 %v1444, %v1922
        %v1924 = vpop.f32.mrf.mxu0
        %v1925 = vadd.f32 %v1444, %v1924
        %1926 = vmatmul.bf16.gmra.mxu0 %v1625
        %v1927 = vpop.f32.mrf.mxu0
        %v1928 = vadd.f32 %v1444, %v1927
        %v1929 = vpop.f32.mrf.mxu0
        %v1930 = vadd.f32 %v1444, %v1929
        %1931 = vmatmul.bf16.gmra.mxu0 %v1628
        %v1932 = vpop.f32.mrf.mxu0
        %v1933 = vadd.f32 %v1444, %v1932
        %v1934 = vpop.f32.mrf.mxu0
        %v1935 = vadd.f32 %v1444, %v1934
        %1936 = vmatmul.bf16.gmra.mxu0 %v1631
        %v1937 = vpop.f32.mrf.mxu0
        %v1938 = vadd.f32 %v1444, %v1937
        %v1939 = vpop.f32.mrf.mxu0
        %v1940 = vadd.f32 %v1444, %v1939
        %1941 = vmatmul.bf16.gmra.mxu0 %v1634
        %v1942 = vpop.f32.mrf.mxu0
        %v1943 = vadd.f32 %v1444, %v1942
        %v1944 = vpop.f32.mrf.mxu0
        %v1945 = vadd.f32 %v1444, %v1944
        %1946 = vmatmul.bf16.gmra.mxu0 %v1637
        %v1947 = vpop.f32.mrf.mxu0
        %v1948 = vadd.f32 %v1444, %v1947
        %v1949 = vpop.f32.mrf.mxu0
        %v1950 = vadd.f32 %v1444, %v1949
        %1951 = vmatmul.bf16.gmra.mxu0 %v1640
        %v1952 = vpop.f32.mrf.mxu0
        %v1953 = vadd.f32 %v1444, %v1952
        %v1954 = vpop.f32.mrf.mxu0
        %v1955 = vadd.f32 %v1444, %v1954
        %1956 = vmatmul.bf16.gmra.mxu0 %v1643
        %v1957 = vpop.f32.mrf.mxu0
        %v1958 = vadd.f32 %v1444, %v1957
        %v1959 = vpop.f32.mrf.mxu0
        %v1960 = vadd.f32 %v1444, %v1959
        %1961 = vmatmul.bf16.gmra.mxu0 %v1646
        %v1962 = vpop.f32.mrf.mxu0
        %v1963 = vadd.f32 %v1444, %v1962
        %v1964 = vpop.f32.mrf.mxu0
        %v1965 = vadd.f32 %v1444, %v1964
        %1966 = vmatmul.bf16.gmra.mxu0 %v1649
        %v1967 = vpop.f32.mrf.mxu0
        %v1968 = vadd.f32 %v1444, %v1967
        %v1969 = vpop.f32.mrf.mxu0
        %v1970 = vadd.f32 %v1444, %v1969
        %1971 = vmatmul.bf16.gmra.mxu0 %v1652
        %v1972 = vpop.f32.mrf.mxu0
        %v1973 = vadd.f32 %v1444, %v1972
        %v1974 = vpop.f32.mrf.mxu0
        %v1975 = vadd.f32 %v1444, %v1974
        %1976 = vmatmul.bf16.gmra.mxu0 %v1655
        %v1977 = vpop.f32.mrf.mxu0
        %v1978 = vadd.f32 %v1444, %v1977
        %v1979 = vpop.f32.mrf.mxu0
        %v1980 = vadd.f32 %v1444, %v1979
        %1981 = vmatmul.bf16.gmra.mxu0 %v1658
        %v1982 = vpop.f32.mrf.mxu0
        %v1983 = vadd.f32 %v1444, %v1982
        %v1984 = vpop.f32.mrf.mxu0
        %v1985 = vadd.f32 %v1444, %v1984
        %1986 = vmatmul.bf16.gmra.mxu0 %v1661
        %v1987 = vpop.f32.mrf.mxu0
        %v1988 = vadd.f32 %v1444, %v1987
        %v1989 = vpop.f32.mrf.mxu0
        %v1990 = vadd.f32 %v1444, %v1989
        %1991 = vdwg.mxu0
        %v1992 = vmax.f32 %v1673, 0.0
        %v1993 = vmax.f32 %v1675, 0.0
        %v1994 = vmax.f32 %v1678, 0.0
        %v1995 = vmax.f32 %v1680, 0.0
        %v1996 = vmax.f32 %v1683, 0.0
        %v1997 = vmax.f32 %v1685, 0.0
        %v1998 = vmax.f32 %v1688, 0.0
        %v1999 = vmax.f32 %v1690, 0.0
        %v2000 = vmax.f32 %v1693, 0.0
        %v2001 = vmax.f32 %v1695, 0.0
        %v2002 = vmax.f32 %v1698, 0.0
        %v2003 = vmax.f32 %v1700, 0.0
        %v2004 = vmax.f32 %v1703, 0.0
        %v2005 = vmax.f32 %v1705, 0.0
        %v2006 = vmax.f32 %v1708, 0.0
        %v2007 = vmax.f32 %v1710, 0.0
        %v2008 = vmax.f32 %v1713, 0.0
        %v2009 = vmax.f32 %v1715, 0.0
        %v2010 = vmax.f32 %v1718, 0.0
        %v2011 = vmax.f32 %v1720, 0.0
        %v2012 = vmax.f32 %v1723, 0.0
        %v2013 = vmax.f32 %v1725, 0.0
        %v2014 = vmax.f32 %v1728, 0.0
        %v2015 = vmax.f32 %v1730, 0.0
        %v2016 = vmax.f32 %v1733, 0.0
        %v2017 = vmax.f32 %v1735, 0.0
        %v2018 = vmax.f32 %v1738, 0.0
        %v2019 = vmax.f32 %v1740, 0.0
        %v2020 = vmax.f32 %v1743, 0.0
        %v2021 = vmax.f32 %v1745, 0.0
        %v2022 = vmax.f32 %v1748, 0.0
        %v2023 = vmax.f32 %v1750, 0.0
        %v2024 = vmax.f32 %v1753, 0.0
        %v2025 = vmax.f32 %v1755, 0.0
        %v2026 = vmax.f32 %v1758, 0.0
        %v2027 = vmax.f32 %v1760, 0.0
        %v2028 = vmax.f32 %v1763, 0.0
        %v2029 = vmax.f32 %v1765, 0.0
        %v2030 = vmax.f32 %v1768, 0.0
        %v2031 = vmax.f32 %v1770, 0.0
        %v2032 = vmax.f32 %v1773, 0.0
        %v2033 = vmax.f32 %v1775, 0.0
        %v2034 = vmax.f32 %v1778, 0.0
        %v2035 = vmax.f32 %v1780, 0.0
        %v2036 = vmax.f32 %v1783, 0.0
        %v2037 = vmax.f32 %v1785, 0.0
        %v2038 = vmax.f32 %v1788, 0.0
        %v2039 = vmax.f32 %v1790, 0.0
        %v2040 = vmax.f32 %v1793, 0.0
        %v2041 = vmax.f32 %v1795, 0.0
        %v2042 = vmax.f32 %v1798, 0.0
        %v2043 = vmax.f32 %v1800, 0.0
        %v2044 = vmax.f32 %v1803, 0.0
        %v2045 = vmax.f32 %v1805, 0.0
        %v2046 = vmax.f32 %v1808, 0.0
        %v2047 = vmax.f32 %v1810, 0.0
        %v2048 = vmax.f32 %v1813, 0.0
        %v2049 = vmax.f32 %v1815, 0.0
        %v2050 = vmax.f32 %v1818, 0.0
        %v2051 = vmax.f32 %v1820, 0.0
        %v2052 = vmax.f32 %v1823, 0.0
        %v2053 = vmax.f32 %v1825, 0.0
        %v2054 = vmax.f32 %v1828, 0.0
        %v2055 = vmax.f32 %v1830, 0.0
        %v2056 = vmax.f32 %v1833, 0.0
        %v2057 = vmax.f32 %v1835, 0.0
        %v2058 = vmax.f32 %v1838, 0.0
        %v2059 = vmax.f32 %v1840, 0.0
        %v2060 = vmax.f32 %v1843, 0.0
        %v2061 = vmax.f32 %v1845, 0.0
        %v2062 = vmax.f32 %v1848, 0.0
        %v2063 = vmax.f32 %v1850, 0.0
        %v2064 = vmax.f32 %v1853, 0.0
        %v2065 = vmax.f32 %v1855, 0.0
        %v2066 = vmax.f32 %v1858, 0.0
        %v2067 = vmax.f32 %v1860, 0.0
        %v2068 = vmax.f32 %v1863, 0.0
        %v2069 = vmax.f32 %v1865, 0.0
        %v2070 = vmax.f32 %v1868, 0.0
        %v2071 = vmax.f32 %v1870, 0.0
        %v2072 = vmax.f32 %v1873, 0.0
        %v2073 = vmax.f32 %v1875, 0.0
        %v2074 = vmax.f32 %v1878, 0.0
        %v2075 = vmax.f32 %v1880, 0.0
        %v2076 = vmax.f32 %v1883, 0.0
        %v2077 = vmax.f32 %v1885, 0.0
        %v2078 = vmax.f32 %v1888, 0.0
        %v2079 = vmax.f32 %v1890, 0.0
        %v2080 = vmax.f32 %v1893, 0.0
        %v2081 = vmax.f32 %v1895, 0.0
        %v2082 = vmax.f32 %v1898, 0.0
        %v2083 = vmax.f32 %v1900, 0.0
        %v2084 = vmax.f32 %v1903, 0.0
        %v2085 = vmax.f32 %v1905, 0.0
        %v2086 = vmax.f32 %v1908, 0.0
        %v2087 = vmax.f32 %v1910, 0.0
        %v2088 = vmax.f32 %v1913, 0.0
        %v2089 = vmax.f32 %v1915, 0.0
        %v2090 = vmax.f32 %v1918, 0.0
        %v2091 = vmax.f32 %v1920, 0.0
        %v2092 = vmax.f32 %v1923, 0.0
        %v2093 = vmax.f32 %v1925, 0.0
        %v2094 = vmax.f32 %v1928, 0.0
        %v2095 = vmax.f32 %v1930, 0.0
        %v2096 = vmax.f32 %v1933, 0.0
        %v2097 = vmax.f32 %v1935, 0.0
        %v2098 = vmax.f32 %v1938, 0.0
        %v2099 = vmax.f32 %v1940, 0.0
        %v2100 = vmax.f32 %v1943, 0.0
        %v2101 = vmax.f32 %v1945, 0.0
        %v2102 = vmax.f32 %v1948, 0.0
        %v2103 = vmax.f32 %v1950, 0.0
        %v2104 = vmax.f32 %v1953, 0.0
        %v2105 = vmax.f32 %v1955, 0.0
        %v2106 = vmax.f32 %v1958, 0.0
        %v2107 = vmax.f32 %v1960, 0.0
        %v2108 = vmax.f32 %v1963, 0.0
        %v2109 = vmax.f32 %v1965, 0.0
        %v2110 = vmax.f32 %v1968, 0.0
        %v2111 = vmax.f32 %v1970, 0.0
        %v2112 = vmax.f32 %v1973, 0.0
        %v2113 = vmax.f32 %v1975, 0.0
        %v2114 = vmax.f32 %v1978, 0.0
        %v2115 = vmax.f32 %v1980, 0.0
        %v2116 = vmax.f32 %v1983, 0.0
        %v2117 = vmax.f32 %v1985, 0.0
        %v2118 = vmax.f32 %v1988, 0.0
        %v2119 = vmax.f32 %v1990, 0.0
        %v2120 = vpack.c.bf16 %v1992, %v1992
        %v2121 = vpack.c.bf16 %v1993, %v1993
        %v2122 = vpack.c.bf16 %v1994, %v1994
        %v2123 = vpack.c.bf16 %v1995, %v1995
        %v2124 = vpack.c.bf16 %v1996, %v1996
        %v2125 = vpack.c.bf16 %v1997, %v1997
        %v2126 = vpack.c.bf16 %v1998, %v1998
        %v2127 = vpack.c.bf16 %v1999, %v1999
        %v2128 = vpack.c.bf16 %v2000, %v2000
        %v2129 = vpack.c.bf16 %v2001, %v2001
        %v2130 = vpack.c.bf16 %v2002, %v2002
        %v2131 = vpack.c.bf16 %v2003, %v2003
        %v2132 = vpack.c.bf16 %v2004, %v2004
        %v2133 = vpack.c.bf16 %v2005, %v2005
        %v2134 = vpack.c.bf16 %v2006, %v2006
        %v2135 = vpack.c.bf16 %v2007, %v2007
        %v2136 = vpack.c.bf16 %v2008, %v2008
        %v2137 = vpack.c.bf16 %v2009, %v2009
        %v2138 = vpack.c.bf16 %v2010, %v2010
        %v2139 = vpack.c.bf16 %v2011, %v2011
        %v2140 = vpack.c.bf16 %v2012, %v2012
        %v2141 = vpack.c.bf16 %v2013, %v2013
        %v2142 = vpack.c.bf16 %v2014, %v2014
        %v2143 = vpack.c.bf16 %v2015, %v2015
        %v2144 = vpack.c.bf16 %v2016, %v2016
        %v2145 = vpack.c.bf16 %v2017, %v2017
        %v2146 = vpack.c.bf16 %v2018, %v2018
        %v2147 = vpack.c.bf16 %v2019, %v2019
        %v2148 = vpack.c.bf16 %v2020, %v2020
        %v2149 = vpack.c.bf16 %v2021, %v2021
        %v2150 = vpack.c.bf16 %v2022, %v2022
        %v2151 = vpack.c.bf16 %v2023, %v2023
        %v2152 = vpack.c.bf16 %v2024, %v2024
        %v2153 = vpack.c.bf16 %v2025, %v2025
        %v2154 = vpack.c.bf16 %v2026, %v2026
        %v2155 = vpack.c.bf16 %v2027, %v2027
        %v2156 = vpack.c.bf16 %v2028, %v2028
        %v2157 = vpack.c.bf16 %v2029, %v2029
        %v2158 = vpack.c.bf16 %v2030, %v2030
        %v2159 = vpack.c.bf16 %v2031, %v2031
        %v2160 = vpack.c.bf16 %v2032, %v2032
        %v2161 = vpack.c.bf16 %v2033, %v2033
        %v2162 = vpack.c.bf16 %v2034, %v2034
        %v2163 = vpack.c.bf16 %v2035, %v2035
        %v2164 = vpack.c.bf16 %v2036, %v2036
        %v2165 = vpack.c.bf16 %v2037, %v2037
        %v2166 = vpack.c.bf16 %v2038, %v2038
        %v2167 = vpack.c.bf16 %v2039, %v2039
        %v2168 = vpack.c.bf16 %v2040, %v2040
        %v2169 = vpack.c.bf16 %v2041, %v2041
        %v2170 = vpack.c.bf16 %v2042, %v2042
        %v2171 = vpack.c.bf16 %v2043, %v2043
        %v2172 = vpack.c.bf16 %v2044, %v2044
        %v2173 = vpack.c.bf16 %v2045, %v2045
        %v2174 = vpack.c.bf16 %v2046, %v2046
        %v2175 = vpack.c.bf16 %v2047, %v2047
        %v2176 = vpack.c.bf16 %v2048, %v2048
        %v2177 = vpack.c.bf16 %v2049, %v2049
        %v2178 = vpack.c.bf16 %v2050, %v2050
        %v2179 = vpack.c.bf16 %v2051, %v2051
        %v2180 = vpack.c.bf16 %v2052, %v2052
        %v2181 = vpack.c.bf16 %v2053, %v2053
        %v2182 = vpack.c.bf16 %v2054, %v2054
        %v2183 = vpack.c.bf16 %v2055, %v2055
        %v2184 = vpack.c.bf16 %v2056, %v2056
        %v2185 = vpack.c.bf16 %v2057, %v2057
        %v2186 = vpack.c.bf16 %v2058, %v2058
        %v2187 = vpack.c.bf16 %v2059, %v2059
        %v2188 = vpack.c.bf16 %v2060, %v2060
        %v2189 = vpack.c.bf16 %v2061, %v2061
        %v2190 = vpack.c.bf16 %v2062, %v2062
        %v2191 = vpack.c.bf16 %v2063, %v2063
        %v2192 = vpack.c.bf16 %v2064, %v2064
        %v2193 = vpack.c.bf16 %v2065, %v2065
        %v2194 = vpack.c.bf16 %v2066, %v2066
        %v2195 = vpack.c.bf16 %v2067, %v2067
        %v2196 = vpack.c.bf16 %v2068, %v2068
        %v2197 = vpack.c.bf16 %v2069, %v2069
        %v2198 = vpack.c.bf16 %v2070, %v2070
        %v2199 = vpack.c.bf16 %v2071, %v2071
        %v2200 = vpack.c.bf16 %v2072, %v2072
        %v2201 = vpack.c.bf16 %v2073, %v2073
        %v2202 = vpack.c.bf16 %v2074, %v2074
        %v2203 = vpack.c.bf16 %v2075, %v2075
        %v2204 = vpack.c.bf16 %v2076, %v2076
        %v2205 = vpack.c.bf16 %v2077, %v2077
        %v2206 = vpack.c.bf16 %v2078, %v2078
        %v2207 = vpack.c.bf16 %v2079, %v2079
        %v2208 = vpack.c.bf16 %v2080, %v2080
        %v2209 = vpack.c.bf16 %v2081, %v2081
        %v2210 = vpack.c.bf16 %v2082, %v2082
        %v2211 = vpack.c.bf16 %v2083, %v2083
        %v2212 = vpack.c.bf16 %v2084, %v2084
        %v2213 = vpack.c.bf16 %v2085, %v2085
        %v2214 = vpack.c.bf16 %v2086, %v2086
        %v2215 = vpack.c.bf16 %v2087, %v2087
        %v2216 = vpack.c.bf16 %v2088, %v2088
        %v2217 = vpack.c.bf16 %v2089, %v2089
        %v2218 = vpack.c.bf16 %v2090, %v2090
        %v2219 = vpack.c.bf16 %v2091, %v2091
        %v2220 = vpack.c.bf16 %v2092, %v2092
        %v2221 = vpack.c.bf16 %v2093, %v2093
        %v2222 = vpack.c.bf16 %v2094, %v2094
        %v2223 = vpack.c.bf16 %v2095, %v2095
        %v2224 = vpack.c.bf16 %v2096, %v2096
        %v2225 = vpack.c.bf16 %v2097, %v2097
        %v2226 = vpack.c.bf16 %v2098, %v2098
        %v2227 = vpack.c.bf16 %v2099, %v2099
        %v2228 = vpack.c.bf16 %v2100, %v2100
        %v2229 = vpack.c.bf16 %v2101, %v2101
        %v2230 = vpack.c.bf16 %v2102, %v2102
        %v2231 = vpack.c.bf16 %v2103, %v2103
        %v2232 = vpack.c.bf16 %v2104, %v2104
        %v2233 = vpack.c.bf16 %v2105, %v2105
        %v2234 = vpack.c.bf16 %v2106, %v2106
        %v2235 = vpack.c.bf16 %v2107, %v2107
        %v2236 = vpack.c.bf16 %v2108, %v2108
        %v2237 = vpack.c.bf16 %v2109, %v2109
        %v2238 = vpack.c.bf16 %v2110, %v2110
        %v2239 = vpack.c.bf16 %v2111, %v2111
        %v2240 = vpack.c.bf16 %v2112, %v2112
        %v2241 = vpack.c.bf16 %v2113, %v2113
        %v2242 = vpack.c.bf16 %v2114, %v2114
        %v2243 = vpack.c.bf16 %v2115, %v2115
        %v2244 = vpack.c.bf16 %v2116, %v2116
        %v2245 = vpack.c.bf16 %v2117, %v2117
        %v2246 = vpack.c.bf16 %v2118, %v2118
        %v2247 = vpack.c.bf16 %v2119, %v2119
        %2248 = vst [vmem:[#allocation2] sm:$0xf] %v2120
        %2249 = vst [vmem:[#allocation2 + $0x4] sm:$0xf] %v2121
        %2250 = vst [vmem:[#allocation2 + $0x8] sm:$0xf] %v2122
        %2251 = vst [vmem:[#allocation2 + $0xc] sm:$0xf] %v2123
        %2252 = vst [vmem:[#allocation2 + $0x10] sm:$0xf] %v2124
        %2253 = vst [vmem:[#allocation2 + $0x14] sm:$0xf] %v2125
        %2254 = vst [vmem:[#allocation2 + $0x18] sm:$0xf] %v2126
        %2255 = vst [vmem:[#allocation2 + $0x1c] sm:$0xf] %v2127
        %2256 = vst [vmem:[#allocation2 + $0x20] sm:$0xf] %v2128
        %2257 = vst [vmem:[#allocation2 + $0x24] sm:$0xf] %v2129
        %2258 = vst [vmem:[#allocation2 + $0x28] sm:$0xf] %v2130
        %2259 = vst [vmem:[#allocation2 + $0x2c] sm:$0xf] %v2131
        %2260 = vst [vmem:[#allocation2 + $0x30] sm:$0xf] %v2132
        %2261 = vst [vmem:[#allocation2 + $0x34] sm:$0xf] %v2133
        %2262 = vst [vmem:[#allocation2 + $0x38] sm:$0xf] %v2134
        %2263 = vst [vmem:[#allocation2 + $0x3c] sm:$0xf] %v2135
        %2264 = vst [vmem:[#allocation2 + $0x40] sm:$0xf] %v2136
        %2265 = vst [vmem:[#allocation2 + $0x44] sm:$0xf] %v2137
        %2266 = vst [vmem:[#allocation2 + $0x48] sm:$0xf] %v2138
        %2267 = vst [vmem:[#allocation2 + $0x4c] sm:$0xf] %v2139
        %2268 = vst [vmem:[#allocation2 + $0x50] sm:$0xf] %v2140
        %2269 = vst [vmem:[#allocation2 + $0x54] sm:$0xf] %v2141
        %2270 = vst [vmem:[#allocation2 + $0x58] sm:$0xf] %v2142
        %2271 = vst [vmem:[#allocation2 + $0x5c] sm:$0xf] %v2143
        %2272 = vst [vmem:[#allocation2 + $0x60] sm:$0xf] %v2144
        %2273 = vst [vmem:[#allocation2 + $0x64] sm:$0xf] %v2145
        %2274 = vst [vmem:[#allocation2 + $0x68] sm:$0xf] %v2146
        %2275 = vst [vmem:[#allocation2 + $0x6c] sm:$0xf] %v2147
        %2276 = vst [vmem:[#allocation2 + $0x70] sm:$0xf] %v2148
        %2277 = vst [vmem:[#allocation2 + $0x74] sm:$0xf] %v2149
        %2278 = vst [vmem:[#allocation2 + $0x78] sm:$0xf] %v2150
        %2279 = vst [vmem:[#allocation2 + $0x7c] sm:$0xf] %v2151
        %2280 = vst [vmem:[#allocation2 + $0x80] sm:$0xf] %v2152
        %2281 = vst [vmem:[#allocation2 + $0x84] sm:$0xf] %v2153
        %2282 = vst [vmem:[#allocation2 + $0x88] sm:$0xf] %v2154
        %2283 = vst [vmem:[#allocation2 + $0x8c] sm:$0xf] %v2155
        %2284 = vst [vmem:[#allocation2 + $0x90] sm:$0xf] %v2156
        %2285 = vst [vmem:[#allocation2 + $0x94] sm:$0xf] %v2157
        %2286 = vst [vmem:[#allocation2 + $0x98] sm:$0xf] %v2158
        %2287 = vst [vmem:[#allocation2 + $0x9c] sm:$0xf] %v2159
        %2288 = vst [vmem:[#allocation2 + $0xa0] sm:$0xf] %v2160
        %2289 = vst [vmem:[#allocation2 + $0xa4] sm:$0xf] %v2161
        %2290 = vst [vmem:[#allocation2 + $0xa8] sm:$0xf] %v2162
        %2291 = vst [vmem:[#allocation2 + $0xac] sm:$0xf] %v2163
        %2292 = vst [vmem:[#allocation2 + $0xb0] sm:$0xf] %v2164
        %2293 = vst [vmem:[#allocation2 + $0xb4] sm:$0xf] %v2165
        %2294 = vst [vmem:[#allocation2 + $0xb8] sm:$0xf] %v2166
        %2295 = vst [vmem:[#allocation2 + $0xbc] sm:$0xf] %v2167
        %2296 = vst [vmem:[#allocation2 + $0xc0] sm:$0xf] %v2168
        %2297 = vst [vmem:[#allocation2 + $0xc4] sm:$0xf] %v2169
        %2298 = vst [vmem:[#allocation2 + $0xc8] sm:$0xf] %v2170
        %2299 = vst [vmem:[#allocation2 + $0xcc] sm:$0xf] %v2171
        %2300 = vst [vmem:[#allocation2 + $0xd0] sm:$0xf] %v2172
        %2301 = vst [vmem:[#allocation2 + $0xd4] sm:$0xf] %v2173
        %2302 = vst [vmem:[#allocation2 + $0xd8] sm:$0xf] %v2174
        %2303 = vst [vmem:[#allocation2 + $0xdc] sm:$0xf] %v2175
        %2304 = vst [vmem:[#allocation2 + $0xe0] sm:$0xf] %v2176
        %2305 = vst [vmem:[#allocation2 + $0xe4] sm:$0xf] %v2177
        %2306 = vst [vmem:[#allocation2 + $0xe8] sm:$0xf] %v2178
        %2307 = vst [vmem:[#allocation2 + $0xec] sm:$0xf] %v2179
        %2308 = vst [vmem:[#allocation2 + $0xf0] sm:$0xf] %v2180
        %2309 = vst [vmem:[#allocation2 + $0xf4] sm:$0xf] %v2181
        %2310 = vst [vmem:[#allocation2 + $0xf8] sm:$0xf] %v2182
        %2311 = vst [vmem:[#allocation2 + $0xfc] sm:$0xf] %v2183
        %2312 = vst [vmem:[#allocation2 + $0x100] sm:$0xf] %v2184
        %2313 = vst [vmem:[#allocation2 + $0x104] sm:$0xf] %v2185
        %2314 = vst [vmem:[#allocation2 + $0x108] sm:$0xf] %v2186
        %2315 = vst [vmem:[#allocation2 + $0x10c] sm:$0xf] %v2187
        %2316 = vst [vmem:[#allocation2 + $0x110] sm:$0xf] %v2188
        %2317 = vst [vmem:[#allocation2 + $0x114] sm:$0xf] %v2189
        %2318 = vst [vmem:[#allocation2 + $0x118] sm:$0xf] %v2190
        %2319 = vst [vmem:[#allocation2 + $0x11c] sm:$0xf] %v2191
        %2320 = vst [vmem:[#allocation2 + $0x120] sm:$0xf] %v2192
        %2321 = vst [vmem:[#allocation2 + $0x124] sm:$0xf] %v2193
        %2322 = vst [vmem:[#allocation2 + $0x128] sm:$0xf] %v2194
        %2323 = vst [vmem:[#allocation2 + $0x12c] sm:$0xf] %v2195
        %2324 = vst [vmem:[#allocation2 + $0x130] sm:$0xf] %v2196
        %2325 = vst [vmem:[#allocation2 + $0x134] sm:$0xf] %v2197
        %2326 = vst [vmem:[#allocation2 + $0x138] sm:$0xf] %v2198
        %2327 = vst [vmem:[#allocation2 + $0x13c] sm:$0xf] %v2199
        %2328 = vst [vmem:[#allocation2 + $0x140] sm:$0xf] %v2200
        %2329 = vst [vmem:[#allocation2 + $0x144] sm:$0xf] %v2201
        %2330 = vst [vmem:[#allocation2 + $0x148] sm:$0xf] %v2202
        %2331 = vst [vmem:[#allocation2 + $0x14c] sm:$0xf] %v2203
        %2332 = vst [vmem:[#allocation2 + $0x150] sm:$0xf] %v2204
        %2333 = vst [vmem:[#allocation2 + $0x154] sm:$0xf] %v2205
        %2334 = vst [vmem:[#allocation2 + $0x158] sm:$0xf] %v2206
        %2335 = vst [vmem:[#allocation2 + $0x15c] sm:$0xf] %v2207
        %2336 = vst [vmem:[#allocation2 + $0x160] sm:$0xf] %v2208
        %2337 = vst [vmem:[#allocation2 + $0x164] sm:$0xf] %v2209
        %2338 = vst [vmem:[#allocation2 + $0x168] sm:$0xf] %v2210
        %2339 = vst [vmem:[#allocation2 + $0x16c] sm:$0xf] %v2211
        %2340 = vst [vmem:[#allocation2 + $0x170] sm:$0xf] %v2212
        %2341 = vst [vmem:[#allocation2 + $0x174] sm:$0xf] %v2213
        %2342 = vst [vmem:[#allocation2 + $0x178] sm:$0xf] %v2214
        %2343 = vst [vmem:[#allocation2 + $0x17c] sm:$0xf] %v2215
        %2344 = vst [vmem:[#allocation2 + $0x180] sm:$0xf] %v2216
        %2345 = vst [vmem:[#allocation2 + $0x184] sm:$0xf] %v2217
        %2346 = vst [vmem:[#allocation2 + $0x188] sm:$0xf] %v2218
        %2347 = vst [vmem:[#allocation2 + $0x18c] sm:$0xf] %v2219
        %2348 = vst [vmem:[#allocation2 + $0x190] sm:$0xf] %v2220
        %2349 = vst [vmem:[#allocation2 + $0x194] sm:$0xf] %v2221
        %2350 = vst [vmem:[#allocation2 + $0x198] sm:$0xf] %v2222
        %2351 = vst [vmem:[#allocation2 + $0x19c] sm:$0xf] %v2223
        %2352 = vst [vmem:[#allocation2 + $0x1a0] sm:$0xf] %v2224
        %2353 = vst [vmem:[#allocation2 + $0x1a4] sm:$0xf] %v2225
        %2354 = vst [vmem:[#allocation2 + $0x1a8] sm:$0xf] %v2226
        %2355 = vst [vmem:[#allocation2 + $0x1ac] sm:$0xf] %v2227
        %2356 = vst [vmem:[#allocation2 + $0x1b0] sm:$0xf] %v2228
        %2357 = vst [vmem:[#allocation2 + $0x1b4] sm:$0xf] %v2229
        %2358 = vst [vmem:[#allocation2 + $0x1b8] sm:$0xf] %v2230
        %2359 = vst [vmem:[#allocation2 + $0x1bc] sm:$0xf] %v2231
        %2360 = vst [vmem:[#allocation2 + $0x1c0] sm:$0xf] %v2232
        %2361 = vst [vmem:[#allocation2 + $0x1c4] sm:$0xf] %v2233
        %2362 = vst [vmem:[#allocation2 + $0x1c8] sm:$0xf] %v2234
        %2363 = vst [vmem:[#allocation2 + $0x1cc] sm:$0xf] %v2235
        %2364 = vst [vmem:[#allocation2 + $0x1d0] sm:$0xf] %v2236
        %2365 = vst [vmem:[#allocation2 + $0x1d4] sm:$0xf] %v2237
        %2366 = vst [vmem:[#allocation2 + $0x1d8] sm:$0xf] %v2238
        %2367 = vst [vmem:[#allocation2 + $0x1dc] sm:$0xf] %v2239
        %2368 = vst [vmem:[#allocation2 + $0x1e0] sm:$0xf] %v2240
        %2369 = vst [vmem:[#allocation2 + $0x1e4] sm:$0xf] %v2241
        %2370 = vst [vmem:[#allocation2 + $0x1e8] sm:$0xf] %v2242
        %2371 = vst [vmem:[#allocation2 + $0x1ec] sm:$0xf] %v2243
        %2372 = vst [vmem:[#allocation2 + $0x1f0] sm:$0xf] %v2244
        %2373 = vst [vmem:[#allocation2 + $0x1f4] sm:$0xf] %v2245
        %2374 = vst [vmem:[#allocation2 + $0x1f8] sm:$0xf] %v2246
        %2375 = vst [vmem:[#allocation2 + $0x1fc] sm:$0xf] %v2247
        %v2376 = vld [vmem:[#allocation3] sm:$0xff]
        %v2377 = vld [vmem:[#allocation3 + $0x8] sm:$0xff]
        %v2378 = vld [vmem:[#allocation3 + $0x10] sm:$0xff]
        %v2379 = vld [vmem:[#allocation3 + $0x18] sm:$0xff]
        %v2380 = vld [vmem:[#allocation3 + $0x20] sm:$0xff]
        %v2381 = vld [vmem:[#allocation3 + $0x28] sm:$0xff]
        %v2382 = vld [vmem:[#allocation3 + $0x30] sm:$0xff]
        %v2383 = vld [vmem:[#allocation3 + $0x38] sm:$0xff]
        %v2384 = vld [vmem:[#allocation3 + $0x40] sm:$0xff]
        %v2385 = vld [vmem:[#allocation3 + $0x48] sm:$0xff]
        %v2386 = vld [vmem:[#allocation3 + $0x50] sm:$0xff]
        %v2387 = vld [vmem:[#allocation3 + $0x58] sm:$0xff]
        %v2388 = vld [vmem:[#allocation3 + $0x60] sm:$0xff]
        %v2389 = vld [vmem:[#allocation3 + $0x68] sm:$0xff]
        %v2390 = vld [vmem:[#allocation3 + $0x70] sm:$0xff]
        %v2391 = vld [vmem:[#allocation3 + $0x78] sm:$0xff]
        %v2392 = vld [vmem:[#allocation3 + $0x80] sm:$0xff]
        %v2393 = vld [vmem:[#allocation3 + $0x88] sm:$0xff]
        %v2394 = vld [vmem:[#allocation3 + $0x90] sm:$0xff]
        %v2395 = vld [vmem:[#allocation3 + $0x98] sm:$0xff]
        %v2396 = vld [vmem:[#allocation3 + $0xa0] sm:$0xff]
        %v2397 = vld [vmem:[#allocation3 + $0xa8] sm:$0xff]
        %v2398 = vld [vmem:[#allocation3 + $0xb0] sm:$0xff]
        %v2399 = vld [vmem:[#allocation3 + $0xb8] sm:$0xff]
        %v2400 = vld [vmem:[#allocation3 + $0xc0] sm:$0xff]
        %v2401 = vld [vmem:[#allocation3 + $0xc8] sm:$0xff]
        %v2402 = vld [vmem:[#allocation3 + $0xd0] sm:$0xff]
        %v2403 = vld [vmem:[#allocation3 + $0xd8] sm:$0xff]
        %v2404 = vld [vmem:[#allocation3 + $0xe0] sm:$0xff]
        %v2405 = vld [vmem:[#allocation3 + $0xe8] sm:$0xff]
        %v2406 = vld [vmem:[#allocation3 + $0xf0] sm:$0xff]
        %v2407 = vld [vmem:[#allocation3 + $0xf8] sm:$0xff]
        %v2408 = vld [vmem:[#allocation3 + $0x100] sm:$0xff]
        %v2409 = vld [vmem:[#allocation3 + $0x108] sm:$0xff]
        %v2410 = vld [vmem:[#allocation3 + $0x110] sm:$0xff]
        %v2411 = vld [vmem:[#allocation3 + $0x118] sm:$0xff]
        %v2412 = vld [vmem:[#allocation3 + $0x120] sm:$0xff]
        %v2413 = vld [vmem:[#allocation3 + $0x128] sm:$0xff]
        %v2414 = vld [vmem:[#allocation3 + $0x130] sm:$0xff]
        %v2415 = vld [vmem:[#allocation3 + $0x138] sm:$0xff]
        %v2416 = vld [vmem:[#allocation3 + $0x140] sm:$0xff]
        %v2417 = vld [vmem:[#allocation3 + $0x148] sm:$0xff]
        %v2418 = vld [vmem:[#allocation3 + $0x150] sm:$0xff]
        %v2419 = vld [vmem:[#allocation3 + $0x158] sm:$0xff]
        %v2420 = vld [vmem:[#allocation3 + $0x160] sm:$0xff]
        %v2421 = vld [vmem:[#allocation3 + $0x168] sm:$0xff]
        %v2422 = vld [vmem:[#allocation3 + $0x170] sm:$0xff]
        %v2423 = vld [vmem:[#allocation3 + $0x178] sm:$0xff]
        %v2424 = vld [vmem:[#allocation3 + $0x180] sm:$0xff]
        %v2425 = vld [vmem:[#allocation3 + $0x188] sm:$0xff]
        %v2426 = vld [vmem:[#allocation3 + $0x190] sm:$0xff]
        %v2427 = vld [vmem:[#allocation3 + $0x198] sm:$0xff]
        %v2428 = vld [vmem:[#allocation3 + $0x1a0] sm:$0xff]
        %v2429 = vld [vmem:[#allocation3 + $0x1a8] sm:$0xff]
        %v2430 = vld [vmem:[#allocation3 + $0x1b0] sm:$0xff]
        %v2431 = vld [vmem:[#allocation3 + $0x1b8] sm:$0xff]
        %v2432 = vld [vmem:[#allocation3 + $0x1c0] sm:$0xff]
        %v2433 = vld [vmem:[#allocation3 + $0x1c8] sm:$0xff]
        %v2434 = vld [vmem:[#allocation3 + $0x1d0] sm:$0xff]
        %v2435 = vld [vmem:[#allocation3 + $0x1d8] sm:$0xff]
        %v2436 = vld [vmem:[#allocation3 + $0x1e0] sm:$0xff]
        %v2437 = vld [vmem:[#allocation3 + $0x1e8] sm:$0xff]
        %v2438 = vld [vmem:[#allocation3 + $0x1f0] sm:$0xff]
        %v2439 = vld [vmem:[#allocation3 + $0x1f8] sm:$0xff]
        %v2440 = vld [vmem:[%s6] sm:$0xff]
        loop: start=0, step=1, limit=4
        $region53: #{pointnet_rot9d.2} parent=47 // loop_pre_header
          _
        $region54: #{pointnet_rot9d.2} parent=47 // loop_header
          %s2442 = sphi 0, %s2446
          %p2443 = scmp.ge.s32.totalorder %s2442, 4
          %v2447 = vphi -inf, %v3933
          %v2448 = vphi -inf, %v3934
          %v2449 = vphi -inf, %v3935
          %v2450 = vphi -inf, %v3936
          %v2451 = vphi -inf, %v3937
          %v2452 = vphi -inf, %v3938
          %v2453 = vphi -inf, %v3939
          %v2454 = vphi -inf, %v3940
        $region55: #{pointnet_rot9d.2} parent=47 // loop_header_branch
          %2445 = sbr.rel (%p2443) target = $region59
        $region56: #{pointnet_rot9d.2} parent=47 // loop_body
          %s2455 = smul.u32 %s2442, 256
          %s2456 = sshra.s32 %s2455, 3
          %s2457 = sand.u32 %s2455, 7
          %s2458 = smul.addr %s2456, 4
          %s2459 = scalar_lea.vmem [#allocation2], %s2458
          %v2460 = vld [vmem:[%s2459] sm:$0xf]
          %v2461 = vld [vmem:[%s2459 + $0x4] sm:$0xf]
          %v2462 = vld [vmem:[%s2459 + $0x8] sm:$0xf]
          %v2463 = vld [vmem:[%s2459 + $0xc] sm:$0xf]
          %v2464 = vld [vmem:[%s2459 + $0x10] sm:$0xf]
          %v2465 = vld [vmem:[%s2459 + $0x14] sm:$0xf]
          %v2466 = vld [vmem:[%s2459 + $0x18] sm:$0xf]
          %v2467 = vld [vmem:[%s2459 + $0x1c] sm:$0xf]
          %v2468 = vld [vmem:[%s2459 + $0x20] sm:$0xf]
          %v2469 = vld [vmem:[%s2459 + $0x24] sm:$0xf]
          %v2470 = vld [vmem:[%s2459 + $0x28] sm:$0xf]
          %v2471 = vld [vmem:[%s2459 + $0x2c] sm:$0xf]
          %v2472 = vld [vmem:[%s2459 + $0x30] sm:$0xf]
          %v2473 = vld [vmem:[%s2459 + $0x34] sm:$0xf]
          %v2474 = vld [vmem:[%s2459 + $0x38] sm:$0xf]
          %v2475 = vld [vmem:[%s2459 + $0x3c] sm:$0xf]
          %v2476 = vld [vmem:[%s2459 + $0x40] sm:$0xf]
          %v2477 = vld [vmem:[%s2459 + $0x44] sm:$0xf]
          %v2478 = vld [vmem:[%s2459 + $0x48] sm:$0xf]
          %v2479 = vld [vmem:[%s2459 + $0x4c] sm:$0xf]
          %v2480 = vld [vmem:[%s2459 + $0x50] sm:$0xf]
          %v2481 = vld [vmem:[%s2459 + $0x54] sm:$0xf]
          %v2482 = vld [vmem:[%s2459 + $0x58] sm:$0xf]
          %v2483 = vld [vmem:[%s2459 + $0x5c] sm:$0xf]
          %v2484 = vld [vmem:[%s2459 + $0x60] sm:$0xf]
          %v2485 = vld [vmem:[%s2459 + $0x64] sm:$0xf]
          %v2486 = vld [vmem:[%s2459 + $0x68] sm:$0xf]
          %v2487 = vld [vmem:[%s2459 + $0x6c] sm:$0xf]
          %v2488 = vld [vmem:[%s2459 + $0x70] sm:$0xf]
          %v2489 = vld [vmem:[%s2459 + $0x74] sm:$0xf]
          %v2490 = vld [vmem:[%s2459 + $0x78] sm:$0xf]
          %v2491 = vld [vmem:[%s2459 + $0x7c] sm:$0xf]
          %v2493 = vperm.slane %v2440, 0
          %v2494 = vperm.slane %v2440, 1
          %v2495 = vperm.slane %v2440, 2
          %v2496 = vperm.slane %v2440, 3
          %v2497 = vperm.slane %v2440, 4
          %v2498 = vperm.slane %v2440, 5
          %v2499 = vperm.slane %v2440, 6
          %v2500 = vperm.slane %v2440, 7
          %v2541 = vunpack.c.l.b16 %v2460
          %v2542 = vunpack.c.l.b16 %v2461
          %v2543 = vunpack.c.l.b16 %v2462
          %v2544 = vunpack.c.l.b16 %v2463
          %v2545 = vunpack.c.l.b16 %v2464
          %v2546 = vunpack.c.l.b16 %v2465
          %v2547 = vunpack.c.l.b16 %v2466
          %v2548 = vunpack.c.l.b16 %v2467
          %v2549 = vunpack.c.l.b16 %v2468
          %v2550 = vunpack.c.l.b16 %v2469
          %v2551 = vunpack.c.l.b16 %v2470
          %v2552 = vunpack.c.l.b16 %v2471
          %v2553 = vunpack.c.l.b16 %v2472
          %v2554 = vunpack.c.l.b16 %v2473
          %v2555 = vunpack.c.l.b16 %v2474
          %v2556 = vunpack.c.l.b16 %v2475
          %v2557 = vunpack.c.l.b16 %v2476
          %v2558 = vunpack.c.l.b16 %v2477
          %v2559 = vunpack.c.l.b16 %v2478
          %v2560 = vunpack.c.l.b16 %v2479
          %v2561 = vunpack.c.l.b16 %v2480
          %v2562 = vunpack.c.l.b16 %v2481
          %v2563 = vunpack.c.l.b16 %v2482
          %v2564 = vunpack.c.l.b16 %v2483
          %v2565 = vunpack.c.l.b16 %v2484
          %v2566 = vunpack.c.l.b16 %v2485
          %v2567 = vunpack.c.l.b16 %v2486
          %v2568 = vunpack.c.l.b16 %v2487
          %v2569 = vunpack.c.l.b16 %v2488
          %v2570 = vunpack.c.l.b16 %v2489
          %v2571 = vunpack.c.l.b16 %v2490
          %v2572 = vunpack.c.l.b16 %v2491
          %v2573 = vpack.c.b16 %v2542, %v2541
          %v2574 = vpack.c.b16 %v2544, %v2543
          %v2575 = vpack.c.b16 %v2546, %v2545
          %v2576 = vpack.c.b16 %v2548, %v2547
          %v2577 = vpack.c.b16 %v2550, %v2549
          %v2578 = vpack.c.b16 %v2552, %v2551
          %v2579 = vpack.c.b16 %v2554, %v2553
          %v2580 = vpack.c.b16 %v2556, %v2555
          %v2581 = vpack.c.b16 %v2558, %v2557
          %v2582 = vpack.c.b16 %v2560, %v2559
          %v2583 = vpack.c.b16 %v2562, %v2561
          %v2584 = vpack.c.b16 %v2564, %v2563
          %v2585 = vpack.c.b16 %v2566, %v2565
          %v2586 = vpack.c.b16 %v2568, %v2567
          %v2587 = vpack.c.b16 %v2570, %v2569
          %v2588 = vpack.c.b16 %v2572, %v2571
          %v2669 = vunpack.c.l.b16 %v2376
          %v2670 = vunpack.c.h.b16 %v2376
          %v2671 = vunpack.c.l.b16 %v2377
          %v2672 = vunpack.c.h.b16 %v2377
          %v2673 = vunpack.c.l.b16 %v2378
          %v2674 = vunpack.c.h.b16 %v2378
          %v2675 = vunpack.c.l.b16 %v2379
          %v2676 = vunpack.c.h.b16 %v2379
          %v2677 = vunpack.c.l.b16 %v2380
          %v2678 = vunpack.c.h.b16 %v2380
          %v2679 = vunpack.c.l.b16 %v2381
          %v2680 = vunpack.c.h.b16 %v2381
          %v2681 = vunpack.c.l.b16 %v2382
          %v2682 = vunpack.c.h.b16 %v2382
          %v2683 = vunpack.c.l.b16 %v2383
          %v2684 = vunpack.c.h.b16 %v2383
          %v2685 = vunpack.c.l.b16 %v2384
          %v2686 = vunpack.c.h.b16 %v2384
          %v2687 = vunpack.c.l.b16 %v2385
          %v2688 = vunpack.c.h.b16 %v2385
          %v2689 = vunpack.c.l.b16 %v2386
          %v2690 = vunpack.c.h.b16 %v2386
          %v2691 = vunpack.c.l.b16 %v2387
          %v2692 = vunpack.c.h.b16 %v2387
          %v2693 = vunpack.c.l.b16 %v2388
          %v2694 = vunpack.c.h.b16 %v2388
          %v2695 = vunpack.c.l.b16 %v2389
          %v2696 = vunpack.c.h.b16 %v2389
          %v2697 = vunpack.c.l.b16 %v2390
          %v2698 = vunpack.c.h.b16 %v2390
          %v2699 = vunpack.c.l.b16 %v2391
          %v2700 = vunpack.c.h.b16 %v2391
          %v2701 = vunpack.c.l.b16 %v2392
          %v2702 = vunpack.c.h.b16 %v2392
          %v2703 = vunpack.c.l.b16 %v2393
          %v2704 = vunpack.c.h.b16 %v2393
          %v2705 = vunpack.c.l.b16 %v2394
          %v2706 = vunpack.c.h.b16 %v2394
          %v2707 = vunpack.c.l.b16 %v2395
          %v2708 = vunpack.c.h.b16 %v2395
          %v2709 = vunpack.c.l.b16 %v2396
          %v2710 = vunpack.c.h.b16 %v2396
          %v2711 = vunpack.c.l.b16 %v2397
          %v2712 = vunpack.c.h.b16 %v2397
          %v2713 = vunpack.c.l.b16 %v2398
          %v2714 = vunpack.c.h.b16 %v2398
          %v2715 = vunpack.c.l.b16 %v2399
          %v2716 = vunpack.c.h.b16 %v2399
          %v2717 = vunpack.c.l.b16 %v2400
          %v2718 = vunpack.c.h.b16 %v2400
          %v2719 = vunpack.c.l.b16 %v2401
          %v2720 = vunpack.c.h.b16 %v2401
          %v2721 = vunpack.c.l.b16 %v2402
          %v2722 = vunpack.c.h.b16 %v2402
          %v2723 = vunpack.c.l.b16 %v2403
          %v2724 = vunpack.c.h.b16 %v2403
          %v2725 = vunpack.c.l.b16 %v2404
          %v2726 = vunpack.c.h.b16 %v2404
          %v2727 = vunpack.c.l.b16 %v2405
          %v2728 = vunpack.c.h.b16 %v2405
          %v2729 = vunpack.c.l.b16 %v2406
          %v2730 = vunpack.c.h.b16 %v2406
          %v2731 = vunpack.c.l.b16 %v2407
          %v2732 = vunpack.c.h.b16 %v2407
          %v2733 = vunpack.c.l.b16 %v2408
          %v2734 = vunpack.c.h.b16 %v2408
          %v2735 = vunpack.c.l.b16 %v2409
          %v2736 = vunpack.c.h.b16 %v2409
          %v2737 = vunpack.c.l.b16 %v2410
          %v2738 = vunpack.c.h.b16 %v2410
          %v2739 = vunpack.c.l.b16 %v2411
          %v2740 = vunpack.c.h.b16 %v2411
          %v2741 = vunpack.c.l.b16 %v2412
          %v2742 = vunpack.c.h.b16 %v2412
          %v2743 = vunpack.c.l.b16 %v2413
          %v2744 = vunpack.c.h.b16 %v2413
          %v2745 = vunpack.c.l.b16 %v2414
          %v2746 = vunpack.c.h.b16 %v2414
          %v2747 = vunpack.c.l.b16 %v2415
          %v2748 = vunpack.c.h.b16 %v2415
          %v2749 = vunpack.c.l.b16 %v2416
          %v2750 = vunpack.c.h.b16 %v2416
          %v2751 = vunpack.c.l.b16 %v2417
          %v2752 = vunpack.c.h.b16 %v2417
          %v2753 = vunpack.c.l.b16 %v2418
          %v2754 = vunpack.c.h.b16 %v2418
          %v2755 = vunpack.c.l.b16 %v2419
          %v2756 = vunpack.c.h.b16 %v2419
          %v2757 = vunpack.c.l.b16 %v2420
          %v2758 = vunpack.c.h.b16 %v2420
          %v2759 = vunpack.c.l.b16 %v2421
          %v2760 = vunpack.c.h.b16 %v2421
          %v2761 = vunpack.c.l.b16 %v2422
          %v2762 = vunpack.c.h.b16 %v2422
          %v2763 = vunpack.c.l.b16 %v2423
          %v2764 = vunpack.c.h.b16 %v2423
          %v2765 = vunpack.c.l.b16 %v2424
          %v2766 = vunpack.c.h.b16 %v2424
          %v2767 = vunpack.c.l.b16 %v2425
          %v2768 = vunpack.c.h.b16 %v2425
          %v2769 = vunpack.c.l.b16 %v2426
          %v2770 = vunpack.c.h.b16 %v2426
          %v2771 = vunpack.c.l.b16 %v2427
          %v2772 = vunpack.c.h.b16 %v2427
          %v2773 = vunpack.c.l.b16 %v2428
          %v2774 = vunpack.c.h.b16 %v2428
          %v2775 = vunpack.c.l.b16 %v2429
          %v2776 = vunpack.c.h.b16 %v2429
          %v2777 = vunpack.c.l.b16 %v2430
          %v2778 = vunpack.c.h.b16 %v2430
          %v2779 = vunpack.c.l.b16 %v2431
          %v2780 = vunpack.c.h.b16 %v2431
          %v2781 = vunpack.c.l.b16 %v2432
          %v2782 = vunpack.c.h.b16 %v2432
          %v2783 = vunpack.c.l.b16 %v2433
          %v2784 = vunpack.c.h.b16 %v2433
          %v2785 = vunpack.c.l.b16 %v2434
          %v2786 = vunpack.c.h.b16 %v2434
          %v2787 = vunpack.c.l.b16 %v2435
          %v2788 = vunpack.c.h.b16 %v2435
          %v2789 = vunpack.c.l.b16 %v2436
          %v2790 = vunpack.c.h.b16 %v2436
          %v2791 = vunpack.c.l.b16 %v2437
          %v2792 = vunpack.c.h.b16 %v2437
          %v2793 = vunpack.c.l.b16 %v2438
          %v2794 = vunpack.c.h.b16 %v2438
          %v2795 = vunpack.c.l.b16 %v2439
          %v2796 = vunpack.c.h.b16 %v2439
          %v2797 = vpack.c.b16 %v2677, %v2669
          %v2798 = vpack.c.b16 %v2678, %v2670
          %v2799 = vpack.c.b16 %v2679, %v2671
          %v2800 = vpack.c.b16 %v2680, %v2672
          %v2801 = vpack.c.b16 %v2681, %v2673
          %v2802 = vpack.c.b16 %v2682, %v2674
          %v2803 = vpack.c.b16 %v2683, %v2675
          %v2804 = vpack.c.b16 %v2684, %v2676
          %v2805 = vpack.c.b16 %v2693, %v2685
          %v2806 = vpack.c.b16 %v2694, %v2686
          %v2807 = vpack.c.b16 %v2695, %v2687
          %v2808 = vpack.c.b16 %v2696, %v2688
          %v2809 = vpack.c.b16 %v2697, %v2689
          %v2810 = vpack.c.b16 %v2698, %v2690
          %v2811 = vpack.c.b16 %v2699, %v2691
          %v2812 = vpack.c.b16 %v2700, %v2692
          %v2813 = vpack.c.b16 %v2709, %v2701
          %v2814 = vpack.c.b16 %v2710, %v2702
          %v2815 = vpack.c.b16 %v2711, %v2703
          %v2816 = vpack.c.b16 %v2712, %v2704
          %v2817 = vpack.c.b16 %v2713, %v2705
          %v2818 = vpack.c.b16 %v2714, %v2706
          %v2819 = vpack.c.b16 %v2715, %v2707
          %v2820 = vpack.c.b16 %v2716, %v2708
          %v2821 = vpack.c.b16 %v2725, %v2717
          %v2822 = vpack.c.b16 %v2726, %v2718
          %v2823 = vpack.c.b16 %v2727, %v2719
          %v2824 = vpack.c.b16 %v2728, %v2720
          %v2825 = vpack.c.b16 %v2729, %v2721
          %v2826 = vpack.c.b16 %v2730, %v2722
          %v2827 = vpack.c.b16 %v2731, %v2723
          %v2828 = vpack.c.b16 %v2732, %v2724
          %v2829 = vpack.c.b16 %v2741, %v2733
          %v2830 = vpack.c.b16 %v2742, %v2734
          %v2831 = vpack.c.b16 %v2743, %v2735
          %v2832 = vpack.c.b16 %v2744, %v2736
          %v2833 = vpack.c.b16 %v2745, %v2737
          %v2834 = vpack.c.b16 %v2746, %v2738
          %v2835 = vpack.c.b16 %v2747, %v2739
          %v2836 = vpack.c.b16 %v2748, %v2740
          %v2837 = vpack.c.b16 %v2757, %v2749
          %v2838 = vpack.c.b16 %v2758, %v2750
          %v2839 = vpack.c.b16 %v2759, %v2751
          %v2840 = vpack.c.b16 %v2760, %v2752
          %v2841 = vpack.c.b16 %v2761, %v2753
          %v2842 = vpack.c.b16 %v2762, %v2754
          %v2843 = vpack.c.b16 %v2763, %v2755
          %v2844 = vpack.c.b16 %v2764, %v2756
          %v2845 = vpack.c.b16 %v2773, %v2765
          %v2846 = vpack.c.b16 %v2774, %v2766
          %v2847 = vpack.c.b16 %v2775, %v2767
          %v2848 = vpack.c.b16 %v2776, %v2768
          %v2849 = vpack.c.b16 %v2777, %v2769
          %v2850 = vpack.c.b16 %v2778, %v2770
          %v2851 = vpack.c.b16 %v2779, %v2771
          %v2852 = vpack.c.b16 %v2780, %v2772
          %v2853 = vpack.c.b16 %v2789, %v2781
          %v2854 = vpack.c.b16 %v2790, %v2782
          %v2855 = vpack.c.b16 %v2791, %v2783
          %v2856 = vpack.c.b16 %v2792, %v2784
          %v2857 = vpack.c.b16 %v2793, %v2785
          %v2858 = vpack.c.b16 %v2794, %v2786
          %v2859 = vpack.c.b16 %v2795, %v2787
          %v2860 = vpack.c.b16 %v2796, %v2788
          %2925 = vmatpush.bf16.msra.mxu0 %v2853
          %2926 = vmatpush.bf16.msra.mxu0 %v2845
          %2927 = vmatpush.bf16.msra.mxu0 %v2837
          %2928 = vmatpush.bf16.msra.mxu0 %v2829
          %2929 = vmatpush.bf16.msra.mxu0 %v2821
          %2930 = vmatpush.bf16.msra.mxu0 %v2813
          %2931 = vmatpush.bf16.msra.mxu0 %v2805
          %2932 = vmatpush.bf16.msra.mxu0 %v2797
          %2933 = vmatmul.bf16.gmra.mxu0 %v2573
          %v2934 = vpop.f32.mrf.mxu0
          %v2935 = vadd.f32 %v2493, %v2934
          %v2936 = vpop.f32.mrf.mxu0
          %v2937 = vadd.f32 %v2493, %v2936
          %2938 = vmatmul.bf16.gmra.mxu0 %v2574
          %v2939 = vpop.f32.mrf.mxu0
          %v2940 = vadd.f32 %v2493, %v2939
          %v2941 = vpop.f32.mrf.mxu0
          %v2942 = vadd.f32 %v2493, %v2941
          %2943 = vmatmul.bf16.gmra.mxu0 %v2575
          %v2944 = vpop.f32.mrf.mxu0
          %v2945 = vadd.f32 %v2493, %v2944
          %v2946 = vpop.f32.mrf.mxu0
          %v2947 = vadd.f32 %v2493, %v2946
          %2948 = vmatmul.bf16.gmra.mxu0 %v2576
          %v2949 = vpop.f32.mrf.mxu0
          %v2950 = vadd.f32 %v2493, %v2949
          %v2951 = vpop.f32.mrf.mxu0
          %v2952 = vadd.f32 %v2493, %v2951
          %2953 = vmatmul.bf16.gmra.mxu0 %v2577
          %v2954 = vpop.f32.mrf.mxu0
          %v2955 = vadd.f32 %v2493, %v2954
          %v2956 = vpop.f32.mrf.mxu0
          %v2957 = vadd.f32 %v2493, %v2956
          %2958 = vmatmul.bf16.gmra.mxu0 %v2578
          %v2959 = vpop.f32.mrf.mxu0
          %v2960 = vadd.f32 %v2493, %v2959
          %v2961 = vpop.f32.mrf.mxu0
          %v2962 = vadd.f32 %v2493, %v2961
          %2963 = vmatmul.bf16.gmra.mxu0 %v2579
          %v2964 = vpop.f32.mrf.mxu0
          %v2965 = vadd.f32 %v2493, %v2964
          %v2966 = vpop.f32.mrf.mxu0
          %v2967 = vadd.f32 %v2493, %v2966
          %2968 = vmatmul.bf16.gmra.mxu0 %v2580
          %v2969 = vpop.f32.mrf.mxu0
          %v2970 = vadd.f32 %v2493, %v2969
          %v2971 = vpop.f32.mrf.mxu0
          %v2972 = vadd.f32 %v2493, %v2971
          %2973 = vmatmul.bf16.gmra.mxu0 %v2581
          %v2974 = vpop.f32.mrf.mxu0
          %v2975 = vadd.f32 %v2493, %v2974
          %v2976 = vpop.f32.mrf.mxu0
          %v2977 = vadd.f32 %v2493, %v2976
          %2978 = vmatmul.bf16.gmra.mxu0 %v2582
          %v2979 = vpop.f32.mrf.mxu0
          %v2980 = vadd.f32 %v2493, %v2979
          %v2981 = vpop.f32.mrf.mxu0
          %v2982 = vadd.f32 %v2493, %v2981
          %2983 = vmatmul.bf16.gmra.mxu0 %v2583
          %v2984 = vpop.f32.mrf.mxu0
          %v2985 = vadd.f32 %v2493, %v2984
          %v2986 = vpop.f32.mrf.mxu0
          %v2987 = vadd.f32 %v2493, %v2986
          %2988 = vmatmul.bf16.gmra.mxu0 %v2584
          %v2989 = vpop.f32.mrf.mxu0
          %v2990 = vadd.f32 %v2493, %v2989
          %v2991 = vpop.f32.mrf.mxu0
          %v2992 = vadd.f32 %v2493, %v2991
          %2993 = vmatmul.bf16.gmra.mxu0 %v2585
          %v2994 = vpop.f32.mrf.mxu0
          %v2995 = vadd.f32 %v2493, %v2994
          %v2996 = vpop.f32.mrf.mxu0
          %v2997 = vadd.f32 %v2493, %v2996
          %2998 = vmatmul.bf16.gmra.mxu0 %v2586
          %v2999 = vpop.f32.mrf.mxu0
          %v3000 = vadd.f32 %v2493, %v2999
          %v3001 = vpop.f32.mrf.mxu0
          %v3002 = vadd.f32 %v2493, %v3001
          %3003 = vmatmul.bf16.gmra.mxu0 %v2587
          %v3004 = vpop.f32.mrf.mxu0
          %v3005 = vadd.f32 %v2493, %v3004
          %v3006 = vpop.f32.mrf.mxu0
          %v3007 = vadd.f32 %v2493, %v3006
          %3008 = vmatmul.bf16.gmra.mxu0 %v2588
          %v3009 = vpop.f32.mrf.mxu0
          %v3010 = vadd.f32 %v2493, %v3009
          %v3011 = vpop.f32.mrf.mxu0
          %v3012 = vadd.f32 %v2493, %v3011
          %3013 = vdwg.mxu0
          %3014 = vmatpush.bf16.msra.mxu0 %v2854
          %3015 = vmatpush.bf16.msra.mxu0 %v2846
          %3016 = vmatpush.bf16.msra.mxu0 %v2838
          %3017 = vmatpush.bf16.msra.mxu0 %v2830
          %3018 = vmatpush.bf16.msra.mxu0 %v2822
          %3019 = vmatpush.bf16.msra.mxu0 %v2814
          %3020 = vmatpush.bf16.msra.mxu0 %v2806
          %3021 = vmatpush.bf16.msra.mxu0 %v2798
          %3022 = vmatmul.bf16.gmra.mxu0 %v2573
          %v3023 = vpop.f32.mrf.mxu0
          %v3024 = vadd.f32 %v2494, %v3023
          %v3025 = vpop.f32.mrf.mxu0
          %v3026 = vadd.f32 %v2494, %v3025
          %3027 = vmatmul.bf16.gmra.mxu0 %v2574
          %v3028 = vpop.f32.mrf.mxu0
          %v3029 = vadd.f32 %v2494, %v3028
          %v3030 = vpop.f32.mrf.mxu0
          %v3031 = vadd.f32 %v2494, %v3030
          %3032 = vmatmul.bf16.gmra.mxu0 %v2575
          %v3033 = vpop.f32.mrf.mxu0
          %v3034 = vadd.f32 %v2494, %v3033
          %v3035 = vpop.f32.mrf.mxu0
          %v3036 = vadd.f32 %v2494, %v3035
          %3037 = vmatmul.bf16.gmra.mxu0 %v2576
          %v3038 = vpop.f32.mrf.mxu0
          %v3039 = vadd.f32 %v2494, %v3038
          %v3040 = vpop.f32.mrf.mxu0
          %v3041 = vadd.f32 %v2494, %v3040
          %3042 = vmatmul.bf16.gmra.mxu0 %v2577
          %v3043 = vpop.f32.mrf.mxu0
          %v3044 = vadd.f32 %v2494, %v3043
          %v3045 = vpop.f32.mrf.mxu0
          %v3046 = vadd.f32 %v2494, %v3045
          %3047 = vmatmul.bf16.gmra.mxu0 %v2578
          %v3048 = vpop.f32.mrf.mxu0
          %v3049 = vadd.f32 %v2494, %v3048
          %v3050 = vpop.f32.mrf.mxu0
          %v3051 = vadd.f32 %v2494, %v3050
          %3052 = vmatmul.bf16.gmra.mxu0 %v2579
          %v3053 = vpop.f32.mrf.mxu0
          %v3054 = vadd.f32 %v2494, %v3053
          %v3055 = vpop.f32.mrf.mxu0
          %v3056 = vadd.f32 %v2494, %v3055
          %3057 = vmatmul.bf16.gmra.mxu0 %v2580
          %v3058 = vpop.f32.mrf.mxu0
          %v3059 = vadd.f32 %v2494, %v3058
          %v3060 = vpop.f32.mrf.mxu0
          %v3061 = vadd.f32 %v2494, %v3060
          %3062 = vmatmul.bf16.gmra.mxu0 %v2581
          %v3063 = vpop.f32.mrf.mxu0
          %v3064 = vadd.f32 %v2494, %v3063
          %v3065 = vpop.f32.mrf.mxu0
          %v3066 = vadd.f32 %v2494, %v3065
          %3067 = vmatmul.bf16.gmra.mxu0 %v2582
          %v3068 = vpop.f32.mrf.mxu0
          %v3069 = vadd.f32 %v2494, %v3068
          %v3070 = vpop.f32.mrf.mxu0
          %v3071 = vadd.f32 %v2494, %v3070
          %3072 = vmatmul.bf16.gmra.mxu0 %v2583
          %v3073 = vpop.f32.mrf.mxu0
          %v3074 = vadd.f32 %v2494, %v3073
          %v3075 = vpop.f32.mrf.mxu0
          %v3076 = vadd.f32 %v2494, %v3075
          %3077 = vmatmul.bf16.gmra.mxu0 %v2584
          %v3078 = vpop.f32.mrf.mxu0
          %v3079 = vadd.f32 %v2494, %v3078
          %v3080 = vpop.f32.mrf.mxu0
          %v3081 = vadd.f32 %v2494, %v3080
          %3082 = vmatmul.bf16.gmra.mxu0 %v2585
          %v3083 = vpop.f32.mrf.mxu0
          %v3084 = vadd.f32 %v2494, %v3083
          %v3085 = vpop.f32.mrf.mxu0
          %v3086 = vadd.f32 %v2494, %v3085
          %3087 = vmatmul.bf16.gmra.mxu0 %v2586
          %v3088 = vpop.f32.mrf.mxu0
          %v3089 = vadd.f32 %v2494, %v3088
          %v3090 = vpop.f32.mrf.mxu0
          %v3091 = vadd.f32 %v2494, %v3090
          %3092 = vmatmul.bf16.gmra.mxu0 %v2587
          %v3093 = vpop.f32.mrf.mxu0
          %v3094 = vadd.f32 %v2494, %v3093
          %v3095 = vpop.f32.mrf.mxu0
          %v3096 = vadd.f32 %v2494, %v3095
          %3097 = vmatmul.bf16.gmra.mxu0 %v2588
          %v3098 = vpop.f32.mrf.mxu0
          %v3099 = vadd.f32 %v2494, %v3098
          %v3100 = vpop.f32.mrf.mxu0
          %v3101 = vadd.f32 %v2494, %v3100
          %3102 = vdwg.mxu0
          %3103 = vmatpush.bf16.msra.mxu0 %v2855
          %3104 = vmatpush.bf16.msra.mxu0 %v2847
          %3105 = vmatpush.bf16.msra.mxu0 %v2839
          %3106 = vmatpush.bf16.msra.mxu0 %v2831
          %3107 = vmatpush.bf16.msra.mxu0 %v2823
          %3108 = vmatpush.bf16.msra.mxu0 %v2815
          %3109 = vmatpush.bf16.msra.mxu0 %v2807
          %3110 = vmatpush.bf16.msra.mxu0 %v2799
          %3111 = vmatmul.bf16.gmra.mxu0 %v2573
          %v3112 = vpop.f32.mrf.mxu0
          %v3113 = vadd.f32 %v2495, %v3112
          %v3114 = vpop.f32.mrf.mxu0
          %v3115 = vadd.f32 %v2495, %v3114
          %3116 = vmatmul.bf16.gmra.mxu0 %v2574
          %v3117 = vpop.f32.mrf.mxu0
          %v3118 = vadd.f32 %v2495, %v3117
          %v3119 = vpop.f32.mrf.mxu0
          %v3120 = vadd.f32 %v2495, %v3119
          %3121 = vmatmul.bf16.gmra.mxu0 %v2575
          %v3122 = vpop.f32.mrf.mxu0
          %v3123 = vadd.f32 %v2495, %v3122
          %v3124 = vpop.f32.mrf.mxu0
          %v3125 = vadd.f32 %v2495, %v3124
          %3126 = vmatmul.bf16.gmra.mxu0 %v2576
          %v3127 = vpop.f32.mrf.mxu0
          %v3128 = vadd.f32 %v2495, %v3127
          %v3129 = vpop.f32.mrf.mxu0
          %v3130 = vadd.f32 %v2495, %v3129
          %3131 = vmatmul.bf16.gmra.mxu0 %v2577
          %v3132 = vpop.f32.mrf.mxu0
          %v3133 = vadd.f32 %v2495, %v3132
          %v3134 = vpop.f32.mrf.mxu0
          %v3135 = vadd.f32 %v2495, %v3134
          %3136 = vmatmul.bf16.gmra.mxu0 %v2578
          %v3137 = vpop.f32.mrf.mxu0
          %v3138 = vadd.f32 %v2495, %v3137
          %v3139 = vpop.f32.mrf.mxu0
          %v3140 = vadd.f32 %v2495, %v3139
          %3141 = vmatmul.bf16.gmra.mxu0 %v2579
          %v3142 = vpop.f32.mrf.mxu0
          %v3143 = vadd.f32 %v2495, %v3142
          %v3144 = vpop.f32.mrf.mxu0
          %v3145 = vadd.f32 %v2495, %v3144
          %3146 = vmatmul.bf16.gmra.mxu0 %v2580
          %v3147 = vpop.f32.mrf.mxu0
          %v3148 = vadd.f32 %v2495, %v3147
          %v3149 = vpop.f32.mrf.mxu0
          %v3150 = vadd.f32 %v2495, %v3149
          %3151 = vmatmul.bf16.gmra.mxu0 %v2581
          %v3152 = vpop.f32.mrf.mxu0
          %v3153 = vadd.f32 %v2495, %v3152
          %v3154 = vpop.f32.mrf.mxu0
          %v3155 = vadd.f32 %v2495, %v3154
          %3156 = vmatmul.bf16.gmra.mxu0 %v2582
          %v3157 = vpop.f32.mrf.mxu0
          %v3158 = vadd.f32 %v2495, %v3157
          %v3159 = vpop.f32.mrf.mxu0
          %v3160 = vadd.f32 %v2495, %v3159
          %3161 = vmatmul.bf16.gmra.mxu0 %v2583
          %v3162 = vpop.f32.mrf.mxu0
          %v3163 = vadd.f32 %v2495, %v3162
          %v3164 = vpop.f32.mrf.mxu0
          %v3165 = vadd.f32 %v2495, %v3164
          %3166 = vmatmul.bf16.gmra.mxu0 %v2584
          %v3167 = vpop.f32.mrf.mxu0
          %v3168 = vadd.f32 %v2495, %v3167
          %v3169 = vpop.f32.mrf.mxu0
          %v3170 = vadd.f32 %v2495, %v3169
          %3171 = vmatmul.bf16.gmra.mxu0 %v2585
          %v3172 = vpop.f32.mrf.mxu0
          %v3173 = vadd.f32 %v2495, %v3172
          %v3174 = vpop.f32.mrf.mxu0
          %v3175 = vadd.f32 %v2495, %v3174
          %3176 = vmatmul.bf16.gmra.mxu0 %v2586
          %v3177 = vpop.f32.mrf.mxu0
          %v3178 = vadd.f32 %v2495, %v3177
          %v3179 = vpop.f32.mrf.mxu0
          %v3180 = vadd.f32 %v2495, %v3179
          %3181 = vmatmul.bf16.gmra.mxu0 %v2587
          %v3182 = vpop.f32.mrf.mxu0
          %v3183 = vadd.f32 %v2495, %v3182
          %v3184 = vpop.f32.mrf.mxu0
          %v3185 = vadd.f32 %v2495, %v3184
          %3186 = vmatmul.bf16.gmra.mxu0 %v2588
          %v3187 = vpop.f32.mrf.mxu0
          %v3188 = vadd.f32 %v2495, %v3187
          %v3189 = vpop.f32.mrf.mxu0
          %v3190 = vadd.f32 %v2495, %v3189
          %3191 = vdwg.mxu0
          %3192 = vmatpush.bf16.msra.mxu0 %v2856
          %3193 = vmatpush.bf16.msra.mxu0 %v2848
          %3194 = vmatpush.bf16.msra.mxu0 %v2840
          %3195 = vmatpush.bf16.msra.mxu0 %v2832
          %3196 = vmatpush.bf16.msra.mxu0 %v2824
          %3197 = vmatpush.bf16.msra.mxu0 %v2816
          %3198 = vmatpush.bf16.msra.mxu0 %v2808
          %3199 = vmatpush.bf16.msra.mxu0 %v2800
          %3200 = vmatmul.bf16.gmra.mxu0 %v2573
          %v3201 = vpop.f32.mrf.mxu0
          %v3202 = vadd.f32 %v2496, %v3201
          %v3203 = vpop.f32.mrf.mxu0
          %v3204 = vadd.f32 %v2496, %v3203
          %3205 = vmatmul.bf16.gmra.mxu0 %v2574
          %v3206 = vpop.f32.mrf.mxu0
          %v3207 = vadd.f32 %v2496, %v3206
          %v3208 = vpop.f32.mrf.mxu0
          %v3209 = vadd.f32 %v2496, %v3208
          %3210 = vmatmul.bf16.gmra.mxu0 %v2575
          %v3211 = vpop.f32.mrf.mxu0
          %v3212 = vadd.f32 %v2496, %v3211
          %v3213 = vpop.f32.mrf.mxu0
          %v3214 = vadd.f32 %v2496, %v3213
          %3215 = vmatmul.bf16.gmra.mxu0 %v2576
          %v3216 = vpop.f32.mrf.mxu0
          %v3217 = vadd.f32 %v2496, %v3216
          %v3218 = vpop.f32.mrf.mxu0
          %v3219 = vadd.f32 %v2496, %v3218
          %3220 = vmatmul.bf16.gmra.mxu0 %v2577
          %v3221 = vpop.f32.mrf.mxu0
          %v3222 = vadd.f32 %v2496, %v3221
          %v3223 = vpop.f32.mrf.mxu0
          %v3224 = vadd.f32 %v2496, %v3223
          %3225 = vmatmul.bf16.gmra.mxu0 %v2578
          %v3226 = vpop.f32.mrf.mxu0
          %v3227 = vadd.f32 %v2496, %v3226
          %v3228 = vpop.f32.mrf.mxu0
          %v3229 = vadd.f32 %v2496, %v3228
          %3230 = vmatmul.bf16.gmra.mxu0 %v2579
          %v3231 = vpop.f32.mrf.mxu0
          %v3232 = vadd.f32 %v2496, %v3231
          %v3233 = vpop.f32.mrf.mxu0
          %v3234 = vadd.f32 %v2496, %v3233
          %3235 = vmatmul.bf16.gmra.mxu0 %v2580
          %v3236 = vpop.f32.mrf.mxu0
          %v3237 = vadd.f32 %v2496, %v3236
          %v3238 = vpop.f32.mrf.mxu0
          %v3239 = vadd.f32 %v2496, %v3238
          %3240 = vmatmul.bf16.gmra.mxu0 %v2581
          %v3241 = vpop.f32.mrf.mxu0
          %v3242 = vadd.f32 %v2496, %v3241
          %v3243 = vpop.f32.mrf.mxu0
          %v3244 = vadd.f32 %v2496, %v3243
          %3245 = vmatmul.bf16.gmra.mxu0 %v2582
          %v3246 = vpop.f32.mrf.mxu0
          %v3247 = vadd.f32 %v2496, %v3246
          %v3248 = vpop.f32.mrf.mxu0
          %v3249 = vadd.f32 %v2496, %v3248
          %3250 = vmatmul.bf16.gmra.mxu0 %v2583
          %v3251 = vpop.f32.mrf.mxu0
          %v3252 = vadd.f32 %v2496, %v3251
          %v3253 = vpop.f32.mrf.mxu0
          %v3254 = vadd.f32 %v2496, %v3253
          %3255 = vmatmul.bf16.gmra.mxu0 %v2584
          %v3256 = vpop.f32.mrf.mxu0
          %v3257 = vadd.f32 %v2496, %v3256
          %v3258 = vpop.f32.mrf.mxu0
          %v3259 = vadd.f32 %v2496, %v3258
          %3260 = vmatmul.bf16.gmra.mxu0 %v2585
          %v3261 = vpop.f32.mrf.mxu0
          %v3262 = vadd.f32 %v2496, %v3261
          %v3263 = vpop.f32.mrf.mxu0
          %v3264 = vadd.f32 %v2496, %v3263
          %3265 = vmatmul.bf16.gmra.mxu0 %v2586
          %v3266 = vpop.f32.mrf.mxu0
          %v3267 = vadd.f32 %v2496, %v3266
          %v3268 = vpop.f32.mrf.mxu0
          %v3269 = vadd.f32 %v2496, %v3268
          %3270 = vmatmul.bf16.gmra.mxu0 %v2587
          %v3271 = vpop.f32.mrf.mxu0
          %v3272 = vadd.f32 %v2496, %v3271
          %v3273 = vpop.f32.mrf.mxu0
          %v3274 = vadd.f32 %v2496, %v3273
          %3275 = vmatmul.bf16.gmra.mxu0 %v2588
          %v3276 = vpop.f32.mrf.mxu0
          %v3277 = vadd.f32 %v2496, %v3276
          %v3278 = vpop.f32.mrf.mxu0
          %v3279 = vadd.f32 %v2496, %v3278
          %3280 = vdwg.mxu0
          %3281 = vmatpush.bf16.msra.mxu0 %v2857
          %3282 = vmatpush.bf16.msra.mxu0 %v2849
          %3283 = vmatpush.bf16.msra.mxu0 %v2841
          %3284 = vmatpush.bf16.msra.mxu0 %v2833
          %3285 = vmatpush.bf16.msra.mxu0 %v2825
          %3286 = vmatpush.bf16.msra.mxu0 %v2817
          %3287 = vmatpush.bf16.msra.mxu0 %v2809
          %3288 = vmatpush.bf16.msra.mxu0 %v2801
          %3289 = vmatmul.bf16.gmra.mxu0 %v2573
          %v3290 = vpop.f32.mrf.mxu0
          %v3291 = vadd.f32 %v2497, %v3290
          %v3292 = vpop.f32.mrf.mxu0
          %v3293 = vadd.f32 %v2497, %v3292
          %3294 = vmatmul.bf16.gmra.mxu0 %v2574
          %v3295 = vpop.f32.mrf.mxu0
          %v3296 = vadd.f32 %v2497, %v3295
          %v3297 = vpop.f32.mrf.mxu0
          %v3298 = vadd.f32 %v2497, %v3297
          %3299 = vmatmul.bf16.gmra.mxu0 %v2575
          %v3300 = vpop.f32.mrf.mxu0
          %v3301 = vadd.f32 %v2497, %v3300
          %v3302 = vpop.f32.mrf.mxu0
          %v3303 = vadd.f32 %v2497, %v3302
          %3304 = vmatmul.bf16.gmra.mxu0 %v2576
          %v3305 = vpop.f32.mrf.mxu0
          %v3306 = vadd.f32 %v2497, %v3305
          %v3307 = vpop.f32.mrf.mxu0
          %v3308 = vadd.f32 %v2497, %v3307
          %3309 = vmatmul.bf16.gmra.mxu0 %v2577
          %v3310 = vpop.f32.mrf.mxu0
          %v3311 = vadd.f32 %v2497, %v3310
          %v3312 = vpop.f32.mrf.mxu0
          %v3313 = vadd.f32 %v2497, %v3312
          %3314 = vmatmul.bf16.gmra.mxu0 %v2578
          %v3315 = vpop.f32.mrf.mxu0
          %v3316 = vadd.f32 %v2497, %v3315
          %v3317 = vpop.f32.mrf.mxu0
          %v3318 = vadd.f32 %v2497, %v3317
          %3319 = vmatmul.bf16.gmra.mxu0 %v2579
          %v3320 = vpop.f32.mrf.mxu0
          %v3321 = vadd.f32 %v2497, %v3320
          %v3322 = vpop.f32.mrf.mxu0
          %v3323 = vadd.f32 %v2497, %v3322
          %3324 = vmatmul.bf16.gmra.mxu0 %v2580
          %v3325 = vpop.f32.mrf.mxu0
          %v3326 = vadd.f32 %v2497, %v3325
          %v3327 = vpop.f32.mrf.mxu0
          %v3328 = vadd.f32 %v2497, %v3327
          %3329 = vmatmul.bf16.gmra.mxu0 %v2581
          %v3330 = vpop.f32.mrf.mxu0
          %v3331 = vadd.f32 %v2497, %v3330
          %v3332 = vpop.f32.mrf.mxu0
          %v3333 = vadd.f32 %v2497, %v3332
          %3334 = vmatmul.bf16.gmra.mxu0 %v2582
          %v3335 = vpop.f32.mrf.mxu0
          %v3336 = vadd.f32 %v2497, %v3335
          %v3337 = vpop.f32.mrf.mxu0
          %v3338 = vadd.f32 %v2497, %v3337
          %3339 = vmatmul.bf16.gmra.mxu0 %v2583
          %v3340 = vpop.f32.mrf.mxu0
          %v3341 = vadd.f32 %v2497, %v3340
          %v3342 = vpop.f32.mrf.mxu0
          %v3343 = vadd.f32 %v2497, %v3342
          %3344 = vmatmul.bf16.gmra.mxu0 %v2584
          %v3345 = vpop.f32.mrf.mxu0
          %v3346 = vadd.f32 %v2497, %v3345
          %v3347 = vpop.f32.mrf.mxu0
          %v3348 = vadd.f32 %v2497, %v3347
          %3349 = vmatmul.bf16.gmra.mxu0 %v2585
          %v3350 = vpop.f32.mrf.mxu0
          %v3351 = vadd.f32 %v2497, %v3350
          %v3352 = vpop.f32.mrf.mxu0
          %v3353 = vadd.f32 %v2497, %v3352
          %3354 = vmatmul.bf16.gmra.mxu0 %v2586
          %v3355 = vpop.f32.mrf.mxu0
          %v3356 = vadd.f32 %v2497, %v3355
          %v3357 = vpop.f32.mrf.mxu0
          %v3358 = vadd.f32 %v2497, %v3357
          %3359 = vmatmul.bf16.gmra.mxu0 %v2587
          %v3360 = vpop.f32.mrf.mxu0
          %v3361 = vadd.f32 %v2497, %v3360
          %v3362 = vpop.f32.mrf.mxu0
          %v3363 = vadd.f32 %v2497, %v3362
          %3364 = vmatmul.bf16.gmra.mxu0 %v2588
          %v3365 = vpop.f32.mrf.mxu0
          %v3366 = vadd.f32 %v2497, %v3365
          %v3367 = vpop.f32.mrf.mxu0
          %v3368 = vadd.f32 %v2497, %v3367
          %3369 = vdwg.mxu0
          %3370 = vmatpush.bf16.msra.mxu0 %v2858
          %3371 = vmatpush.bf16.msra.mxu0 %v2850
          %3372 = vmatpush.bf16.msra.mxu0 %v2842
          %3373 = vmatpush.bf16.msra.mxu0 %v2834
          %3374 = vmatpush.bf16.msra.mxu0 %v2826
          %3375 = vmatpush.bf16.msra.mxu0 %v2818
          %3376 = vmatpush.bf16.msra.mxu0 %v2810
          %3377 = vmatpush.bf16.msra.mxu0 %v2802
          %3378 = vmatmul.bf16.gmra.mxu0 %v2573
          %v3379 = vpop.f32.mrf.mxu0
          %v3380 = vadd.f32 %v2498, %v3379
          %v3381 = vpop.f32.mrf.mxu0
          %v3382 = vadd.f32 %v2498, %v3381
          %3383 = vmatmul.bf16.gmra.mxu0 %v2574
          %v3384 = vpop.f32.mrf.mxu0
          %v3385 = vadd.f32 %v2498, %v3384
          %v3386 = vpop.f32.mrf.mxu0
          %v3387 = vadd.f32 %v2498, %v3386
          %3388 = vmatmul.bf16.gmra.mxu0 %v2575
          %v3389 = vpop.f32.mrf.mxu0
          %v3390 = vadd.f32 %v2498, %v3389
          %v3391 = vpop.f32.mrf.mxu0
          %v3392 = vadd.f32 %v2498, %v3391
          %3393 = vmatmul.bf16.gmra.mxu0 %v2576
          %v3394 = vpop.f32.mrf.mxu0
          %v3395 = vadd.f32 %v2498, %v3394
          %v3396 = vpop.f32.mrf.mxu0
          %v3397 = vadd.f32 %v2498, %v3396
          %3398 = vmatmul.bf16.gmra.mxu0 %v2577
          %v3399 = vpop.f32.mrf.mxu0
          %v3400 = vadd.f32 %v2498, %v3399
          %v3401 = vpop.f32.mrf.mxu0
          %v3402 = vadd.f32 %v2498, %v3401
          %3403 = vmatmul.bf16.gmra.mxu0 %v2578
          %v3404 = vpop.f32.mrf.mxu0
          %v3405 = vadd.f32 %v2498, %v3404
          %v3406 = vpop.f32.mrf.mxu0
          %v3407 = vadd.f32 %v2498, %v3406
          %3408 = vmatmul.bf16.gmra.mxu0 %v2579
          %v3409 = vpop.f32.mrf.mxu0
          %v3410 = vadd.f32 %v2498, %v3409
          %v3411 = vpop.f32.mrf.mxu0
          %v3412 = vadd.f32 %v2498, %v3411
          %3413 = vmatmul.bf16.gmra.mxu0 %v2580
          %v3414 = vpop.f32.mrf.mxu0
          %v3415 = vadd.f32 %v2498, %v3414
          %v3416 = vpop.f32.mrf.mxu0
          %v3417 = vadd.f32 %v2498, %v3416
          %3418 = vmatmul.bf16.gmra.mxu0 %v2581
          %v3419 = vpop.f32.mrf.mxu0
          %v3420 = vadd.f32 %v2498, %v3419
          %v3421 = vpop.f32.mrf.mxu0
          %v3422 = vadd.f32 %v2498, %v3421
          %3423 = vmatmul.bf16.gmra.mxu0 %v2582
          %v3424 = vpop.f32.mrf.mxu0
          %v3425 = vadd.f32 %v2498, %v3424
          %v3426 = vpop.f32.mrf.mxu0
          %v3427 = vadd.f32 %v2498, %v3426
          %3428 = vmatmul.bf16.gmra.mxu0 %v2583
          %v3429 = vpop.f32.mrf.mxu0
          %v3430 = vadd.f32 %v2498, %v3429
          %v3431 = vpop.f32.mrf.mxu0
          %v3432 = vadd.f32 %v2498, %v3431
          %3433 = vmatmul.bf16.gmra.mxu0 %v2584
          %v3434 = vpop.f32.mrf.mxu0
          %v3435 = vadd.f32 %v2498, %v3434
          %v3436 = vpop.f32.mrf.mxu0
          %v3437 = vadd.f32 %v2498, %v3436
          %3438 = vmatmul.bf16.gmra.mxu0 %v2585
          %v3439 = vpop.f32.mrf.mxu0
          %v3440 = vadd.f32 %v2498, %v3439
          %v3441 = vpop.f32.mrf.mxu0
          %v3442 = vadd.f32 %v2498, %v3441
          %3443 = vmatmul.bf16.gmra.mxu0 %v2586
          %v3444 = vpop.f32.mrf.mxu0
          %v3445 = vadd.f32 %v2498, %v3444
          %v3446 = vpop.f32.mrf.mxu0
          %v3447 = vadd.f32 %v2498, %v3446
          %3448 = vmatmul.bf16.gmra.mxu0 %v2587
          %v3449 = vpop.f32.mrf.mxu0
          %v3450 = vadd.f32 %v2498, %v3449
          %v3451 = vpop.f32.mrf.mxu0
          %v3452 = vadd.f32 %v2498, %v3451
          %3453 = vmatmul.bf16.gmra.mxu0 %v2588
          %v3454 = vpop.f32.mrf.mxu0
          %v3455 = vadd.f32 %v2498, %v3454
          %v3456 = vpop.f32.mrf.mxu0
          %v3457 = vadd.f32 %v2498, %v3456
          %3458 = vdwg.mxu0
          %3459 = vmatpush.bf16.msra.mxu0 %v2859
          %3460 = vmatpush.bf16.msra.mxu0 %v2851
          %3461 = vmatpush.bf16.msra.mxu0 %v2843
          %3462 = vmatpush.bf16.msra.mxu0 %v2835
          %3463 = vmatpush.bf16.msra.mxu0 %v2827
          %3464 = vmatpush.bf16.msra.mxu0 %v2819
          %3465 = vmatpush.bf16.msra.mxu0 %v2811
          %3466 = vmatpush.bf16.msra.mxu0 %v2803
          %3467 = vmatmul.bf16.gmra.mxu0 %v2573
          %v3468 = vpop.f32.mrf.mxu0
          %v3469 = vadd.f32 %v2499, %v3468
          %v3470 = vpop.f32.mrf.mxu0
          %v3471 = vadd.f32 %v2499, %v3470
          %3472 = vmatmul.bf16.gmra.mxu0 %v2574
          %v3473 = vpop.f32.mrf.mxu0
          %v3474 = vadd.f32 %v2499, %v3473
          %v3475 = vpop.f32.mrf.mxu0
          %v3476 = vadd.f32 %v2499, %v3475
          %3477 = vmatmul.bf16.gmra.mxu0 %v2575
          %v3478 = vpop.f32.mrf.mxu0
          %v3479 = vadd.f32 %v2499, %v3478
          %v3480 = vpop.f32.mrf.mxu0
          %v3481 = vadd.f32 %v2499, %v3480
          %3482 = vmatmul.bf16.gmra.mxu0 %v2576
          %v3483 = vpop.f32.mrf.mxu0
          %v3484 = vadd.f32 %v2499, %v3483
          %v3485 = vpop.f32.mrf.mxu0
          %v3486 = vadd.f32 %v2499, %v3485
          %3487 = vmatmul.bf16.gmra.mxu0 %v2577
          %v3488 = vpop.f32.mrf.mxu0
          %v3489 = vadd.f32 %v2499, %v3488
          %v3490 = vpop.f32.mrf.mxu0
          %v3491 = vadd.f32 %v2499, %v3490
          %3492 = vmatmul.bf16.gmra.mxu0 %v2578
          %v3493 = vpop.f32.mrf.mxu0
          %v3494 = vadd.f32 %v2499, %v3493
          %v3495 = vpop.f32.mrf.mxu0
          %v3496 = vadd.f32 %v2499, %v3495
          %3497 = vmatmul.bf16.gmra.mxu0 %v2579
          %v3498 = vpop.f32.mrf.mxu0
          %v3499 = vadd.f32 %v2499, %v3498
          %v3500 = vpop.f32.mrf.mxu0
          %v3501 = vadd.f32 %v2499, %v3500
          %3502 = vmatmul.bf16.gmra.mxu0 %v2580
          %v3503 = vpop.f32.mrf.mxu0
          %v3504 = vadd.f32 %v2499, %v3503
          %v3505 = vpop.f32.mrf.mxu0
          %v3506 = vadd.f32 %v2499, %v3505
          %3507 = vmatmul.bf16.gmra.mxu0 %v2581
          %v3508 = vpop.f32.mrf.mxu0
          %v3509 = vadd.f32 %v2499, %v3508
          %v3510 = vpop.f32.mrf.mxu0
          %v3511 = vadd.f32 %v2499, %v3510
          %3512 = vmatmul.bf16.gmra.mxu0 %v2582
          %v3513 = vpop.f32.mrf.mxu0
          %v3514 = vadd.f32 %v2499, %v3513
          %v3515 = vpop.f32.mrf.mxu0
          %v3516 = vadd.f32 %v2499, %v3515
          %3517 = vmatmul.bf16.gmra.mxu0 %v2583
          %v3518 = vpop.f32.mrf.mxu0
          %v3519 = vadd.f32 %v2499, %v3518
          %v3520 = vpop.f32.mrf.mxu0
          %v3521 = vadd.f32 %v2499, %v3520
          %3522 = vmatmul.bf16.gmra.mxu0 %v2584
          %v3523 = vpop.f32.mrf.mxu0
          %v3524 = vadd.f32 %v2499, %v3523
          %v3525 = vpop.f32.mrf.mxu0
          %v3526 = vadd.f32 %v2499, %v3525
          %3527 = vmatmul.bf16.gmra.mxu0 %v2585
          %v3528 = vpop.f32.mrf.mxu0
          %v3529 = vadd.f32 %v2499, %v3528
          %v3530 = vpop.f32.mrf.mxu0
          %v3531 = vadd.f32 %v2499, %v3530
          %3532 = vmatmul.bf16.gmra.mxu0 %v2586
          %v3533 = vpop.f32.mrf.mxu0
          %v3534 = vadd.f32 %v2499, %v3533
          %v3535 = vpop.f32.mrf.mxu0
          %v3536 = vadd.f32 %v2499, %v3535
          %3537 = vmatmul.bf16.gmra.mxu0 %v2587
          %v3538 = vpop.f32.mrf.mxu0
          %v3539 = vadd.f32 %v2499, %v3538
          %v3540 = vpop.f32.mrf.mxu0
          %v3541 = vadd.f32 %v2499, %v3540
          %3542 = vmatmul.bf16.gmra.mxu0 %v2588
          %v3543 = vpop.f32.mrf.mxu0
          %v3544 = vadd.f32 %v2499, %v3543
          %v3545 = vpop.f32.mrf.mxu0
          %v3546 = vadd.f32 %v2499, %v3545
          %3547 = vdwg.mxu0
          %3548 = vmatpush.bf16.msra.mxu0 %v2860
          %3549 = vmatpush.bf16.msra.mxu0 %v2852
          %3550 = vmatpush.bf16.msra.mxu0 %v2844
          %3551 = vmatpush.bf16.msra.mxu0 %v2836
          %3552 = vmatpush.bf16.msra.mxu0 %v2828
          %3553 = vmatpush.bf16.msra.mxu0 %v2820
          %3554 = vmatpush.bf16.msra.mxu0 %v2812
          %3555 = vmatpush.bf16.msra.mxu0 %v2804
          %3556 = vmatmul.bf16.gmra.mxu0 %v2573
          %v3557 = vpop.f32.mrf.mxu0
          %v3558 = vadd.f32 %v2500, %v3557
          %v3559 = vpop.f32.mrf.mxu0
          %v3560 = vadd.f32 %v2500, %v3559
          %3561 = vmatmul.bf16.gmra.mxu0 %v2574
          %v3562 = vpop.f32.mrf.mxu0
          %v3563 = vadd.f32 %v2500, %v3562
          %v3564 = vpop.f32.mrf.mxu0
          %v3565 = vadd.f32 %v2500, %v3564
          %3566 = vmatmul.bf16.gmra.mxu0 %v2575
          %v3567 = vpop.f32.mrf.mxu0
          %v3568 = vadd.f32 %v2500, %v3567
          %v3569 = vpop.f32.mrf.mxu0
          %v3570 = vadd.f32 %v2500, %v3569
          %3571 = vmatmul.bf16.gmra.mxu0 %v2576
          %v3572 = vpop.f32.mrf.mxu0
          %v3573 = vadd.f32 %v2500, %v3572
          %v3574 = vpop.f32.mrf.mxu0
          %v3575 = vadd.f32 %v2500, %v3574
          %3576 = vmatmul.bf16.gmra.mxu0 %v2577
          %v3577 = vpop.f32.mrf.mxu0
          %v3578 = vadd.f32 %v2500, %v3577
          %v3579 = vpop.f32.mrf.mxu0
          %v3580 = vadd.f32 %v2500, %v3579
          %3581 = vmatmul.bf16.gmra.mxu0 %v2578
          %v3582 = vpop.f32.mrf.mxu0
          %v3583 = vadd.f32 %v2500, %v3582
          %v3584 = vpop.f32.mrf.mxu0
          %v3585 = vadd.f32 %v2500, %v3584
          %3586 = vmatmul.bf16.gmra.mxu0 %v2579
          %v3587 = vpop.f32.mrf.mxu0
          %v3588 = vadd.f32 %v2500, %v3587
          %v3589 = vpop.f32.mrf.mxu0
          %v3590 = vadd.f32 %v2500, %v3589
          %3591 = vmatmul.bf16.gmra.mxu0 %v2580
          %v3592 = vpop.f32.mrf.mxu0
          %v3593 = vadd.f32 %v2500, %v3592
          %v3594 = vpop.f32.mrf.mxu0
          %v3595 = vadd.f32 %v2500, %v3594
          %3596 = vmatmul.bf16.gmra.mxu0 %v2581
          %v3597 = vpop.f32.mrf.mxu0
          %v3598 = vadd.f32 %v2500, %v3597
          %v3599 = vpop.f32.mrf.mxu0
          %v3600 = vadd.f32 %v2500, %v3599
          %3601 = vmatmul.bf16.gmra.mxu0 %v2582
          %v3602 = vpop.f32.mrf.mxu0
          %v3603 = vadd.f32 %v2500, %v3602
          %v3604 = vpop.f32.mrf.mxu0
          %v3605 = vadd.f32 %v2500, %v3604
          %3606 = vmatmul.bf16.gmra.mxu0 %v2583
          %v3607 = vpop.f32.mrf.mxu0
          %v3608 = vadd.f32 %v2500, %v3607
          %v3609 = vpop.f32.mrf.mxu0
          %v3610 = vadd.f32 %v2500, %v3609
          %3611 = vmatmul.bf16.gmra.mxu0 %v2584
          %v3612 = vpop.f32.mrf.mxu0
          %v3613 = vadd.f32 %v2500, %v3612
          %v3614 = vpop.f32.mrf.mxu0
          %v3615 = vadd.f32 %v2500, %v3614
          %3616 = vmatmul.bf16.gmra.mxu0 %v2585
          %v3617 = vpop.f32.mrf.mxu0
          %v3618 = vadd.f32 %v2500, %v3617
          %v3619 = vpop.f32.mrf.mxu0
          %v3620 = vadd.f32 %v2500, %v3619
          %3621 = vmatmul.bf16.gmra.mxu0 %v2586
          %v3622 = vpop.f32.mrf.mxu0
          %v3623 = vadd.f32 %v2500, %v3622
          %v3624 = vpop.f32.mrf.mxu0
          %v3625 = vadd.f32 %v2500, %v3624
          %3626 = vmatmul.bf16.gmra.mxu0 %v2587
          %v3627 = vpop.f32.mrf.mxu0
          %v3628 = vadd.f32 %v2500, %v3627
          %v3629 = vpop.f32.mrf.mxu0
          %v3630 = vadd.f32 %v2500, %v3629
          %3631 = vmatmul.bf16.gmra.mxu0 %v2588
          %v3632 = vpop.f32.mrf.mxu0
          %v3633 = vadd.f32 %v2500, %v3632
          %v3634 = vpop.f32.mrf.mxu0
          %v3635 = vadd.f32 %v2500, %v3634
          %3636 = vdwg.mxu0
          %v3637 = vmax.f32 %v2935, %v2937
          %v3638 = vmax.f32 %v3637, %v2940
          %v3639 = vmax.f32 %v3638, %v2942
          %v3640 = vmax.f32 %v3639, %v2945
          %v3641 = vmax.f32 %v3640, %v2947
          %v3642 = vmax.f32 %v3641, %v2950
          %v3643 = vmax.f32 %v3642, %v2952
          %v3644 = vmax.f32 %v3643, %v2955
          %v3645 = vmax.f32 %v3644, %v2957
          %v3646 = vmax.f32 %v3645, %v2960
          %v3647 = vmax.f32 %v3646, %v2962
          %v3648 = vmax.f32 %v3647, %v2965
          %v3649 = vmax.f32 %v3648, %v2967
          %v3650 = vmax.f32 %v3649, %v2970
          %v3651 = vmax.f32 %v3650, %v2972
          %v3652 = vmax.f32 %v3651, %v2975
          %v3653 = vmax.f32 %v3652, %v2977
          %v3654 = vmax.f32 %v3653, %v2980
          %v3655 = vmax.f32 %v3654, %v2982
          %v3656 = vmax.f32 %v3655, %v2985
          %v3657 = vmax.f32 %v3656, %v2987
          %v3658 = vmax.f32 %v3657, %v2990
          %v3659 = vmax.f32 %v3658, %v2992
          %v3660 = vmax.f32 %v3659, %v2995
          %v3661 = vmax.f32 %v3660, %v2997
          %v3662 = vmax.f32 %v3661, %v3000
          %v3663 = vmax.f32 %v3662, %v3002
          %v3664 = vmax.f32 %v3663, %v3005
          %v3665 = vmax.f32 %v3664, %v3007
          %v3666 = vmax.f32 %v3665, %v3010
          %v3667 = vmax.f32 %v3666, %v3012
          %v3668 = vrot.slane %v3667, 4
          %v3669 = vmax.f32 %v3667, %v3668
          %v3670 = vrot.slane %v3669, 2
          %v3671 = vmax.f32 %v3669, %v3670
          %v3672 = vrot.slane %v3671, 1
          %v3673 = vmax.f32 %v3671, %v3672
          %v3674 = vmax.f32 %v3024, %v3026
          %v3675 = vmax.f32 %v3674, %v3029
          %v3676 = vmax.f32 %v3675, %v3031
          %v3677 = vmax.f32 %v3676, %v3034
          %v3678 = vmax.f32 %v3677, %v3036
          %v3679 = vmax.f32 %v3678, %v3039
          %v3680 = vmax.f32 %v3679, %v3041
          %v3681 = vmax.f32 %v3680, %v3044
          %v3682 = vmax.f32 %v3681, %v3046
          %v3683 = vmax.f32 %v3682, %v3049
          %v3684 = vmax.f32 %v3683, %v3051
          %v3685 = vmax.f32 %v3684, %v3054
          %v3686 = vmax.f32 %v3685, %v3056
          %v3687 = vmax.f32 %v3686, %v3059
          %v3688 = vmax.f32 %v3687, %v3061
          %v3689 = vmax.f32 %v3688, %v3064
          %v3690 = vmax.f32 %v3689, %v3066
          %v3691 = vmax.f32 %v3690, %v3069
          %v3692 = vmax.f32 %v3691, %v3071
          %v3693 = vmax.f32 %v3692, %v3074
          %v3694 = vmax.f32 %v3693, %v3076
          %v3695 = vmax.f32 %v3694, %v3079
          %v3696 = vmax.f32 %v3695, %v3081
          %v3697 = vmax.f32 %v3696, %v3084
          %v3698 = vmax.f32 %v3697, %v3086
          %v3699 = vmax.f32 %v3698, %v3089
          %v3700 = vmax.f32 %v3699, %v3091
          %v3701 = vmax.f32 %v3700, %v3094
          %v3702 = vmax.f32 %v3701, %v3096
          %v3703 = vmax.f32 %v3702, %v3099
          %v3704 = vmax.f32 %v3703, %v3101
          %v3705 = vrot.slane %v3704, 4
          %v3706 = vmax.f32 %v3704, %v3705
          %v3707 = vrot.slane %v3706, 2
          %v3708 = vmax.f32 %v3706, %v3707
          %v3709 = vrot.slane %v3708, 1
          %v3710 = vmax.f32 %v3708, %v3709
          %v3711 = vmax.f32 %v3113, %v3115
          %v3712 = vmax.f32 %v3711, %v3118
          %v3713 = vmax.f32 %v3712, %v3120
          %v3714 = vmax.f32 %v3713, %v3123
          %v3715 = vmax.f32 %v3714, %v3125
          %v3716 = vmax.f32 %v3715, %v3128
          %v3717 = vmax.f32 %v3716, %v3130
          %v3718 = vmax.f32 %v3717, %v3133
          %v3719 = vmax.f32 %v3718, %v3135
          %v3720 = vmax.f32 %v3719, %v3138
          %v3721 = vmax.f32 %v3720, %v3140
          %v3722 = vmax.f32 %v3721, %v3143
          %v3723 = vmax.f32 %v3722, %v3145
          %v3724 = vmax.f32 %v3723, %v3148
          %v3725 = vmax.f32 %v3724, %v3150
          %v3726 = vmax.f32 %v3725, %v3153
          %v3727 = vmax.f32 %v3726, %v3155
          %v3728 = vmax.f32 %v3727, %v3158
          %v3729 = vmax.f32 %v3728, %v3160
          %v3730 = vmax.f32 %v3729, %v3163
          %v3731 = vmax.f32 %v3730, %v3165
          %v3732 = vmax.f32 %v3731, %v3168
          %v3733 = vmax.f32 %v3732, %v3170
          %v3734 = vmax.f32 %v3733, %v3173
          %v3735 = vmax.f32 %v3734, %v3175
          %v3736 = vmax.f32 %v3735, %v3178
          %v3737 = vmax.f32 %v3736, %v3180
          %v3738 = vmax.f32 %v3737, %v3183
          %v3739 = vmax.f32 %v3738, %v3185
          %v3740 = vmax.f32 %v3739, %v3188
          %v3741 = vmax.f32 %v3740, %v3190
          %v3742 = vrot.slane %v3741, 4
          %v3743 = vmax.f32 %v3741, %v3742
          %v3744 = vrot.slane %v3743, 2
          %v3745 = vmax.f32 %v3743, %v3744
          %v3746 = vrot.slane %v3745, 1
          %v3747 = vmax.f32 %v3745, %v3746
          %v3748 = vmax.f32 %v3202, %v3204
          %v3749 = vmax.f32 %v3748, %v3207
          %v3750 = vmax.f32 %v3749, %v3209
          %v3751 = vmax.f32 %v3750, %v3212
          %v3752 = vmax.f32 %v3751, %v3214
          %v3753 = vmax.f32 %v3752, %v3217
          %v3754 = vmax.f32 %v3753, %v3219
          %v3755 = vmax.f32 %v3754, %v3222
          %v3756 = vmax.f32 %v3755, %v3224
          %v3757 = vmax.f32 %v3756, %v3227
          %v3758 = vmax.f32 %v3757, %v3229
          %v3759 = vmax.f32 %v3758, %v3232
          %v3760 = vmax.f32 %v3759, %v3234
          %v3761 = vmax.f32 %v3760, %v3237
          %v3762 = vmax.f32 %v3761, %v3239
          %v3763 = vmax.f32 %v3762, %v3242
          %v3764 = vmax.f32 %v3763, %v3244
          %v3765 = vmax.f32 %v3764, %v3247
          %v3766 = vmax.f32 %v3765, %v3249
          %v3767 = vmax.f32 %v3766, %v3252
          %v3768 = vmax.f32 %v3767, %v3254
          %v3769 = vmax.f32 %v3768, %v3257
          %v3770 = vmax.f32 %v3769, %v3259
          %v3771 = vmax.f32 %v3770, %v3262
          %v3772 = vmax.f32 %v3771, %v3264
          %v3773 = vmax.f32 %v3772, %v3267
          %v3774 = vmax.f32 %v3773, %v3269
          %v3775 = vmax.f32 %v3774, %v3272
          %v3776 = vmax.f32 %v3775, %v3274
          %v3777 = vmax.f32 %v3776, %v3277
          %v3778 = vmax.f32 %v3777, %v3279
          %v3779 = vrot.slane %v3778, 4
          %v3780 = vmax.f32 %v3778, %v3779
          %v3781 = vrot.slane %v3780, 2
          %v3782 = vmax.f32 %v3780, %v3781
          %v3783 = vrot.slane %v3782, 1
          %v3784 = vmax.f32 %v3782, %v3783
          %v3785 = vmax.f32 %v3291, %v3293
          %v3786 = vmax.f32 %v3785, %v3296
          %v3787 = vmax.f32 %v3786, %v3298
          %v3788 = vmax.f32 %v3787, %v3301
          %v3789 = vmax.f32 %v3788, %v3303
          %v3790 = vmax.f32 %v3789, %v3306
          %v3791 = vmax.f32 %v3790, %v3308
          %v3792 = vmax.f32 %v3791, %v3311
          %v3793 = vmax.f32 %v3792, %v3313
          %v3794 = vmax.f32 %v3793, %v3316
          %v3795 = vmax.f32 %v3794, %v3318
          %v3796 = vmax.f32 %v3795, %v3321
          %v3797 = vmax.f32 %v3796, %v3323
          %v3798 = vmax.f32 %v3797, %v3326
          %v3799 = vmax.f32 %v3798, %v3328
          %v3800 = vmax.f32 %v3799, %v3331
          %v3801 = vmax.f32 %v3800, %v3333
          %v3802 = vmax.f32 %v3801, %v3336
          %v3803 = vmax.f32 %v3802, %v3338
          %v3804 = vmax.f32 %v3803, %v3341
          %v3805 = vmax.f32 %v3804, %v3343
          %v3806 = vmax.f32 %v3805, %v3346
          %v3807 = vmax.f32 %v3806, %v3348
          %v3808 = vmax.f32 %v3807, %v3351
          %v3809 = vmax.f32 %v3808, %v3353
          %v3810 = vmax.f32 %v3809, %v3356
          %v3811 = vmax.f32 %v3810, %v3358
          %v3812 = vmax.f32 %v3811, %v3361
          %v3813 = vmax.f32 %v3812, %v3363
          %v3814 = vmax.f32 %v3813, %v3366
          %v3815 = vmax.f32 %v3814, %v3368
          %v3816 = vrot.slane %v3815, 4
          %v3817 = vmax.f32 %v3815, %v3816
          %v3818 = vrot.slane %v3817, 2
          %v3819 = vmax.f32 %v3817, %v3818
          %v3820 = vrot.slane %v3819, 1
          %v3821 = vmax.f32 %v3819, %v3820
          %v3822 = vmax.f32 %v3380, %v3382
          %v3823 = vmax.f32 %v3822, %v3385
          %v3824 = vmax.f32 %v3823, %v3387
          %v3825 = vmax.f32 %v3824, %v3390
          %v3826 = vmax.f32 %v3825, %v3392
          %v3827 = vmax.f32 %v3826, %v3395
          %v3828 = vmax.f32 %v3827, %v3397
          %v3829 = vmax.f32 %v3828, %v3400
          %v3830 = vmax.f32 %v3829, %v3402
          %v3831 = vmax.f32 %v3830, %v3405
          %v3832 = vmax.f32 %v3831, %v3407
          %v3833 = vmax.f32 %v3832, %v3410
          %v3834 = vmax.f32 %v3833, %v3412
          %v3835 = vmax.f32 %v3834, %v3415
          %v3836 = vmax.f32 %v3835, %v3417
          %v3837 = vmax.f32 %v3836, %v3420
          %v3838 = vmax.f32 %v3837, %v3422
          %v3839 = vmax.f32 %v3838, %v3425
          %v3840 = vmax.f32 %v3839, %v3427
          %v3841 = vmax.f32 %v3840, %v3430
          %v3842 = vmax.f32 %v3841, %v3432
          %v3843 = vmax.f32 %v3842, %v3435
          %v3844 = vmax.f32 %v3843, %v3437
          %v3845 = vmax.f32 %v3844, %v3440
          %v3846 = vmax.f32 %v3845, %v3442
          %v3847 = vmax.f32 %v3846, %v3445
          %v3848 = vmax.f32 %v3847, %v3447
          %v3849 = vmax.f32 %v3848, %v3450
          %v3850 = vmax.f32 %v3849, %v3452
          %v3851 = vmax.f32 %v3850, %v3455
          %v3852 = vmax.f32 %v3851, %v3457
          %v3853 = vrot.slane %v3852, 4
          %v3854 = vmax.f32 %v3852, %v3853
          %v3855 = vrot.slane %v3854, 2
          %v3856 = vmax.f32 %v3854, %v3855
          %v3857 = vrot.slane %v3856, 1
          %v3858 = vmax.f32 %v3856, %v3857
          %v3859 = vmax.f32 %v3469, %v3471
          %v3860 = vmax.f32 %v3859, %v3474
          %v3861 = vmax.f32 %v3860, %v3476
          %v3862 = vmax.f32 %v3861, %v3479
          %v3863 = vmax.f32 %v3862, %v3481
          %v3864 = vmax.f32 %v3863, %v3484
          %v3865 = vmax.f32 %v3864, %v3486
          %v3866 = vmax.f32 %v3865, %v3489
          %v3867 = vmax.f32 %v3866, %v3491
          %v3868 = vmax.f32 %v3867, %v3494
          %v3869 = vmax.f32 %v3868, %v3496
          %v3870 = vmax.f32 %v3869, %v3499
          %v3871 = vmax.f32 %v3870, %v3501
          %v3872 = vmax.f32 %v3871, %v3504
          %v3873 = vmax.f32 %v3872, %v3506
          %v3874 = vmax.f32 %v3873, %v3509
          %v3875 = vmax.f32 %v3874, %v3511
          %v3876 = vmax.f32 %v3875, %v3514
          %v3877 = vmax.f32 %v3876, %v3516
          %v3878 = vmax.f32 %v3877, %v3519
          %v3879 = vmax.f32 %v3878, %v3521
          %v3880 = vmax.f32 %v3879, %v3524
          %v3881 = vmax.f32 %v3880, %v3526
          %v3882 = vmax.f32 %v3881, %v3529
          %v3883 = vmax.f32 %v3882, %v3531
          %v3884 = vmax.f32 %v3883, %v3534
          %v3885 = vmax.f32 %v3884, %v3536
          %v3886 = vmax.f32 %v3885, %v3539
          %v3887 = vmax.f32 %v3886, %v3541
          %v3888 = vmax.f32 %v3887, %v3544
          %v3889 = vmax.f32 %v3888, %v3546
          %v3890 = vrot.slane %v3889, 4
          %v3891 = vmax.f32 %v3889, %v3890
          %v3892 = vrot.slane %v3891, 2
          %v3893 = vmax.f32 %v3891, %v3892
          %v3894 = vrot.slane %v3893, 1
          %v3895 = vmax.f32 %v3893, %v3894
          %v3896 = vmax.f32 %v3558, %v3560
          %v3897 = vmax.f32 %v3896, %v3563
          %v3898 = vmax.f32 %v3897, %v3565
          %v3899 = vmax.f32 %v3898, %v3568
          %v3900 = vmax.f32 %v3899, %v3570
          %v3901 = vmax.f32 %v3900, %v3573
          %v3902 = vmax.f32 %v3901, %v3575
          %v3903 = vmax.f32 %v3902, %v3578
          %v3904 = vmax.f32 %v3903, %v3580
          %v3905 = vmax.f32 %v3904, %v3583
          %v3906 = vmax.f32 %v3905, %v3585
          %v3907 = vmax.f32 %v3906, %v3588
          %v3908 = vmax.f32 %v3907, %v3590
          %v3909 = vmax.f32 %v3908, %v3593
          %v3910 = vmax.f32 %v3909, %v3595
          %v3911 = vmax.f32 %v3910, %v3598
          %v3912 = vmax.f32 %v3911, %v3600
          %v3913 = vmax.f32 %v3912, %v3603
          %v3914 = vmax.f32 %v3913, %v3605
          %v3915 = vmax.f32 %v3914, %v3608
          %v3916 = vmax.f32 %v3915, %v3610
          %v3917 = vmax.f32 %v3916, %v3613
          %v3918 = vmax.f32 %v3917, %v3615
          %v3919 = vmax.f32 %v3918, %v3618
          %v3920 = vmax.f32 %v3919, %v3620
          %v3921 = vmax.f32 %v3920, %v3623
          %v3922 = vmax.f32 %v3921, %v3625
          %v3923 = vmax.f32 %v3922, %v3628
          %v3924 = vmax.f32 %v3923, %v3630
          %v3925 = vmax.f32 %v3924, %v3633
          %v3926 = vmax.f32 %v3925, %v3635
          %v3927 = vrot.slane %v3926, 4
          %v3928 = vmax.f32 %v3926, %v3927
          %v3929 = vrot.slane %v3928, 2
          %v3930 = vmax.f32 %v3928, %v3929
          %v3931 = vrot.slane %v3930, 1
          %v3932 = vmax.f32 %v3930, %v3931
          %v3933 = vmax.f32 %v2447, %v3673
          %v3934 = vmax.f32 %v2448, %v3710
          %v3935 = vmax.f32 %v2449, %v3747
          %v3936 = vmax.f32 %v2450, %v3784
          %v3937 = vmax.f32 %v2451, %v3821
          %v3938 = vmax.f32 %v2452, %v3858
          %v3939 = vmax.f32 %v2453, %v3895
          %v3940 = vmax.f32 %v2454, %v3932
        $region57: #{pointnet_rot9d.2} parent=47 // loop_footer
          %s2446 = sadd.s32 1, %s2442
        $region58: #{pointnet_rot9d.2} parent=47 // loop_footer_branch
          %2441 = sbr.rel target = $region54
        $region59: #{pointnet_rot9d.2} parent=47 // loop_exit
          _
        %p3941 = scmp.eq.s32.totalorder %s26, 0
        // Predicated region
        $region60: #{pointnet_rot9d.2} parent=47 // pred_check
          %p3942 = pneg %p3941
        $region61: #{pointnet_rot9d.2} parent=47 // pred_check_branch
          %3944 = sbr.rel (%p3942) target = $region63
        $region62: #{pointnet_rot9d.2} parent=47 // pred_region
          %v3953 = vrot.slane %v2448, 7
          %v3954 = vrot.slane %v2449, 6
          %v3955 = vrot.slane %v2450, 5
          %v3956 = vrot.slane %v2451, 4
          %v3957 = vrot.slane %v2452, 3
          %v3958 = vrot.slane %v2453, 2
          %v3959 = vrot.slane %v2454, 1
          %vm3960 = vcmask 1040384
          %v3961 = vsel %vm3960, %v2447, %v3953
          %vm3962 = vcmask 1042434
          %v3963 = vsel %vm3962, %v3954, %v3955
          %vm3964 = vcmask 1041408
          %v3965 = vsel %vm3964, %v3961, %v3963
          %vm3966 = vcmask 1044484
          %v3967 = vsel %vm3966, %v3956, %v3957
          %vm3968 = vcmask 1046534
          %v3969 = vsel %vm3968, %v3958, %v3959
          %vm3970 = vcmask 1045508
          %v3971 = vsel %vm3970, %v3967, %v3969
          %vm3972 = vcmask 1043456
          %v3973 = vsel %vm3972, %v3965, %v3971
          %3975 = vst [vmem:[%s339] sm:$0xff] %v3973
        $region63: #{pointnet_rot9d.2} parent=47 // pred_fallthru
          _
        %p3976 = scmp.gt.s32.totalorder %s26, 0
        // Predicated region
        $region64: #{pointnet_rot9d.2} parent=47 // pred_check
          %p3977 = pneg %p3976
        $region65: #{pointnet_rot9d.2} parent=47 // pred_check_branch
          %3979 = sbr.rel (%p3977) target = $region67
        $region66: #{pointnet_rot9d.2} parent=47 // pred_region
          %v3980 = vld [vmem:[%s339] sm:$0xff]
          %v3989 = vrot.slane %v2448, 7
          %v3990 = vrot.slane %v2449, 6
          %v3991 = vrot.slane %v2450, 5
          %v3992 = vrot.slane %v2451, 4
          %v3993 = vrot.slane %v2452, 3
          %v3994 = vrot.slane %v2453, 2
          %v3995 = vrot.slane %v2454, 1
          %vm3996 = vcmask 1040384
          %v3997 = vsel %vm3996, %v2447, %v3989
          %vm3998 = vcmask 1042434
          %v3999 = vsel %vm3998, %v3990, %v3991
          %vm4000 = vcmask 1041408
          %v4001 = vsel %vm4000, %v3997, %v3999
          %vm4002 = vcmask 1044484
          %v4003 = vsel %vm4002, %v3992, %v3993
          %vm4004 = vcmask 1046534
          %v4005 = vsel %vm4004, %v3994, %v3995
          %vm4006 = vcmask 1045508
          %v4007 = vsel %vm4006, %v4003, %v4005
          %vm4008 = vcmask 1043456
          %v4009 = vsel %vm4008, %v4001, %v4007
          %v4011 = vmax.f32 %v3980, %v4009
          %4012 = vst [vmem:[%s339] sm:$0xff] %v4011
        $region67: #{pointnet_rot9d.2} parent=47 // pred_fallthru
          _
        %s4013 = sadd.s32 %s24, %s25
        %p4014 = scmp.lt.s32.totalorder %s4013, 1
        %s4015 = scalar_select %p4014, %s4013, 1
        %s4016 = smul.addr %s4015, 8
        %s4017 = scalar_lea.vmem %s7, %s4016
        // Predicated region
        $region68: #{pointnet_rot9d.2} parent=47 // pred_check
          %p4018 = pneg %p214
        $region69: #{pointnet_rot9d.2} parent=47 // pred_check_branch
          %4020 = sbr.rel (%p4018) target = $region71
        $region70: #{pointnet_rot9d.2} parent=47 // pred_region
          %s4021 = sadd.s32 %s24, %s25
        $region71: #{pointnet_rot9d.2} parent=47 // pred_fallthru
          _
      $region48: #{pointnet_rot9d.2} parent=5 // pred_fallthru
        _
      %p4022 = scmp.le.s32.totalorder 2, %s14
      // Predicated region
      $region72: #{pointnet_rot9d.2} parent=5 // pred_check
        %p4023 = pneg %p4022
      $region73: #{pointnet_rot9d.2} parent=5 // pred_check_branch
        %4025 = sbr.rel (%p4023) target = $region75
      $region74: #{pointnet_rot9d.2} parent=5 // pred_region
        %s4026 = ssub.s32 %s14, 2
        // Predicated region
        $region76: #{pointnet_rot9d.2} parent=74 // pred_check
          %p4027 = pneg %p220
        $region77: #{pointnet_rot9d.2} parent=74 // pred_check_branch
          %4029 = sbr.rel (%p4027) target = $region79
        $region78: #{pointnet_rot9d.2} parent=74 // pred_region
          %s4030 = sadd.s32 %s27, %s28
          %p4031 = scmp.lt.s32.totalorder %s4030, 1
          %s4032 = scalar_select %p4031, %s4030, 1
          %s4033 = smul.addr %s4032, 8
          %s4034 = scalar_lea.vmem %s7, %s4033
        $region79: #{pointnet_rot9d.2} parent=74 // pred_fallthru
          _
      $region75: #{pointnet_rot9d.2} parent=5 // pred_fallthru
        _
    $region6: #{pointnet_rot9d.2} parent=1 // loop_footer
      %s18 = sadd.s32 1, %s14
    $region7: #{pointnet_rot9d.2} parent=1 // loop_footer_branch
      %13 = sbr.rel target = $region3
    $region8: #{pointnet_rot9d.2} parent=1 // loop_exit
      _
    %4035 = vsyncpa [#allocation4], 1
    %s4036 = scalar_lea.sflag [#allocation4], 1
    %4037 = vsyncpa %s4036, 1

// kernel: pointnet_rot9d.3
$region0: #{pointnet_rot9d.3}
  #allocation0 [shape = 'u32[]', space=smem, size = 0x4, offset = 0x4, fixed_abs, tag = 'smem constant byte address 0x4 - core index']
  #allocation1 [shape = 'u32[72,128]{1,0:T(1,128)}', space=vmem, size = 0x9000, scoped, tag = 'internal scratch']
  %s0 = inlined_call_operand.vmem [shape: f32[2,1024], index: 0, kind: input, shape index: {}]
  %s1 = inlined_call_operand.hbm [shape: bf16[1024,512], index: 1, kind: input, shape index: {}]
  %s2 = inlined_call_operand.vmem [shape: f32[1,512], index: 2, kind: input, shape index: {}]
  %s3 = inlined_call_operand.hbm [shape: bf16[512,256], index: 3, kind: input, shape index: {}]
  %s4 = inlined_call_operand.vmem [shape: f32[1,256], index: 4, kind: input, shape index: {}]
  %s5 = inlined_call_operand.vmem [shape: bf16[256,128], index: 5, kind: input, shape index: {}]
  %s6 = inlined_call_operand.vmem [shape: f32[1,128], index: 6, kind: input, shape index: {}]
  %s7 = inlined_call_operand.vmem [shape: f32[2,128], index: 7, kind: output, shape index: {}]
  %s8 = sld [smem:[#allocation0]]
  $region46: #{pointnet_rot9d.3} parent=0
    _
  %s10 = ssub.s32 1, %s8
  %s11 = scalar_select 0, %s10, %s8
  $region1: #{pointnet_rot9d.3} parent=0
    #allocation2 [shape = 'u8[1048576]{0}', space=vmem, size = 0x100000, scoped, tag = 'input window, operand 1, single buffered']
    #allocation3 [shape = 's32[1]{0}', space=sflag, size = 0x4, scoped, tag = 'scoped memory for pointnet_rot9d.3']
    #allocation4 [shape = 'u8[262144]{0}', space=vmem, size = 0x40000, scoped, tag = 'input window, operand 3, single buffered']
    #allocation5 [shape = 's32[1]{0}', space=sflag, size = 0x4, scoped, tag = 'scoped memory for pointnet_rot9d.3']
    %12 = vsyncpa [#allocation3], 0
    %13 = vsyncpa [#allocation5], 0
    // Predicated region
    $region2: #{pointnet_rot9d.3} parent=1 // pred_check
      _
    $region3: #{pointnet_rot9d.3} parent=1 // pred_check_branch
      %15 = sbr.rel (0) target = $region5
    $region4: #{pointnet_rot9d.3} parent=1 // pred_region
      _
    $region5: #{pointnet_rot9d.3} parent=1 // pred_fallthru
      _
    // Predicated region
    $region6: #{pointnet_rot9d.3} parent=1 // pred_check
      _
    $region7: #{pointnet_rot9d.3} parent=1 // pred_check_branch
      %17 = sbr.rel (0) target = $region9
    $region8: #{pointnet_rot9d.3} parent=1 // pred_region
      %19 = vsyncadd [#allocation3], 0
      %s20 = sshll.u32 %s1, 4
      %s21 = int_to_ptr.hbm [resolvable:$true] %s20
      %s22 = sshll.u32 [#allocation2], 4
      %s23 = int_to_ptr.vmem [resolvable:$true] %s22
      %28 = dma.hbm_to_vmem [thread:$0]  %s21, 32768, %s23, [#allocation3], 256, 256, 16
    $region9: #{pointnet_rot9d.3} parent=1 // pred_fallthru
      _
    // Predicated region
    $region10: #{pointnet_rot9d.3} parent=1 // pred_check
      _
    $region11: #{pointnet_rot9d.3} parent=1 // pred_check_branch
      %30 = sbr.rel (0) target = $region13
    $region12: #{pointnet_rot9d.3} parent=1 // pred_region
      _
    $region13: #{pointnet_rot9d.3} parent=1 // pred_fallthru
      _
    // Predicated region
    $region14: #{pointnet_rot9d.3} parent=1 // pred_check
      _
    $region15: #{pointnet_rot9d.3} parent=1 // pred_check_branch
      %32 = sbr.rel (0) target = $region17
    $region16: #{pointnet_rot9d.3} parent=1 // pred_region
      %34 = vsyncadd [#allocation5], 0
      %s35 = sshll.u32 %s3, 4
      %s36 = int_to_ptr.hbm [resolvable:$true] %s35
      %s37 = sshll.u32 [#allocation4], 4
      %s38 = int_to_ptr.vmem [resolvable:$true] %s37
      %43 = dma.hbm_to_vmem [thread:$0]  %s36, 8192, %s38, [#allocation5], 128, 128, 8
    $region17: #{pointnet_rot9d.3} parent=1 // pred_fallthru
      _
    // Predicated region
    $region18: #{pointnet_rot9d.3} parent=1 // pred_check
      _
    $region19: #{pointnet_rot9d.3} parent=1 // pred_check_branch
      %45 = sbr.rel (0) target = $region21
    $region20: #{pointnet_rot9d.3} parent=1 // pred_region
      _
    $region21: #{pointnet_rot9d.3} parent=1 // pred_fallthru
      _
    // Predicated region
    $region22: #{pointnet_rot9d.3} parent=1 // pred_check
      _
    $region23: #{pointnet_rot9d.3} parent=1 // pred_check_branch
      %47 = sbr.rel (0) target = $region25
    $region24: #{pointnet_rot9d.3} parent=1 // pred_region
      _
    $region25: #{pointnet_rot9d.3} parent=1 // pred_fallthru
      _
    // Predicated region
    $region26: #{pointnet_rot9d.3} parent=1 // pred_check
      _
    $region27: #{pointnet_rot9d.3} parent=1 // pred_check_branch
      %49 = sbr.rel (0) target = $region29
    $region28: #{pointnet_rot9d.3} parent=1 // pred_region
      _
    $region29: #{pointnet_rot9d.3} parent=1 // pred_fallthru
      _
    // Predicated region
    $region30: #{pointnet_rot9d.3} parent=1 // pred_check
      _
    $region31: #{pointnet_rot9d.3} parent=1 // pred_check_branch
      %51 = sbr.rel (0) target = $region33
    $region32: #{pointnet_rot9d.3} parent=1 // pred_region
      %53 = dma.done [#allocation3], 32768
    $region33: #{pointnet_rot9d.3} parent=1 // pred_fallthru
      _
    // Predicated region
    $region34: #{pointnet_rot9d.3} parent=1 // pred_check
      _
    $region35: #{pointnet_rot9d.3} parent=1 // pred_check_branch
      %55 = sbr.rel (0) target = $region37
    $region36: #{pointnet_rot9d.3} parent=1 // pred_region
      %57 = dma.done [#allocation5], 8192
    $region37: #{pointnet_rot9d.3} parent=1 // pred_fallthru
      _
    %v58 = vld [vmem:[%s0] sm:$0xff]
    %v59 = vld [vmem:[%s0 + $0x8] sm:$0xff]
    %62 = vst [vmem:[#allocation1] ss:$4 sm:$0xff] %v58
    %s63 = scalar_lea.vmem [#allocation1], 32
    %64 = vst [vmem:[%s63] ss:$4 sm:$0xff] %v59
    %v65 = vld.sshfl [vmem:[#allocation1] sm:$0xff pattern:$0x73625140]
    %v66 = vld.sshfl [vmem:[#allocation1 + $0x8] sm:$0xff pattern:$0x73625140]
    %v67 = vld.sshfl [vmem:[#allocation1 + $0x10] sm:$0xff pattern:$0x73625140]
    %v68 = vld.sshfl [vmem:[#allocation1 + $0x18] sm:$0xff pattern:$0x73625140]
    %v69 = vld.sshfl [vmem:[#allocation1 + $0x20] sm:$0xff pattern:$0x73625140]
    %v70 = vld.sshfl [vmem:[#allocation1 + $0x28] sm:$0xff pattern:$0x73625140]
    %v71 = vld.sshfl [vmem:[#allocation1 + $0x30] sm:$0xff pattern:$0x73625140]
    %v72 = vld.sshfl [vmem:[#allocation1 + $0x38] sm:$0xff pattern:$0x73625140]
    %v81 = vpack.c.bf16 %v65, %v65
    %v82 = vpack.c.bf16 %v66, %v66
    %v83 = vpack.c.bf16 %v67, %v67
    %v84 = vpack.c.bf16 %v68, %v68
    %v85 = vpack.c.bf16 %v69, %v69
    %v86 = vpack.c.bf16 %v70, %v70
    %v87 = vpack.c.bf16 %v71, %v71
    %v88 = vpack.c.bf16 %v72, %v72
    %v89 = vld [vmem:[#allocation2] sm:$0xff]
    %v90 = vld [vmem:[#allocation2 + $0x8] sm:$0xff]
    %v91 = vld [vmem:[#allocation2 + $0x10] sm:$0xff]
    %v92 = vld [vmem:[#allocation2 + $0x18] sm:$0xff]
    %v93 = vld [vmem:[#allocation2 + $0x20] sm:$0xff]
    %v94 = vld [vmem:[#allocation2 + $0x28] sm:$0xff]
    %v95 = vld [vmem:[#allocation2 + $0x30] sm:$0xff]
    %v96 = vld [vmem:[#allocation2 + $0x38] sm:$0xff]
    %v97 = vld [vmem:[#allocation2 + $0x40] sm:$0xff]
    %v98 = vld [vmem:[#allocation2 + $0x48] sm:$0xff]
    %v99 = vld [vmem:[#allocation2 + $0x50] sm:$0xff]
    %v100 = vld [vmem:[#allocation2 + $0x58] sm:$0xff]
    %v101 = vld [vmem:[#allocation2 + $0x60] sm:$0xff]
    %v102 = vld [vmem:[#allocation2 + $0x68] sm:$0xff]
    %v103 = vld [vmem:[#allocation2 + $0x70] sm:$0xff]
    %v104 = vld [vmem:[#allocation2 + $0x78] sm:$0xff]
    %v105 = vld [vmem:[#allocation2 + $0x80] sm:$0xff]
    %v106 = vld [vmem:[#allocation2 + $0x88] sm:$0xff]
    %v107 = vld [vmem:[#allocation2 + $0x90] sm:$0xff]
    %v108 = vld [vmem:[#allocation2 + $0x98] sm:$0xff]
    %v109 = vld [vmem:[#allocation2 + $0xa0] sm:$0xff]
    %v110 = vld [vmem:[#allocation2 + $0xa8] sm:$0xff]
    %v111 = vld [vmem:[#allocation2 + $0xb0] sm:$0xff]
    %v112 = vld [vmem:[#allocation2 + $0xb8] sm:$0xff]
    %v113 = vld [vmem:[#allocation2 + $0xc0] sm:$0xff]
    %v114 = vld [vmem:[#allocation2 + $0xc8] sm:$0xff]
    %v115 = vld [vmem:[#allocation2 + $0xd0] sm:$0xff]
    %v116 = vld [vmem:[#allocation2 + $0xd8] sm:$0xff]
    %v117 = vld [vmem:[#allocation2 + $0xe0] sm:$0xff]
    %v118 = vld [vmem:[#allocation2 + $0xe8] sm:$0xff]
    %v119 = vld [vmem:[#allocation2 + $0xf0] sm:$0xff]
    %v120 = vld [vmem:[#allocation2 + $0xf8] sm:$0xff]
    %v121 = vld [vmem:[#allocation2 + $0x100] sm:$0xff]
    %v122 = vld [vmem:[#allocation2 + $0x108] sm:$0xff]
    %v123 = vld [vmem:[#allocation2 + $0x110] sm:$0xff]
    %v124 = vld [vmem:[#allocation2 + $0x118] sm:$0xff]
    %v125 = vld [vmem:[#allocation2 + $0x120] sm:$0xff]
    %v126 = vld [vmem:[#allocation2 + $0x128] sm:$0xff]
    %v127 = vld [vmem:[#allocation2 + $0x130] sm:$0xff]
    %v128 = vld [vmem:[#allocation2 + $0x138] sm:$0xff]
    %v129 = vld [vmem:[#allocation2 + $0x140] sm:$0xff]
    %v130 = vld [vmem:[#allocation2 + $0x148] sm:$0xff]
    %v131 = vld [vmem:[#allocation2 + $0x150] sm:$0xff]
    %v132 = vld [vmem:[#allocation2 + $0x158] sm:$0xff]
    %v133 = vld [vmem:[#allocation2 + $0x160] sm:$0xff]
    %v134 = vld [vmem:[#allocation2 + $0x168] sm:$0xff]
    %v135 = vld [vmem:[#allocation2 + $0x170] sm:$0xff]
    %v136 = vld [vmem:[#allocation2 + $0x178] sm:$0xff]
    %v137 = vld [vmem:[#allocation2 + $0x180] sm:$0xff]
    %v138 = vld [vmem:[#allocation2 + $0x188] sm:$0xff]
    %v139 = vld [vmem:[#allocation2 + $0x190] sm:$0xff]
    %v140 = vld [vmem:[#allocation2 + $0x198] sm:$0xff]
    %v141 = vld [vmem:[#allocation2 + $0x1a0] sm:$0xff]
    %v142 = vld [vmem:[#allocation2 + $0x1a8] sm:$0xff]
    %v143 = vld [vmem:[#allocation2 + $0x1b0] sm:$0xff]
    %v144 = vld [vmem:[#allocation2 + $0x1b8] sm:$0xff]
    %v145 = vld [vmem:[#allocation2 + $0x1c0] sm:$0xff]
    %v146 = vld [vmem:[#allocation2 + $0x1c8] sm:$0xff]
    %v147 = vld [vmem:[#allocation2 + $0x1d0] sm:$0xff]
    %v148 = vld [vmem:[#allocation2 + $0x1d8] sm:$0xff]
    %v149 = vld [vmem:[#allocation2 + $0x1e0] sm:$0xff]
    %v150 = vld [vmem:[#allocation2 + $0x1e8] sm:$0xff]
    %v151 = vld [vmem:[#allocation2 + $0x1f0] sm:$0xff]
    %v152 = vld [vmem:[#allocation2 + $0x1f8] sm:$0xff]
    %v153 = vld [vmem:[#allocation2 + $0x200] sm:$0xff]
    %v154 = vld [vmem:[#allocation2 + $0x208] sm:$0xff]
    %v155 = vld [vmem:[#allocation2 + $0x210] sm:$0xff]
    %v156 = vld [vmem:[#allocation2 + $0x218] sm:$0xff]
    %v157 = vld [vmem:[#allocation2 + $0x220] sm:$0xff]
    %v158 = vld [vmem:[#allocation2 + $0x228] sm:$0xff]
    %v159 = vld [vmem:[#allocation2 + $0x230] sm:$0xff]
    %v160 = vld [vmem:[#allocation2 + $0x238] sm:$0xff]
    %v161 = vld [vmem:[#allocation2 + $0x240] sm:$0xff]
    %v162 = vld [vmem:[#allocation2 + $0x248] sm:$0xff]
    %v163 = vld [vmem:[#allocation2 + $0x250] sm:$0xff]
    %v164 = vld [vmem:[#allocation2 + $0x258] sm:$0xff]
    %v165 = vld [vmem:[#allocation2 + $0x260] sm:$0xff]
    %v166 = vld [vmem:[#allocation2 + $0x268] sm:$0xff]
    %v167 = vld [vmem:[#allocation2 + $0x270] sm:$0xff]
    %v168 = vld [vmem:[#allocation2 + $0x278] sm:$0xff]
    %v169 = vld [vmem:[#allocation2 + $0x280] sm:$0xff]
    %v170 = vld [vmem:[#allocation2 + $0x288] sm:$0xff]
    %v171 = vld [vmem:[#allocation2 + $0x290] sm:$0xff]
    %v172 = vld [vmem:[#allocation2 + $0x298] sm:$0xff]
    %v173 = vld [vmem:[#allocation2 + $0x2a0] sm:$0xff]
    %v174 = vld [vmem:[#allocation2 + $0x2a8] sm:$0xff]
    %v175 = vld [vmem:[#allocation2 + $0x2b0] sm:$0xff]
    %v176 = vld [vmem:[#allocation2 + $0x2b8] sm:$0xff]
    %v177 = vld [vmem:[#allocation2 + $0x2c0] sm:$0xff]
    %v178 = vld [vmem:[#allocation2 + $0x2c8] sm:$0xff]
    %v179 = vld [vmem:[#allocation2 + $0x2d0] sm:$0xff]
    %v180 = vld [vmem:[#allocation2 + $0x2d8] sm:$0xff]
    %v181 = vld [vmem:[#allocation2 + $0x2e0] sm:$0xff]
    %v182 = vld [vmem:[#allocation2 + $0x2e8] sm:$0xff]
    %v183 = vld [vmem:[#allocation2 + $0x2f0] sm:$0xff]
    %v184 = vld [vmem:[#allocation2 + $0x2f8] sm:$0xff]
    %v185 = vld [vmem:[#allocation2 + $0x300] sm:$0xff]
    %v186 = vld [vmem:[#allocation2 + $0x308] sm:$0xff]
    %v187 = vld [vmem:[#allocation2 + $0x310] sm:$0xff]
    %v188 = vld [vmem:[#allocation2 + $0x318] sm:$0xff]
    %v189 = vld [vmem:[#allocation2 + $0x320] sm:$0xff]
    %v190 = vld [vmem:[#allocation2 + $0x328] sm:$0xff]
    %v191 = vld [vmem:[#allocation2 + $0x330] sm:$0xff]
    %v192 = vld [vmem:[#allocation2 + $0x338] sm:$0xff]
    %v193 = vld [vmem:[#allocation2 + $0x340] sm:$0xff]
    %v194 = vld [vmem:[#allocation2 + $0x348] sm:$0xff]
    %v195 = vld [vmem:[#allocation2 + $0x350] sm:$0xff]
    %v196 = vld [vmem:[#allocation2 + $0x358] sm:$0xff]
    %v197 = vld [vmem:[#allocation2 + $0x360] sm:$0xff]
    %v198 = vld [vmem:[#allocation2 + $0x368] sm:$0xff]
    %v199 = vld [vmem:[#allocation2 + $0x370] sm:$0xff]
    %v200 = vld [vmem:[#allocation2 + $0x378] sm:$0xff]
    %v201 = vld [vmem:[#allocation2 + $0x380] sm:$0xff]
    %v202 = vld [vmem:[#allocation2 + $0x388] sm:$0xff]
    %v203 = vld [vmem:[#allocation2 + $0x390] sm:$0xff]
    %v204 = vld [vmem:[#allocation2 + $0x398] sm:$0xff]
    %v205 = vld [vmem:[#allocation2 + $0x3a0] sm:$0xff]
    %v206 = vld [vmem:[#allocation2 + $0x3a8] sm:$0xff]
    %v207 = vld [vmem:[#allocation2 + $0x3b0] sm:$0xff]
    %v208 = vld [vmem:[#allocation2 + $0x3b8] sm:$0xff]
    %v209 = vld [vmem:[#allocation2 + $0x3c0] sm:$0xff]
    %v210 = vld [vmem:[#allocation2 + $0x3c8] sm:$0xff]
    %v211 = vld [vmem:[#allocation2 + $0x3d0] sm:$0xff]
    %v212 = vld [vmem:[#allocation2 + $0x3d8] sm:$0xff]
    %v213 = vld [vmem:[#allocation2 + $0x3e0] sm:$0xff]
    %v214 = vld [vmem:[#allocation2 + $0x3e8] sm:$0xff]
    %v215 = vld [vmem:[#allocation2 + $0x3f0] sm:$0xff]
    %v216 = vld [vmem:[#allocation2 + $0x3f8] sm:$0xff]
    %v217 = vld [vmem:[#allocation2 + $0x400] sm:$0xff]
    %v218 = vld [vmem:[#allocation2 + $0x408] sm:$0xff]
    %v219 = vld [vmem:[#allocation2 + $0x410] sm:$0xff]
    %v220 = vld [vmem:[#allocation2 + $0x418] sm:$0xff]
    %v221 = vld [vmem:[#allocation2 + $0x420] sm:$0xff]
    %v222 = vld [vmem:[#allocation2 + $0x428] sm:$0xff]
    %v223 = vld [vmem:[#allocation2 + $0x430] sm:$0xff]
    %v224 = vld [vmem:[#allocation2 + $0x438] sm:$0xff]
    %v225 = vld [vmem:[#allocation2 + $0x440] sm:$0xff]
    %v226 = vld [vmem:[#allocation2 + $0x448] sm:$0xff]
    %v227 = vld [vmem:[#allocation2 + $0x450] sm:$0xff]
    %v228 = vld [vmem:[#allocation2 + $0x458] sm:$0xff]
    %v229 = vld [vmem:[#allocation2 + $0x460] sm:$0xff]
    %v230 = vld [vmem:[#allocation2 + $0x468] sm:$0xff]
    %v231 = vld [vmem:[#allocation2 + $0x470] sm:$0xff]
    %v232 = vld [vmem:[#allocation2 + $0x478] sm:$0xff]
    %v233 = vld [vmem:[#allocation2 + $0x480] sm:$0xff]
    %v234 = vld [vmem:[#allocation2 + $0x488] sm:$0xff]
    %v235 = vld [vmem:[#allocation2 + $0x490] sm:$0xff]
    %v236 = vld [vmem:[#allocation2 + $0x498] sm:$0xff]
    %v237 = vld [vmem:[#allocation2 + $0x4a0] sm:$0xff]
    %v238 = vld [vmem:[#allocation2 + $0x4a8] sm:$0xff]
    %v239 = vld [vmem:[#allocation2 + $0x4b0] sm:$0xff]
    %v240 = vld [vmem:[#allocation2 + $0x4b8] sm:$0xff]
    %v241 = vld [vmem:[#allocation2 + $0x4c0] sm:$0xff]
    %v242 = vld [vmem:[#allocation2 + $0x4c8] sm:$0xff]
    %v243 = vld [vmem:[#allocation2 + $0x4d0] sm:$0xff]
    %v244 = vld [vmem:[#allocation2 + $0x4d8] sm:$0xff]
    %v245 = vld [vmem:[#allocation2 + $0x4e0] sm:$0xff]
    %v246 = vld [vmem:[#allocation2 + $0x4e8] sm:$0xff]
    %v247 = vld [vmem:[#allocation2 + $0x4f0] sm:$0xff]
    %v248 = vld [vmem:[#allocation2 + $0x4f8] sm:$0xff]
    %v249 = vld [vmem:[#allocation2 + $0x500] sm:$0xff]
    %v250 = vld [vmem:[#allocation2 + $0x508] sm:$0xff]
    %v251 = vld [vmem:[#allocation2 + $0x510] sm:$0xff]
    %v252 = vld [vmem:[#allocation2 + $0x518] sm:$0xff]
    %v253 = vld [vmem:[#allocation2 + $0x520] sm:$0xff]
    %v254 = vld [vmem:[#allocation2 + $0x528] sm:$0xff]
    %v255 = vld [vmem:[#allocation2 + $0x530] sm:$0xff]
    %v256 = vld [vmem:[#allocation2 + $0x538] sm:$0xff]
    %v257 = vld [vmem:[#allocation2 + $0x540] sm:$0xff]
    %v258 = vld [vmem:[#allocation2 + $0x548] sm:$0xff]
    %v259 = vld [vmem:[#allocation2 + $0x550] sm:$0xff]
    %v260 = vld [vmem:[#allocation2 + $0x558] sm:$0xff]
    %v261 = vld [vmem:[#allocation2 + $0x560] sm:$0xff]
    %v262 = vld [vmem:[#allocation2 + $0x568] sm:$0xff]
    %v263 = vld [vmem:[#allocation2 + $0x570] sm:$0xff]
    %v264 = vld [vmem:[#allocation2 + $0x578] sm:$0xff]
    %v265 = vld [vmem:[#allocation2 + $0x580] sm:$0xff]
    %v266 = vld [vmem:[#allocation2 + $0x588] sm:$0xff]
    %v267 = vld [vmem:[#allocation2 + $0x590] sm:$0xff]
    %v268 = vld [vmem:[#allocation2 + $0x598] sm:$0xff]
    %v269 = vld [vmem:[#allocation2 + $0x5a0] sm:$0xff]
    %v270 = vld [vmem:[#allocation2 + $0x5a8] sm:$0xff]
    %v271 = vld [vmem:[#allocation2 + $0x5b0] sm:$0xff]
    %v272 = vld [vmem:[#allocation2 + $0x5b8] sm:$0xff]
    %v273 = vld [vmem:[#allocation2 + $0x5c0] sm:$0xff]
    %v274 = vld [vmem:[#allocation2 + $0x5c8] sm:$0xff]
    %v275 = vld [vmem:[#allocation2 + $0x5d0] sm:$0xff]
    %v276 = vld [vmem:[#allocation2 + $0x5d8] sm:$0xff]
    %v277 = vld [vmem:[#allocation2 + $0x5e0] sm:$0xff]
    %v278 = vld [vmem:[#allocation2 + $0x5e8] sm:$0xff]
    %v279 = vld [vmem:[#allocation2 + $0x5f0] sm:$0xff]
    %v280 = vld [vmem:[#allocation2 + $0x5f8] sm:$0xff]
    %v281 = vld [vmem:[#allocation2 + $0x600] sm:$0xff]
    %v282 = vld [vmem:[#allocation2 + $0x608] sm:$0xff]
    %v283 = vld [vmem:[#allocation2 + $0x610] sm:$0xff]
    %v284 = vld [vmem:[#allocation2 + $0x618] sm:$0xff]
    %v285 = vld [vmem:[#allocation2 + $0x620] sm:$0xff]
    %v286 = vld [vmem:[#allocation2 + $0x628] sm:$0xff]
    %v287 = vld [vmem:[#allocation2 + $0x630] sm:$0xff]
    %v288 = vld [vmem:[#allocation2 + $0x638] sm:$0xff]
    %v289 = vld [vmem:[#allocation2 + $0x640] sm:$0xff]
    %v290 = vld [vmem:[#allocation2 + $0x648] sm:$0xff]
    %v291 = vld [vmem:[#allocation2 + $0x650] sm:$0xff]
    %v292 = vld [vmem:[#allocation2 + $0x658] sm:$0xff]
    %v293 = vld [vmem:[#allocation2 + $0x660] sm:$0xff]
    %v294 = vld [vmem:[#allocation2 + $0x668] sm:$0xff]
    %v295 = vld [vmem:[#allocation2 + $0x670] sm:$0xff]
    %v296 = vld [vmem:[#allocation2 + $0x678] sm:$0xff]
    %v297 = vld [vmem:[#allocation2 + $0x680] sm:$0xff]
    %v298 = vld [vmem:[#allocation2 + $0x688] sm:$0xff]
    %v299 = vld [vmem:[#allocation2 + $0x690] sm:$0xff]
    %v300 = vld [vmem:[#allocation2 + $0x698] sm:$0xff]
    %v301 = vld [vmem:[#allocation2 + $0x6a0] sm:$0xff]
    %v302 = vld [vmem:[#allocation2 + $0x6a8] sm:$0xff]
    %v303 = vld [vmem:[#allocation2 + $0x6b0] sm:$0xff]
    %v304 = vld [vmem:[#allocation2 + $0x6b8] sm:$0xff]
    %v305 = vld [vmem:[#allocation2 + $0x6c0] sm:$0xff]
    %v306 = vld [vmem:[#allocation2 + $0x6c8] sm:$0xff]
    %v307 = vld [vmem:[#allocation2 + $0x6d0] sm:$0xff]
    %v308 = vld [vmem:[#allocation2 + $0x6d8] sm:$0xff]
    %v309 = vld [vmem:[#allocation2 + $0x6e0] sm:$0xff]
    %v310 = vld [vmem:[#allocation2 + $0x6e8] sm:$0xff]
    %v311 = vld [vmem:[#allocation2 + $0x6f0] sm:$0xff]
    %v312 = vld [vmem:[#allocation2 + $0x6f8] sm:$0xff]
    %v313 = vld [vmem:[#allocation2 + $0x700] sm:$0xff]
    %v314 = vld [vmem:[#allocation2 + $0x708] sm:$0xff]
    %v315 = vld [vmem:[#allocation2 + $0x710] sm:$0xff]
    %v316 = vld [vmem:[#allocation2 + $0x718] sm:$0xff]
    %v317 = vld [vmem:[#allocation2 + $0x720] sm:$0xff]
    %v318 = vld [vmem:[#allocation2 + $0x728] sm:$0xff]
    %v319 = vld [vmem:[#allocation2 + $0x730] sm:$0xff]
    %v320 = vld [vmem:[#allocation2 + $0x738] sm:$0xff]
    %v321 = vld [vmem:[#allocation2 + $0x740] sm:$0xff]
    %v322 = vld [vmem:[#allocation2 + $0x748] sm:$0xff]
    %v323 = vld [vmem:[#allocation2 + $0x750] sm:$0xff]
    %v324 = vld [vmem:[#allocation2 + $0x758] sm:$0xff]
    %v325 = vld [vmem:[#allocation2 + $0x760] sm:$0xff]
    %v326 = vld [vmem:[#allocation2 + $0x768] sm:$0xff]
    %v327 = vld [vmem:[#allocation2 + $0x770] sm:$0xff]
    %v328 = vld [vmem:[#allocation2 + $0x778] sm:$0xff]
    %v329 = vld [vmem:[#allocation2 + $0x780] sm:$0xff]
    %v330 = vld [vmem:[#allocation2 + $0x788] sm:$0xff]
    %v331 = vld [vmem:[#allocation2 + $0x790] sm:$0xff]
    %v332 = vld [vmem:[#allocation2 + $0x798] sm:$0xff]
    %v333 = vld [vmem:[#allocation2 + $0x7a0] sm:$0xff]
    %v334 = vld [vmem:[#allocation2 + $0x7a8] sm:$0xff]
    %v335 = vld [vmem:[#allocation2 + $0x7b0] sm:$0xff]
    %v336 = vld [vmem:[#allocation2 + $0x7b8] sm:$0xff]
    %v337 = vld [vmem:[#allocation2 + $0x7c0] sm:$0xff]
    %v338 = vld [vmem:[#allocation2 + $0x7c8] sm:$0xff]
    %v339 = vld [vmem:[#allocation2 + $0x7d0] sm:$0xff]
    %v340 = vld [vmem:[#allocation2 + $0x7d8] sm:$0xff]
    %v341 = vld [vmem:[#allocation2 + $0x7e0] sm:$0xff]
    %v342 = vld [vmem:[#allocation2 + $0x7e8] sm:$0xff]
    %v343 = vld [vmem:[#allocation2 + $0x7f0] sm:$0xff]
    %v344 = vld [vmem:[#allocation2 + $0x7f8] sm:$0xff]
    %v345 = vld [vmem:[%s2] sm:$0xf]
    %v347 = vperm.slane %v345, 0
    %v348 = vperm.slane %v345, 1
    %v349 = vperm.slane %v345, 2
    %v350 = vperm.slane %v345, 3
    %v611 = vunpack.c.l.b16 %v89
    %v612 = vunpack.c.h.b16 %v89
    %v613 = vunpack.c.l.b16 %v90
    %v614 = vunpack.c.h.b16 %v90
    %v615 = vunpack.c.l.b16 %v91
    %v616 = vunpack.c.h.b16 %v91
    %v617 = vunpack.c.l.b16 %v92
    %v618 = vunpack.c.h.b16 %v92
    %v619 = vunpack.c.l.b16 %v93
    %v620 = vunpack.c.h.b16 %v93
    %v621 = vunpack.c.l.b16 %v94
    %v622 = vunpack.c.h.b16 %v94
    %v623 = vunpack.c.l.b16 %v95
    %v624 = vunpack.c.h.b16 %v95
    %v625 = vunpack.c.l.b16 %v96
    %v626 = vunpack.c.h.b16 %v96
    %v627 = vunpack.c.l.b16 %v97
    %v628 = vunpack.c.h.b16 %v97
    %v629 = vunpack.c.l.b16 %v98
    %v630 = vunpack.c.h.b16 %v98
    %v631 = vunpack.c.l.b16 %v99
    %v632 = vunpack.c.h.b16 %v99
    %v633 = vunpack.c.l.b16 %v100
    %v634 = vunpack.c.h.b16 %v100
    %v635 = vunpack.c.l.b16 %v101
    %v636 = vunpack.c.h.b16 %v101
    %v637 = vunpack.c.l.b16 %v102
    %v638 = vunpack.c.h.b16 %v102
    %v639 = vunpack.c.l.b16 %v103
    %v640 = vunpack.c.h.b16 %v103
    %v641 = vunpack.c.l.b16 %v104
    %v642 = vunpack.c.h.b16 %v104
    %v643 = vunpack.c.l.b16 %v105
    %v644 = vunpack.c.h.b16 %v105
    %v645 = vunpack.c.l.b16 %v106
    %v646 = vunpack.c.h.b16 %v106
    %v647 = vunpack.c.l.b16 %v107
    %v648 = vunpack.c.h.b16 %v107
    %v649 = vunpack.c.l.b16 %v108
    %v650 = vunpack.c.h.b16 %v108
    %v651 = vunpack.c.l.b16 %v109
    %v652 = vunpack.c.h.b16 %v109
    %v653 = vunpack.c.l.b16 %v110
    %v654 = vunpack.c.h.b16 %v110
    %v655 = vunpack.c.l.b16 %v111
    %v656 = vunpack.c.h.b16 %v111
    %v657 = vunpack.c.l.b16 %v112
    %v658 = vunpack.c.h.b16 %v112
    %v659 = vunpack.c.l.b16 %v113
    %v660 = vunpack.c.h.b16 %v113
    %v661 = vunpack.c.l.b16 %v114
    %v662 = vunpack.c.h.b16 %v114
    %v663 = vunpack.c.l.b16 %v115
    %v664 = vunpack.c.h.b16 %v115
    %v665 = vunpack.c.l.b16 %v116
    %v666 = vunpack.c.h.b16 %v116
    %v667 = vunpack.c.l.b16 %v117
    %v668 = vunpack.c.h.b16 %v117
    %v669 = vunpack.c.l.b16 %v118
    %v670 = vunpack.c.h.b16 %v118
    %v671 = vunpack.c.l.b16 %v119
    %v672 = vunpack.c.h.b16 %v119
    %v673 = vunpack.c.l.b16 %v120
    %v674 = vunpack.c.h.b16 %v120
    %v675 = vunpack.c.l.b16 %v121
    %v676 = vunpack.c.h.b16 %v121
    %v677 = vunpack.c.l.b16 %v122
    %v678 = vunpack.c.h.b16 %v122
    %v679 = vunpack.c.l.b16 %v123
    %v680 = vunpack.c.h.b16 %v123
    %v681 = vunpack.c.l.b16 %v124
    %v682 = vunpack.c.h.b16 %v124
    %v683 = vunpack.c.l.b16 %v125
    %v684 = vunpack.c.h.b16 %v125
    %v685 = vunpack.c.l.b16 %v126
    %v686 = vunpack.c.h.b16 %v126
    %v687 = vunpack.c.l.b16 %v127
    %v688 = vunpack.c.h.b16 %v127
    %v689 = vunpack.c.l.b16 %v128
    %v690 = vunpack.c.h.b16 %v128
    %v691 = vunpack.c.l.b16 %v129
    %v692 = vunpack.c.h.b16 %v129
    %v693 = vunpack.c.l.b16 %v130
    %v694 = vunpack.c.h.b16 %v130
    %v695 = vunpack.c.l.b16 %v131
    %v696 = vunpack.c.h.b16 %v131
    %v697 = vunpack.c.l.b16 %v132
    %v698 = vunpack.c.h.b16 %v132
    %v699 = vunpack.c.l.b16 %v133
    %v700 = vunpack.c.h.b16 %v133
    %v701 = vunpack.c.l.b16 %v134
    %v702 = vunpack.c.h.b16 %v134
    %v703 = vunpack.c.l.b16 %v135
    %v704 = vunpack.c.h.b16 %v135
    %v705 = vunpack.c.l.b16 %v136
    %v706 = vunpack.c.h.b16 %v136
    %v707 = vunpack.c.l.b16 %v137
    %v708 = vunpack.c.h.b16 %v137
    %v709 = vunpack.c.l.b16 %v138
    %v710 = vunpack.c.h.b16 %v138
    %v711 = vunpack.c.l.b16 %v139
    %v712 = vunpack.c.h.b16 %v139
    %v713 = vunpack.c.l.b16 %v140
    %v714 = vunpack.c.h.b16 %v140
    %v715 = vunpack.c.l.b16 %v141
    %v716 = vunpack.c.h.b16 %v141
    %v717 = vunpack.c.l.b16 %v142
    %v718 = vunpack.c.h.b16 %v142
    %v719 = vunpack.c.l.b16 %v143
    %v720 = vunpack.c.h.b16 %v143
    %v721 = vunpack.c.l.b16 %v144
    %v722 = vunpack.c.h.b16 %v144
    %v723 = vunpack.c.l.b16 %v145
    %v724 = vunpack.c.h.b16 %v145
    %v725 = vunpack.c.l.b16 %v146
    %v726 = vunpack.c.h.b16 %v146
    %v727 = vunpack.c.l.b16 %v147
    %v728 = vunpack.c.h.b16 %v147
    %v729 = vunpack.c.l.b16 %v148
    %v730 = vunpack.c.h.b16 %v148
    %v731 = vunpack.c.l.b16 %v149
    %v732 = vunpack.c.h.b16 %v149
    %v733 = vunpack.c.l.b16 %v150
    %v734 = vunpack.c.h.b16 %v150
    %v735 = vunpack.c.l.b16 %v151
    %v736 = vunpack.c.h.b16 %v151
    %v737 = vunpack.c.l.b16 %v152
    %v738 = vunpack.c.h.b16 %v152
    %v739 = vunpack.c.l.b16 %v153
    %v740 = vunpack.c.h.b16 %v153
    %v741 = vunpack.c.l.b16 %v154
    %v742 = vunpack.c.h.b16 %v154
    %v743 = vunpack.c.l.b16 %v155
    %v744 = vunpack.c.h.b16 %v155
    %v745 = vunpack.c.l.b16 %v156
    %v746 = vunpack.c.h.b16 %v156
    %v747 = vunpack.c.l.b16 %v157
    %v748 = vunpack.c.h.b16 %v157
    %v749 = vunpack.c.l.b16 %v158
    %v750 = vunpack.c.h.b16 %v158
    %v751 = vunpack.c.l.b16 %v159
    %v752 = vunpack.c.h.b16 %v159
    %v753 = vunpack.c.l.b16 %v160
    %v754 = vunpack.c.h.b16 %v160
    %v755 = vunpack.c.l.b16 %v161
    %v756 = vunpack.c.h.b16 %v161
    %v757 = vunpack.c.l.b16 %v162
    %v758 = vunpack.c.h.b16 %v162
    %v759 = vunpack.c.l.b16 %v163
    %v760 = vunpack.c.h.b16 %v163
    %v761 = vunpack.c.l.b16 %v164
    %v762 = vunpack.c.h.b16 %v164
    %v763 = vunpack.c.l.b16 %v165
    %v764 = vunpack.c.h.b16 %v165
    %v765 = vunpack.c.l.b16 %v166
    %v766 = vunpack.c.h.b16 %v166
    %v767 = vunpack.c.l.b16 %v167
    %v768 = vunpack.c.h.b16 %v167
    %v769 = vunpack.c.l.b16 %v168
    %v770 = vunpack.c.h.b16 %v168
    %v771 = vunpack.c.l.b16 %v169
    %v772 = vunpack.c.h.b16 %v169
    %v773 = vunpack.c.l.b16 %v170
    %v774 = vunpack.c.h.b16 %v170
    %v775 = vunpack.c.l.b16 %v171
    %v776 = vunpack.c.h.b16 %v171
    %v777 = vunpack.c.l.b16 %v172
    %v778 = vunpack.c.h.b16 %v172
    %v779 = vunpack.c.l.b16 %v173
    %v780 = vunpack.c.h.b16 %v173
    %v781 = vunpack.c.l.b16 %v174
    %v782 = vunpack.c.h.b16 %v174
    %v783 = vunpack.c.l.b16 %v175
    %v784 = vunpack.c.h.b16 %v175
    %v785 = vunpack.c.l.b16 %v176
    %v786 = vunpack.c.h.b16 %v176
    %v787 = vunpack.c.l.b16 %v177
    %v788 = vunpack.c.h.b16 %v177
    %v789 = vunpack.c.l.b16 %v178
    %v790 = vunpack.c.h.b16 %v178
    %v791 = vunpack.c.l.b16 %v179
    %v792 = vunpack.c.h.b16 %v179
    %v793 = vunpack.c.l.b16 %v180
    %v794 = vunpack.c.h.b16 %v180
    %v795 = vunpack.c.l.b16 %v181
    %v796 = vunpack.c.h.b16 %v181
    %v797 = vunpack.c.l.b16 %v182
    %v798 = vunpack.c.h.b16 %v182
    %v799 = vunpack.c.l.b16 %v183
    %v800 = vunpack.c.h.b16 %v183
    %v801 = vunpack.c.l.b16 %v184
    %v802 = vunpack.c.h.b16 %v184
    %v803 = vunpack.c.l.b16 %v185
    %v804 = vunpack.c.h.b16 %v185
    %v805 = vunpack.c.l.b16 %v186
    %v806 = vunpack.c.h.b16 %v186
    %v807 = vunpack.c.l.b16 %v187
    %v808 = vunpack.c.h.b16 %v187
    %v809 = vunpack.c.l.b16 %v188
    %v810 = vunpack.c.h.b16 %v188
    %v811 = vunpack.c.l.b16 %v189
    %v812 = vunpack.c.h.b16 %v189
    %v813 = vunpack.c.l.b16 %v190
    %v814 = vunpack.c.h.b16 %v190
    %v815 = vunpack.c.l.b16 %v191
    %v816 = vunpack.c.h.b16 %v191
    %v817 = vunpack.c.l.b16 %v192
    %v818 = vunpack.c.h.b16 %v192
    %v819 = vunpack.c.l.b16 %v193
    %v820 = vunpack.c.h.b16 %v193
    %v821 = vunpack.c.l.b16 %v194
    %v822 = vunpack.c.h.b16 %v194
    %v823 = vunpack.c.l.b16 %v195
    %v824 = vunpack.c.h.b16 %v195
    %v825 = vunpack.c.l.b16 %v196
    %v826 = vunpack.c.h.b16 %v196
    %v827 = vunpack.c.l.b16 %v197
    %v828 = vunpack.c.h.b16 %v197
    %v829 = vunpack.c.l.b16 %v198
    %v830 = vunpack.c.h.b16 %v198
    %v831 = vunpack.c.l.b16 %v199
    %v832 = vunpack.c.h.b16 %v199
    %v833 = vunpack.c.l.b16 %v200
    %v834 = vunpack.c.h.b16 %v200
    %v835 = vunpack.c.l.b16 %v201
    %v836 = vunpack.c.h.b16 %v201
    %v837 = vunpack.c.l.b16 %v202
    %v838 = vunpack.c.h.b16 %v202
    %v839 = vunpack.c.l.b16 %v203
    %v840 = vunpack.c.h.b16 %v203
    %v841 = vunpack.c.l.b16 %v204
    %v842 = vunpack.c.h.b16 %v204
    %v843 = vunpack.c.l.b16 %v205
    %v844 = vunpack.c.h.b16 %v205
    %v845 = vunpack.c.l.b16 %v206
    %v846 = vunpack.c.h.b16 %v206
    %v847 = vunpack.c.l.b16 %v207
    %v848 = vunpack.c.h.b16 %v207
    %v849 = vunpack.c.l.b16 %v208
    %v850 = vunpack.c.h.b16 %v208
    %v851 = vunpack.c.l.b16 %v209
    %v852 = vunpack.c.h.b16 %v209
    %v853 = vunpack.c.l.b16 %v210
    %v854 = vunpack.c.h.b16 %v210
    %v855 = vunpack.c.l.b16 %v211
    %v856 = vunpack.c.h.b16 %v211
    %v857 = vunpack.c.l.b16 %v212
    %v858 = vunpack.c.h.b16 %v212
    %v859 = vunpack.c.l.b16 %v213
    %v860 = vunpack.c.h.b16 %v213
    %v861 = vunpack.c.l.b16 %v214
    %v862 = vunpack.c.h.b16 %v214
    %v863 = vunpack.c.l.b16 %v215
    %v864 = vunpack.c.h.b16 %v215
    %v865 = vunpack.c.l.b16 %v216
    %v866 = vunpack.c.h.b16 %v216
    %v867 = vunpack.c.l.b16 %v217
    %v868 = vunpack.c.h.b16 %v217
    %v869 = vunpack.c.l.b16 %v218
    %v870 = vunpack.c.h.b16 %v218
    %v871 = vunpack.c.l.b16 %v219
    %v872 = vunpack.c.h.b16 %v219
    %v873 = vunpack.c.l.b16 %v220
    %v874 = vunpack.c.h.b16 %v220
    %v875 = vunpack.c.l.b16 %v221
    %v876 = vunpack.c.h.b16 %v221
    %v877 = vunpack.c.l.b16 %v222
    %v878 = vunpack.c.h.b16 %v222
    %v879 = vunpack.c.l.b16 %v223
    %v880 = vunpack.c.h.b16 %v223
    %v881 = vunpack.c.l.b16 %v224
    %v882 = vunpack.c.h.b16 %v224
    %v883 = vunpack.c.l.b16 %v225
    %v884 = vunpack.c.h.b16 %v225
    %v885 = vunpack.c.l.b16 %v226
    %v886 = vunpack.c.h.b16 %v226
    %v887 = vunpack.c.l.b16 %v227
    %v888 = vunpack.c.h.b16 %v227
    %v889 = vunpack.c.l.b16 %v228
    %v890 = vunpack.c.h.b16 %v228
    %v891 = vunpack.c.l.b16 %v229
    %v892 = vunpack.c.h.b16 %v229
    %v893 = vunpack.c.l.b16 %v230
    %v894 = vunpack.c.h.b16 %v230
    %v895 = vunpack.c.l.b16 %v231
    %v896 = vunpack.c.h.b16 %v231
    %v897 = vunpack.c.l.b16 %v232
    %v898 = vunpack.c.h.b16 %v232
    %v899 = vunpack.c.l.b16 %v233
    %v900 = vunpack.c.h.b16 %v233
    %v901 = vunpack.c.l.b16 %v234
    %v902 = vunpack.c.h.b16 %v234
    %v903 = vunpack.c.l.b16 %v235
    %v904 = vunpack.c.h.b16 %v235
    %v905 = vunpack.c.l.b16 %v236
    %v906 = vunpack.c.h.b16 %v236
    %v907 = vunpack.c.l.b16 %v237
    %v908 = vunpack.c.h.b16 %v237
    %v909 = vunpack.c.l.b16 %v238
    %v910 = vunpack.c.h.b16 %v238
    %v911 = vunpack.c.l.b16 %v239
    %v912 = vunpack.c.h.b16 %v239
    %v913 = vunpack.c.l.b16 %v240
    %v914 = vunpack.c.h.b16 %v240
    %v915 = vunpack.c.l.b16 %v241
    %v916 = vunpack.c.h.b16 %v241
    %v917 = vunpack.c.l.b16 %v242
    %v918 = vunpack.c.h.b16 %v242
    %v919 = vunpack.c.l.b16 %v243
    %v920 = vunpack.c.h.b16 %v243
    %v921 = vunpack.c.l.b16 %v244
    %v922 = vunpack.c.h.b16 %v244
    %v923 = vunpack.c.l.b16 %v245
    %v924 = vunpack.c.h.b16 %v245
    %v925 = vunpack.c.l.b16 %v246
    %v926 = vunpack.c.h.b16 %v246
    %v927 = vunpack.c.l.b16 %v247
    %v928 = vunpack.c.h.b16 %v247
    %v929 = vunpack.c.l.b16 %v248
    %v930 = vunpack.c.h.b16 %v248
    %v931 = vunpack.c.l.b16 %v249
    %v932 = vunpack.c.h.b16 %v249
    %v933 = vunpack.c.l.b16 %v250
    %v934 = vunpack.c.h.b16 %v250
    %v935 = vunpack.c.l.b16 %v251
    %v936 = vunpack.c.h.b16 %v251
    %v937 = vunpack.c.l.b16 %v252
    %v938 = vunpack.c.h.b16 %v252
    %v939 = vunpack.c.l.b16 %v253
    %v940 = vunpack.c.h.b16 %v253
    %v941 = vunpack.c.l.b16 %v254
    %v942 = vunpack.c.h.b16 %v254
    %v943 = vunpack.c.l.b16 %v255
    %v944 = vunpack.c.h.b16 %v255
    %v945 = vunpack.c.l.b16 %v256
    %v946 = vunpack.c.h.b16 %v256
    %v947 = vunpack.c.l.b16 %v257
    %v948 = vunpack.c.h.b16 %v257
    %v949 = vunpack.c.l.b16 %v258
    %v950 = vunpack.c.h.b16 %v258
    %v951 = vunpack.c.l.b16 %v259
    %v952 = vunpack.c.h.b16 %v259
    %v953 = vunpack.c.l.b16 %v260
    %v954 = vunpack.c.h.b16 %v260
    %v955 = vunpack.c.l.b16 %v261
    %v956 = vunpack.c.h.b16 %v261
    %v957 = vunpack.c.l.b16 %v262
    %v958 = vunpack.c.h.b16 %v262
    %v959 = vunpack.c.l.b16 %v263
    %v960 = vunpack.c.h.b16 %v263
    %v961 = vunpack.c.l.b16 %v264
    %v962 = vunpack.c.h.b16 %v264
    %v963 = vunpack.c.l.b16 %v265
    %v964 = vunpack.c.h.b16 %v265
    %v965 = vunpack.c.l.b16 %v266
    %v966 = vunpack.c.h.b16 %v266
    %v967 = vunpack.c.l.b16 %v267
    %v968 = vunpack.c.h.b16 %v267
    %v969 = vunpack.c.l.b16 %v268
    %v970 = vunpack.c.h.b16 %v268
    %v971 = vunpack.c.l.b16 %v269
    %v972 = vunpack.c.h.b16 %v269
    %v973 = vunpack.c.l.b16 %v270
    %v974 = vunpack.c.h.b16 %v270
    %v975 = vunpack.c.l.b16 %v271
    %v976 = vunpack.c.h.b16 %v271
    %v977 = vunpack.c.l.b16 %v272
    %v978 = vunpack.c.h.b16 %v272
    %v979 = vunpack.c.l.b16 %v273
    %v980 = vunpack.c.h.b16 %v273
    %v981 = vunpack.c.l.b16 %v274
    %v982 = vunpack.c.h.b16 %v274
    %v983 = vunpack.c.l.b16 %v275
    %v984 = vunpack.c.h.b16 %v275
    %v985 = vunpack.c.l.b16 %v276
    %v986 = vunpack.c.h.b16 %v276
    %v987 = vunpack.c.l.b16 %v277
    %v988 = vunpack.c.h.b16 %v277
    %v989 = vunpack.c.l.b16 %v278
    %v990 = vunpack.c.h.b16 %v278
    %v991 = vunpack.c.l.b16 %v279
    %v992 = vunpack.c.h.b16 %v279
    %v993 = vunpack.c.l.b16 %v280
    %v994 = vunpack.c.h.b16 %v280
    %v995 = vunpack.c.l.b16 %v281
    %v996 = vunpack.c.h.b16 %v281
    %v997 = vunpack.c.l.b16 %v282
    %v998 = vunpack.c.h.b16 %v282
    %v999 = vunpack.c.l.b16 %v283
    %v1000 = vunpack.c.h.b16 %v283
    %v1001 = vunpack.c.l.b16 %v284
    %v1002 = vunpack.c.h.b16 %v284
    %v1003 = vunpack.c.l.b16 %v285
    %v1004 = vunpack.c.h.b16 %v285
    %v1005 = vunpack.c.l.b16 %v286
    %v1006 = vunpack.c.h.b16 %v286
    %v1007 = vunpack.c.l.b16 %v287
    %v1008 = vunpack.c.h.b16 %v287
    %v1009 = vunpack.c.l.b16 %v288
    %v1010 = vunpack.c.h.b16 %v288
    %v1011 = vunpack.c.l.b16 %v289
    %v1012 = vunpack.c.h.b16 %v289
    %v1013 = vunpack.c.l.b16 %v290
    %v1014 = vunpack.c.h.b16 %v290
    %v1015 = vunpack.c.l.b16 %v291
    %v1016 = vunpack.c.h.b16 %v291
    %v1017 = vunpack.c.l.b16 %v292
    %v1018 = vunpack.c.h.b16 %v292
    %v1019 = vunpack.c.l.b16 %v293
    %v1020 = vunpack.c.h.b16 %v293
    %v1021 = vunpack.c.l.b16 %v294
    %v1022 = vunpack.c.h.b16 %v294
    %v1023 = vunpack.c.l.b16 %v295
    %v1024 = vunpack.c.h.b16 %v295
    %v1025 = vunpack.c.l.b16 %v296
    %v1026 = vunpack.c.h.b16 %v296
    %v1027 = vunpack.c.l.b16 %v297
    %v1028 = vunpack.c.h.b16 %v297
    %v1029 = vunpack.c.l.b16 %v298
    %v1030 = vunpack.c.h.b16 %v298
    %v1031 = vunpack.c.l.b16 %v299
    %v1032 = vunpack.c.h.b16 %v299
    %v1033 = vunpack.c.l.b16 %v300
    %v1034 = vunpack.c.h.b16 %v300
    %v1035 = vunpack.c.l.b16 %v301
    %v1036 = vunpack.c.h.b16 %v301
    %v1037 = vunpack.c.l.b16 %v302
    %v1038 = vunpack.c.h.b16 %v302
    %v1039 = vunpack.c.l.b16 %v303
    %v1040 = vunpack.c.h.b16 %v303
    %v1041 = vunpack.c.l.b16 %v304
    %v1042 = vunpack.c.h.b16 %v304
    %v1043 = vunpack.c.l.b16 %v305
    %v1044 = vunpack.c.h.b16 %v305
    %v1045 = vunpack.c.l.b16 %v306
    %v1046 = vunpack.c.h.b16 %v306
    %v1047 = vunpack.c.l.b16 %v307
    %v1048 = vunpack.c.h.b16 %v307
    %v1049 = vunpack.c.l.b16 %v308
    %v1050 = vunpack.c.h.b16 %v308
    %v1051 = vunpack.c.l.b16 %v309
    %v1052 = vunpack.c.h.b16 %v309
    %v1053 = vunpack.c.l.b16 %v310
    %v1054 = vunpack.c.h.b16 %v310
    %v1055 = vunpack.c.l.b16 %v311
    %v1056 = vunpack.c.h.b16 %v311
    %v1057 = vunpack.c.l.b16 %v312
    %v1058 = vunpack.c.h.b16 %v312
    %v1059 = vunpack.c.l.b16 %v313
    %v1060 = vunpack.c.h.b16 %v313
    %v1061 = vunpack.c.l.b16 %v314
    %v1062 = vunpack.c.h.b16 %v314
    %v1063 = vunpack.c.l.b16 %v315
    %v1064 = vunpack.c.h.b16 %v315
    %v1065 = vunpack.c.l.b16 %v316
    %v1066 = vunpack.c.h.b16 %v316
    %v1067 = vunpack.c.l.b16 %v317
    %v1068 = vunpack.c.h.b16 %v317
    %v1069 = vunpack.c.l.b16 %v318
    %v1070 = vunpack.c.h.b16 %v318
    %v1071 = vunpack.c.l.b16 %v319
    %v1072 = vunpack.c.h.b16 %v319
    %v1073 = vunpack.c.l.b16 %v320
    %v1074 = vunpack.c.h.b16 %v320
    %v1075 = vunpack.c.l.b16 %v321
    %v1076 = vunpack.c.h.b16 %v321
    %v1077 = vunpack.c.l.b16 %v322
    %v1078 = vunpack.c.h.b16 %v322
    %v1079 = vunpack.c.l.b16 %v323
    %v1080 = vunpack.c.h.b16 %v323
    %v1081 = vunpack.c.l.b16 %v324
    %v1082 = vunpack.c.h.b16 %v324
    %v1083 = vunpack.c.l.b16 %v325
    %v1084 = vunpack.c.h.b16 %v325
    %v1085 = vunpack.c.l.b16 %v326
    %v1086 = vunpack.c.h.b16 %v326
    %v1087 = vunpack.c.l.b16 %v327
    %v1088 = vunpack.c.h.b16 %v327
    %v1089 = vunpack.c.l.b16 %v328
    %v1090 = vunpack.c.h.b16 %v328
    %v1091 = vunpack.c.l.b16 %v329
    %v1092 = vunpack.c.h.b16 %v329
    %v1093 = vunpack.c.l.b16 %v330
    %v1094 = vunpack.c.h.b16 %v330
    %v1095 = vunpack.c.l.b16 %v331
    %v1096 = vunpack.c.h.b16 %v331
    %v1097 = vunpack.c.l.b16 %v332
    %v1098 = vunpack.c.h.b16 %v332
    %v1099 = vunpack.c.l.b16 %v333
    %v1100 = vunpack.c.h.b16 %v333
    %v1101 = vunpack.c.l.b16 %v334
    %v1102 = vunpack.c.h.b16 %v334
    %v1103 = vunpack.c.l.b16 %v335
    %v1104 = vunpack.c.h.b16 %v335
    %v1105 = vunpack.c.l.b16 %v336
    %v1106 = vunpack.c.h.b16 %v336
    %v1107 = vunpack.c.l.b16 %v337
    %v1108 = vunpack.c.h.b16 %v337
    %v1109 = vunpack.c.l.b16 %v338
    %v1110 = vunpack.c.h.b16 %v338
    %v1111 = vunpack.c.l.b16 %v339
    %v1112 = vunpack.c.h.b16 %v339
    %v1113 = vunpack.c.l.b16 %v340
    %v1114 = vunpack.c.h.b16 %v340
    %v1115 = vunpack.c.l.b16 %v341
    %v1116 = vunpack.c.h.b16 %v341
    %v1117 = vunpack.c.l.b16 %v342
    %v1118 = vunpack.c.h.b16 %v342
    %v1119 = vunpack.c.l.b16 %v343
    %v1120 = vunpack.c.h.b16 %v343
    %v1121 = vunpack.c.l.b16 %v344
    %v1122 = vunpack.c.h.b16 %v344
    %v1123 = vpack.c.b16 %v615, %v611
    %v1124 = vpack.c.b16 %v616, %v612
    %v1125 = vpack.c.b16 %v617, %v613
    %v1126 = vpack.c.b16 %v618, %v614
    %v1127 = vpack.c.b16 %v623, %v619
    %v1128 = vpack.c.b16 %v624, %v620
    %v1129 = vpack.c.b16 %v625, %v621
    %v1130 = vpack.c.b16 %v626, %v622
    %v1131 = vpack.c.b16 %v631, %v627
    %v1132 = vpack.c.b16 %v632, %v628
    %v1133 = vpack.c.b16 %v633, %v629
    %v1134 = vpack.c.b16 %v634, %v630
    %v1135 = vpack.c.b16 %v639, %v635
    %v1136 = vpack.c.b16 %v640, %v636
    %v1137 = vpack.c.b16 %v641, %v637
    %v1138 = vpack.c.b16 %v642, %v638
    %v1139 = vpack.c.b16 %v647, %v643
    %v1140 = vpack.c.b16 %v648, %v644
    %v1141 = vpack.c.b16 %v649, %v645
    %v1142 = vpack.c.b16 %v650, %v646
    %v1143 = vpack.c.b16 %v655, %v651
    %v1144 = vpack.c.b16 %v656, %v652
    %v1145 = vpack.c.b16 %v657, %v653
    %v1146 = vpack.c.b16 %v658, %v654
    %v1147 = vpack.c.b16 %v663, %v659
    %v1148 = vpack.c.b16 %v664, %v660
    %v1149 = vpack.c.b16 %v665, %v661
    %v1150 = vpack.c.b16 %v666, %v662
    %v1151 = vpack.c.b16 %v671, %v667
    %v1152 = vpack.c.b16 %v672, %v668
    %v1153 = vpack.c.b16 %v673, %v669
    %v1154 = vpack.c.b16 %v674, %v670
    %v1155 = vpack.c.b16 %v679, %v675
    %v1156 = vpack.c.b16 %v680, %v676
    %v1157 = vpack.c.b16 %v681, %v677
    %v1158 = vpack.c.b16 %v682, %v678
    %v1159 = vpack.c.b16 %v687, %v683
    %v1160 = vpack.c.b16 %v688, %v684
    %v1161 = vpack.c.b16 %v689, %v685
    %v1162 = vpack.c.b16 %v690, %v686
    %v1163 = vpack.c.b16 %v695, %v691
    %v1164 = vpack.c.b16 %v696, %v692
    %v1165 = vpack.c.b16 %v697, %v693
    %v1166 = vpack.c.b16 %v698, %v694
    %v1167 = vpack.c.b16 %v703, %v699
    %v1168 = vpack.c.b16 %v704, %v700
    %v1169 = vpack.c.b16 %v705, %v701
    %v1170 = vpack.c.b16 %v706, %v702
    %v1171 = vpack.c.b16 %v711, %v707
    %v1172 = vpack.c.b16 %v712, %v708
    %v1173 = vpack.c.b16 %v713, %v709
    %v1174 = vpack.c.b16 %v714, %v710
    %v1175 = vpack.c.b16 %v719, %v715
    %v1176 = vpack.c.b16 %v720, %v716
    %v1177 = vpack.c.b16 %v721, %v717
    %v1178 = vpack.c.b16 %v722, %v718
    %v1179 = vpack.c.b16 %v727, %v723
    %v1180 = vpack.c.b16 %v728, %v724
    %v1181 = vpack.c.b16 %v729, %v725
    %v1182 = vpack.c.b16 %v730, %v726
    %v1183 = vpack.c.b16 %v735, %v731
    %v1184 = vpack.c.b16 %v736, %v732
    %v1185 = vpack.c.b16 %v737, %v733
    %v1186 = vpack.c.b16 %v738, %v734
    %v1187 = vpack.c.b16 %v743, %v739
    %v1188 = vpack.c.b16 %v744, %v740
    %v1189 = vpack.c.b16 %v745, %v741
    %v1190 = vpack.c.b16 %v746, %v742
    %v1191 = vpack.c.b16 %v751, %v747
    %v1192 = vpack.c.b16 %v752, %v748
    %v1193 = vpack.c.b16 %v753, %v749
    %v1194 = vpack.c.b16 %v754, %v750
    %v1195 = vpack.c.b16 %v759, %v755
    %v1196 = vpack.c.b16 %v760, %v756
    %v1197 = vpack.c.b16 %v761, %v757
    %v1198 = vpack.c.b16 %v762, %v758
    %v1199 = vpack.c.b16 %v767, %v763
    %v1200 = vpack.c.b16 %v768, %v764
    %v1201 = vpack.c.b16 %v769, %v765
    %v1202 = vpack.c.b16 %v770, %v766
    %v1203 = vpack.c.b16 %v775, %v771
    %v1204 = vpack.c.b16 %v776, %v772
    %v1205 = vpack.c.b16 %v777, %v773
    %v1206 = vpack.c.b16 %v778, %v774
    %v1207 = vpack.c.b16 %v783, %v779
    %v1208 = vpack.c.b16 %v784, %v780
    %v1209 = vpack.c.b16 %v785, %v781
    %v1210 = vpack.c.b16 %v786, %v782
    %v1211 = vpack.c.b16 %v791, %v787
    %v1212 = vpack.c.b16 %v792, %v788
    %v1213 = vpack.c.b16 %v793, %v789
    %v1214 = vpack.c.b16 %v794, %v790
    %v1215 = vpack.c.b16 %v799, %v795
    %v1216 = vpack.c.b16 %v800, %v796
    %v1217 = vpack.c.b16 %v801, %v797
    %v1218 = vpack.c.b16 %v802, %v798
    %v1219 = vpack.c.b16 %v807, %v803
    %v1220 = vpack.c.b16 %v808, %v804
    %v1221 = vpack.c.b16 %v809, %v805
    %v1222 = vpack.c.b16 %v810, %v806
    %v1223 = vpack.c.b16 %v815, %v811
    %v1224 = vpack.c.b16 %v816, %v812
    %v1225 = vpack.c.b16 %v817, %v813
    %v1226 = vpack.c.b16 %v818, %v814
    %v1227 = vpack.c.b16 %v823, %v819
    %v1228 = vpack.c.b16 %v824, %v820
    %v1229 = vpack.c.b16 %v825, %v821
    %v1230 = vpack.c.b16 %v826, %v822
    %v1231 = vpack.c.b16 %v831, %v827
    %v1232 = vpack.c.b16 %v832, %v828
    %v1233 = vpack.c.b16 %v833, %v829
    %v1234 = vpack.c.b16 %v834, %v830
    %v1235 = vpack.c.b16 %v839, %v835
    %v1236 = vpack.c.b16 %v840, %v836
    %v1237 = vpack.c.b16 %v841, %v837
    %v1238 = vpack.c.b16 %v842, %v838
    %v1239 = vpack.c.b16 %v847, %v843
    %v1240 = vpack.c.b16 %v848, %v844
    %v1241 = vpack.c.b16 %v849, %v845
    %v1242 = vpack.c.b16 %v850, %v846
    %v1243 = vpack.c.b16 %v855, %v851
    %v1244 = vpack.c.b16 %v856, %v852
    %v1245 = vpack.c.b16 %v857, %v853
    %v1246 = vpack.c.b16 %v858, %v854
    %v1247 = vpack.c.b16 %v863, %v859
    %v1248 = vpack.c.b16 %v864, %v860
    %v1249 = vpack.c.b16 %v865, %v861
    %v1250 = vpack.c.b16 %v866, %v862
    %v1251 = vpack.c.b16 %v871, %v867
    %v1252 = vpack.c.b16 %v872, %v868
    %v1253 = vpack.c.b16 %v873, %v869
    %v1254 = vpack.c.b16 %v874, %v870
    %v1255 = vpack.c.b16 %v879, %v875
    %v1256 = vpack.c.b16 %v880, %v876
    %v1257 = vpack.c.b16 %v881, %v877
    %v1258 = vpack.c.b16 %v882, %v878
    %v1259 = vpack.c.b16 %v887, %v883
    %v1260 = vpack.c.b16 %v888, %v884
    %v1261 = vpack.c.b16 %v889, %v885
    %v1262 = vpack.c.b16 %v890, %v886
    %v1263 = vpack.c.b16 %v895, %v891
    %v1264 = vpack.c.b16 %v896, %v892
    %v1265 = vpack.c.b16 %v897, %v893
    %v1266 = vpack.c.b16 %v898, %v894
    %v1267 = vpack.c.b16 %v903, %v899
    %v1268 = vpack.c.b16 %v904, %v900
    %v1269 = vpack.c.b16 %v905, %v901
    %v1270 = vpack.c.b16 %v906, %v902
    %v1271 = vpack.c.b16 %v911, %v907
    %v1272 = vpack.c.b16 %v912, %v908
    %v1273 = vpack.c.b16 %v913, %v909
    %v1274 = vpack.c.b16 %v914, %v910
    %v1275 = vpack.c.b16 %v919, %v915
    %v1276 = vpack.c.b16 %v920, %v916
    %v1277 = vpack.c.b16 %v921, %v917
    %v1278 = vpack.c.b16 %v922, %v918
    %v1279 = vpack.c.b16 %v927, %v923
    %v1280 = vpack.c.b16 %v928, %v924
    %v1281 = vpack.c.b16 %v929, %v925
    %v1282 = vpack.c.b16 %v930, %v926
    %v1283 = vpack.c.b16 %v935, %v931
    %v1284 = vpack.c.b16 %v936, %v932
    %v1285 = vpack.c.b16 %v937, %v933
    %v1286 = vpack.c.b16 %v938, %v934
    %v1287 = vpack.c.b16 %v943, %v939
    %v1288 = vpack.c.b16 %v944, %v940
    %v1289 = vpack.c.b16 %v945, %v941
    %v1290 = vpack.c.b16 %v946, %v942
    %v1291 = vpack.c.b16 %v951, %v947
    %v1292 = vpack.c.b16 %v952, %v948
    %v1293 = vpack.c.b16 %v953, %v949
    %v1294 = vpack.c.b16 %v954, %v950
    %v1295 = vpack.c.b16 %v959, %v955
    %v1296 = vpack.c.b16 %v960, %v956
    %v1297 = vpack.c.b16 %v961, %v957
    %v1298 = vpack.c.b16 %v962, %v958
    %v1299 = vpack.c.b16 %v967, %v963
    %v1300 = vpack.c.b16 %v968, %v964
    %v1301 = vpack.c.b16 %v969, %v965
    %v1302 = vpack.c.b16 %v970, %v966
    %v1303 = vpack.c.b16 %v975, %v971
    %v1304 = vpack.c.b16 %v976, %v972
    %v1305 = vpack.c.b16 %v977, %v973
    %v1306 = vpack.c.b16 %v978, %v974
    %v1307 = vpack.c.b16 %v983, %v979
    %v1308 = vpack.c.b16 %v984, %v980
    %v1309 = vpack.c.b16 %v985, %v981
    %v1310 = vpack.c.b16 %v986, %v982
    %v1311 = vpack.c.b16 %v991, %v987
    %v1312 = vpack.c.b16 %v992, %v988
    %v1313 = vpack.c.b16 %v993, %v989
    %v1314 = vpack.c.b16 %v994, %v990
    %v1315 = vpack.c.b16 %v999, %v995
    %v1316 = vpack.c.b16 %v1000, %v996
    %v1317 = vpack.c.b16 %v1001, %v997
    %v1318 = vpack.c.b16 %v1002, %v998
    %v1319 = vpack.c.b16 %v1007, %v1003
    %v1320 = vpack.c.b16 %v1008, %v1004
    %v1321 = vpack.c.b16 %v1009, %v1005
    %v1322 = vpack.c.b16 %v1010, %v1006
    %v1323 = vpack.c.b16 %v1015, %v1011
    %v1324 = vpack.c.b16 %v1016, %v1012
    %v1325 = vpack.c.b16 %v1017, %v1013
    %v1326 = vpack.c.b16 %v1018, %v1014
    %v1327 = vpack.c.b16 %v1023, %v1019
    %v1328 = vpack.c.b16 %v1024, %v1020
    %v1329 = vpack.c.b16 %v1025, %v1021
    %v1330 = vpack.c.b16 %v1026, %v1022
    %v1331 = vpack.c.b16 %v1031, %v1027
    %v1332 = vpack.c.b16 %v1032, %v1028
    %v1333 = vpack.c.b16 %v1033, %v1029
    %v1334 = vpack.c.b16 %v1034, %v1030
    %v1335 = vpack.c.b16 %v1039, %v1035
    %v1336 = vpack.c.b16 %v1040, %v1036
    %v1337 = vpack.c.b16 %v1041, %v1037
    %v1338 = vpack.c.b16 %v1042, %v1038
    %v1339 = vpack.c.b16 %v1047, %v1043
    %v1340 = vpack.c.b16 %v1048, %v1044
    %v1341 = vpack.c.b16 %v1049, %v1045
    %v1342 = vpack.c.b16 %v1050, %v1046
    %v1343 = vpack.c.b16 %v1055, %v1051
    %v1344 = vpack.c.b16 %v1056, %v1052
    %v1345 = vpack.c.b16 %v1057, %v1053
    %v1346 = vpack.c.b16 %v1058, %v1054
    %v1347 = vpack.c.b16 %v1063, %v1059
    %v1348 = vpack.c.b16 %v1064, %v1060
    %v1349 = vpack.c.b16 %v1065, %v1061
    %v1350 = vpack.c.b16 %v1066, %v1062
    %v1351 = vpack.c.b16 %v1071, %v1067
    %v1352 = vpack.c.b16 %v1072, %v1068
    %v1353 = vpack.c.b16 %v1073, %v1069
    %v1354 = vpack.c.b16 %v1074, %v1070
    %v1355 = vpack.c.b16 %v1079, %v1075
    %v1356 = vpack.c.b16 %v1080, %v1076
    %v1357 = vpack.c.b16 %v1081, %v1077
    %v1358 = vpack.c.b16 %v1082, %v1078
    %v1359 = vpack.c.b16 %v1087, %v1083
    %v1360 = vpack.c.b16 %v1088, %v1084
    %v1361 = vpack.c.b16 %v1089, %v1085
    %v1362 = vpack.c.b16 %v1090, %v1086
    %v1363 = vpack.c.b16 %v1095, %v1091
    %v1364 = vpack.c.b16 %v1096, %v1092
    %v1365 = vpack.c.b16 %v1097, %v1093
    %v1366 = vpack.c.b16 %v1098, %v1094
    %v1367 = vpack.c.b16 %v1103, %v1099
    %v1368 = vpack.c.b16 %v1104, %v1100
    %v1369 = vpack.c.b16 %v1105, %v1101
    %v1370 = vpack.c.b16 %v1106, %v1102
    %v1371 = vpack.c.b16 %v1111, %v1107
    %v1372 = vpack.c.b16 %v1112, %v1108
    %v1373 = vpack.c.b16 %v1113, %v1109
    %v1374 = vpack.c.b16 %v1114, %v1110
    %v1375 = vpack.c.b16 %v1119, %v1115
    %v1376 = vpack.c.b16 %v1120, %v1116
    %v1377 = vpack.c.b16 %v1121, %v1117
    %v1378 = vpack.c.b16 %v1122, %v1118
    %1635 = vmatpush.bf16.msra.mxu0 %v1151
    %1636 = vmatpush.bf16.msra.mxu0 %v1147
    %1637 = vmatpush.bf16.msra.mxu0 %v1143
    %1638 = vmatpush.bf16.msra.mxu0 %v1139
    %1639 = vmatpush.bf16.msra.mxu0 %v1135
    %1640 = vmatpush.bf16.msra.mxu0 %v1131
    %1641 = vmatpush.bf16.msra.mxu0 %v1127
    %1642 = vmatpush.bf16.msra.mxu0 %v1123
    %1643 = vmatmul.bf16.gmra.mxu0 %v81
    %v1644 = vpop.f32.mrf.mxu0
    %v1645 = vadd.f32 %v347, %v1644
    %v1646 = vpop.f32.mrf.mxu0
    %1647 = vdwg.mxu0
    %1648 = vmatpush.bf16.msra.mxu0 %v1183
    %1649 = vmatpush.bf16.msra.mxu0 %v1179
    %1650 = vmatpush.bf16.msra.mxu0 %v1175
    %1651 = vmatpush.bf16.msra.mxu0 %v1171
    %1652 = vmatpush.bf16.msra.mxu0 %v1167
    %1653 = vmatpush.bf16.msra.mxu0 %v1163
    %1654 = vmatpush.bf16.msra.mxu0 %v1159
    %1655 = vmatpush.bf16.msra.mxu0 %v1155
    %1656 = vmatmul.bf16.gmra.mxu0 %v82
    %v1657 = vpop.f32.mrf.mxu0
    %v1658 = vadd.f32 %v1645, %v1657
    %v1659 = vpop.f32.mrf.mxu0
    %1660 = vdwg.mxu0
    %1661 = vmatpush.bf16.msra.mxu0 %v1215
    %1662 = vmatpush.bf16.msra.mxu0 %v1211
    %1663 = vmatpush.bf16.msra.mxu0 %v1207
    %1664 = vmatpush.bf16.msra.mxu0 %v1203
    %1665 = vmatpush.bf16.msra.mxu0 %v1199
    %1666 = vmatpush.bf16.msra.mxu0 %v1195
    %1667 = vmatpush.bf16.msra.mxu0 %v1191
    %1668 = vmatpush.bf16.msra.mxu0 %v1187
    %1669 = vmatmul.bf16.gmra.mxu0 %v83
    %v1670 = vpop.f32.mrf.mxu0
    %v1671 = vadd.f32 %v1658, %v1670
    %v1672 = vpop.f32.mrf.mxu0
    %1673 = vdwg.mxu0
    %1674 = vmatpush.bf16.msra.mxu0 %v1247
    %1675 = vmatpush.bf16.msra.mxu0 %v1243
    %1676 = vmatpush.bf16.msra.mxu0 %v1239
    %1677 = vmatpush.bf16.msra.mxu0 %v1235
    %1678 = vmatpush.bf16.msra.mxu0 %v1231
    %1679 = vmatpush.bf16.msra.mxu0 %v1227
    %1680 = vmatpush.bf16.msra.mxu0 %v1223
    %1681 = vmatpush.bf16.msra.mxu0 %v1219
    %1682 = vmatmul.bf16.gmra.mxu0 %v84
    %v1683 = vpop.f32.mrf.mxu0
    %v1684 = vadd.f32 %v1671, %v1683
    %v1685 = vpop.f32.mrf.mxu0
    %1686 = vdwg.mxu0
    %1687 = vmatpush.bf16.msra.mxu0 %v1279
    %1688 = vmatpush.bf16.msra.mxu0 %v1275
    %1689 = vmatpush.bf16.msra.mxu0 %v1271
    %1690 = vmatpush.bf16.msra.mxu0 %v1267
    %1691 = vmatpush.bf16.msra.mxu0 %v1263
    %1692 = vmatpush.bf16.msra.mxu0 %v1259
    %1693 = vmatpush.bf16.msra.mxu0 %v1255
    %1694 = vmatpush.bf16.msra.mxu0 %v1251
    %1695 = vmatmul.bf16.gmra.mxu0 %v85
    %v1696 = vpop.f32.mrf.mxu0
    %v1697 = vadd.f32 %v1684, %v1696
    %v1698 = vpop.f32.mrf.mxu0
    %1699 = vdwg.mxu0
    %1700 = vmatpush.bf16.msra.mxu0 %v1311
    %1701 = vmatpush.bf16.msra.mxu0 %v1307
    %1702 = vmatpush.bf16.msra.mxu0 %v1303
    %1703 = vmatpush.bf16.msra.mxu0 %v1299
    %1704 = vmatpush.bf16.msra.mxu0 %v1295
    %1705 = vmatpush.bf16.msra.mxu0 %v1291
    %1706 = vmatpush.bf16.msra.mxu0 %v1287
    %1707 = vmatpush.bf16.msra.mxu0 %v1283
    %1708 = vmatmul.bf16.gmra.mxu0 %v86
    %v1709 = vpop.f32.mrf.mxu0
    %v1710 = vadd.f32 %v1697, %v1709
    %v1711 = vpop.f32.mrf.mxu0
    %1712 = vdwg.mxu0
    %1713 = vmatpush.bf16.msra.mxu0 %v1343
    %1714 = vmatpush.bf16.msra.mxu0 %v1339
    %1715 = vmatpush.bf16.msra.mxu0 %v1335
    %1716 = vmatpush.bf16.msra.mxu0 %v1331
    %1717 = vmatpush.bf16.msra.mxu0 %v1327
    %1718 = vmatpush.bf16.msra.mxu0 %v1323
    %1719 = vmatpush.bf16.msra.mxu0 %v1319
    %1720 = vmatpush.bf16.msra.mxu0 %v1315
    %1721 = vmatmul.bf16.gmra.mxu0 %v87
    %v1722 = vpop.f32.mrf.mxu0
    %v1723 = vadd.f32 %v1710, %v1722
    %v1724 = vpop.f32.mrf.mxu0
    %1725 = vdwg.mxu0
    %1726 = vmatpush.bf16.msra.mxu0 %v1375
    %1727 = vmatpush.bf16.msra.mxu0 %v1371
    %1728 = vmatpush.bf16.msra.mxu0 %v1367
    %1729 = vmatpush.bf16.msra.mxu0 %v1363
    %1730 = vmatpush.bf16.msra.mxu0 %v1359
    %1731 = vmatpush.bf16.msra.mxu0 %v1355
    %1732 = vmatpush.bf16.msra.mxu0 %v1351
    %1733 = vmatpush.bf16.msra.mxu0 %v1347
    %1734 = vmatmul.bf16.gmra.mxu0 %v88
    %v1735 = vpop.f32.mrf.mxu0
    %v1736 = vadd.f32 %v1723, %v1735
    %v1737 = vpop.f32.mrf.mxu0
    %1738 = vdwg.mxu0
    %1739 = vmatpush.bf16.msra.mxu0 %v1152
    %1740 = vmatpush.bf16.msra.mxu0 %v1148
    %1741 = vmatpush.bf16.msra.mxu0 %v1144
    %1742 = vmatpush.bf16.msra.mxu0 %v1140
    %1743 = vmatpush.bf16.msra.mxu0 %v1136
    %1744 = vmatpush.bf16.msra.mxu0 %v1132
    %1745 = vmatpush.bf16.msra.mxu0 %v1128
    %1746 = vmatpush.bf16.msra.mxu0 %v1124
    %1747 = vmatmul.bf16.gmra.mxu0 %v81
    %v1748 = vpop.f32.mrf.mxu0
    %v1749 = vadd.f32 %v348, %v1748
    %v1750 = vpop.f32.mrf.mxu0
    %1751 = vdwg.mxu0
    %1752 = vmatpush.bf16.msra.mxu0 %v1184
    %1753 = vmatpush.bf16.msra.mxu0 %v1180
    %1754 = vmatpush.bf16.msra.mxu0 %v1176
    %1755 = vmatpush.bf16.msra.mxu0 %v1172
    %1756 = vmatpush.bf16.msra.mxu0 %v1168
    %1757 = vmatpush.bf16.msra.mxu0 %v1164
    %1758 = vmatpush.bf16.msra.mxu0 %v1160
    %1759 = vmatpush.bf16.msra.mxu0 %v1156
    %1760 = vmatmul.bf16.gmra.mxu0 %v82
    %v1761 = vpop.f32.mrf.mxu0
    %v1762 = vadd.f32 %v1749, %v1761
    %v1763 = vpop.f32.mrf.mxu0
    %1764 = vdwg.mxu0
    %1765 = vmatpush.bf16.msra.mxu0 %v1216
    %1766 = vmatpush.bf16.msra.mxu0 %v1212
    %1767 = vmatpush.bf16.msra.mxu0 %v1208
    %1768 = vmatpush.bf16.msra.mxu0 %v1204
    %1769 = vmatpush.bf16.msra.mxu0 %v1200
    %1770 = vmatpush.bf16.msra.mxu0 %v1196
    %1771 = vmatpush.bf16.msra.mxu0 %v1192
    %1772 = vmatpush.bf16.msra.mxu0 %v1188
    %1773 = vmatmul.bf16.gmra.mxu0 %v83
    %v1774 = vpop.f32.mrf.mxu0
    %v1775 = vadd.f32 %v1762, %v1774
    %v1776 = vpop.f32.mrf.mxu0
    %1777 = vdwg.mxu0
    %1778 = vmatpush.bf16.msra.mxu0 %v1248
    %1779 = vmatpush.bf16.msra.mxu0 %v1244
    %1780 = vmatpush.bf16.msra.mxu0 %v1240
    %1781 = vmatpush.bf16.msra.mxu0 %v1236
    %1782 = vmatpush.bf16.msra.mxu0 %v1232
    %1783 = vmatpush.bf16.msra.mxu0 %v1228
    %1784 = vmatpush.bf16.msra.mxu0 %v1224
    %1785 = vmatpush.bf16.msra.mxu0 %v1220
    %1786 = vmatmul.bf16.gmra.mxu0 %v84
    %v1787 = vpop.f32.mrf.mxu0
    %v1788 = vadd.f32 %v1775, %v1787
    %v1789 = vpop.f32.mrf.mxu0
    %1790 = vdwg.mxu0
    %1791 = vmatpush.bf16.msra.mxu0 %v1280
    %1792 = vmatpush.bf16.msra.mxu0 %v1276
    %1793 = vmatpush.bf16.msra.mxu0 %v1272
    %1794 = vmatpush.bf16.msra.mxu0 %v1268
    %1795 = vmatpush.bf16.msra.mxu0 %v1264
    %1796 = vmatpush.bf16.msra.mxu0 %v1260
    %1797 = vmatpush.bf16.msra.mxu0 %v1256
    %1798 = vmatpush.bf16.msra.mxu0 %v1252
    %1799 = vmatmul.bf16.gmra.mxu0 %v85
    %v1800 = vpop.f32.mrf.mxu0
    %v1801 = vadd.f32 %v1788, %v1800
    %v1802 = vpop.f32.mrf.mxu0
    %1803 = vdwg.mxu0
    %1804 = vmatpush.bf16.msra.mxu0 %v1312
    %1805 = vmatpush.bf16.msra.mxu0 %v1308
    %1806 = vmatpush.bf16.msra.mxu0 %v1304
    %1807 = vmatpush.bf16.msra.mxu0 %v1300
    %1808 = vmatpush.bf16.msra.mxu0 %v1296
    %1809 = vmatpush.bf16.msra.mxu0 %v1292
    %1810 = vmatpush.bf16.msra.mxu0 %v1288
    %1811 = vmatpush.bf16.msra.mxu0 %v1284
    %1812 = vmatmul.bf16.gmra.mxu0 %v86
    %v1813 = vpop.f32.mrf.mxu0
    %v1814 = vadd.f32 %v1801, %v1813
    %v1815 = vpop.f32.mrf.mxu0
    %1816 = vdwg.mxu0
    %1817 = vmatpush.bf16.msra.mxu0 %v1344
    %1818 = vmatpush.bf16.msra.mxu0 %v1340
    %1819 = vmatpush.bf16.msra.mxu0 %v1336
    %1820 = vmatpush.bf16.msra.mxu0 %v1332
    %1821 = vmatpush.bf16.msra.mxu0 %v1328
    %1822 = vmatpush.bf16.msra.mxu0 %v1324
    %1823 = vmatpush.bf16.msra.mxu0 %v1320
    %1824 = vmatpush.bf16.msra.mxu0 %v1316
    %1825 = vmatmul.bf16.gmra.mxu0 %v87
    %v1826 = vpop.f32.mrf.mxu0
    %v1827 = vadd.f32 %v1814, %v1826
    %v1828 = vpop.f32.mrf.mxu0
    %1829 = vdwg.mxu0
    %1830 = vmatpush.bf16.msra.mxu0 %v1376
    %1831 = vmatpush.bf16.msra.mxu0 %v1372
    %1832 = vmatpush.bf16.msra.mxu0 %v1368
    %1833 = vmatpush.bf16.msra.mxu0 %v1364
    %1834 = vmatpush.bf16.msra.mxu0 %v1360
    %1835 = vmatpush.bf16.msra.mxu0 %v1356
    %1836 = vmatpush.bf16.msra.mxu0 %v1352
    %1837 = vmatpush.bf16.msra.mxu0 %v1348
    %1838 = vmatmul.bf16.gmra.mxu0 %v88
    %v1839 = vpop.f32.mrf.mxu0
    %v1840 = vadd.f32 %v1827, %v1839
    %v1841 = vpop.f32.mrf.mxu0
    %1842 = vdwg.mxu0
    %1843 = vmatpush.bf16.msra.mxu0 %v1153
    %1844 = vmatpush.bf16.msra.mxu0 %v1149
    %1845 = vmatpush.bf16.msra.mxu0 %v1145
    %1846 = vmatpush.bf16.msra.mxu0 %v1141
    %1847 = vmatpush.bf16.msra.mxu0 %v1137
    %1848 = vmatpush.bf16.msra.mxu0 %v1133
    %1849 = vmatpush.bf16.msra.mxu0 %v1129
    %1850 = vmatpush.bf16.msra.mxu0 %v1125
    %1851 = vmatmul.bf16.gmra.mxu0 %v81
    %v1852 = vpop.f32.mrf.mxu0
    %v1853 = vadd.f32 %v349, %v1852
    %v1854 = vpop.f32.mrf.mxu0
    %1855 = vdwg.mxu0
    %1856 = vmatpush.bf16.msra.mxu0 %v1185
    %1857 = vmatpush.bf16.msra.mxu0 %v1181
    %1858 = vmatpush.bf16.msra.mxu0 %v1177
    %1859 = vmatpush.bf16.msra.mxu0 %v1173
    %1860 = vmatpush.bf16.msra.mxu0 %v1169
    %1861 = vmatpush.bf16.msra.mxu0 %v1165
    %1862 = vmatpush.bf16.msra.mxu0 %v1161
    %1863 = vmatpush.bf16.msra.mxu0 %v1157
    %1864 = vmatmul.bf16.gmra.mxu0 %v82
    %v1865 = vpop.f32.mrf.mxu0
    %v1866 = vadd.f32 %v1853, %v1865
    %v1867 = vpop.f32.mrf.mxu0
    %1868 = vdwg.mxu0
    %1869 = vmatpush.bf16.msra.mxu0 %v1217
    %1870 = vmatpush.bf16.msra.mxu0 %v1213
    %1871 = vmatpush.bf16.msra.mxu0 %v1209
    %1872 = vmatpush.bf16.msra.mxu0 %v1205
    %1873 = vmatpush.bf16.msra.mxu0 %v1201
    %1874 = vmatpush.bf16.msra.mxu0 %v1197
    %1875 = vmatpush.bf16.msra.mxu0 %v1193
    %1876 = vmatpush.bf16.msra.mxu0 %v1189
    %1877 = vmatmul.bf16.gmra.mxu0 %v83
    %v1878 = vpop.f32.mrf.mxu0
    %v1879 = vadd.f32 %v1866, %v1878
    %v1880 = vpop.f32.mrf.mxu0
    %1881 = vdwg.mxu0
    %1882 = vmatpush.bf16.msra.mxu0 %v1249
    %1883 = vmatpush.bf16.msra.mxu0 %v1245
    %1884 = vmatpush.bf16.msra.mxu0 %v1241
    %1885 = vmatpush.bf16.msra.mxu0 %v1237
    %1886 = vmatpush.bf16.msra.mxu0 %v1233
    %1887 = vmatpush.bf16.msra.mxu0 %v1229
    %1888 = vmatpush.bf16.msra.mxu0 %v1225
    %1889 = vmatpush.bf16.msra.mxu0 %v1221
    %1890 = vmatmul.bf16.gmra.mxu0 %v84
    %v1891 = vpop.f32.mrf.mxu0
    %v1892 = vadd.f32 %v1879, %v1891
    %v1893 = vpop.f32.mrf.mxu0
    %1894 = vdwg.mxu0
    %1895 = vmatpush.bf16.msra.mxu0 %v1281
    %1896 = vmatpush.bf16.msra.mxu0 %v1277
    %1897 = vmatpush.bf16.msra.mxu0 %v1273
    %1898 = vmatpush.bf16.msra.mxu0 %v1269
    %1899 = vmatpush.bf16.msra.mxu0 %v1265
    %1900 = vmatpush.bf16.msra.mxu0 %v1261
    %1901 = vmatpush.bf16.msra.mxu0 %v1257
    %1902 = vmatpush.bf16.msra.mxu0 %v1253
    %1903 = vmatmul.bf16.gmra.mxu0 %v85
    %v1904 = vpop.f32.mrf.mxu0
    %v1905 = vadd.f32 %v1892, %v1904
    %v1906 = vpop.f32.mrf.mxu0
    %1907 = vdwg.mxu0
    %1908 = vmatpush.bf16.msra.mxu0 %v1313
    %1909 = vmatpush.bf16.msra.mxu0 %v1309
    %1910 = vmatpush.bf16.msra.mxu0 %v1305
    %1911 = vmatpush.bf16.msra.mxu0 %v1301
    %1912 = vmatpush.bf16.msra.mxu0 %v1297
    %1913 = vmatpush.bf16.msra.mxu0 %v1293
    %1914 = vmatpush.bf16.msra.mxu0 %v1289
    %1915 = vmatpush.bf16.msra.mxu0 %v1285
    %1916 = vmatmul.bf16.gmra.mxu0 %v86
    %v1917 = vpop.f32.mrf.mxu0
    %v1918 = vadd.f32 %v1905, %v1917
    %v1919 = vpop.f32.mrf.mxu0
    %1920 = vdwg.mxu0
    %1921 = vmatpush.bf16.msra.mxu0 %v1345
    %1922 = vmatpush.bf16.msra.mxu0 %v1341
    %1923 = vmatpush.bf16.msra.mxu0 %v1337
    %1924 = vmatpush.bf16.msra.mxu0 %v1333
    %1925 = vmatpush.bf16.msra.mxu0 %v1329
    %1926 = vmatpush.bf16.msra.mxu0 %v1325
    %1927 = vmatpush.bf16.msra.mxu0 %v1321
    %1928 = vmatpush.bf16.msra.mxu0 %v1317
    %1929 = vmatmul.bf16.gmra.mxu0 %v87
    %v1930 = vpop.f32.mrf.mxu0
    %v1931 = vadd.f32 %v1918, %v1930
    %v1932 = vpop.f32.mrf.mxu0
    %1933 = vdwg.mxu0
    %1934 = vmatpush.bf16.msra.mxu0 %v1377
    %1935 = vmatpush.bf16.msra.mxu0 %v1373
    %1936 = vmatpush.bf16.msra.mxu0 %v1369
    %1937 = vmatpush.bf16.msra.mxu0 %v1365
    %1938 = vmatpush.bf16.msra.mxu0 %v1361
    %1939 = vmatpush.bf16.msra.mxu0 %v1357
    %1940 = vmatpush.bf16.msra.mxu0 %v1353
    %1941 = vmatpush.bf16.msra.mxu0 %v1349
    %1942 = vmatmul.bf16.gmra.mxu0 %v88
    %v1943 = vpop.f32.mrf.mxu0
    %v1944 = vadd.f32 %v1931, %v1943
    %v1945 = vpop.f32.mrf.mxu0
    %1946 = vdwg.mxu0
    %1947 = vmatpush.bf16.msra.mxu0 %v1154
    %1948 = vmatpush.bf16.msra.mxu0 %v1150
    %1949 = vmatpush.bf16.msra.mxu0 %v1146
    %1950 = vmatpush.bf16.msra.mxu0 %v1142
    %1951 = vmatpush.bf16.msra.mxu0 %v1138
    %1952 = vmatpush.bf16.msra.mxu0 %v1134
    %1953 = vmatpush.bf16.msra.mxu0 %v1130
    %1954 = vmatpush.bf16.msra.mxu0 %v1126
    %1955 = vmatmul.bf16.gmra.mxu0 %v81
    %v1956 = vpop.f32.mrf.mxu0
    %v1957 = vadd.f32 %v350, %v1956
    %v1958 = vpop.f32.mrf.mxu0
    %1959 = vdwg.mxu0
    %1960 = vmatpush.bf16.msra.mxu0 %v1186
    %1961 = vmatpush.bf16.msra.mxu0 %v1182
    %1962 = vmatpush.bf16.msra.mxu0 %v1178
    %1963 = vmatpush.bf16.msra.mxu0 %v1174
    %1964 = vmatpush.bf16.msra.mxu0 %v1170
    %1965 = vmatpush.bf16.msra.mxu0 %v1166
    %1966 = vmatpush.bf16.msra.mxu0 %v1162
    %1967 = vmatpush.bf16.msra.mxu0 %v1158
    %1968 = vmatmul.bf16.gmra.mxu0 %v82
    %v1969 = vpop.f32.mrf.mxu0
    %v1970 = vadd.f32 %v1957, %v1969
    %v1971 = vpop.f32.mrf.mxu0
    %1972 = vdwg.mxu0
    %1973 = vmatpush.bf16.msra.mxu0 %v1218
    %1974 = vmatpush.bf16.msra.mxu0 %v1214
    %1975 = vmatpush.bf16.msra.mxu0 %v1210
    %1976 = vmatpush.bf16.msra.mxu0 %v1206
    %1977 = vmatpush.bf16.msra.mxu0 %v1202
    %1978 = vmatpush.bf16.msra.mxu0 %v1198
    %1979 = vmatpush.bf16.msra.mxu0 %v1194
    %1980 = vmatpush.bf16.msra.mxu0 %v1190
    %1981 = vmatmul.bf16.gmra.mxu0 %v83
    %v1982 = vpop.f32.mrf.mxu0
    %v1983 = vadd.f32 %v1970, %v1982
    %v1984 = vpop.f32.mrf.mxu0
    %1985 = vdwg.mxu0
    %1986 = vmatpush.bf16.msra.mxu0 %v1250
    %1987 = vmatpush.bf16.msra.mxu0 %v1246
    %1988 = vmatpush.bf16.msra.mxu0 %v1242
    %1989 = vmatpush.bf16.msra.mxu0 %v1238
    %1990 = vmatpush.bf16.msra.mxu0 %v1234
    %1991 = vmatpush.bf16.msra.mxu0 %v1230
    %1992 = vmatpush.bf16.msra.mxu0 %v1226
    %1993 = vmatpush.bf16.msra.mxu0 %v1222
    %1994 = vmatmul.bf16.gmra.mxu0 %v84
    %v1995 = vpop.f32.mrf.mxu0
    %v1996 = vadd.f32 %v1983, %v1995
    %v1997 = vpop.f32.mrf.mxu0
    %1998 = vdwg.mxu0
    %1999 = vmatpush.bf16.msra.mxu0 %v1282
    %2000 = vmatpush.bf16.msra.mxu0 %v1278
    %2001 = vmatpush.bf16.msra.mxu0 %v1274
    %2002 = vmatpush.bf16.msra.mxu0 %v1270
    %2003 = vmatpush.bf16.msra.mxu0 %v1266
    %2004 = vmatpush.bf16.msra.mxu0 %v1262
    %2005 = vmatpush.bf16.msra.mxu0 %v1258
    %2006 = vmatpush.bf16.msra.mxu0 %v1254
    %2007 = vmatmul.bf16.gmra.mxu0 %v85
    %v2008 = vpop.f32.mrf.mxu0
    %v2009 = vadd.f32 %v1996, %v2008
    %v2010 = vpop.f32.mrf.mxu0
    %2011 = vdwg.mxu0
    %2012 = vmatpush.bf16.msra.mxu0 %v1314
    %2013 = vmatpush.bf16.msra.mxu0 %v1310
    %2014 = vmatpush.bf16.msra.mxu0 %v1306
    %2015 = vmatpush.bf16.msra.mxu0 %v1302
    %2016 = vmatpush.bf16.msra.mxu0 %v1298
    %2017 = vmatpush.bf16.msra.mxu0 %v1294
    %2018 = vmatpush.bf16.msra.mxu0 %v1290
    %2019 = vmatpush.bf16.msra.mxu0 %v1286
    %2020 = vmatmul.bf16.gmra.mxu0 %v86
    %v2021 = vpop.f32.mrf.mxu0
    %v2022 = vadd.f32 %v2009, %v2021
    %v2023 = vpop.f32.mrf.mxu0
    %2024 = vdwg.mxu0
    %2025 = vmatpush.bf16.msra.mxu0 %v1346
    %2026 = vmatpush.bf16.msra.mxu0 %v1342
    %2027 = vmatpush.bf16.msra.mxu0 %v1338
    %2028 = vmatpush.bf16.msra.mxu0 %v1334
    %2029 = vmatpush.bf16.msra.mxu0 %v1330
    %2030 = vmatpush.bf16.msra.mxu0 %v1326
    %2031 = vmatpush.bf16.msra.mxu0 %v1322
    %2032 = vmatpush.bf16.msra.mxu0 %v1318
    %2033 = vmatmul.bf16.gmra.mxu0 %v87
    %v2034 = vpop.f32.mrf.mxu0
    %v2035 = vadd.f32 %v2022, %v2034
    %v2036 = vpop.f32.mrf.mxu0
    %2037 = vdwg.mxu0
    %2038 = vmatpush.bf16.msra.mxu0 %v1378
    %2039 = vmatpush.bf16.msra.mxu0 %v1374
    %2040 = vmatpush.bf16.msra.mxu0 %v1370
    %2041 = vmatpush.bf16.msra.mxu0 %v1366
    %2042 = vmatpush.bf16.msra.mxu0 %v1362
    %2043 = vmatpush.bf16.msra.mxu0 %v1358
    %2044 = vmatpush.bf16.msra.mxu0 %v1354
    %2045 = vmatpush.bf16.msra.mxu0 %v1350
    %2046 = vmatmul.bf16.gmra.mxu0 %v88
    %v2047 = vpop.f32.mrf.mxu0
    %v2048 = vadd.f32 %v2035, %v2047
    %v2049 = vpop.f32.mrf.mxu0
    %2050 = vdwg.mxu0
    %v2051 = vmax.f32 %v1736, 0.0
    %v2052 = vmax.f32 %v1840, 0.0
    %v2053 = vmax.f32 %v1944, 0.0
    %v2054 = vmax.f32 %v2048, 0.0
    %v2055 = vpack.c.bf16 %v2051, %v2051
    %v2056 = vpack.c.bf16 %v2052, %v2052
    %v2057 = vpack.c.bf16 %v2053, %v2053
    %v2058 = vpack.c.bf16 %v2054, %v2054
    %v2059 = vld [vmem:[#allocation4] sm:$0xff]
    %v2060 = vld [vmem:[#allocation4 + $0x8] sm:$0xff]
    %v2061 = vld [vmem:[#allocation4 + $0x10] sm:$0xff]
    %v2062 = vld [vmem:[#allocation4 + $0x18] sm:$0xff]
    %v2063 = vld [vmem:[#allocation4 + $0x20] sm:$0xff]
    %v2064 = vld [vmem:[#allocation4 + $0x28] sm:$0xff]
    %v2065 = vld [vmem:[#allocation4 + $0x30] sm:$0xff]
    %v2066 = vld [vmem:[#allocation4 + $0x38] sm:$0xff]
    %v2067 = vld [vmem:[#allocation4 + $0x40] sm:$0xff]
    %v2068 = vld [vmem:[#allocation4 + $0x48] sm:$0xff]
    %v2069 = vld [vmem:[#allocation4 + $0x50] sm:$0xff]
    %v2070 = vld [vmem:[#allocation4 + $0x58] sm:$0xff]
    %v2071 = vld [vmem:[#allocation4 + $0x60] sm:$0xff]
    %v2072 = vld [vmem:[#allocation4 + $0x68] sm:$0xff]
    %v2073 = vld [vmem:[#allocation4 + $0x70] sm:$0xff]
    %v2074 = vld [vmem:[#allocation4 + $0x78] sm:$0xff]
    %v2075 = vld [vmem:[#allocation4 + $0x80] sm:$0xff]
    %v2076 = vld [vmem:[#allocation4 + $0x88] sm:$0xff]
    %v2077 = vld [vmem:[#allocation4 + $0x90] sm:$0xff]
    %v2078 = vld [vmem:[#allocation4 + $0x98] sm:$0xff]
    %v2079 = vld [vmem:[#allocation4 + $0xa0] sm:$0xff]
    %v2080 = vld [vmem:[#allocation4 + $0xa8] sm:$0xff]
    %v2081 = vld [vmem:[#allocation4 + $0xb0] sm:$0xff]
    %v2082 = vld [vmem:[#allocation4 + $0xb8] sm:$0xff]
    %v2083 = vld [vmem:[#allocation4 + $0xc0] sm:$0xff]
    %v2084 = vld [vmem:[#allocation4 + $0xc8] sm:$0xff]
    %v2085 = vld [vmem:[#allocation4 + $0xd0] sm:$0xff]
    %v2086 = vld [vmem:[#allocation4 + $0xd8] sm:$0xff]
    %v2087 = vld [vmem:[#allocation4 + $0xe0] sm:$0xff]
    %v2088 = vld [vmem:[#allocation4 + $0xe8] sm:$0xff]
    %v2089 = vld [vmem:[#allocation4 + $0xf0] sm:$0xff]
    %v2090 = vld [vmem:[#allocation4 + $0xf8] sm:$0xff]
    %v2091 = vld [vmem:[#allocation4 + $0x100] sm:$0xff]
    %v2092 = vld [vmem:[#allocation4 + $0x108] sm:$0xff]
    %v2093 = vld [vmem:[#allocation4 + $0x110] sm:$0xff]
    %v2094 = vld [vmem:[#allocation4 + $0x118] sm:$0xff]
    %v2095 = vld [vmem:[#allocation4 + $0x120] sm:$0xff]
    %v2096 = vld [vmem:[#allocation4 + $0x128] sm:$0xff]
    %v2097 = vld [vmem:[#allocation4 + $0x130] sm:$0xff]
    %v2098 = vld [vmem:[#allocation4 + $0x138] sm:$0xff]
    %v2099 = vld [vmem:[#allocation4 + $0x140] sm:$0xff]
    %v2100 = vld [vmem:[#allocation4 + $0x148] sm:$0xff]
    %v2101 = vld [vmem:[#allocation4 + $0x150] sm:$0xff]
    %v2102 = vld [vmem:[#allocation4 + $0x158] sm:$0xff]
    %v2103 = vld [vmem:[#allocation4 + $0x160] sm:$0xff]
    %v2104 = vld [vmem:[#allocation4 + $0x168] sm:$0xff]
    %v2105 = vld [vmem:[#allocation4 + $0x170] sm:$0xff]
    %v2106 = vld [vmem:[#allocation4 + $0x178] sm:$0xff]
    %v2107 = vld [vmem:[#allocation4 + $0x180] sm:$0xff]
    %v2108 = vld [vmem:[#allocation4 + $0x188] sm:$0xff]
    %v2109 = vld [vmem:[#allocation4 + $0x190] sm:$0xff]
    %v2110 = vld [vmem:[#allocation4 + $0x198] sm:$0xff]
    %v2111 = vld [vmem:[#allocation4 + $0x1a0] sm:$0xff]
    %v2112 = vld [vmem:[#allocation4 + $0x1a8] sm:$0xff]
    %v2113 = vld [vmem:[#allocation4 + $0x1b0] sm:$0xff]
    %v2114 = vld [vmem:[#allocation4 + $0x1b8] sm:$0xff]
    %v2115 = vld [vmem:[#allocation4 + $0x1c0] sm:$0xff]
    %v2116 = vld [vmem:[#allocation4 + $0x1c8] sm:$0xff]
    %v2117 = vld [vmem:[#allocation4 + $0x1d0] sm:$0xff]
    %v2118 = vld [vmem:[#allocation4 + $0x1d8] sm:$0xff]
    %v2119 = vld [vmem:[#allocation4 + $0x1e0] sm:$0xff]
    %v2120 = vld [vmem:[#allocation4 + $0x1e8] sm:$0xff]
    %v2121 = vld [vmem:[#allocation4 + $0x1f0] sm:$0xff]
    %v2122 = vld [vmem:[#allocation4 + $0x1f8] sm:$0xff]
    %v2123 = vld [vmem:[%s4] sm:$0x3]
    %v2125 = vperm.slane %v2123, 0
    %v2126 = vperm.slane %v2123, 1
    %v2193 = vunpack.c.l.b16 %v2059
    %v2194 = vunpack.c.h.b16 %v2059
    %v2195 = vunpack.c.l.b16 %v2060
    %v2196 = vunpack.c.h.b16 %v2060
    %v2197 = vunpack.c.l.b16 %v2061
    %v2198 = vunpack.c.h.b16 %v2061
    %v2199 = vunpack.c.l.b16 %v2062
    %v2200 = vunpack.c.h.b16 %v2062
    %v2201 = vunpack.c.l.b16 %v2063
    %v2202 = vunpack.c.h.b16 %v2063
    %v2203 = vunpack.c.l.b16 %v2064
    %v2204 = vunpack.c.h.b16 %v2064
    %v2205 = vunpack.c.l.b16 %v2065
    %v2206 = vunpack.c.h.b16 %v2065
    %v2207 = vunpack.c.l.b16 %v2066
    %v2208 = vunpack.c.h.b16 %v2066
    %v2209 = vunpack.c.l.b16 %v2067
    %v2210 = vunpack.c.h.b16 %v2067
    %v2211 = vunpack.c.l.b16 %v2068
    %v2212 = vunpack.c.h.b16 %v2068
    %v2213 = vunpack.c.l.b16 %v2069
    %v2214 = vunpack.c.h.b16 %v2069
    %v2215 = vunpack.c.l.b16 %v2070
    %v2216 = vunpack.c.h.b16 %v2070
    %v2217 = vunpack.c.l.b16 %v2071
    %v2218 = vunpack.c.h.b16 %v2071
    %v2219 = vunpack.c.l.b16 %v2072
    %v2220 = vunpack.c.h.b16 %v2072
    %v2221 = vunpack.c.l.b16 %v2073
    %v2222 = vunpack.c.h.b16 %v2073
    %v2223 = vunpack.c.l.b16 %v2074
    %v2224 = vunpack.c.h.b16 %v2074
    %v2225 = vunpack.c.l.b16 %v2075
    %v2226 = vunpack.c.h.b16 %v2075
    %v2227 = vunpack.c.l.b16 %v2076
    %v2228 = vunpack.c.h.b16 %v2076
    %v2229 = vunpack.c.l.b16 %v2077
    %v2230 = vunpack.c.h.b16 %v2077
    %v2231 = vunpack.c.l.b16 %v2078
    %v2232 = vunpack.c.h.b16 %v2078
    %v2233 = vunpack.c.l.b16 %v2079
    %v2234 = vunpack.c.h.b16 %v2079
    %v2235 = vunpack.c.l.b16 %v2080
    %v2236 = vunpack.c.h.b16 %v2080
    %v2237 = vunpack.c.l.b16 %v2081
    %v2238 = vunpack.c.h.b16 %v2081
    %v2239 = vunpack.c.l.b16 %v2082
    %v2240 = vunpack.c.h.b16 %v2082
    %v2241 = vunpack.c.l.b16 %v2083
    %v2242 = vunpack.c.h.b16 %v2083
    %v2243 = vunpack.c.l.b16 %v2084
    %v2244 = vunpack.c.h.b16 %v2084
    %v2245 = vunpack.c.l.b16 %v2085
    %v2246 = vunpack.c.h.b16 %v2085
    %v2247 = vunpack.c.l.b16 %v2086
    %v2248 = vunpack.c.h.b16 %v2086
    %v2249 = vunpack.c.l.b16 %v2087
    %v2250 = vunpack.c.h.b16 %v2087
    %v2251 = vunpack.c.l.b16 %v2088
    %v2252 = vunpack.c.h.b16 %v2088
    %v2253 = vunpack.c.l.b16 %v2089
    %v2254 = vunpack.c.h.b16 %v2089
    %v2255 = vunpack.c.l.b16 %v2090
    %v2256 = vunpack.c.h.b16 %v2090
    %v2257 = vunpack.c.l.b16 %v2091
    %v2258 = vunpack.c.h.b16 %v2091
    %v2259 = vunpack.c.l.b16 %v2092
    %v2260 = vunpack.c.h.b16 %v2092
    %v2261 = vunpack.c.l.b16 %v2093
    %v2262 = vunpack.c.h.b16 %v2093
    %v2263 = vunpack.c.l.b16 %v2094
    %v2264 = vunpack.c.h.b16 %v2094
    %v2265 = vunpack.c.l.b16 %v2095
    %v2266 = vunpack.c.h.b16 %v2095
    %v2267 = vunpack.c.l.b16 %v2096
    %v2268 = vunpack.c.h.b16 %v2096
    %v2269 = vunpack.c.l.b16 %v2097
    %v2270 = vunpack.c.h.b16 %v2097
    %v2271 = vunpack.c.l.b16 %v2098
    %v2272 = vunpack.c.h.b16 %v2098
    %v2273 = vunpack.c.l.b16 %v2099
    %v2274 = vunpack.c.h.b16 %v2099
    %v2275 = vunpack.c.l.b16 %v2100
    %v2276 = vunpack.c.h.b16 %v2100
    %v2277 = vunpack.c.l.b16 %v2101
    %v2278 = vunpack.c.h.b16 %v2101
    %v2279 = vunpack.c.l.b16 %v2102
    %v2280 = vunpack.c.h.b16 %v2102
    %v2281 = vunpack.c.l.b16 %v2103
    %v2282 = vunpack.c.h.b16 %v2103
    %v2283 = vunpack.c.l.b16 %v2104
    %v2284 = vunpack.c.h.b16 %v2104
    %v2285 = vunpack.c.l.b16 %v2105
    %v2286 = vunpack.c.h.b16 %v2105
    %v2287 = vunpack.c.l.b16 %v2106
    %v2288 = vunpack.c.h.b16 %v2106
    %v2289 = vunpack.c.l.b16 %v2107
    %v2290 = vunpack.c.h.b16 %v2107
    %v2291 = vunpack.c.l.b16 %v2108
    %v2292 = vunpack.c.h.b16 %v2108
    %v2293 = vunpack.c.l.b16 %v2109
    %v2294 = vunpack.c.h.b16 %v2109
    %v2295 = vunpack.c.l.b16 %v2110
    %v2296 = vunpack.c.h.b16 %v2110
    %v2297 = vunpack.c.l.b16 %v2111
    %v2298 = vunpack.c.h.b16 %v2111
    %v2299 = vunpack.c.l.b16 %v2112
    %v2300 = vunpack.c.h.b16 %v2112
    %v2301 = vunpack.c.l.b16 %v2113
    %v2302 = vunpack.c.h.b16 %v2113
    %v2303 = vunpack.c.l.b16 %v2114
    %v2304 = vunpack.c.h.b16 %v2114
    %v2305 = vunpack.c.l.b16 %v2115
    %v2306 = vunpack.c.h.b16 %v2115
    %v2307 = vunpack.c.l.b16 %v2116
    %v2308 = vunpack.c.h.b16 %v2116
    %v2309 = vunpack.c.l.b16 %v2117
    %v2310 = vunpack.c.h.b16 %v2117
    %v2311 = vunpack.c.l.b16 %v2118
    %v2312 = vunpack.c.h.b16 %v2118
    %v2313 = vunpack.c.l.b16 %v2119
    %v2314 = vunpack.c.h.b16 %v2119
    %v2315 = vunpack.c.l.b16 %v2120
    %v2316 = vunpack.c.h.b16 %v2120
    %v2317 = vunpack.c.l.b16 %v2121
    %v2318 = vunpack.c.h.b16 %v2121
    %v2319 = vunpack.c.l.b16 %v2122
    %v2320 = vunpack.c.h.b16 %v2122
    %v2321 = vpack.c.b16 %v2195, %v2193
    %v2322 = vpack.c.b16 %v2196, %v2194
    %v2323 = vpack.c.b16 %v2199, %v2197
    %v2324 = vpack.c.b16 %v2200, %v2198
    %v2325 = vpack.c.b16 %v2203, %v2201
    %v2326 = vpack.c.b16 %v2204, %v2202
    %v2327 = vpack.c.b16 %v2207, %v2205
    %v2328 = vpack.c.b16 %v2208, %v2206
    %v2329 = vpack.c.b16 %v2211, %v2209
    %v2330 = vpack.c.b16 %v2212, %v2210
    %v2331 = vpack.c.b16 %v2215, %v2213
    %v2332 = vpack.c.b16 %v2216, %v2214
    %v2333 = vpack.c.b16 %v2219, %v2217
    %v2334 = vpack.c.b16 %v2220, %v2218
    %v2335 = vpack.c.b16 %v2223, %v2221
    %v2336 = vpack.c.b16 %v2224, %v2222
    %v2337 = vpack.c.b16 %v2227, %v2225
    %v2338 = vpack.c.b16 %v2228, %v2226
    %v2339 = vpack.c.b16 %v2231, %v2229
    %v2340 = vpack.c.b16 %v2232, %v2230
    %v2341 = vpack.c.b16 %v2235, %v2233
    %v2342 = vpack.c.b16 %v2236, %v2234
    %v2343 = vpack.c.b16 %v2239, %v2237
    %v2344 = vpack.c.b16 %v2240, %v2238
    %v2345 = vpack.c.b16 %v2243, %v2241
    %v2346 = vpack.c.b16 %v2244, %v2242
    %v2347 = vpack.c.b16 %v2247, %v2245
    %v2348 = vpack.c.b16 %v2248, %v2246
    %v2349 = vpack.c.b16 %v2251, %v2249
    %v2350 = vpack.c.b16 %v2252, %v2250
    %v2351 = vpack.c.b16 %v2255, %v2253
    %v2352 = vpack.c.b16 %v2256, %v2254
    %v2353 = vpack.c.b16 %v2259, %v2257
    %v2354 = vpack.c.b16 %v2260, %v2258
    %v2355 = vpack.c.b16 %v2263, %v2261
    %v2356 = vpack.c.b16 %v2264, %v2262
    %v2357 = vpack.c.b16 %v2267, %v2265
    %v2358 = vpack.c.b16 %v2268, %v2266
    %v2359 = vpack.c.b16 %v2271, %v2269
    %v2360 = vpack.c.b16 %v2272, %v2270
    %v2361 = vpack.c.b16 %v2275, %v2273
    %v2362 = vpack.c.b16 %v2276, %v2274
    %v2363 = vpack.c.b16 %v2279, %v2277
    %v2364 = vpack.c.b16 %v2280, %v2278
    %v2365 = vpack.c.b16 %v2283, %v2281
    %v2366 = vpack.c.b16 %v2284, %v2282
    %v2367 = vpack.c.b16 %v2287, %v2285
    %v2368 = vpack.c.b16 %v2288, %v2286
    %v2369 = vpack.c.b16 %v2291, %v2289
    %v2370 = vpack.c.b16 %v2292, %v2290
    %v2371 = vpack.c.b16 %v2295, %v2293
    %v2372 = vpack.c.b16 %v2296, %v2294
    %v2373 = vpack.c.b16 %v2299, %v2297
    %v2374 = vpack.c.b16 %v2300, %v2298
    %v2375 = vpack.c.b16 %v2303, %v2301
    %v2376 = vpack.c.b16 %v2304, %v2302
    %v2377 = vpack.c.b16 %v2307, %v2305
    %v2378 = vpack.c.b16 %v2308, %v2306
    %v2379 = vpack.c.b16 %v2311, %v2309
    %v2380 = vpack.c.b16 %v2312, %v2310
    %v2381 = vpack.c.b16 %v2315, %v2313
    %v2382 = vpack.c.b16 %v2316, %v2314
    %v2383 = vpack.c.b16 %v2319, %v2317
    %v2384 = vpack.c.b16 %v2320, %v2318
    %2449 = vmatpush.bf16.msra.mxu0 %v2335
    %2450 = vmatpush.bf16.msra.mxu0 %v2333
    %2451 = vmatpush.bf16.msra.mxu0 %v2331
    %2452 = vmatpush.bf16.msra.mxu0 %v2329
    %2453 = vmatpush.bf16.msra.mxu0 %v2327
    %2454 = vmatpush.bf16.msra.mxu0 %v2325
    %2455 = vmatpush.bf16.msra.mxu0 %v2323
    %2456 = vmatpush.bf16.msra.mxu0 %v2321
    %2457 = vmatmul.bf16.gmra.mxu0 %v2055
    %v2458 = vpop.f32.mrf.mxu0
    %v2459 = vadd.f32 %v2125, %v2458
    %v2460 = vpop.f32.mrf.mxu0
    %2461 = vdwg.mxu0
    %2462 = vmatpush.bf16.msra.mxu0 %v2351
    %2463 = vmatpush.bf16.msra.mxu0 %v2349
    %2464 = vmatpush.bf16.msra.mxu0 %v2347
    %2465 = vmatpush.bf16.msra.mxu0 %v2345
    %2466 = vmatpush.bf16.msra.mxu0 %v2343
    %2467 = vmatpush.bf16.msra.mxu0 %v2341
    %2468 = vmatpush.bf16.msra.mxu0 %v2339
    %2469 = vmatpush.bf16.msra.mxu0 %v2337
    %2470 = vmatmul.bf16.gmra.mxu0 %v2056
    %v2471 = vpop.f32.mrf.mxu0
    %v2472 = vadd.f32 %v2459, %v2471
    %v2473 = vpop.f32.mrf.mxu0
    %2474 = vdwg.mxu0
    %2475 = vmatpush.bf16.msra.mxu0 %v2367
    %2476 = vmatpush.bf16.msra.mxu0 %v2365
    %2477 = vmatpush.bf16.msra.mxu0 %v2363
    %2478 = vmatpush.bf16.msra.mxu0 %v2361
    %2479 = vmatpush.bf16.msra.mxu0 %v2359
    %2480 = vmatpush.bf16.msra.mxu0 %v2357
    %2481 = vmatpush.bf16.msra.mxu0 %v2355
    %2482 = vmatpush.bf16.msra.mxu0 %v2353
    %2483 = vmatmul.bf16.gmra.mxu0 %v2057
    %v2484 = vpop.f32.mrf.mxu0
    %v2485 = vadd.f32 %v2472, %v2484
    %v2486 = vpop.f32.mrf.mxu0
    %2487 = vdwg.mxu0
    %2488 = vmatpush.bf16.msra.mxu0 %v2383
    %2489 = vmatpush.bf16.msra.mxu0 %v2381
    %2490 = vmatpush.bf16.msra.mxu0 %v2379
    %2491 = vmatpush.bf16.msra.mxu0 %v2377
    %2492 = vmatpush.bf16.msra.mxu0 %v2375
    %2493 = vmatpush.bf16.msra.mxu0 %v2373
    %2494 = vmatpush.bf16.msra.mxu0 %v2371
    %2495 = vmatpush.bf16.msra.mxu0 %v2369
    %2496 = vmatmul.bf16.gmra.mxu0 %v2058
    %v2497 = vpop.f32.mrf.mxu0
    %v2498 = vadd.f32 %v2485, %v2497
    %v2499 = vpop.f32.mrf.mxu0
    %2500 = vdwg.mxu0
    %2501 = vmatpush.bf16.msra.mxu0 %v2336
    %2502 = vmatpush.bf16.msra.mxu0 %v2334
    %2503 = vmatpush.bf16.msra.mxu0 %v2332
    %2504 = vmatpush.bf16.msra.mxu0 %v2330
    %2505 = vmatpush.bf16.msra.mxu0 %v2328
    %2506 = vmatpush.bf16.msra.mxu0 %v2326
    %2507 = vmatpush.bf16.msra.mxu0 %v2324
    %2508 = vmatpush.bf16.msra.mxu0 %v2322
    %2509 = vmatmul.bf16.gmra.mxu0 %v2055
    %v2510 = vpop.f32.mrf.mxu0
    %v2511 = vadd.f32 %v2126, %v2510
    %v2512 = vpop.f32.mrf.mxu0
    %2513 = vdwg.mxu0
    %2514 = vmatpush.bf16.msra.mxu0 %v2352
    %2515 = vmatpush.bf16.msra.mxu0 %v2350
    %2516 = vmatpush.bf16.msra.mxu0 %v2348
    %2517 = vmatpush.bf16.msra.mxu0 %v2346
    %2518 = vmatpush.bf16.msra.mxu0 %v2344
    %2519 = vmatpush.bf16.msra.mxu0 %v2342
    %2520 = vmatpush.bf16.msra.mxu0 %v2340
    %2521 = vmatpush.bf16.msra.mxu0 %v2338
    %2522 = vmatmul.bf16.gmra.mxu0 %v2056
    %v2523 = vpop.f32.mrf.mxu0
    %v2524 = vadd.f32 %v2511, %v2523
    %v2525 = vpop.f32.mrf.mxu0
    %2526 = vdwg.mxu0
    %2527 = vmatpush.bf16.msra.mxu0 %v2368
    %2528 = vmatpush.bf16.msra.mxu0 %v2366
    %2529 = vmatpush.bf16.msra.mxu0 %v2364
    %2530 = vmatpush.bf16.msra.mxu0 %v2362
    %2531 = vmatpush.bf16.msra.mxu0 %v2360
    %2532 = vmatpush.bf16.msra.mxu0 %v2358
    %2533 = vmatpush.bf16.msra.mxu0 %v2356
    %2534 = vmatpush.bf16.msra.mxu0 %v2354
    %2535 = vmatmul.bf16.gmra.mxu0 %v2057
    %v2536 = vpop.f32.mrf.mxu0
    %v2537 = vadd.f32 %v2524, %v2536
    %v2538 = vpop.f32.mrf.mxu0
    %2539 = vdwg.mxu0
    %2540 = vmatpush.bf16.msra.mxu0 %v2384
    %2541 = vmatpush.bf16.msra.mxu0 %v2382
    %2542 = vmatpush.bf16.msra.mxu0 %v2380
    %2543 = vmatpush.bf16.msra.mxu0 %v2378
    %2544 = vmatpush.bf16.msra.mxu0 %v2376
    %2545 = vmatpush.bf16.msra.mxu0 %v2374
    %2546 = vmatpush.bf16.msra.mxu0 %v2372
    %2547 = vmatpush.bf16.msra.mxu0 %v2370
    %2548 = vmatmul.bf16.gmra.mxu0 %v2058
    %v2549 = vpop.f32.mrf.mxu0
    %v2550 = vadd.f32 %v2537, %v2549
    %v2551 = vpop.f32.mrf.mxu0
    %2552 = vdwg.mxu0
    %v2553 = vmax.f32 %v2498, 0.0
    %v2554 = vmax.f32 %v2550, 0.0
    %v2555 = vpack.c.bf16 %v2553, %v2553
    %v2556 = vpack.c.bf16 %v2554, %v2554
    %v2557 = vld [vmem:[%s5] sm:$0xf]
    %v2558 = vld [vmem:[%s5 + $0x4] sm:$0xf]
    %v2559 = vld [vmem:[%s5 + $0x8] sm:$0xf]
    %v2560 = vld [vmem:[%s5 + $0xc] sm:$0xf]
    %v2561 = vld [vmem:[%s5 + $0x10] sm:$0xf]
    %v2562 = vld [vmem:[%s5 + $0x14] sm:$0xf]
    %v2563 = vld [vmem:[%s5 + $0x18] sm:$0xf]
    %v2564 = vld [vmem:[%s5 + $0x1c] sm:$0xf]
    %v2565 = vld [vmem:[%s5 + $0x20] sm:$0xf]
    %v2566 = vld [vmem:[%s5 + $0x24] sm:$0xf]
    %v2567 = vld [vmem:[%s5 + $0x28] sm:$0xf]
    %v2568 = vld [vmem:[%s5 + $0x2c] sm:$0xf]
    %v2569 = vld [vmem:[%s5 + $0x30] sm:$0xf]
    %v2570 = vld [vmem:[%s5 + $0x34] sm:$0xf]
    %v2571 = vld [vmem:[%s5 + $0x38] sm:$0xf]
    %v2572 = vld [vmem:[%s5 + $0x3c] sm:$0xf]
    %v2573 = vld [vmem:[%s5 + $0x40] sm:$0xf]
    %v2574 = vld [vmem:[%s5 + $0x44] sm:$0xf]
    %v2575 = vld [vmem:[%s5 + $0x48] sm:$0xf]
    %v2576 = vld [vmem:[%s5 + $0x4c] sm:$0xf]
    %v2577 = vld [vmem:[%s5 + $0x50] sm:$0xf]
    %v2578 = vld [vmem:[%s5 + $0x54] sm:$0xf]
    %v2579 = vld [vmem:[%s5 + $0x58] sm:$0xf]
    %v2580 = vld [vmem:[%s5 + $0x5c] sm:$0xf]
    %v2581 = vld [vmem:[%s5 + $0x60] sm:$0xf]
    %v2582 = vld [vmem:[%s5 + $0x64] sm:$0xf]
    %v2583 = vld [vmem:[%s5 + $0x68] sm:$0xf]
    %v2584 = vld [vmem:[%s5 + $0x6c] sm:$0xf]
    %v2585 = vld [vmem:[%s5 + $0x70] sm:$0xf]
    %v2586 = vld [vmem:[%s5 + $0x74] sm:$0xf]
    %v2587 = vld [vmem:[%s5 + $0x78] sm:$0xf]
    %v2588 = vld [vmem:[%s5 + $0x7c] sm:$0xf]
    %v2589 = vld [vmem:[%s6] sm:$0x1]
    %v2591 = vperm.slane %v2589, 0
    %v2625 = vunpack.c.l.b16 %v2557
    %v2626 = vunpack.c.l.b16 %v2558
    %v2627 = vunpack.c.l.b16 %v2559
    %v2628 = vunpack.c.l.b16 %v2560
    %v2629 = vunpack.c.l.b16 %v2561
    %v2630 = vunpack.c.l.b16 %v2562
    %v2631 = vunpack.c.l.b16 %v2563
    %v2632 = vunpack.c.l.b16 %v2564
    %v2633 = vunpack.c.l.b16 %v2565
    %v2634 = vunpack.c.l.b16 %v2566
    %v2635 = vunpack.c.l.b16 %v2567
    %v2636 = vunpack.c.l.b16 %v2568
    %v2637 = vunpack.c.l.b16 %v2569
    %v2638 = vunpack.c.l.b16 %v2570
    %v2639 = vunpack.c.l.b16 %v2571
    %v2640 = vunpack.c.l.b16 %v2572
    %v2641 = vunpack.c.l.b16 %v2573
    %v2642 = vunpack.c.l.b16 %v2574
    %v2643 = vunpack.c.l.b16 %v2575
    %v2644 = vunpack.c.l.b16 %v2576
    %v2645 = vunpack.c.l.b16 %v2577
    %v2646 = vunpack.c.l.b16 %v2578
    %v2647 = vunpack.c.l.b16 %v2579
    %v2648 = vunpack.c.l.b16 %v2580
    %v2649 = vunpack.c.l.b16 %v2581
    %v2650 = vunpack.c.l.b16 %v2582
    %v2651 = vunpack.c.l.b16 %v2583
    %v2652 = vunpack.c.l.b16 %v2584
    %v2653 = vunpack.c.l.b16 %v2585
    %v2654 = vunpack.c.l.b16 %v2586
    %v2655 = vunpack.c.l.b16 %v2587
    %v2656 = vunpack.c.l.b16 %v2588
    %v2657 = vpack.c.b16 %v2626, %v2625
    %v2658 = vpack.c.b16 %v2628, %v2627
    %v2659 = vpack.c.b16 %v2630, %v2629
    %v2660 = vpack.c.b16 %v2632, %v2631
    %v2661 = vpack.c.b16 %v2634, %v2633
    %v2662 = vpack.c.b16 %v2636, %v2635
    %v2663 = vpack.c.b16 %v2638, %v2637
    %v2664 = vpack.c.b16 %v2640, %v2639
    %v2665 = vpack.c.b16 %v2642, %v2641
    %v2666 = vpack.c.b16 %v2644, %v2643
    %v2667 = vpack.c.b16 %v2646, %v2645
    %v2668 = vpack.c.b16 %v2648, %v2647
    %v2669 = vpack.c.b16 %v2650, %v2649
    %v2670 = vpack.c.b16 %v2652, %v2651
    %v2671 = vpack.c.b16 %v2654, %v2653
    %v2672 = vpack.c.b16 %v2656, %v2655
    %2689 = vmatpush.bf16.msra.mxu0 %v2664
    %2690 = vmatpush.bf16.msra.mxu0 %v2663
    %2691 = vmatpush.bf16.msra.mxu0 %v2662
    %2692 = vmatpush.bf16.msra.mxu0 %v2661
    %2693 = vmatpush.bf16.msra.mxu0 %v2660
    %2694 = vmatpush.bf16.msra.mxu0 %v2659
    %2695 = vmatpush.bf16.msra.mxu0 %v2658
    %2696 = vmatpush.bf16.msra.mxu0 %v2657
    %2697 = vmatmul.bf16.gmra.mxu0 %v2555
    %v2698 = vpop.f32.mrf.mxu0
    %v2699 = vadd.f32 %v2591, %v2698
    %v2700 = vpop.f32.mrf.mxu0
    %2701 = vdwg.mxu0
    %2702 = vmatpush.bf16.msra.mxu0 %v2672
    %2703 = vmatpush.bf16.msra.mxu0 %v2671
    %2704 = vmatpush.bf16.msra.mxu0 %v2670
    %2705 = vmatpush.bf16.msra.mxu0 %v2669
    %2706 = vmatpush.bf16.msra.mxu0 %v2668
    %2707 = vmatpush.bf16.msra.mxu0 %v2667
    %2708 = vmatpush.bf16.msra.mxu0 %v2666
    %2709 = vmatpush.bf16.msra.mxu0 %v2665
    %2710 = vmatmul.bf16.gmra.mxu0 %v2556
    %v2711 = vpop.f32.mrf.mxu0
    %v2712 = vadd.f32 %v2699, %v2711
    %v2713 = vpop.f32.mrf.mxu0
    %2714 = vdwg.mxu0
    %2715 = vst [vmem:[%s7] sm:$0x3] %v2712
    // Predicated region
    $region38: #{pointnet_rot9d.3} parent=1 // pred_check
      _
    $region39: #{pointnet_rot9d.3} parent=1 // pred_check_branch
      %2717 = sbr.rel (0) target = $region41
    $region40: #{pointnet_rot9d.3} parent=1 // pred_region
      _
    $region41: #{pointnet_rot9d.3} parent=1 // pred_fallthru
      _
    // Predicated region
    $region42: #{pointnet_rot9d.3} parent=1 // pred_check
      _
    $region43: #{pointnet_rot9d.3} parent=1 // pred_check_branch
      %2719 = sbr.rel (0) target = $region45
    $region44: #{pointnet_rot9d.3} parent=1 // pred_region
      _
    $region45: #{pointnet_rot9d.3} parent=1 // pred_fallthru
      _
    %2720 = vsyncpa [#allocation3], 1
    %2721 = vsyncpa [#allocation5], 1

// kernel: custom-call.22
$region0: #{custom-call.22}
  %s0 = inlined_call_operand.vmem [shape: f32[2,2,2], index: 0, kind: input, shape index: {}]
  %s1 = inlined_call_operand.vmem [shape: f32[2,2,2], index: 1, kind: input, shape index: {}]
  %s2 = inlined_call_operand.vmem [shape: f32[2,2,2], index: 2, kind: input, shape index: {}]
  %s3 = inlined_call_operand.vmem [shape: f32[2,2,2], index: 3, kind: input, shape index: {}]
  %s4 = inlined_call_operand.vmem [shape: f32[2,2], index: 4, kind: output, shape index: {0}]
  %s5 = inlined_call_operand.vmem [shape: f32[2,2], index: 5, kind: output, shape index: {1}]
  %s6 = inlined_call_operand.vmem [shape: f32[2,2,2], index: 6, kind: output, shape index: {2}]
  %s7 = inlined_call_operand.vmem [shape: f32[2,2,2], index: 7, kind: output, shape index: {3}]
  %s8 = inlined_call_operand.vmem [shape: f32[2,2,2], index: 8, kind: output, shape index: {4}]
  %s9 = inlined_call_operand.vmem [shape: f32[2,2,2], index: 9, kind: output, shape index: {5}]
  %10 = xla_tuple %s4, %s5, %s6, %s7, %s8, %s9
  $region1: #{custom-call.22} parent=0
    #allocation0 [shape = 'u8[4096]{0}', space=vmem, size = 0x1000, scoped, tag = 'operand span for operand 0']
    #allocation1 [shape = 'u8[2048]{0}', space=vmem, size = 0x800, scoped, tag = 'packed  for operand 0']
    #allocation2 [shape = 'u8[4096]{0}', space=vmem, size = 0x1000, scoped, tag = 'operand span for operand 1']
    #allocation3 [shape = 'u8[2048]{0}', space=vmem, size = 0x800, scoped, tag = 'packed  for operand 1']
    #allocation4 [shape = 'u8[4096]{0}', space=vmem, size = 0x1000, scoped, tag = 'operand span for operand 2']
    #allocation5 [shape = 'u8[2048]{0}', space=vmem, size = 0x800, scoped, tag = 'packed  for operand 2']
    #allocation6 [shape = 'u8[4096]{0}', space=vmem, size = 0x1000, scoped, tag = 'operand span for operand 3']
    #allocation7 [shape = 'u8[2048]{0}', space=vmem, size = 0x800, scoped, tag = 'packed  for operand 3']
    #allocation8 [shape = 'u8[4096]{0}', space=vmem, size = 0x1000, scoped, tag = 'operand span for operand 4']
    #allocation9 [shape = 'u8[2048]{0}', space=vmem, size = 0x800, scoped, tag = 'packed  for operand 4']
    #allocation10 [shape = 'u8[4096]{0}', space=vmem, size = 0x1000, scoped, tag = 'operand span for operand 5']
    #allocation11 [shape = 'u8[2048]{0}', space=vmem, size = 0x800, scoped, tag = 'packed  for operand 5']
    #allocation12 [shape = 'u8[4096]{0}', space=vmem, size = 0x1000, scoped, tag = 'operand span for operand 6']
    #allocation13 [shape = 'u8[2048]{0}', space=vmem, size = 0x800, scoped, tag = 'packed  for operand 6']
    #allocation14 [shape = 'u8[4096]{0}', space=vmem, size = 0x1000, scoped, tag = 'operand span for operand 7']
    #allocation15 [shape = 'u8[2048]{0}', space=vmem, size = 0x800, scoped, tag = 'packed  for operand 7']
    #allocation16 [shape = 'u8[4096]{0}', space=vmem, size = 0x1000, scoped, tag = 'operand span for operand 8']
    #allocation17 [shape = 'u8[2048]{0}', space=vmem, size = 0x800, scoped, tag = 'packed  for operand 8']
    #allocation18 [shape = 'u8[4096]{0}', space=vmem, size = 0x1000, scoped, tag = 'operand span for operand 9']
    #allocation19 [shape = 'u8[2048]{0}', space=vmem, size = 0x800, scoped, tag = 'packed  for operand 9']
    loop: start=0, step=1, limit=4
    $region2: #{custom-call.22} parent=1 // loop_pre_header
      _
    $region3: #{custom-call.22} parent=1 // loop_header
      %s12 = sphi 0, %s16
      %p13 = scmp.ge.s32.totalorder %s12, 4
      %s24 = sphi 0, %s26
      %s27 = sphi 0, %s24
      %s28 = sphi 0, %s27
      %s44 = sphi 0, %s28
      %s52 = sphi 0, %s54
      %s55 = sphi 0, %s52
      %s56 = sphi 0, %s55
      %s72 = sphi 0, %s56
    $region4: #{custom-call.22} parent=1 // loop_header_branch
      %15 = sbr.rel (%p13) target = $region8
    $region5: #{custom-call.22} parent=1 // loop_body
      %s17 = ssub.s32 %s12, 1
      %s18 = ssub.s32 %s12, 2
      %s19 = sadd.s32 %s12, 1
      %s20 = sshrl.u32 %s12, 3
      %s21 = sshrl.u32 %s19, 3
      %s22 = ssub.s32 %s20, %s21
      %p23 = scmp.eq.s32.totalorder %s22, 0
      %s25 = sadd.s32 %s24, 1
      %s26 = scalar_select %p23, %s24, %s25
      %p29 = pneg %p23
      %p30 = scmp.eq.s32.totalorder %s12, 1
      %p31 = por %p29, %p30
      %p32 = scmp.ne.s32.totalorder %s24, %s27
      %p33 = scmp.eq.s32.totalorder %s12, 0
      %p34 = por %p32, %p33
      %p35 = scmp.ne.s32.totalorder %s24, %s27
      %p36 = scmp.eq.s32.totalorder %s17, 1
      %p37 = por %p35, %p36
      %p38 = scmp.ne.s32.totalorder %s27, %s28
      %p39 = scmp.eq.s32.totalorder %s17, 0
      %p40 = por %p38, %p39
      %p41 = scmp.ne.s32.totalorder %s27, %s28
      %p42 = scmp.eq.s32.totalorder %s18, 1
      %p43 = por %p41, %p42
      %p45 = scmp.ne.s32.totalorder %s28, %s44
      %p46 = scmp.eq.s32.totalorder %s18, 0
      %p47 = por %p45, %p46
      %s48 = sshrl.u32 %s12, 3
      %s49 = sshrl.u32 %s19, 3
      %s50 = ssub.s32 %s48, %s49
      %p51 = scmp.eq.s32.totalorder %s50, 0
      %s53 = sadd.s32 %s52, 1
      %s54 = scalar_select %p51, %s52, %s53
      %p57 = pneg %p51
      %p58 = scmp.eq.s32.totalorder %s12, 1
      %p59 = por %p57, %p58
      %p60 = scmp.ne.s32.totalorder %s52, %s55
      %p61 = scmp.eq.s32.totalorder %s12, 0
      %p62 = por %p60, %p61
      %p63 = scmp.ne.s32.totalorder %s52, %s55
      %p64 = scmp.eq.s32.totalorder %s17, 1
      %p65 = por %p63, %p64
      %p66 = scmp.ne.s32.totalorder %s55, %s56
      %p67 = scmp.eq.s32.totalorder %s17, 0
      %p68 = por %p66, %p67
      %p69 = scmp.ne.s32.totalorder %s55, %s56
      %p70 = scmp.eq.s32.totalorder %s18, 1
      %p71 = por %p69, %p70
      %p73 = scmp.ne.s32.totalorder %s56, %s72
      %p74 = scmp.eq.s32.totalorder %s18, 0
      %p75 = por %p73, %p74
      %p76 = scmp.le.s32.totalorder 1, %s12
      %p77 = scmp.lt.s32.totalorder %s12, 3
      %p78 = pnand %p76, %p77
      %p79 = pneg %p78
      // Predicated region
      $region9: #{custom-call.22} parent=5 // pred_check
        _
      $region10: #{custom-call.22} parent=5 // pred_check_branch
        %81 = sbr.rel (%p78) target = $region12
      $region11: #{custom-call.22} parent=5 // pred_region
        %s82 = ssub.s32 %s12, 1
      $region12: #{custom-call.22} parent=5 // pred_fallthru
        _
      %p83 = scmp.lt.s32.totalorder %s12, 2
      // Predicated region
      $region13: #{custom-call.22} parent=5 // pred_check
        %p84 = pneg %p83
      $region14: #{custom-call.22} parent=5 // pred_check_branch
        %86 = sbr.rel (%p84) target = $region16
      $region15: #{custom-call.22} parent=5 // pred_region
        %s87 = sand.u32 %s12, 1
        %s88 = sand.u32 %s12, 1
        %s89 = smul.addr %s88, 2
        %s90 = scalar_lea.vmem [#allocation1], %s89
        %s91 = smul.addr %s12, 2
        %s92 = scalar_lea.vmem %s0, %s91
        // Predicated region
        $region17: #{custom-call.22} parent=15 // pred_check
          _
        $region18: #{custom-call.22} parent=15 // pred_check_branch
          %94 = sbr.rel (0) target = $region20
        $region19: #{custom-call.22} parent=15 // pred_region
          // Predicated region
          $region21: #{custom-call.22} parent=19 // pred_check
            _
          $region22: #{custom-call.22} parent=19 // pred_check_branch
            %96 = sbr.rel target = $region24
          $region23: #{custom-call.22} parent=19 // pred_region
            // Predicated region
            $region36: #{custom-call.22} parent=23 // pred_check
              _
            $region37: #{custom-call.22} parent=23 // pred_check_branch
              %112 = sbr.rel (0) target = $region39
            $region38: #{custom-call.22} parent=23 // pred_region
              %s114 = ssub.s32 4, 1
              loop: start=0, step=1, limit=1
              $region40: #{custom-call.22} parent=38 // loop_pre_header
                _
              $region41: #{custom-call.22} parent=38 // loop_header
                %s116 = sphi 0, %s120
                %p117 = scmp.ge.s32.totalorder %s116, 1
                %s121 = sphi %s92, %s92
                %s122 = sphi %s90, %s90
              $region42: #{custom-call.22} parent=38 // loop_header_branch
                %119 = sbr.rel (%p117) target = $region46
              $region43: #{custom-call.22} parent=38 // loop_body
                %v123 = vld [vmem:[%s121] sm:%s114]
                %124 = vst [vmem:[%s122] sm:%s114] %v123
              $region44: #{custom-call.22} parent=38 // loop_footer
                %s120 = sadd.s32 1, %s116
              $region45: #{custom-call.22} parent=38 // loop_footer_branch
                %115 = sbr.rel target = $region41
              $region46: #{custom-call.22} parent=38 // loop_exit
                _
            $region39: #{custom-call.22} parent=23 // pred_fallthru
              _
          $region24: #{custom-call.22} parent=19 // pred_fallthru
            _
          // Predicated region
          $region25: #{custom-call.22} parent=19 // pred_check
            _
          $region26: #{custom-call.22} parent=19 // pred_check_branch
            %98 = sbr.rel (0) target = $region28
          $region27: #{custom-call.22} parent=19 // pred_region
            %s100 = ssub.s32 4, 1
            loop: start=0, step=1, limit=1
            $region29: #{custom-call.22} parent=27 // loop_pre_header
              _
            $region30: #{custom-call.22} parent=27 // loop_header
              %s102 = sphi 0, %s106
              %p103 = scmp.ge.s32.totalorder %s102, 1
              %s107 = sphi %s92, %s92
              %s108 = sphi %s90, %s90
            $region31: #{custom-call.22} parent=27 // loop_header_branch
              %105 = sbr.rel (%p103) target = $region35
            $region32: #{custom-call.22} parent=27 // loop_body
              %v109 = vld [vmem:[%s107] sm:%s100]
              %110 = vst [vmem:[%s108] sm:%s100] %v109
            $region33: #{custom-call.22} parent=27 // loop_footer
              %s106 = sadd.s32 1, %s102
            $region34: #{custom-call.22} parent=27 // loop_footer_branch
              %101 = sbr.rel target = $region30
            $region35: #{custom-call.22} parent=27 // loop_exit
              _
          $region28: #{custom-call.22} parent=19 // pred_fallthru
            _
        $region20: #{custom-call.22} parent=15 // pred_fallthru
          _
        %125 = vnop
        %s126 = sand.u32 %s12, 1
        %s127 = sand.u32 %s12, 1
        %s128 = smul.addr %s127, 2
        %s129 = scalar_lea.vmem [#allocation3], %s128
        %s130 = smul.addr %s12, 2
        %s131 = scalar_lea.vmem %s1, %s130
        // Predicated region
        $region47: #{custom-call.22} parent=15 // pred_check
          _
        $region48: #{custom-call.22} parent=15 // pred_check_branch
          %133 = sbr.rel (0) target = $region50
        $region49: #{custom-call.22} parent=15 // pred_region
          // Predicated region
          $region51: #{custom-call.22} parent=49 // pred_check
            _
          $region52: #{custom-call.22} parent=49 // pred_check_branch
            %135 = sbr.rel target = $region54
          $region53: #{custom-call.22} parent=49 // pred_region
            // Predicated region
            $region66: #{custom-call.22} parent=53 // pred_check
              _
            $region67: #{custom-call.22} parent=53 // pred_check_branch
              %151 = sbr.rel (0) target = $region69
            $region68: #{custom-call.22} parent=53 // pred_region
              %s153 = ssub.s32 4, 1
              loop: start=0, step=1, limit=1
              $region70: #{custom-call.22} parent=68 // loop_pre_header
                _
              $region71: #{custom-call.22} parent=68 // loop_header
                %s155 = sphi 0, %s159
                %p156 = scmp.ge.s32.totalorder %s155, 1
                %s160 = sphi %s131, %s131
                %s161 = sphi %s129, %s129
              $region72: #{custom-call.22} parent=68 // loop_header_branch
                %158 = sbr.rel (%p156) target = $region76
              $region73: #{custom-call.22} parent=68 // loop_body
                %v162 = vld [vmem:[%s160] sm:%s153]
                %163 = vst [vmem:[%s161] sm:%s153] %v162
              $region74: #{custom-call.22} parent=68 // loop_footer
                %s159 = sadd.s32 1, %s155
              $region75: #{custom-call.22} parent=68 // loop_footer_branch
                %154 = sbr.rel target = $region71
              $region76: #{custom-call.22} parent=68 // loop_exit
                _
            $region69: #{custom-call.22} parent=53 // pred_fallthru
              _
          $region54: #{custom-call.22} parent=49 // pred_fallthru
            _
          // Predicated region
          $region55: #{custom-call.22} parent=49 // pred_check
            _
          $region56: #{custom-call.22} parent=49 // pred_check_branch
            %137 = sbr.rel (0) target = $region58
          $region57: #{custom-call.22} parent=49 // pred_region
            %s139 = ssub.s32 4, 1
            loop: start=0, step=1, limit=1
            $region59: #{custom-call.22} parent=57 // loop_pre_header
              _
            $region60: #{custom-call.22} parent=57 // loop_header
              %s141 = sphi 0, %s145
              %p142 = scmp.ge.s32.totalorder %s141, 1
              %s146 = sphi %s131, %s131
              %s147 = sphi %s129, %s129
            $region61: #{custom-call.22} parent=57 // loop_header_branch
              %144 = sbr.rel (%p142) target = $region65
            $region62: #{custom-call.22} parent=57 // loop_body
              %v148 = vld [vmem:[%s146] sm:%s139]
              %149 = vst [vmem:[%s147] sm:%s139] %v148
            $region63: #{custom-call.22} parent=57 // loop_footer
              %s145 = sadd.s32 1, %s141
            $region64: #{custom-call.22} parent=57 // loop_footer_branch
              %140 = sbr.rel target = $region60
            $region65: #{custom-call.22} parent=57 // loop_exit
              _
          $region58: #{custom-call.22} parent=49 // pred_fallthru
            _
        $region50: #{custom-call.22} parent=15 // pred_fallthru
          _
        %164 = vnop
        %s165 = sand.u32 %s12, 1
        %s166 = sand.u32 %s12, 1
        %s167 = smul.addr %s166, 2
        %s168 = scalar_lea.vmem [#allocation5], %s167
        %s169 = smul.addr %s12, 2
        %s170 = scalar_lea.vmem %s2, %s169
        // Predicated region
        $region77: #{custom-call.22} parent=15 // pred_check
          _
        $region78: #{custom-call.22} parent=15 // pred_check_branch
          %172 = sbr.rel (0) target = $region80
        $region79: #{custom-call.22} parent=15 // pred_region
          // Predicated region
          $region81: #{custom-call.22} parent=79 // pred_check
            _
          $region82: #{custom-call.22} parent=79 // pred_check_branch
            %174 = sbr.rel target = $region84
          $region83: #{custom-call.22} parent=79 // pred_region
            // Predicated region
            $region96: #{custom-call.22} parent=83 // pred_check
              _
            $region97: #{custom-call.22} parent=83 // pred_check_branch
              %190 = sbr.rel (0) target = $region99
            $region98: #{custom-call.22} parent=83 // pred_region
              %s192 = ssub.s32 4, 1
              loop: start=0, step=1, limit=1
              $region100: #{custom-call.22} parent=98 // loop_pre_header
                _
              $region101: #{custom-call.22} parent=98 // loop_header
                %s194 = sphi 0, %s198
                %p195 = scmp.ge.s32.totalorder %s194, 1
                %s199 = sphi %s170, %s170
                %s200 = sphi %s168, %s168
              $region102: #{custom-call.22} parent=98 // loop_header_branch
                %197 = sbr.rel (%p195) target = $region106
              $region103: #{custom-call.22} parent=98 // loop_body
                %v201 = vld [vmem:[%s199] sm:%s192]
                %202 = vst [vmem:[%s200] sm:%s192] %v201
              $region104: #{custom-call.22} parent=98 // loop_footer
                %s198 = sadd.s32 1, %s194
              $region105: #{custom-call.22} parent=98 // loop_footer_branch
                %193 = sbr.rel target = $region101
              $region106: #{custom-call.22} parent=98 // loop_exit
                _
            $region99: #{custom-call.22} parent=83 // pred_fallthru
              _
          $region84: #{custom-call.22} parent=79 // pred_fallthru
            _
          // Predicated region
          $region85: #{custom-call.22} parent=79 // pred_check
            _
          $region86: #{custom-call.22} parent=79 // pred_check_branch
            %176 = sbr.rel (0) target = $region88
          $region87: #{custom-call.22} parent=79 // pred_region
            %s178 = ssub.s32 4, 1
            loop: start=0, step=1, limit=1
            $region89: #{custom-call.22} parent=87 // loop_pre_header
              _
            $region90: #{custom-call.22} parent=87 // loop_header
              %s180 = sphi 0, %s184
              %p181 = scmp.ge.s32.totalorder %s180, 1
              %s185 = sphi %s170, %s170
              %s186 = sphi %s168, %s168
            $region91: #{custom-call.22} parent=87 // loop_header_branch
              %183 = sbr.rel (%p181) target = $region95
            $region92: #{custom-call.22} parent=87 // loop_body
              %v187 = vld [vmem:[%s185] sm:%s178]
              %188 = vst [vmem:[%s186] sm:%s178] %v187
            $region93: #{custom-call.22} parent=87 // loop_footer
              %s184 = sadd.s32 1, %s180
            $region94: #{custom-call.22} parent=87 // loop_footer_branch
              %179 = sbr.rel target = $region90
            $region95: #{custom-call.22} parent=87 // loop_exit
              _
          $region88: #{custom-call.22} parent=79 // pred_fallthru
            _
        $region80: #{custom-call.22} parent=15 // pred_fallthru
          _
        %203 = vnop
        %s204 = sand.u32 %s12, 1
        %s205 = sand.u32 %s12, 1
        %s206 = smul.addr %s205, 2
        %s207 = scalar_lea.vmem [#allocation7], %s206
        %s208 = smul.addr %s12, 2
        %s209 = scalar_lea.vmem %s3, %s208
        // Predicated region
        $region107: #{custom-call.22} parent=15 // pred_check
          _
        $region108: #{custom-call.22} parent=15 // pred_check_branch
          %211 = sbr.rel (0) target = $region110
        $region109: #{custom-call.22} parent=15 // pred_region
          // Predicated region
          $region111: #{custom-call.22} parent=109 // pred_check
            _
          $region112: #{custom-call.22} parent=109 // pred_check_branch
            %213 = sbr.rel target = $region114
          $region113: #{custom-call.22} parent=109 // pred_region
            // Predicated region
            $region126: #{custom-call.22} parent=113 // pred_check
              _
            $region127: #{custom-call.22} parent=113 // pred_check_branch
              %229 = sbr.rel (0) target = $region129
            $region128: #{custom-call.22} parent=113 // pred_region
              %s231 = ssub.s32 4, 1
              loop: start=0, step=1, limit=1
              $region130: #{custom-call.22} parent=128 // loop_pre_header
                _
              $region131: #{custom-call.22} parent=128 // loop_header
                %s233 = sphi 0, %s237
                %p234 = scmp.ge.s32.totalorder %s233, 1
                %s238 = sphi %s209, %s209
                %s239 = sphi %s207, %s207
              $region132: #{custom-call.22} parent=128 // loop_header_branch
                %236 = sbr.rel (%p234) target = $region136
              $region133: #{custom-call.22} parent=128 // loop_body
                %v240 = vld [vmem:[%s238] sm:%s231]
                %241 = vst [vmem:[%s239] sm:%s231] %v240
              $region134: #{custom-call.22} parent=128 // loop_footer
                %s237 = sadd.s32 1, %s233
              $region135: #{custom-call.22} parent=128 // loop_footer_branch
                %232 = sbr.rel target = $region131
              $region136: #{custom-call.22} parent=128 // loop_exit
                _
            $region129: #{custom-call.22} parent=113 // pred_fallthru
              _
          $region114: #{custom-call.22} parent=109 // pred_fallthru
            _
          // Predicated region
          $region115: #{custom-call.22} parent=109 // pred_check
            _
          $region116: #{custom-call.22} parent=109 // pred_check_branch
            %215 = sbr.rel (0) target = $region118
          $region117: #{custom-call.22} parent=109 // pred_region
            %s217 = ssub.s32 4, 1
            loop: start=0, step=1, limit=1
            $region119: #{custom-call.22} parent=117 // loop_pre_header
              _
            $region120: #{custom-call.22} parent=117 // loop_header
              %s219 = sphi 0, %s223
              %p220 = scmp.ge.s32.totalorder %s219, 1
              %s224 = sphi %s209, %s209
              %s225 = sphi %s207, %s207
            $region121: #{custom-call.22} parent=117 // loop_header_branch
              %222 = sbr.rel (%p220) target = $region125
            $region122: #{custom-call.22} parent=117 // loop_body
              %v226 = vld [vmem:[%s224] sm:%s217]
              %227 = vst [vmem:[%s225] sm:%s217] %v226
            $region123: #{custom-call.22} parent=117 // loop_footer
              %s223 = sadd.s32 1, %s219
            $region124: #{custom-call.22} parent=117 // loop_footer_branch
              %218 = sbr.rel target = $region120
            $region125: #{custom-call.22} parent=117 // loop_exit
              _
          $region118: #{custom-call.22} parent=109 // pred_fallthru
            _
        $region110: #{custom-call.22} parent=15 // pred_fallthru
          _
        %242 = vnop
      $region16: #{custom-call.22} parent=5 // pred_fallthru
        _
      %p243 = scmp.le.s32.totalorder 1, %s12
      %p244 = scmp.lt.s32.totalorder %s12, 3
      %p245 = pnand %p243, %p244
      %p246 = pneg %p245
      // Predicated region
      $region137: #{custom-call.22} parent=5 // pred_check
        _
      $region138: #{custom-call.22} parent=5 // pred_check_branch
        %248 = sbr.rel (%p245) target = $region140
      $region139: #{custom-call.22} parent=5 // pred_region
        #allocation20 [shape = 'f32[2,2]{1,0}', space=vmem, size = 0x1000, scoped, tag = 'a top-left matrix']
        #allocation21 [shape = 'f32[2,2]{1,0}', space=vmem, size = 0x1000, scoped, tag = 'a top-right matrix']
        #allocation22 [shape = 'f32[2,2]{1,0}', space=vmem, size = 0x1000, scoped, tag = 'a bottom-left matrix']
        #allocation23 [shape = 'f32[2,2]{1,0}', space=vmem, size = 0x1000, scoped, tag = 'a bottom-right matrix']
        %s249 = ssub.s32 %s12, 1
        %s250 = sand.u32 %s17, 1
        %s251 = sand.u32 %s17, 1
        %s252 = smul.addr %s251, 2
        %s253 = scalar_lea.vmem [#allocation1], %s252
        %s254 = sand.u32 %s17, 1
        %s255 = sand.u32 %s17, 1
        %s256 = smul.addr %s255, 2
        %s257 = scalar_lea.vmem [#allocation3], %s256
        %s258 = sand.u32 %s17, 1
        %s259 = sand.u32 %s17, 1
        %s260 = smul.addr %s259, 2
        %s261 = scalar_lea.vmem [#allocation5], %s260
        %s262 = sand.u32 %s17, 1
        %s263 = sand.u32 %s17, 1
        %s264 = smul.addr %s263, 2
        %s265 = scalar_lea.vmem [#allocation7], %s264
        %s266 = sand.u32 %s17, 1
        %s267 = sand.u32 %s17, 1
        %s268 = smul.addr %s267, 2
        %s269 = scalar_lea.vmem [#allocation1], %s268
        %s270 = sand.u32 %s17, 1
        %s271 = sand.u32 %s17, 1
        %s272 = smul.addr %s271, 2
        %s273 = scalar_lea.vmem [#allocation3], %s272
        %s274 = sand.u32 %s17, 1
        %s275 = sand.u32 %s17, 1
        %s276 = smul.addr %s275, 2
        %s277 = scalar_lea.vmem [#allocation5], %s276
        %s278 = sand.u32 %s17, 1
        %s279 = sand.u32 %s17, 1
        %s280 = smul.addr %s279, 2
        %s281 = scalar_lea.vmem [#allocation7], %s280
        %p282 = pneg %p40
        %p283 = pneg %p37
        %s284 = sand.u32 %s27, 1
        %s285 = sand.u32 %s27, 1
        %s286 = smul.addr %s285, 2
        %s287 = scalar_lea.vmem [#allocation9], %s286
        %p288 = pneg %p68
        %p289 = pneg %p65
        %s290 = sand.u32 %s55, 1
        %s291 = sand.u32 %s55, 1
        %s292 = smul.addr %s291, 2
        %s293 = scalar_lea.vmem [#allocation11], %s292
        %s294 = sand.u32 %s17, 1
        %s295 = sand.u32 %s17, 1
        %s296 = smul.addr %s295, 2
        %s297 = scalar_lea.vmem [#allocation13], %s296
        %s298 = sand.u32 %s17, 1
        %s299 = sand.u32 %s17, 1
        %s300 = smul.addr %s299, 2
        %s301 = scalar_lea.vmem [#allocation15], %s300
        %s302 = sand.u32 %s17, 1
        %s303 = sand.u32 %s17, 1
        %s304 = smul.addr %s303, 2
        %s305 = scalar_lea.vmem [#allocation17], %s304
        %s306 = sand.u32 %s17, 1
        %s307 = sand.u32 %s17, 1
        %s308 = smul.addr %s307, 2
        %s309 = scalar_lea.vmem [#allocation19], %s308
        %s311 = ssub.s32 4, 1
        %v312 = vld [vmem:[%s269] sm:%s311]
        %313 = vst [vmem:[#allocation0] sm:%s311] %v312
        %s315 = ssub.s32 4, 1
        %v316 = vld [vmem:[%s273] sm:%s315]
        %317 = vst [vmem:[#allocation2] sm:%s315] %v316
        %s319 = ssub.s32 4, 1
        %v320 = vld [vmem:[%s277] sm:%s319]
        %321 = vst [vmem:[#allocation4] sm:%s319] %v320
        %s323 = ssub.s32 4, 1
        %v324 = vld [vmem:[%s281] sm:%s323]
        %325 = vst [vmem:[#allocation6] sm:%s323] %v324
        %s326 = sshrl.u32 %s17, 3
        %s327 = sshrl.u32 %s17, 3
        %s328 = smov [#allocation20]
        %v329 = vld [vmem:[#allocation0] sm:$0xff]
        %330 = vst [vmem:[%s328] sm:$0xff] %v329
        %s331 = smov [#allocation21]
        %v332 = vld [vmem:[#allocation2] sm:$0xff]
        %333 = vst [vmem:[%s331] sm:$0xff] %v332
        %s334 = smov [#allocation22]
        %v335 = vld [vmem:[#allocation4] sm:$0xff]
        %336 = vst [vmem:[%s334] sm:$0xff] %v335
        %s337 = smov [#allocation23]
        %v338 = vld [vmem:[#allocation6] sm:$0xff]
        %339 = vst [vmem:[%s337] sm:$0xff] %v338
        %340 = vst [vmem:[#allocation12] sm:$0xff] 0.0
        %341 = vst [vmem:[#allocation14] sm:$0xff] 0.0
        %342 = vst [vmem:[#allocation16] sm:$0xff] 0.0
        %343 = vst [vmem:[#allocation18] sm:$0xff] 0.0
        %s344 = smov [#allocation12]
        %v345 = vlaneseq
        %v346 = vand.u32 %v345, 127
        %v347 = vmov %v346
        %v348 = vlaneseq
        %v349 = vshrl.u32 %v348, 7
        %v350 = vmov %v349
        %v351 = vld [vmem:[%s344] sm:$0x3]
        %vm354 = vcmp.eq.s32.totalorder %v350, %v347
        %v355 = vsel %vm354, 1.0, %v351
        %356 = vst [vmem:[%s344] sm:$0x3] %v355
        %s357 = smov [#allocation18]
        %v358 = vlaneseq
        %v359 = vand.u32 %v358, 127
        %v360 = vmov %v359
        %v361 = vlaneseq
        %v362 = vshrl.u32 %v361, 7
        %v363 = vmov %v362
        %v364 = vld [vmem:[%s357] sm:$0x3]
        %vm367 = vcmp.eq.s32.totalorder %v363, %v360
        %v368 = vsel %vm367, 1.0, %v364
        %369 = vst [vmem:[%s357] sm:$0x3] %v368
        // While loop
        $region141: #{custom-call.22} parent=139 // loop_pre_header
          _
        $region142: #{custom-call.22} parent=139 // loop_header
          %s371 = sphi 0, %s953
          %v372 = vlaneseq
          %v373 = vand.u32 %v372, 127
          %v374 = vmov %v373
          %v375 = vlaneseq
          %v376 = vshrl.u32 %v375, 7
          %v377 = vmov %v376
          %s378 = smov [#allocation20]
          %v379 = vlaneseq
          %v380 = vand.u32 %v379, 127
          %vm381 = vcmp.ge.s32.totalorder %v380, 0
          %vm382 = vcmp.lt.s32.totalorder %v380, 2
          %vm383 = vmand %vm381, %vm382
          %v384 = vld [vmem:[%s378] sm:$0x3]
          %v385 = vsel %vm383, %v384, 0.0
          %v386 = vmul.f32 %v385, %v385
          %vm389 = vcmp.eq.s32.totalorder %v377, %v374
          %v390 = vsel %vm389, 0.0, %v386
          %v391 = vlaneseq
          %v392 = vand.u32 %v391, 127
          %v393 = vmov %v392
          %v394 = vlaneseq
          %v395 = vshrl.u32 %v394, 7
          %v396 = vmov %v395
          %s397 = smov [#allocation21]
          %v398 = vlaneseq
          %v399 = vand.u32 %v398, 127
          %vm400 = vcmp.ge.s32.totalorder %v399, 0
          %vm401 = vcmp.lt.s32.totalorder %v399, 2
          %vm402 = vmand %vm400, %vm401
          %v403 = vld [vmem:[%s397] sm:$0x3]
          %v404 = vsel %vm402, %v403, 0.0
          %v405 = vmul.f32 %v404, %v404
          %v406 = vadd.f32 %v390, %v405
          %v407 = vadd.f32 %v386, %v405
          %v408 = vlaneseq
          %v409 = vand.u32 %v408, 127
          %v410 = vmov %v409
          %v411 = vlaneseq
          %v412 = vshrl.u32 %v411, 7
          %v413 = vmov %v412
          %s414 = smov [#allocation22]
          %v415 = vlaneseq
          %v416 = vand.u32 %v415, 127
          %vm417 = vcmp.ge.s32.totalorder %v416, 0
          %vm418 = vcmp.lt.s32.totalorder %v416, 2
          %vm419 = vmand %vm417, %vm418
          %v420 = vld [vmem:[%s414] sm:$0x3]
          %v421 = vsel %vm419, %v420, 0.0
          %v422 = vmul.f32 %v421, %v421
          %v423 = vadd.f32 %v406, %v422
          %v424 = vadd.f32 %v407, %v422
          %v425 = vlaneseq
          %v426 = vand.u32 %v425, 127
          %v427 = vmov %v426
          %v428 = vlaneseq
          %v429 = vshrl.u32 %v428, 7
          %v430 = vmov %v429
          %s431 = smov [#allocation23]
          %v432 = vlaneseq
          %v433 = vand.u32 %v432, 127
          %vm434 = vcmp.ge.s32.totalorder %v433, 0
          %vm435 = vcmp.lt.s32.totalorder %v433, 2
          %vm436 = vmand %vm434, %vm435
          %v437 = vld [vmem:[%s431] sm:$0x3]
          %v438 = vsel %vm436, %v437, 0.0
          %v439 = vmul.f32 %v438, %v438
          %vm442 = vcmp.eq.s32.totalorder %v430, %v427
          %v443 = vsel %vm442, 0.0, %v439
          %v444 = vadd.f32 %v423, %v443
          %v445 = vadd.f32 %v424, %v439
          %446 = vadd.xlane.f32.xlu0 %v445
          %v447 = vpop.xlane.xlu0 %446
          %v448 = vrot.slane %v447, 4
          %v449 = vadd.f32 %v447, %v448
          %v450 = vrot.slane %v449, 2
          %v451 = vadd.f32 %v449, %v450
          %v452 = vrot.slane %v451, 1
          %v453 = vadd.f32 %v451, %v452
          %454 = vadd.xlane.f32.xlu0 %v444
          %v455 = vpop.xlane.xlu0 %454
          %v456 = vrot.slane %v455, 4
          %v457 = vadd.f32 %v455, %v456
          %v458 = vrot.slane %v457, 2
          %v459 = vadd.f32 %v457, %v458
          %v460 = vrot.slane %v459, 1
          %v461 = vadd.f32 %v459, %v460
          %s462 = vtos %v461
          %s463 = vtos %v453
          %s464 = smul.f32 1e-10, %s463
          %p465 = scmp.le.f32.partialorder %s462, %s464
          %p466 = scmp.ge.s32.totalorder %s371, 15
          %p467 = por %p465, %p466
        $region143: #{custom-call.22} parent=139 // loop_header_branch
          %955 = sbr.rel (%p467) target = $region147
        $region144: #{custom-call.22} parent=139 // loop_body
          loop: start=0, step=1, limit=3
          $region148: #{custom-call.22} parent=144 // loop_pre_header
            _
          $region149: #{custom-call.22} parent=144 // loop_header
            %s469 = sphi 0, %s473
            %p470 = scmp.ge.s32.totalorder %s469, 3
          $region150: #{custom-call.22} parent=144 // loop_header_branch
            %472 = sbr.rel (%p470) target = $region154
          $region151: #{custom-call.22} parent=144 // loop_body
            #allocation24 [shape = 'f32[1024]{0}', space=vmem, size = 0x1000, scoped, tag = 'a_tl_diag vmem']
            #allocation25 [shape = 'f32[1024]{0}', space=vmem, size = 0x1000, scoped, tag = 'a_tr_diag vmem']
            #allocation26 [shape = 'f32[1024]{0}', space=vmem, size = 0x1000, scoped, tag = 'a_br_diag vmem']
            #allocation27 [shape = 'f32[1024]{0}', space=vmem, size = 0x1000, scoped, tag = 'rt1 vmem']
            #allocation28 [shape = 'f32[1024]{0}', space=vmem, size = 0x1000, scoped, tag = 'rt2 vmem']
            #allocation29 [shape = 'f32[1024]{0}', space=vmem, size = 0x1000, scoped, tag = 'c vmem']
            #allocation30 [shape = 'f32[1024]{0}', space=vmem, size = 0x1000, scoped, tag = 's vmem']
            #allocation31 [shape = 'f32[4096]{0}', space=vmem, size = 0x4000, scoped, tag = 'c broadcast']
            #allocation32 [shape = 'f32[4096]{0}', space=vmem, size = 0x4000, scoped, tag = 's broadcast']
            %s474 = smov [#allocation20]
            %s475 = smov [#allocation24]
            %v476 = vlaneseq
            %v477 = vand.u32 %v476, 127
            %v478 = vmov %v477
            %v479 = vlaneseq
            %v480 = vshrl.u32 %v479, 7
            %v481 = vmov %v480
            %v482 = vld [vmem:[%s474] sm:$0x3]
            %vm485 = vcmp.eq.s32.totalorder %v481, %v478
            %v486 = vsel %vm485, %v482, 0.0
            %v487 = vrot.slane %v486, 4
            %v488 = vadd.f32 %v486, %v487
            %v489 = vrot.slane %v488, 2
            %v490 = vadd.f32 %v488, %v489
            %v491 = vrot.slane %v490, 1
            %v492 = vadd.f32 %v490, %v491
            %493 = vst [vmem:[%s475] sm:$0x1] %v492
            %s494 = smov [#allocation21]
            %s495 = smov [#allocation25]
            %v496 = vlaneseq
            %v497 = vand.u32 %v496, 127
            %v498 = vmov %v497
            %v499 = vlaneseq
            %v500 = vshrl.u32 %v499, 7
            %v501 = vmov %v500
            %v502 = vld [vmem:[%s494] sm:$0x3]
            %vm505 = vcmp.eq.s32.totalorder %v501, %v498
            %v506 = vsel %vm505, %v502, 0.0
            %v507 = vrot.slane %v506, 4
            %v508 = vadd.f32 %v506, %v507
            %v509 = vrot.slane %v508, 2
            %v510 = vadd.f32 %v508, %v509
            %v511 = vrot.slane %v510, 1
            %v512 = vadd.f32 %v510, %v511
            %513 = vst [vmem:[%s495] sm:$0x1] %v512
            %s514 = smov [#allocation23]
            %s515 = smov [#allocation26]
            %v516 = vlaneseq
            %v517 = vand.u32 %v516, 127
            %v518 = vmov %v517
            %v519 = vlaneseq
            %v520 = vshrl.u32 %v519, 7
            %v521 = vmov %v520
            %v522 = vld [vmem:[%s514] sm:$0x3]
            %vm525 = vcmp.eq.s32.totalorder %v521, %v518
            %v526 = vsel %vm525, %v522, 0.0
            %v527 = vrot.slane %v526, 4
            %v528 = vadd.f32 %v526, %v527
            %v529 = vrot.slane %v528, 2
            %v530 = vadd.f32 %v528, %v529
            %v531 = vrot.slane %v530, 1
            %v532 = vadd.f32 %v530, %v531
            %533 = vst [vmem:[%s515] sm:$0x1] %v532
            %s534 = smov [#allocation29]
            %s535 = smov [#allocation30]
            %s536 = smov [#allocation24]
            %v537 = vld [vmem:[%s536] sm:$0xff]
            %s538 = smov [#allocation25]
            %v539 = vld [vmem:[%s538] sm:$0xff]
            %s540 = smov [#allocation26]
            %v541 = vld [vmem:[%s540] sm:$0xff]
            %v542 = vsub.f32 %v541, %v537
            %v543 = vmul.f32 2.0, %v539
            %v544 = vrcp.pop %v543
            %v545 = vmul.f32 %v543, %v544
            %v546 = vsub.f32 1.0, %v545
            %v547 = vmul.f32 %v544, %v546
            %v548 = vadd.f32 %v544, %v547
            %vm549 = vweird.f32 %v543
            %vm550 = vweird.f32 %v544
            %vm551 = vmor %vm549, %vm550
            %v552 = vsel %vm551, %v544, %v548
            %v553 = vand.u32 2147483647, %v543
            %vm554 = vcmp.eq.f32.partialorder %v553, 8.507059e+37
            %v555 = vand.u32 %v543, 2147483648
            %v556 = vor.u32 1.1754944e-38, %v555
            %v557 = vsel %vm554, %v556, %v552
            %v558 = vmul.f32 %v542, %v557
            %vm559 = vcmp.ge.f32.partialorder %v558, 0.0
            %v560 = vmul.f32 %v558, %v558
            %v561 = vadd.f32 1.0, %v560
            %v562 = vrsqrt.pop %v561
            %v563 = vmul.f32 %v562, %v561
            %v564 = vmul.f32 %v563, %v562
            %v565 = vmul.f32 0.5, %v564
            %v566 = vsub.f32 1.5, %v565
            %v567 = vmul.f32 %v562, %v566
            %v568 = vmul.f32 %v561, %v567
            %vm569 = vcmp.eq.f32.partialorder %v561, inf
            %v570 = vsel %vm569, %v561, %v568
            %vm571 = vcmp.eq.f32.partialorder %v561, 0.0
            %v572 = vand.u32 %v561, 2147483648
            %v573 = vsel %vm571, %v572, %v570
            %v574 = vxor.u32 %v573, 2147483648
            %v575 = vsel %vm559, %v573, %v574
            %v576 = vadd.f32 %v558, %v575
            %v577 = vrcp.pop %v576
            %v578 = vmul.f32 %v576, %v577
            %v579 = vsub.f32 1.0, %v578
            %v580 = vmul.f32 %v577, %v579
            %v581 = vadd.f32 %v577, %v580
            %vm582 = vweird.f32 %v576
            %vm583 = vweird.f32 %v577
            %vm584 = vmor %vm582, %vm583
            %v585 = vsel %vm584, %v577, %v581
            %v586 = vand.u32 2147483647, %v576
            %vm587 = vcmp.eq.f32.partialorder %v586, 8.507059e+37
            %v588 = vand.u32 %v576, 2147483648
            %v589 = vor.u32 1.1754944e-38, %v588
            %v590 = vsel %vm587, %v589, %v585
            %v591 = vand.u32 2147483647, %v537
            %v592 = vand.u32 2147483647, %v539
            %v593 = vand.u32 2147483647, %v541
            %v594 = vmin.f32 %v591, %v593
            %v595 = vmul.f32 1.1920929e-08, %v594
            %vm596 = vcmp.le.f32.partialorder %v592, %v595
            %v597 = vsel %vm596, 0.0, %v590
            %v598 = vmul.f32 %v597, %v597
            %v599 = vadd.f32 1.0, %v598
            %v600 = vrsqrt.pop %v599
            %v601 = vmul.f32 %v600, %v599
            %v602 = vmul.f32 %v601, %v600
            %v603 = vmul.f32 0.5, %v602
            %v604 = vsub.f32 1.5, %v603
            %v605 = vmul.f32 %v600, %v604
            %vm606 = vweird.f32 %v599
            %vm607 = vweird.f32 %v600
            %vm608 = vmor %vm606, %vm607
            %v609 = vsel %vm608, %v600, %v605
            %v610 = vmul.f32 %v597, %v609
            %v611 = vmul.f32 %v597, %v539
            %v612 = vsub.f32 %v537, %v611
            %v613 = vmul.f32 %v597, %v539
            %v614 = vadd.f32 %v541, %v613
            %s615 = smov [#allocation27]
            %616 = vst [vmem:[%s615] sm:$0xff] %v612
            %s617 = smov [#allocation28]
            %618 = vst [vmem:[%s617] sm:$0xff] %v614
            %s619 = smov %s534
            %620 = vst [vmem:[%s619] sm:$0xff] %v609
            %s621 = smov %s535
            %622 = vst [vmem:[%s621] sm:$0xff] %v610
            %s623 = smov [#allocation29]
            %v624 = vld [vmem:[%s623] ss:$0 sm:$0xff]
            %v625 = vlaneseq
            %v626 = vand.u32 %v625, 127
            %v627 = vmov %v626
            %v628 = vlaneseq
            %v629 = vshrl.u32 %v628, 7
            %v630 = vmov %v629
            %vm632 = vcmp.eq.s32.totalorder %v630, %v627
            %v633 = vsel %vm632, %v624, 0.0
            %634 = vadd.xlane.f32.xlu0 %v633
            %v635 = vpop.xlane.xlu0 %634
            %s636 = smov [#allocation31]
            %637 = vst [vmem:[%s636] sm:$0xff] %v635
            %s638 = smov [#allocation30]
            %v639 = vld [vmem:[%s638] ss:$0 sm:$0xff]
            %v640 = vlaneseq
            %v641 = vand.u32 %v640, 127
            %v642 = vmov %v641
            %v643 = vlaneseq
            %v644 = vshrl.u32 %v643, 7
            %v645 = vmov %v644
            %vm647 = vcmp.eq.s32.totalorder %v645, %v642
            %v648 = vsel %vm647, %v639, 0.0
            %649 = vadd.xlane.f32.xlu0 %v648
            %v650 = vpop.xlane.xlu0 %649
            %s651 = smov [#allocation32]
            %652 = vst [vmem:[%s651] sm:$0xff] %v650
            %s653 = smov [#allocation31]
            %v654 = vld [vmem:[%s653] sm:$0xff]
            %s655 = smov [#allocation32]
            %v656 = vld [vmem:[%s655] sm:$0xff]
            %s657 = smov [#allocation20]
            %s658 = smov [#allocation21]
            %s659 = smov [#allocation22]
            %s660 = smov [#allocation23]
            %v661 = vld [vmem:[%s657] sm:$0x3]
            %v662 = vld [vmem:[%s658] sm:$0x3]
            %v663 = vld [vmem:[%s659] sm:$0x3]
            %v664 = vld [vmem:[%s660] sm:$0x3]
            %v665 = vmul.f32 %v654, %v661
            %v666 = vmul.f32 %v656, %v663
            %v667 = vsub.f32 %v665, %v666
            %v668 = vmul.f32 %v654, %v662
            %v669 = vmul.f32 %v656, %v664
            %v670 = vsub.f32 %v668, %v669
            %v671 = vmul.f32 %v656, %v661
            %v672 = vmul.f32 %v654, %v663
            %v673 = vadd.f32 %v671, %v672
            %v674 = vmul.f32 %v656, %v662
            %v675 = vmul.f32 %v654, %v664
            %v676 = vadd.f32 %v674, %v675
            %677 = vst [vmem:[%s657] sm:$0x3] %v667
            %678 = vst [vmem:[%s658] sm:$0x3] %v670
            %679 = vst [vmem:[%s659] sm:$0x3] %v673
            %680 = vst [vmem:[%s660] sm:$0x3] %v676
            %s681 = smov [#allocation29]
            %v682 = vld [vmem:[%s681] ss:$0 sm:$0xff]
            %s683 = smov [#allocation30]
            %v684 = vld [vmem:[%s683] ss:$0 sm:$0xff]
            %s685 = smov [#allocation20]
            %s686 = smov [#allocation21]
            %s687 = smov [#allocation22]
            %s688 = smov [#allocation23]
            %v689 = vld [vmem:[%s685] sm:$0x3]
            %v690 = vld [vmem:[%s686] sm:$0x3]
            %v691 = vld [vmem:[%s687] sm:$0x3]
            %v692 = vld [vmem:[%s688] sm:$0x3]
            %v693 = vmul.f32 %v682, %v689
            %v694 = vmul.f32 %v684, %v690
            %v695 = vsub.f32 %v693, %v694
            %v696 = vmul.f32 %v684, %v689
            %v697 = vmul.f32 %v682, %v690
            %v698 = vadd.f32 %v696, %v697
            %v699 = vmul.f32 %v682, %v691
            %v700 = vmul.f32 %v684, %v692
            %v701 = vsub.f32 %v699, %v700
            %v702 = vmul.f32 %v684, %v691
            %v703 = vmul.f32 %v682, %v692
            %v704 = vadd.f32 %v702, %v703
            %705 = vst [vmem:[%s685] sm:$0x3] %v695
            %706 = vst [vmem:[%s686] sm:$0x3] %v698
            %707 = vst [vmem:[%s687] sm:$0x3] %v701
            %708 = vst [vmem:[%s688] sm:$0x3] %v704
            %s709 = smov [#allocation20]
            %s710 = smov [#allocation27]
            %v711 = vlaneseq
            %v712 = vand.u32 %v711, 127
            %v713 = vmov %v712
            %v714 = vlaneseq
            %v715 = vshrl.u32 %v714, 7
            %v716 = vmov %v715
            %v717 = vld [vmem:[%s710] ss:$0 sm:$0xff]
            %v718 = vld [vmem:[%s709] sm:$0x3]
            %vm721 = vcmp.eq.s32.totalorder %v716, %v713
            %v722 = vsel %vm721, %v717, %v718
            %723 = vst [vmem:[%s709] sm:$0x3] %v722
            %s724 = smov [#allocation21]
            %v725 = vlaneseq
            %v726 = vand.u32 %v725, 127
            %v727 = vmov %v726
            %v728 = vlaneseq
            %v729 = vshrl.u32 %v728, 7
            %v730 = vmov %v729
            %v731 = vld [vmem:[%s724] sm:$0x3]
            %vm734 = vcmp.eq.s32.totalorder %v730, %v727
            %v735 = vsel %vm734, 0.0, %v731
            %736 = vst [vmem:[%s724] sm:$0x3] %v735
            %s737 = smov [#allocation22]
            %v738 = vlaneseq
            %v739 = vand.u32 %v738, 127
            %v740 = vmov %v739
            %v741 = vlaneseq
            %v742 = vshrl.u32 %v741, 7
            %v743 = vmov %v742
            %v744 = vld [vmem:[%s737] sm:$0x3]
            %vm747 = vcmp.eq.s32.totalorder %v743, %v740
            %v748 = vsel %vm747, 0.0, %v744
            %749 = vst [vmem:[%s737] sm:$0x3] %v748
            %s750 = smov [#allocation23]
            %s751 = smov [#allocation28]
            %v752 = vlaneseq
            %v753 = vand.u32 %v752, 127
            %v754 = vmov %v753
            %v755 = vlaneseq
            %v756 = vshrl.u32 %v755, 7
            %v757 = vmov %v756
            %v758 = vld [vmem:[%s751] ss:$0 sm:$0xff]
            %v759 = vld [vmem:[%s750] sm:$0x3]
            %vm762 = vcmp.eq.s32.totalorder %v757, %v754
            %v763 = vsel %vm762, %v758, %v759
            %764 = vst [vmem:[%s750] sm:$0x3] %v763
            %s765 = smov [#allocation20]
            %s766 = smov [#allocation21]
            %v767 = vld [vmem:[%s766] sm:$0x3]
            %768 = vrot.lane.b32.xlu0 %v767, 1
            %v769 = vpop.permute.xlu0 %768
            %v770 = vld [vmem:[%s765] sm:$0x3]
            %v771 = vld [vmem:[%s765] sm:$0x3]
            %772 = vrot.lane.b32.xlu0 %v771, 1
            %v773 = vpop.permute.xlu0 %772
            %v774 = vlaneseq
            %v775 = vand.u32 %v774, 127
            %vm776 = vcmp.eq.s32.totalorder %v775, 0
            %v777 = vsel %vm776, %v771, %v773
            %v778 = vlaneseq
            %v779 = vand.u32 %v778, 127
            %vm780 = vcmp.eq.s32.totalorder %v779, 1
            %v781 = vsel %vm780, %v769, %v777
            %v782 = vlaneseq
            %v783 = vand.u32 %v782, 127
            %vm784 = vcmp.ge.s32.totalorder %v783, 0
            %vm785 = vcmp.lt.s32.totalorder %v783, 2
            %vm786 = vmand %vm784, %vm785
            %v787 = vsel %vm786, %v781, 0.0
            %v788 = vld [vmem:[%s766] sm:$0x3]
            %789 = vrot.lane.b32.xlu0 %v788, 127
            %v790 = vpop.permute.xlu0 %789
            %v791 = vlaneseq
            %v792 = vand.u32 %v791, 127
            %vm793 = vcmp.eq.s32.totalorder %v792, 1
            %v794 = vsel %vm793, %v770, %v790
            %795 = vst [vmem:[%s765] sm:$0x3] %v787
            %796 = vst [vmem:[%s766] sm:$0x3] %v794
            %s797 = smov [#allocation22]
            %s798 = smov [#allocation23]
            %v799 = vld [vmem:[%s798] sm:$0x3]
            %800 = vrot.lane.b32.xlu0 %v799, 1
            %v801 = vpop.permute.xlu0 %800
            %v802 = vld [vmem:[%s797] sm:$0x3]
            %v803 = vld [vmem:[%s797] sm:$0x3]
            %804 = vrot.lane.b32.xlu0 %v803, 1
            %v805 = vpop.permute.xlu0 %804
            %v806 = vlaneseq
            %v807 = vand.u32 %v806, 127
            %vm808 = vcmp.eq.s32.totalorder %v807, 0
            %v809 = vsel %vm808, %v803, %v805
            %v810 = vlaneseq
            %v811 = vand.u32 %v810, 127
            %vm812 = vcmp.eq.s32.totalorder %v811, 1
            %v813 = vsel %vm812, %v801, %v809
            %v814 = vlaneseq
            %v815 = vand.u32 %v814, 127
            %vm816 = vcmp.ge.s32.totalorder %v815, 0
            %vm817 = vcmp.lt.s32.totalorder %v815, 2
            %vm818 = vmand %vm816, %vm817
            %v819 = vsel %vm818, %v813, 0.0
            %v820 = vld [vmem:[%s798] sm:$0x3]
            %821 = vrot.lane.b32.xlu0 %v820, 127
            %v822 = vpop.permute.xlu0 %821
            %v823 = vlaneseq
            %v824 = vand.u32 %v823, 127
            %vm825 = vcmp.eq.s32.totalorder %v824, 1
            %v826 = vsel %vm825, %v802, %v822
            %827 = vst [vmem:[%s797] sm:$0x3] %v819
            %828 = vst [vmem:[%s798] sm:$0x3] %v826
            %s829 = smov [#allocation20]
            %s830 = smov [#allocation22]
            %v831 = vld [vmem:[%s829] ss:$0 sm:$0xff]
            %s833 = scalar_lea.vmem %s829, 4294967295
            %v834 = vld [vmem:[%s833] sm:$0x2]
            %v835 = vlaneseq
            %v836 = vshrl.u32 %v835, 7
            %vm837 = vcmp.eq.s32.totalorder %v836, 0
            %v838 = vsel %vm837, %v831, %v834
            %s839 = scalar_lea.vmem %s829, 1
            %v840 = vld [vmem:[%s839] ss:$0 sm:$0xff]
            %841 = vst [vmem:[%s829] sm:$0x3] %v838
            %v842 = vld [vmem:[%s830] ss:$0 sm:$0xff]
            %s843 = scalar_lea.vmem %s829, 1
            %844 = vst [vmem:[%s843] sm:$0x1] %v842
            %s845 = scalar_lea.vmem %s830, 1
            %v846 = vld [vmem:[%s845] sm:$0x1]
            %v847 = vlaneseq
            %v848 = vshrl.u32 %v847, 7
            %vm849 = vcmp.eq.s32.totalorder %v848, 1
            %v850 = vsel %vm849, %v840, %v846
            %v851 = vld [vmem:[%s830] ss:$0 sm:$0xff]
            %852 = vst [vmem:[%s830] sm:$0x3] %v850
            %s853 = smov [#allocation21]
            %s854 = smov [#allocation23]
            %v855 = vld [vmem:[%s853] ss:$0 sm:$0xff]
            %s857 = scalar_lea.vmem %s853, 4294967295
            %v858 = vld [vmem:[%s857] sm:$0x2]
            %v859 = vlaneseq
            %v860 = vshrl.u32 %v859, 7
            %vm861 = vcmp.eq.s32.totalorder %v860, 0
            %v862 = vsel %vm861, %v855, %v858
            %s863 = scalar_lea.vmem %s853, 1
            %v864 = vld [vmem:[%s863] ss:$0 sm:$0xff]
            %865 = vst [vmem:[%s853] sm:$0x3] %v862
            %v866 = vld [vmem:[%s854] ss:$0 sm:$0xff]
            %s867 = scalar_lea.vmem %s853, 1
            %868 = vst [vmem:[%s867] sm:$0x1] %v866
            %s869 = scalar_lea.vmem %s854, 1
            %v870 = vld [vmem:[%s869] sm:$0x1]
            %v871 = vlaneseq
            %v872 = vshrl.u32 %v871, 7
            %vm873 = vcmp.eq.s32.totalorder %v872, 1
            %v874 = vsel %vm873, %v864, %v870
            %v875 = vld [vmem:[%s854] ss:$0 sm:$0xff]
            %876 = vst [vmem:[%s854] sm:$0x3] %v874
            %s877 = smov [#allocation31]
            %v878 = vld [vmem:[%s877] sm:$0xff]
            %s879 = smov [#allocation32]
            %v880 = vld [vmem:[%s879] sm:$0xff]
            %s881 = smov [#allocation12]
            %s882 = smov [#allocation14]
            %s883 = smov [#allocation16]
            %s884 = smov [#allocation18]
            %v885 = vld [vmem:[%s881] sm:$0x3]
            %v886 = vld [vmem:[%s882] sm:$0x3]
            %v887 = vld [vmem:[%s883] sm:$0x3]
            %v888 = vld [vmem:[%s884] sm:$0x3]
            %v889 = vmul.f32 %v878, %v885
            %v890 = vmul.f32 %v880, %v887
            %v891 = vsub.f32 %v889, %v890
            %v892 = vmul.f32 %v878, %v886
            %v893 = vmul.f32 %v880, %v888
            %v894 = vsub.f32 %v892, %v893
            %v895 = vmul.f32 %v880, %v885
            %v896 = vmul.f32 %v878, %v887
            %v897 = vadd.f32 %v895, %v896
            %v898 = vmul.f32 %v880, %v886
            %v899 = vmul.f32 %v878, %v888
            %v900 = vadd.f32 %v898, %v899
            %901 = vst [vmem:[%s881] sm:$0x3] %v891
            %902 = vst [vmem:[%s882] sm:$0x3] %v894
            %903 = vst [vmem:[%s883] sm:$0x3] %v897
            %904 = vst [vmem:[%s884] sm:$0x3] %v900
            %s905 = smov [#allocation12]
            %s906 = smov [#allocation16]
            %v907 = vld [vmem:[%s905] ss:$0 sm:$0xff]
            %s909 = scalar_lea.vmem %s905, 4294967295
            %v910 = vld [vmem:[%s909] sm:$0x2]
            %v911 = vlaneseq
            %v912 = vshrl.u32 %v911, 7
            %vm913 = vcmp.eq.s32.totalorder %v912, 0
            %v914 = vsel %vm913, %v907, %v910
            %s915 = scalar_lea.vmem %s905, 1
            %v916 = vld [vmem:[%s915] ss:$0 sm:$0xff]
            %917 = vst [vmem:[%s905] sm:$0x3] %v914
            %v918 = vld [vmem:[%s906] ss:$0 sm:$0xff]
            %s919 = scalar_lea.vmem %s905, 1
            %920 = vst [vmem:[%s919] sm:$0x1] %v918
            %s921 = scalar_lea.vmem %s906, 1
            %v922 = vld [vmem:[%s921] sm:$0x1]
            %v923 = vlaneseq
            %v924 = vshrl.u32 %v923, 7
            %vm925 = vcmp.eq.s32.totalorder %v924, 1
            %v926 = vsel %vm925, %v916, %v922
            %v927 = vld [vmem:[%s906] ss:$0 sm:$0xff]
            %928 = vst [vmem:[%s906] sm:$0x3] %v926
            %s929 = smov [#allocation14]
            %s930 = smov [#allocation18]
            %v931 = vld [vmem:[%s929] ss:$0 sm:$0xff]
            %s933 = scalar_lea.vmem %s929, 4294967295
            %v934 = vld [vmem:[%s933] sm:$0x2]
            %v935 = vlaneseq
            %v936 = vshrl.u32 %v935, 7
            %vm937 = vcmp.eq.s32.totalorder %v936, 0
            %v938 = vsel %vm937, %v931, %v934
            %s939 = scalar_lea.vmem %s929, 1
            %v940 = vld [vmem:[%s939] ss:$0 sm:$0xff]
            %941 = vst [vmem:[%s929] sm:$0x3] %v938
            %v942 = vld [vmem:[%s930] ss:$0 sm:$0xff]
            %s943 = scalar_lea.vmem %s929, 1
            %944 = vst [vmem:[%s943] sm:$0x1] %v942
            %s945 = scalar_lea.vmem %s930, 1
            %v946 = vld [vmem:[%s945] sm:$0x1]
            %v947 = vlaneseq
            %v948 = vshrl.u32 %v947, 7
            %vm949 = vcmp.eq.s32.totalorder %v948, 1
            %v950 = vsel %vm949, %v940, %v946
            %v951 = vld [vmem:[%s930] ss:$0 sm:$0xff]
            %952 = vst [vmem:[%s930] sm:$0x3] %v950
          $region152: #{custom-call.22} parent=144 // loop_footer
            %s473 = sadd.s32 1, %s469
          $region153: #{custom-call.22} parent=144 // loop_footer_branch
            %468 = sbr.rel target = $region149
          $region154: #{custom-call.22} parent=144 // loop_exit
            _
          %s953 = sadd.s32 %s371, 1
        $region145: #{custom-call.22} parent=139 // loop_footer
          _
        $region146: #{custom-call.22} parent=139 // loop_footer_branch
          %370 = sbr.rel target = $region142
        $region147: #{custom-call.22} parent=139 // loop_exit
          _
        %s956 = sand.u32 %s17, 7
        %s957 = scalar_lea.vmem [#allocation8], %s956
        %s958 = sand.u32 %s17, 7
        %s959 = scalar_lea.vmem [#allocation10], %s958
        %s960 = smov [#allocation20]
        %s961 = smov %s957
        %v962 = vlaneseq
        %v963 = vand.u32 %v962, 127
        %v964 = vmov %v963
        %v965 = vlaneseq
        %v966 = vshrl.u32 %v965, 7
        %v967 = vmov %v966
        %v968 = vld [vmem:[%s960] sm:$0x3]
        %vm971 = vcmp.eq.s32.totalorder %v967, %v964
        %v972 = vsel %vm971, %v968, 0.0
        %v973 = vrot.slane %v972, 4
        %v974 = vadd.f32 %v972, %v973
        %v975 = vrot.slane %v974, 2
        %v976 = vadd.f32 %v974, %v975
        %v977 = vrot.slane %v976, 1
        %v978 = vadd.f32 %v976, %v977
        %979 = vst [vmem:[%s961] sm:$0x1] %v978
        %s980 = smov [#allocation23]
        %s981 = smov %s959
        %v982 = vlaneseq
        %v983 = vand.u32 %v982, 127
        %v984 = vmov %v983
        %v985 = vlaneseq
        %v986 = vshrl.u32 %v985, 7
        %v987 = vmov %v986
        %v988 = vld [vmem:[%s980] sm:$0x3]
        %vm991 = vcmp.eq.s32.totalorder %v987, %v984
        %v992 = vsel %vm991, %v988, 0.0
        %v993 = vrot.slane %v992, 4
        %v994 = vadd.f32 %v992, %v993
        %v995 = vrot.slane %v994, 2
        %v996 = vadd.f32 %v994, %v995
        %v997 = vrot.slane %v996, 1
        %v998 = vadd.f32 %v996, %v997
        %999 = vst [vmem:[%s981] sm:$0x1] %v998
        %s1001 = ssub.s32 4, 1
        %v1002 = vld [vmem:[#allocation8] sm:%s1001]
        %s1004 = ssub.s32 4, 1
        %1005 = vst [vmem:[%s287] sm:%s1004] %v1002
        %s1007 = ssub.s32 4, 1
        %v1008 = vld [vmem:[#allocation10] sm:%s1007]
        %s1010 = ssub.s32 4, 1
        %1011 = vst [vmem:[%s293] sm:%s1010] %v1008
        %s1013 = ssub.s32 4, 1
        %v1014 = vld [vmem:[#allocation12] sm:%s1013]
        %s1016 = ssub.s32 4, 1
        %1017 = vst [vmem:[%s297] sm:%s1016] %v1014
        %s1019 = ssub.s32 4, 1
        %v1020 = vld [vmem:[#allocation14] sm:%s1019]
        %s1022 = ssub.s32 4, 1
        %1023 = vst [vmem:[%s301] sm:%s1022] %v1020
        %s1025 = ssub.s32 4, 1
        %v1026 = vld [vmem:[#allocation16] sm:%s1025]
        %s1028 = ssub.s32 4, 1
        %1029 = vst [vmem:[%s305] sm:%s1028] %v1026
        %s1031 = ssub.s32 4, 1
        %v1032 = vld [vmem:[#allocation18] sm:%s1031]
        %s1034 = ssub.s32 4, 1
        %1035 = vst [vmem:[%s309] sm:%s1034] %v1032
        %s1036 = sand.u32 %s27, 1
        %s1037 = sand.u32 %s27, 1
        %s1038 = smul.addr %s1037, 2
        %s1039 = scalar_lea.vmem [#allocation9], %s1038
        %s1040 = sand.u32 %s55, 1
        %s1041 = sand.u32 %s55, 1
        %s1042 = smul.addr %s1041, 2
        %s1043 = scalar_lea.vmem [#allocation11], %s1042
        %s1044 = sand.u32 %s17, 1
        %s1045 = sand.u32 %s17, 1
        %s1046 = smul.addr %s1045, 2
        %s1047 = scalar_lea.vmem [#allocation13], %s1046
        %s1048 = sand.u32 %s17, 1
        %s1049 = sand.u32 %s17, 1
        %s1050 = smul.addr %s1049, 2
        %s1051 = scalar_lea.vmem [#allocation15], %s1050
        %s1052 = sand.u32 %s17, 1
        %s1053 = sand.u32 %s17, 1
        %s1054 = smul.addr %s1053, 2
        %s1055 = scalar_lea.vmem [#allocation17], %s1054
        %s1056 = sand.u32 %s17, 1
        %s1057 = sand.u32 %s17, 1
        %s1058 = smul.addr %s1057, 2
        %s1059 = scalar_lea.vmem [#allocation19], %s1058
        // Predicated region
        $region155: #{custom-call.22} parent=139 // pred_check
          %p1060 = pneg %p37
        $region156: #{custom-call.22} parent=139 // pred_check_branch
          %1062 = sbr.rel (%p1060) target = $region158
        $region157: #{custom-call.22} parent=139 // pred_region
          %s1063 = sshrl.u32 %s17, 3
          %s1064 = smul.addr %s1063, 2
          %s1065 = scalar_lea.vmem %s4, %s1064
          // Predicated region
          $region159: #{custom-call.22} parent=157 // pred_check
            _
          $region160: #{custom-call.22} parent=157 // pred_check_branch
            %1067 = sbr.rel (0) target = $region162
          $region161: #{custom-call.22} parent=157 // pred_region
            // Predicated region
            $region163: #{custom-call.22} parent=161 // pred_check
              _
            $region164: #{custom-call.22} parent=161 // pred_check_branch
              %1069 = sbr.rel target = $region166
            $region165: #{custom-call.22} parent=161 // pred_region
              // Predicated region
              $region178: #{custom-call.22} parent=165 // pred_check
                _
              $region179: #{custom-call.22} parent=165 // pred_check_branch
                %1085 = sbr.rel (0) target = $region181
              $region180: #{custom-call.22} parent=165 // pred_region
                %s1087 = ssub.s32 4, 1
                loop: start=0, step=1, limit=1
                $region182: #{custom-call.22} parent=180 // loop_pre_header
                  _
                $region183: #{custom-call.22} parent=180 // loop_header
                  %s1089 = sphi 0, %s1093
                  %p1090 = scmp.ge.s32.totalorder %s1089, 1
                  %s1094 = sphi %s1039, %s1039
                  %s1095 = sphi %s1065, %s1065
                $region184: #{custom-call.22} parent=180 // loop_header_branch
                  %1092 = sbr.rel (%p1090) target = $region188
                $region185: #{custom-call.22} parent=180 // loop_body
                  %v1096 = vld [vmem:[%s1094] sm:%s1087]
                  %1097 = vst [vmem:[%s1095] sm:%s1087] %v1096
                $region186: #{custom-call.22} parent=180 // loop_footer
                  %s1093 = sadd.s32 1, %s1089
                $region187: #{custom-call.22} parent=180 // loop_footer_branch
                  %1088 = sbr.rel target = $region183
                $region188: #{custom-call.22} parent=180 // loop_exit
                  _
              $region181: #{custom-call.22} parent=165 // pred_fallthru
                _
            $region166: #{custom-call.22} parent=161 // pred_fallthru
              _
            // Predicated region
            $region167: #{custom-call.22} parent=161 // pred_check
              _
            $region168: #{custom-call.22} parent=161 // pred_check_branch
              %1071 = sbr.rel (0) target = $region170
            $region169: #{custom-call.22} parent=161 // pred_region
              %s1073 = ssub.s32 4, 1
              loop: start=0, step=1, limit=1
              $region171: #{custom-call.22} parent=169 // loop_pre_header
                _
              $region172: #{custom-call.22} parent=169 // loop_header
                %s1075 = sphi 0, %s1079
                %p1076 = scmp.ge.s32.totalorder %s1075, 1
                %s1080 = sphi %s1039, %s1039
                %s1081 = sphi %s1065, %s1065
              $region173: #{custom-call.22} parent=169 // loop_header_branch
                %1078 = sbr.rel (%p1076) target = $region177
              $region174: #{custom-call.22} parent=169 // loop_body
                %v1082 = vld [vmem:[%s1080] sm:%s1073]
                %1083 = vst [vmem:[%s1081] sm:%s1073] %v1082
              $region175: #{custom-call.22} parent=169 // loop_footer
                %s1079 = sadd.s32 1, %s1075
              $region176: #{custom-call.22} parent=169 // loop_footer_branch
                %1074 = sbr.rel target = $region172
              $region177: #{custom-call.22} parent=169 // loop_exit
                _
            $region170: #{custom-call.22} parent=161 // pred_fallthru
              _
          $region162: #{custom-call.22} parent=157 // pred_fallthru
            _
          %1098 = vnop
        $region158: #{custom-call.22} parent=139 // pred_fallthru
          _
        // Predicated region
        $region189: #{custom-call.22} parent=139 // pred_check
          %p1099 = pneg %p65
        $region190: #{custom-call.22} parent=139 // pred_check_branch
          %1101 = sbr.rel (%p1099) target = $region192
        $region191: #{custom-call.22} parent=139 // pred_region
          %s1102 = sshrl.u32 %s17, 3
          %s1103 = smul.addr %s1102, 2
          %s1104 = scalar_lea.vmem %s5, %s1103
          // Predicated region
          $region193: #{custom-call.22} parent=191 // pred_check
            _
          $region194: #{custom-call.22} parent=191 // pred_check_branch
            %1106 = sbr.rel (0) target = $region196
          $region195: #{custom-call.22} parent=191 // pred_region
            // Predicated region
            $region197: #{custom-call.22} parent=195 // pred_check
              _
            $region198: #{custom-call.22} parent=195 // pred_check_branch
              %1108 = sbr.rel target = $region200
            $region199: #{custom-call.22} parent=195 // pred_region
              // Predicated region
              $region212: #{custom-call.22} parent=199 // pred_check
                _
              $region213: #{custom-call.22} parent=199 // pred_check_branch
                %1124 = sbr.rel (0) target = $region215
              $region214: #{custom-call.22} parent=199 // pred_region
                %s1126 = ssub.s32 4, 1
                loop: start=0, step=1, limit=1
                $region216: #{custom-call.22} parent=214 // loop_pre_header
                  _
                $region217: #{custom-call.22} parent=214 // loop_header
                  %s1128 = sphi 0, %s1132
                  %p1129 = scmp.ge.s32.totalorder %s1128, 1
                  %s1133 = sphi %s1043, %s1043
                  %s1134 = sphi %s1104, %s1104
                $region218: #{custom-call.22} parent=214 // loop_header_branch
                  %1131 = sbr.rel (%p1129) target = $region222
                $region219: #{custom-call.22} parent=214 // loop_body
                  %v1135 = vld [vmem:[%s1133] sm:%s1126]
                  %1136 = vst [vmem:[%s1134] sm:%s1126] %v1135
                $region220: #{custom-call.22} parent=214 // loop_footer
                  %s1132 = sadd.s32 1, %s1128
                $region221: #{custom-call.22} parent=214 // loop_footer_branch
                  %1127 = sbr.rel target = $region217
                $region222: #{custom-call.22} parent=214 // loop_exit
                  _
              $region215: #{custom-call.22} parent=199 // pred_fallthru
                _
            $region200: #{custom-call.22} parent=195 // pred_fallthru
              _
            // Predicated region
            $region201: #{custom-call.22} parent=195 // pred_check
              _
            $region202: #{custom-call.22} parent=195 // pred_check_branch
              %1110 = sbr.rel (0) target = $region204
            $region203: #{custom-call.22} parent=195 // pred_region
              %s1112 = ssub.s32 4, 1
              loop: start=0, step=1, limit=1
              $region205: #{custom-call.22} parent=203 // loop_pre_header
                _
              $region206: #{custom-call.22} parent=203 // loop_header
                %s1114 = sphi 0, %s1118
                %p1115 = scmp.ge.s32.totalorder %s1114, 1
                %s1119 = sphi %s1043, %s1043
                %s1120 = sphi %s1104, %s1104
              $region207: #{custom-call.22} parent=203 // loop_header_branch
                %1117 = sbr.rel (%p1115) target = $region211
              $region208: #{custom-call.22} parent=203 // loop_body
                %v1121 = vld [vmem:[%s1119] sm:%s1112]
                %1122 = vst [vmem:[%s1120] sm:%s1112] %v1121
              $region209: #{custom-call.22} parent=203 // loop_footer
                %s1118 = sadd.s32 1, %s1114
              $region210: #{custom-call.22} parent=203 // loop_footer_branch
                %1113 = sbr.rel target = $region206
              $region211: #{custom-call.22} parent=203 // loop_exit
                _
            $region204: #{custom-call.22} parent=195 // pred_fallthru
              _
          $region196: #{custom-call.22} parent=191 // pred_fallthru
            _
          %1137 = vnop
        $region192: #{custom-call.22} parent=139 // pred_fallthru
          _
        %s1138 = smul.addr %s17, 2
        %s1139 = scalar_lea.vmem %s6, %s1138
        // Predicated region
        $region223: #{custom-call.22} parent=139 // pred_check
          _
        $region224: #{custom-call.22} parent=139 // pred_check_branch
          %1141 = sbr.rel (0) target = $region226
        $region225: #{custom-call.22} parent=139 // pred_region
          // Predicated region
          $region227: #{custom-call.22} parent=225 // pred_check
            _
          $region228: #{custom-call.22} parent=225 // pred_check_branch
            %1143 = sbr.rel target = $region230
          $region229: #{custom-call.22} parent=225 // pred_region
            // Predicated region
            $region242: #{custom-call.22} parent=229 // pred_check
              _
            $region243: #{custom-call.22} parent=229 // pred_check_branch
              %1159 = sbr.rel (0) target = $region245
            $region244: #{custom-call.22} parent=229 // pred_region
              %s1161 = ssub.s32 4, 1
              loop: start=0, step=1, limit=1
              $region246: #{custom-call.22} parent=244 // loop_pre_header
                _
              $region247: #{custom-call.22} parent=244 // loop_header
                %s1163 = sphi 0, %s1167
                %p1164 = scmp.ge.s32.totalorder %s1163, 1
                %s1168 = sphi %s1047, %s1047
                %s1169 = sphi %s1139, %s1139
              $region248: #{custom-call.22} parent=244 // loop_header_branch
                %1166 = sbr.rel (%p1164) target = $region252
              $region249: #{custom-call.22} parent=244 // loop_body
                %v1170 = vld [vmem:[%s1168] sm:%s1161]
                %1171 = vst [vmem:[%s1169] sm:%s1161] %v1170
              $region250: #{custom-call.22} parent=244 // loop_footer
                %s1167 = sadd.s32 1, %s1163
              $region251: #{custom-call.22} parent=244 // loop_footer_branch
                %1162 = sbr.rel target = $region247
              $region252: #{custom-call.22} parent=244 // loop_exit
                _
            $region245: #{custom-call.22} parent=229 // pred_fallthru
              _
          $region230: #{custom-call.22} parent=225 // pred_fallthru
            _
          // Predicated region
          $region231: #{custom-call.22} parent=225 // pred_check
            _
          $region232: #{custom-call.22} parent=225 // pred_check_branch
            %1145 = sbr.rel (0) target = $region234
          $region233: #{custom-call.22} parent=225 // pred_region
            %s1147 = ssub.s32 4, 1
            loop: start=0, step=1, limit=1
            $region235: #{custom-call.22} parent=233 // loop_pre_header
              _
            $region236: #{custom-call.22} parent=233 // loop_header
              %s1149 = sphi 0, %s1153
              %p1150 = scmp.ge.s32.totalorder %s1149, 1
              %s1154 = sphi %s1047, %s1047
              %s1155 = sphi %s1139, %s1139
            $region237: #{custom-call.22} parent=233 // loop_header_branch
              %1152 = sbr.rel (%p1150) target = $region241
            $region238: #{custom-call.22} parent=233 // loop_body
              %v1156 = vld [vmem:[%s1154] sm:%s1147]
              %1157 = vst [vmem:[%s1155] sm:%s1147] %v1156
            $region239: #{custom-call.22} parent=233 // loop_footer
              %s1153 = sadd.s32 1, %s1149
            $region240: #{custom-call.22} parent=233 // loop_footer_branch
              %1148 = sbr.rel target = $region236
            $region241: #{custom-call.22} parent=233 // loop_exit
              _
          $region234: #{custom-call.22} parent=225 // pred_fallthru
            _
        $region226: #{custom-call.22} parent=139 // pred_fallthru
          _
        %1172 = vnop
        %s1173 = smul.addr %s17, 2
        %s1174 = scalar_lea.vmem %s7, %s1173
        // Predicated region
        $region253: #{custom-call.22} parent=139 // pred_check
          _
        $region254: #{custom-call.22} parent=139 // pred_check_branch
          %1176 = sbr.rel (0) target = $region256
        $region255: #{custom-call.22} parent=139 // pred_region
          // Predicated region
          $region257: #{custom-call.22} parent=255 // pred_check
            _
          $region258: #{custom-call.22} parent=255 // pred_check_branch
            %1178 = sbr.rel target = $region260
          $region259: #{custom-call.22} parent=255 // pred_region
            // Predicated region
            $region272: #{custom-call.22} parent=259 // pred_check
              _
            $region273: #{custom-call.22} parent=259 // pred_check_branch
              %1194 = sbr.rel (0) target = $region275
            $region274: #{custom-call.22} parent=259 // pred_region
              %s1196 = ssub.s32 4, 1
              loop: start=0, step=1, limit=1
              $region276: #{custom-call.22} parent=274 // loop_pre_header
                _
              $region277: #{custom-call.22} parent=274 // loop_header
                %s1198 = sphi 0, %s1202
                %p1199 = scmp.ge.s32.totalorder %s1198, 1
                %s1203 = sphi %s1051, %s1051
                %s1204 = sphi %s1174, %s1174
              $region278: #{custom-call.22} parent=274 // loop_header_branch
                %1201 = sbr.rel (%p1199) target = $region282
              $region279: #{custom-call.22} parent=274 // loop_body
                %v1205 = vld [vmem:[%s1203] sm:%s1196]
                %1206 = vst [vmem:[%s1204] sm:%s1196] %v1205
              $region280: #{custom-call.22} parent=274 // loop_footer
                %s1202 = sadd.s32 1, %s1198
              $region281: #{custom-call.22} parent=274 // loop_footer_branch
                %1197 = sbr.rel target = $region277
              $region282: #{custom-call.22} parent=274 // loop_exit
                _
            $region275: #{custom-call.22} parent=259 // pred_fallthru
              _
          $region260: #{custom-call.22} parent=255 // pred_fallthru
            _
          // Predicated region
          $region261: #{custom-call.22} parent=255 // pred_check
            _
          $region262: #{custom-call.22} parent=255 // pred_check_branch
            %1180 = sbr.rel (0) target = $region264
          $region263: #{custom-call.22} parent=255 // pred_region
            %s1182 = ssub.s32 4, 1
            loop: start=0, step=1, limit=1
            $region265: #{custom-call.22} parent=263 // loop_pre_header
              _
            $region266: #{custom-call.22} parent=263 // loop_header
              %s1184 = sphi 0, %s1188
              %p1185 = scmp.ge.s32.totalorder %s1184, 1
              %s1189 = sphi %s1051, %s1051
              %s1190 = sphi %s1174, %s1174
            $region267: #{custom-call.22} parent=263 // loop_header_branch
              %1187 = sbr.rel (%p1185) target = $region271
            $region268: #{custom-call.22} parent=263 // loop_body
              %v1191 = vld [vmem:[%s1189] sm:%s1182]
              %1192 = vst [vmem:[%s1190] sm:%s1182] %v1191
            $region269: #{custom-call.22} parent=263 // loop_footer
              %s1188 = sadd.s32 1, %s1184
            $region270: #{custom-call.22} parent=263 // loop_footer_branch
              %1183 = sbr.rel target = $region266
            $region271: #{custom-call.22} parent=263 // loop_exit
              _
          $region264: #{custom-call.22} parent=255 // pred_fallthru
            _
        $region256: #{custom-call.22} parent=139 // pred_fallthru
          _
        %1207 = vnop
        %s1208 = smul.addr %s17, 2
        %s1209 = scalar_lea.vmem %s8, %s1208
        // Predicated region
        $region283: #{custom-call.22} parent=139 // pred_check
          _
        $region284: #{custom-call.22} parent=139 // pred_check_branch
          %1211 = sbr.rel (0) target = $region286
        $region285: #{custom-call.22} parent=139 // pred_region
          // Predicated region
          $region287: #{custom-call.22} parent=285 // pred_check
            _
          $region288: #{custom-call.22} parent=285 // pred_check_branch
            %1213 = sbr.rel target = $region290
          $region289: #{custom-call.22} parent=285 // pred_region
            // Predicated region
            $region302: #{custom-call.22} parent=289 // pred_check
              _
            $region303: #{custom-call.22} parent=289 // pred_check_branch
              %1229 = sbr.rel (0) target = $region305
            $region304: #{custom-call.22} parent=289 // pred_region
              %s1231 = ssub.s32 4, 1
              loop: start=0, step=1, limit=1
              $region306: #{custom-call.22} parent=304 // loop_pre_header
                _
              $region307: #{custom-call.22} parent=304 // loop_header
                %s1233 = sphi 0, %s1237
                %p1234 = scmp.ge.s32.totalorder %s1233, 1
                %s1238 = sphi %s1055, %s1055
                %s1239 = sphi %s1209, %s1209
              $region308: #{custom-call.22} parent=304 // loop_header_branch
                %1236 = sbr.rel (%p1234) target = $region312
              $region309: #{custom-call.22} parent=304 // loop_body
                %v1240 = vld [vmem:[%s1238] sm:%s1231]
                %1241 = vst [vmem:[%s1239] sm:%s1231] %v1240
              $region310: #{custom-call.22} parent=304 // loop_footer
                %s1237 = sadd.s32 1, %s1233
              $region311: #{custom-call.22} parent=304 // loop_footer_branch
                %1232 = sbr.rel target = $region307
              $region312: #{custom-call.22} parent=304 // loop_exit
                _
            $region305: #{custom-call.22} parent=289 // pred_fallthru
              _
          $region290: #{custom-call.22} parent=285 // pred_fallthru
            _
          // Predicated region
          $region291: #{custom-call.22} parent=285 // pred_check
            _
          $region292: #{custom-call.22} parent=285 // pred_check_branch
            %1215 = sbr.rel (0) target = $region294
          $region293: #{custom-call.22} parent=285 // pred_region
            %s1217 = ssub.s32 4, 1
            loop: start=0, step=1, limit=1
            $region295: #{custom-call.22} parent=293 // loop_pre_header
              _
            $region296: #{custom-call.22} parent=293 // loop_header
              %s1219 = sphi 0, %s1223
              %p1220 = scmp.ge.s32.totalorder %s1219, 1
              %s1224 = sphi %s1055, %s1055
              %s1225 = sphi %s1209, %s1209
            $region297: #{custom-call.22} parent=293 // loop_header_branch
              %1222 = sbr.rel (%p1220) target = $region301
            $region298: #{custom-call.22} parent=293 // loop_body
              %v1226 = vld [vmem:[%s1224] sm:%s1217]
              %1227 = vst [vmem:[%s1225] sm:%s1217] %v1226
            $region299: #{custom-call.22} parent=293 // loop_footer
              %s1223 = sadd.s32 1, %s1219
            $region300: #{custom-call.22} parent=293 // loop_footer_branch
              %1218 = sbr.rel target = $region296
            $region301: #{custom-call.22} parent=293 // loop_exit
              _
          $region294: #{custom-call.22} parent=285 // pred_fallthru
            _
        $region286: #{custom-call.22} parent=139 // pred_fallthru
          _
        %1242 = vnop
        %s1243 = smul.addr %s17, 2
        %s1244 = scalar_lea.vmem %s9, %s1243
        // Predicated region
        $region313: #{custom-call.22} parent=139 // pred_check
          _
        $region314: #{custom-call.22} parent=139 // pred_check_branch
          %1246 = sbr.rel (0) target = $region316
        $region315: #{custom-call.22} parent=139 // pred_region
          // Predicated region
          $region317: #{custom-call.22} parent=315 // pred_check
            _
          $region318: #{custom-call.22} parent=315 // pred_check_branch
            %1248 = sbr.rel target = $region320
          $region319: #{custom-call.22} parent=315 // pred_region
            // Predicated region
            $region332: #{custom-call.22} parent=319 // pred_check
              _
            $region333: #{custom-call.22} parent=319 // pred_check_branch
              %1264 = sbr.rel (0) target = $region335
            $region334: #{custom-call.22} parent=319 // pred_region
              %s1266 = ssub.s32 4, 1
              loop: start=0, step=1, limit=1
              $region336: #{custom-call.22} parent=334 // loop_pre_header
                _
              $region337: #{custom-call.22} parent=334 // loop_header
                %s1268 = sphi 0, %s1272
                %p1269 = scmp.ge.s32.totalorder %s1268, 1
                %s1273 = sphi %s1059, %s1059
                %s1274 = sphi %s1244, %s1244
              $region338: #{custom-call.22} parent=334 // loop_header_branch
                %1271 = sbr.rel (%p1269) target = $region342
              $region339: #{custom-call.22} parent=334 // loop_body
                %v1275 = vld [vmem:[%s1273] sm:%s1266]
                %1276 = vst [vmem:[%s1274] sm:%s1266] %v1275
              $region340: #{custom-call.22} parent=334 // loop_footer
                %s1272 = sadd.s32 1, %s1268
              $region341: #{custom-call.22} parent=334 // loop_footer_branch
                %1267 = sbr.rel target = $region337
              $region342: #{custom-call.22} parent=334 // loop_exit
                _
            $region335: #{custom-call.22} parent=319 // pred_fallthru
              _
          $region320: #{custom-call.22} parent=315 // pred_fallthru
            _
          // Predicated region
          $region321: #{custom-call.22} parent=315 // pred_check
            _
          $region322: #{custom-call.22} parent=315 // pred_check_branch
            %1250 = sbr.rel (0) target = $region324
          $region323: #{custom-call.22} parent=315 // pred_region
            %s1252 = ssub.s32 4, 1
            loop: start=0, step=1, limit=1
            $region325: #{custom-call.22} parent=323 // loop_pre_header
              _
            $region326: #{custom-call.22} parent=323 // loop_header
              %s1254 = sphi 0, %s1258
              %p1255 = scmp.ge.s32.totalorder %s1254, 1
              %s1259 = sphi %s1059, %s1059
              %s1260 = sphi %s1244, %s1244
            $region327: #{custom-call.22} parent=323 // loop_header_branch
              %1257 = sbr.rel (%p1255) target = $region331
            $region328: #{custom-call.22} parent=323 // loop_body
              %v1261 = vld [vmem:[%s1259] sm:%s1252]
              %1262 = vst [vmem:[%s1260] sm:%s1252] %v1261
            $region329: #{custom-call.22} parent=323 // loop_footer
              %s1258 = sadd.s32 1, %s1254
            $region330: #{custom-call.22} parent=323 // loop_footer_branch
              %1253 = sbr.rel target = $region326
            $region331: #{custom-call.22} parent=323 // loop_exit
              _
          $region324: #{custom-call.22} parent=315 // pred_fallthru
            _
        $region316: #{custom-call.22} parent=139 // pred_fallthru
          _
        %1277 = vnop
      $region140: #{custom-call.22} parent=5 // pred_fallthru
        _
      %p1278 = scmp.le.s32.totalorder 2, %s12
      // Predicated region
      $region343: #{custom-call.22} parent=5 // pred_check
        %p1279 = pneg %p1278
      $region344: #{custom-call.22} parent=5 // pred_check_branch
        %1281 = sbr.rel (%p1279) target = $region346
      $region345: #{custom-call.22} parent=5 // pred_region
        %s1282 = ssub.s32 %s12, 2
        // Predicated region
        $region347: #{custom-call.22} parent=345 // pred_check
          %p1283 = pneg %p43
        $region348: #{custom-call.22} parent=345 // pred_check_branch
          %1285 = sbr.rel (%p1283) target = $region350
        $region349: #{custom-call.22} parent=345 // pred_region
          %s1286 = sand.u32 %s28, 1
          %s1287 = sand.u32 %s28, 1
          %s1288 = smul.addr %s1287, 2
          %s1289 = scalar_lea.vmem [#allocation9], %s1288
        $region350: #{custom-call.22} parent=345 // pred_fallthru
          _
        // Predicated region
        $region351: #{custom-call.22} parent=345 // pred_check
          %p1290 = pneg %p71
        $region352: #{custom-call.22} parent=345 // pred_check_branch
          %1292 = sbr.rel (%p1290) target = $region354
        $region353: #{custom-call.22} parent=345 // pred_region
          %s1293 = sand.u32 %s56, 1
          %s1294 = sand.u32 %s56, 1
          %s1295 = smul.addr %s1294, 2
          %s1296 = scalar_lea.vmem [#allocation11], %s1295
        $region354: #{custom-call.22} parent=345 // pred_fallthru
          _
        %s1297 = sand.u32 %s18, 1
        %s1298 = sand.u32 %s18, 1
        %s1299 = smul.addr %s1298, 2
        %s1300 = scalar_lea.vmem [#allocation13], %s1299
        %s1301 = sand.u32 %s18, 1
        %s1302 = sand.u32 %s18, 1
        %s1303 = smul.addr %s1302, 2
        %s1304 = scalar_lea.vmem [#allocation15], %s1303
        %s1305 = sand.u32 %s18, 1
        %s1306 = sand.u32 %s18, 1
        %s1307 = smul.addr %s1306, 2
        %s1308 = scalar_lea.vmem [#allocation17], %s1307
        %s1309 = sand.u32 %s18, 1
        %s1310 = sand.u32 %s18, 1
        %s1311 = smul.addr %s1310, 2
        %s1312 = scalar_lea.vmem [#allocation19], %s1311
      $region346: #{custom-call.22} parent=5 // pred_fallthru
        _
    $region6: #{custom-call.22} parent=1 // loop_footer
      %s16 = sadd.s32 1, %s12
    $region7: #{custom-call.22} parent=1 // loop_footer_branch
      %11 = sbr.rel target = $region3
    $region8: #{custom-call.22} parent=1 // loop_exit
      _

// kernel: reverse
$region0: #{reverse}
  %s0 = inlined_call_operand.vmem [shape: f32[2,3], index: 0, kind: input, shape index: {}]
  %s1 = inlined_call_operand.vmem [shape: f32[2,3], index: 1, kind: output, shape index: {}]
  %v2 = vlaneseq
  %v3 = vsub.s32 2, %v2
  %4 = vset.pattern.permute.xlu0 %v3
  $region1: #{reverse} parent=0
    #allocation0 [shape = 'u8[4096]{0}', space=vmem, size = 0x1000, scoped, tag = 'operand span for operand 0']
    #allocation1 [shape = 'u8[1024]{0}', space=vmem, size = 0x400, scoped, tag = 'packed  for operand 0']
    #allocation2 [shape = 'u8[4096]{0}', space=vmem, size = 0x1000, scoped, tag = 'operand span for operand 1']
    #allocation3 [shape = 'u8[1024]{0}', space=vmem, size = 0x400, scoped, tag = 'packed  for operand 1']
    // Predicated region
    $region2: #{reverse} parent=1 // pred_check
      _
    $region3: #{reverse} parent=1 // pred_check_branch
      %6 = sbr.rel (0) target = $region5
    $region4: #{reverse} parent=1 // pred_region
      // Predicated region
      $region6: #{reverse} parent=4 // pred_check
        _
      $region7: #{reverse} parent=4 // pred_check_branch
        %8 = sbr.rel target = $region9
      $region8: #{reverse} parent=4 // pred_region
        // Predicated region
        $region21: #{reverse} parent=8 // pred_check
          _
        $region22: #{reverse} parent=8 // pred_check_branch
          %24 = sbr.rel (0) target = $region24
        $region23: #{reverse} parent=8 // pred_region
          %s26 = ssub.s32 4, 1
          loop: start=0, step=1, limit=1
          $region25: #{reverse} parent=23 // loop_pre_header
            _
          $region26: #{reverse} parent=23 // loop_header
            %s28 = sphi 0, %s32
            %p29 = scmp.ge.s32.totalorder %s28, 1
            %s33 = sphi %s0, %s0
            %s34 = sphi [#allocation1], [#allocation1]
          $region27: #{reverse} parent=23 // loop_header_branch
            %31 = sbr.rel (%p29) target = $region31
          $region28: #{reverse} parent=23 // loop_body
            %v35 = vld [vmem:[%s33] sm:%s26]
            %36 = vst [vmem:[%s34] sm:%s26] %v35
          $region29: #{reverse} parent=23 // loop_footer
            %s32 = sadd.s32 1, %s28
          $region30: #{reverse} parent=23 // loop_footer_branch
            %27 = sbr.rel target = $region26
          $region31: #{reverse} parent=23 // loop_exit
            _
        $region24: #{reverse} parent=8 // pred_fallthru
          _
      $region9: #{reverse} parent=4 // pred_fallthru
        _
      // Predicated region
      $region10: #{reverse} parent=4 // pred_check
        _
      $region11: #{reverse} parent=4 // pred_check_branch
        %10 = sbr.rel (0) target = $region13
      $region12: #{reverse} parent=4 // pred_region
        %s12 = ssub.s32 4, 1
        loop: start=0, step=1, limit=1
        $region14: #{reverse} parent=12 // loop_pre_header
          _
        $region15: #{reverse} parent=12 // loop_header
          %s14 = sphi 0, %s18
          %p15 = scmp.ge.s32.totalorder %s14, 1
          %s19 = sphi %s0, %s0
          %s20 = sphi [#allocation1], [#allocation1]
        $region16: #{reverse} parent=12 // loop_header_branch
          %17 = sbr.rel (%p15) target = $region20
        $region17: #{reverse} parent=12 // loop_body
          %v21 = vld [vmem:[%s19] sm:%s12]
          %22 = vst [vmem:[%s20] sm:%s12] %v21
        $region18: #{reverse} parent=12 // loop_footer
          %s18 = sadd.s32 1, %s14
        $region19: #{reverse} parent=12 // loop_footer_branch
          %13 = sbr.rel target = $region15
        $region20: #{reverse} parent=12 // loop_exit
          _
      $region13: #{reverse} parent=4 // pred_fallthru
        _
    $region5: #{reverse} parent=1 // pred_fallthru
      _
    %37 = vnop
    %s39 = ssub.s32 4, 1
    %v40 = vld [vmem:[#allocation1] sm:%s39]
    %41 = vst [vmem:[#allocation0] sm:%s39] %v40
    %v42 = vld [vmem:[#allocation0] sm:$0xff]
    %43 = vperm.xlu0 %4, %v42
    %v44 = vpop.permute.xlu0 %43
    %45 = vst [vmem:[#allocation2] sm:$0xff] %v44
    %s47 = ssub.s32 4, 1
    %v48 = vld [vmem:[#allocation2] sm:%s47]
    %s50 = ssub.s32 4, 1
    %51 = vst [vmem:[#allocation3] sm:%s50] %v48
    // Predicated region
    $region32: #{reverse} parent=1 // pred_check
      _
    $region33: #{reverse} parent=1 // pred_check_branch
      %53 = sbr.rel (0) target = $region35
    $region34: #{reverse} parent=1 // pred_region
      // Predicated region
      $region36: #{reverse} parent=34 // pred_check
        _
      $region37: #{reverse} parent=34 // pred_check_branch
        %55 = sbr.rel target = $region39
      $region38: #{reverse} parent=34 // pred_region
        // Predicated region
        $region51: #{reverse} parent=38 // pred_check
          _
        $region52: #{reverse} parent=38 // pred_check_branch
          %71 = sbr.rel (0) target = $region54
        $region53: #{reverse} parent=38 // pred_region
          %s73 = ssub.s32 4, 1
          loop: start=0, step=1, limit=1
          $region55: #{reverse} parent=53 // loop_pre_header
            _
          $region56: #{reverse} parent=53 // loop_header
            %s75 = sphi 0, %s79
            %p76 = scmp.ge.s32.totalorder %s75, 1
            %s80 = sphi [#allocation3], [#allocation3]
            %s81 = sphi %s1, %s1
          $region57: #{reverse} parent=53 // loop_header_branch
            %78 = sbr.rel (%p76) target = $region61
          $region58: #{reverse} parent=53 // loop_body
            %v82 = vld [vmem:[%s80] sm:%s73]
            %83 = vst [vmem:[%s81] sm:%s73] %v82
          $region59: #{reverse} parent=53 // loop_footer
            %s79 = sadd.s32 1, %s75
          $region60: #{reverse} parent=53 // loop_footer_branch
            %74 = sbr.rel target = $region56
          $region61: #{reverse} parent=53 // loop_exit
            _
        $region54: #{reverse} parent=38 // pred_fallthru
          _
      $region39: #{reverse} parent=34 // pred_fallthru
        _
      // Predicated region
      $region40: #{reverse} parent=34 // pred_check
        _
      $region41: #{reverse} parent=34 // pred_check_branch
        %57 = sbr.rel (0) target = $region43
      $region42: #{reverse} parent=34 // pred_region
        %s59 = ssub.s32 4, 1
        loop: start=0, step=1, limit=1
        $region44: #{reverse} parent=42 // loop_pre_header
          _
        $region45: #{reverse} parent=42 // loop_header
          %s61 = sphi 0, %s65
          %p62 = scmp.ge.s32.totalorder %s61, 1
          %s66 = sphi [#allocation3], [#allocation3]
          %s67 = sphi %s1, %s1
        $region46: #{reverse} parent=42 // loop_header_branch
          %64 = sbr.rel (%p62) target = $region50
        $region47: #{reverse} parent=42 // loop_body
          %v68 = vld [vmem:[%s66] sm:%s59]
          %69 = vst [vmem:[%s67] sm:%s59] %v68
        $region48: #{reverse} parent=42 // loop_footer
          %s65 = sadd.s32 1, %s61
        $region49: #{reverse} parent=42 // loop_footer_branch
          %60 = sbr.rel target = $region45
        $region50: #{reverse} parent=42 // loop_exit
          _
      $region43: #{reverse} parent=34 // pred_fallthru
        _
    $region35: #{reverse} parent=1 // pred_fallthru
      _
    %84 = vnop

// kernel: custom-call.16
$region0: #{custom-call.16}
  %s0 = inlined_call_operand.vmem [shape: f32[2,3,3], index: 0, kind: input, shape index: {}]
  %s1 = inlined_call_operand.vmem [shape: f32[2,3,3], index: 1, kind: output, shape index: {0}]
  %s2 = inlined_call_operand.vmem [shape: f32[2,3], index: 2, kind: output, shape index: {1}]
  %3 = xla_tuple %s1, %s2
  $region1: #{custom-call.16} parent=0
    #allocation0 [shape = 'u8[4096]{0}', space=vmem, size = 0x1000, scoped, tag = 'operand span for operand 0']
    #allocation1 [shape = 'u8[4096]{0}', space=vmem, size = 0x1000, scoped, tag = 'packed  for operand 0']
    #allocation2 [shape = 'u8[4096]{0}', space=vmem, size = 0x1000, scoped, tag = 'operand span for operand 1']
    #allocation3 [shape = 'u8[4096]{0}', space=vmem, size = 0x1000, scoped, tag = 'packed  for operand 1']
    #allocation4 [shape = 'u8[4096]{0}', space=vmem, size = 0x1000, scoped, tag = 'operand span for operand 2']
    #allocation5 [shape = 'u8[2048]{0}', space=vmem, size = 0x800, scoped, tag = 'packed  for operand 2']
    loop: start=0, step=1, limit=4
    $region2: #{custom-call.16} parent=1 // loop_pre_header
      _
    $region3: #{custom-call.16} parent=1 // loop_header
      %s5 = sphi 0, %s9
      %p6 = scmp.ge.s32.totalorder %s5, 4
      %s12 = sphi 0, %s31
      %s13 = sphi 0, %s27
      %s14 = sphi 0, %s23
      %s15 = sphi 0, %s12
      %s16 = sphi 0, %s13
      %s17 = sphi 0, %s14
      %s18 = sphi 0, %s15
      %s19 = sphi 0, %s16
      %s20 = sphi 0, %s17
      %s46 = sphi 0, %s48
      %s49 = sphi 0, %s46
      %s50 = sphi 0, %s49
      %s66 = sphi 0, %s50
    $region4: #{custom-call.16} parent=1 // loop_header_branch
      %8 = sbr.rel (%p6) target = $region8
    $region5: #{custom-call.16} parent=1 // loop_body
      %s10 = ssub.s32 %s5, 1
      %s11 = ssub.s32 %s5, 2
      %s21 = sadd.s32 1, %s14
      %p22 = scmp.ge.s32.totalorder %s21, 1
      %s23 = scalar_select %p22, 0, %s21
      %s24 = sadd.s32 1, %s13
      %s25 = scalar_select %p22, %s24, %s13
      %p26 = scmp.ge.s32.totalorder %s25, 1
      %s27 = scalar_select %p26, 0, %s25
      %s28 = sadd.s32 1, %s12
      %s29 = scalar_select %p26, %s28, %s12
      %p30 = scmp.ge.s32.totalorder %s29, 2
      %s31 = scalar_select %p30, 0, %s29
      %p32 = scmp.lt.s32.totalorder %s12, 0
      %s33 = ssub.s32 0, %s12
      %s34 = scalar_select %p32, %s33, %s12
      %s35 = sshrl.u32 %s34, 3
      %s36 = ssub.s32 0, %s35
      %s37 = scalar_select %p32, %s36, %s35
      %p38 = scmp.lt.s32.totalorder %s31, 0
      %s39 = ssub.s32 0, %s31
      %s40 = scalar_select %p38, %s39, %s31
      %s41 = sshrl.u32 %s40, 3
      %s42 = ssub.s32 0, %s41
      %s43 = scalar_select %p38, %s42, %s41
      %s44 = ssub.s32 %s37, %s43
      %p45 = scmp.eq.s32.totalorder %s44, 0
      %s47 = sadd.s32 %s46, 1
      %s48 = scalar_select %p45, %s46, %s47
      %p51 = pneg %p45
      %p52 = scmp.eq.s32.totalorder %s5, 1
      %p53 = por %p51, %p52
      %p54 = scmp.ne.s32.totalorder %s46, %s49
      %p55 = scmp.eq.s32.totalorder %s5, 0
      %p56 = por %p54, %p55
      %p57 = scmp.ne.s32.totalorder %s46, %s49
      %p58 = scmp.eq.s32.totalorder %s10, 1
      %p59 = por %p57, %p58
      %p60 = scmp.ne.s32.totalorder %s49, %s50
      %p61 = scmp.eq.s32.totalorder %s10, 0
      %p62 = por %p60, %p61
      %p63 = scmp.ne.s32.totalorder %s49, %s50
      %p64 = scmp.eq.s32.totalorder %s11, 1
      %p65 = por %p63, %p64
      %p67 = scmp.ne.s32.totalorder %s50, %s66
      %p68 = scmp.eq.s32.totalorder %s11, 0
      %p69 = por %p67, %p68
      %p70 = scmp.le.s32.totalorder 1, %s5
      %p71 = scmp.lt.s32.totalorder %s5, 3
      %p72 = pnand %p70, %p71
      %p73 = pneg %p72
      // Predicated region
      $region9: #{custom-call.16} parent=5 // pred_check
        _
      $region10: #{custom-call.16} parent=5 // pred_check_branch
        %75 = sbr.rel (%p72) target = $region12
      $region11: #{custom-call.16} parent=5 // pred_region
        %s76 = ssub.s32 %s5, 1
      $region12: #{custom-call.16} parent=5 // pred_fallthru
        _
      %p77 = scmp.lt.s32.totalorder %s5, 2
      // Predicated region
      $region13: #{custom-call.16} parent=5 // pred_check
        %p78 = pneg %p77
      $region14: #{custom-call.16} parent=5 // pred_check_branch
        %80 = sbr.rel (%p78) target = $region16
      $region15: #{custom-call.16} parent=5 // pred_region
        %s81 = sand.u32 %s5, 1
        %s82 = sand.u32 %s5, 1
        %s83 = smul.addr %s82, 4
        %s84 = scalar_lea.vmem [#allocation1], %s83
        %s85 = sadd.s32 %s14, %s13
        %s86 = sadd.s32 %s85, %s12
        %s87 = smul.addr %s86, 4
        %s88 = scalar_lea.vmem %s0, %s87
        // Predicated region
        $region17: #{custom-call.16} parent=15 // pred_check
          _
        $region18: #{custom-call.16} parent=15 // pred_check_branch
          %90 = sbr.rel (0) target = $region20
        $region19: #{custom-call.16} parent=15 // pred_region
          // Predicated region
          $region21: #{custom-call.16} parent=19 // pred_check
            _
          $region22: #{custom-call.16} parent=19 // pred_check_branch
            %92 = sbr.rel target = $region24
          $region23: #{custom-call.16} parent=19 // pred_region
            // Predicated region
            $region36: #{custom-call.16} parent=23 // pred_check
              _
            $region37: #{custom-call.16} parent=23 // pred_check_branch
              %108 = sbr.rel (0) target = $region39
            $region38: #{custom-call.16} parent=23 // pred_region
              %s110 = ssub.s32 16, 1
              loop: start=0, step=1, limit=1
              $region40: #{custom-call.16} parent=38 // loop_pre_header
                _
              $region41: #{custom-call.16} parent=38 // loop_header
                %s112 = sphi 0, %s116
                %p113 = scmp.ge.s32.totalorder %s112, 1
                %s117 = sphi %s88, %s88
                %s118 = sphi %s84, %s84
              $region42: #{custom-call.16} parent=38 // loop_header_branch
                %115 = sbr.rel (%p113) target = $region46
              $region43: #{custom-call.16} parent=38 // loop_body
                %v119 = vld [vmem:[%s117] sm:%s110]
                %120 = vst [vmem:[%s118] sm:%s110] %v119
              $region44: #{custom-call.16} parent=38 // loop_footer
                %s116 = sadd.s32 1, %s112
              $region45: #{custom-call.16} parent=38 // loop_footer_branch
                %111 = sbr.rel target = $region41
              $region46: #{custom-call.16} parent=38 // loop_exit
                _
            $region39: #{custom-call.16} parent=23 // pred_fallthru
              _
          $region24: #{custom-call.16} parent=19 // pred_fallthru
            _
          // Predicated region
          $region25: #{custom-call.16} parent=19 // pred_check
            _
          $region26: #{custom-call.16} parent=19 // pred_check_branch
            %94 = sbr.rel (0) target = $region28
          $region27: #{custom-call.16} parent=19 // pred_region
            %s96 = ssub.s32 16, 1
            loop: start=0, step=1, limit=1
            $region29: #{custom-call.16} parent=27 // loop_pre_header
              _
            $region30: #{custom-call.16} parent=27 // loop_header
              %s98 = sphi 0, %s102
              %p99 = scmp.ge.s32.totalorder %s98, 1
              %s103 = sphi %s88, %s88
              %s104 = sphi %s84, %s84
            $region31: #{custom-call.16} parent=27 // loop_header_branch
              %101 = sbr.rel (%p99) target = $region35
            $region32: #{custom-call.16} parent=27 // loop_body
              %v105 = vld [vmem:[%s103] sm:%s96]
              %106 = vst [vmem:[%s104] sm:%s96] %v105
            $region33: #{custom-call.16} parent=27 // loop_footer
              %s102 = sadd.s32 1, %s98
            $region34: #{custom-call.16} parent=27 // loop_footer_branch
              %97 = sbr.rel target = $region30
            $region35: #{custom-call.16} parent=27 // loop_exit
              _
          $region28: #{custom-call.16} parent=19 // pred_fallthru
            _
        $region20: #{custom-call.16} parent=15 // pred_fallthru
          _
        %121 = vnop
      $region16: #{custom-call.16} parent=5 // pred_fallthru
        _
      %p122 = scmp.le.s32.totalorder 1, %s5
      %p123 = scmp.lt.s32.totalorder %s5, 3
      %p124 = pnand %p122, %p123
      %p125 = pneg %p124
      // Predicated region
      $region47: #{custom-call.16} parent=5 // pred_check
        _
      $region48: #{custom-call.16} parent=5 // pred_check_branch
        %127 = sbr.rel (%p124) target = $region50
      $region49: #{custom-call.16} parent=5 // pred_region
        #allocation6 [shape = 'f32[3,128]{1,0}', space=vmem, size = 0x1000, scoped, tag = 'scratch for Householder reflectors']
        %s128 = ssub.s32 %s5, 1
        %s129 = sand.u32 %s10, 1
        %s130 = sand.u32 %s10, 1
        %s131 = smul.addr %s130, 4
        %s132 = scalar_lea.vmem [#allocation1], %s131
        %s133 = sand.u32 %s10, 1
        %s134 = sand.u32 %s10, 1
        %s135 = smul.addr %s134, 4
        %s136 = scalar_lea.vmem [#allocation1], %s135
        %s137 = sand.u32 %s10, 1
        %s138 = sand.u32 %s10, 1
        %s139 = smul.addr %s138, 4
        %s140 = scalar_lea.vmem [#allocation3], %s139
        %p141 = pneg %p62
        %p142 = pneg %p59
        %s143 = sand.u32 %s49, 1
        %s144 = sand.u32 %s49, 1
        %s145 = smul.addr %s144, 2
        %s146 = scalar_lea.vmem [#allocation5], %s145
        %s148 = ssub.s32 16, 1
        %v149 = vld [vmem:[%s136] sm:%s148]
        %150 = vst [vmem:[#allocation0] sm:%s148] %v149
        %p151 = scmp.lt.s32.totalorder %s15, 0
        %s152 = ssub.s32 0, %s15
        %s153 = scalar_select %p151, %s152, %s15
        %s154 = sshrl.u32 %s153, 3
        %s155 = ssub.s32 0, %s154
        %s156 = scalar_select %p151, %s155, %s154
        %s157 = sand.u32 %s15, 7
        %s158 = scalar_lea.vmem [#allocation4], %s157
        %v159 = vld [vmem:[#allocation0] sm:$0xff]
        %160 = vst [vmem:[#allocation2] sm:$0xff] %v159
        %161 = vst [vmem:[%s158] sm:$0x1] 0.0
        loop: start=0, step=1, limit=3
        $region51: #{custom-call.16} parent=49 // loop_pre_header
          _
        $region52: #{custom-call.16} parent=49 // loop_header
          %s163 = sphi 0, %s167
          %p164 = scmp.ge.s32.totalorder %s163, 3
        $region53: #{custom-call.16} parent=49 // loop_header_branch
          %166 = sbr.rel (%p164) target = $region57
        $region54: #{custom-call.16} parent=49 // loop_body
          %v168 = vld [vmem:[#allocation2] sm:$0xff]
          %v169 = vlaneseq
          %v170 = vshrl.u32 %v169, 7
          %v172 = vstv %s163
          %vm173 = vcmp.gt.s32.totalorder %v170, %v172
          %vm174 = vcmp.lt.s32.totalorder %v170, 3
          %vm175 = vmand %vm173, %vm174
          %v176 = vsel %vm175, %v168, 0.0
          %v177 = vmul.f32 %v176, %v176
          %v178 = vrot.slane %v177, 4
          %v179 = vadd.f32 %v177, %v178
          %v180 = vrot.slane %v179, 2
          %v181 = vadd.f32 %v179, %v180
          %v182 = vrot.slane %v181, 1
          %v183 = vadd.f32 %v181, %v182
          %v184 = vrsqrt.pop %v183
          %v185 = vmul.f32 %v184, %v183
          %v186 = vmul.f32 %v185, %v184
          %v187 = vmul.f32 0.5, %v186
          %v188 = vsub.f32 1.5, %v187
          %v189 = vmul.f32 %v184, %v188
          %v190 = vmul.f32 %v183, %v189
          %vm191 = vcmp.eq.f32.partialorder %v183, inf
          %v192 = vsel %vm191, %v183, %v190
          %vm193 = vcmp.eq.f32.partialorder %v183, 0.0
          %v194 = vand.u32 %v183, 2147483648
          %v195 = vsel %vm193, %v194, %v192
          %vm196 = vcmp.eq.f32.partialorder %v183, 0.0
          %s197 = sshrl.u32 %s163, 3
          %s198 = sand.u32 %s163, 7
          %s199 = smul.addr %s197, 8
          %s200 = sadd.s32 %s198, %s199
          %s201 = scalar_lea.vmem [#allocation2], %s200
          %v202 = vld [vmem:[%s201] ss:$0 sm:$0xff]
          %v203 = vand.u32 2147483647, %v202
          %v204 = vmax.f32 %v203, 0.0
          %v205 = vand.u32 2147483647, %v195
          %v206 = vmax.f32 %v204, %v205
          %v207 = vrcp.pop %v206
          %v208 = vmul.f32 %v206, %v207
          %v209 = vsub.f32 1.0, %v208
          %v210 = vmul.f32 %v207, %v209
          %v211 = vadd.f32 %v207, %v210
          %vm212 = vweird.f32 %v206
          %vm213 = vweird.f32 %v207
          %vm214 = vmor %vm212, %vm213
          %v215 = vsel %vm214, %v207, %v211
          %v216 = vand.u32 2147483647, %v206
          %vm217 = vcmp.eq.f32.partialorder %v216, 8.507059e+37
          %v218 = vand.u32 %v206, 2147483648
          %v219 = vor.u32 1.1754944e-38, %v218
          %v220 = vsel %vm217, %v219, %v215
          %v221 = vmul.f32 %v203, %v220
          %v222 = vmul.f32 %v221, %v221
          %v223 = vrcp.pop %v206
          %v224 = vmul.f32 %v206, %v223
          %v225 = vsub.f32 1.0, %v224
          %v226 = vmul.f32 %v223, %v225
          %v227 = vadd.f32 %v223, %v226
          %vm228 = vweird.f32 %v206
          %vm229 = vweird.f32 %v223
          %vm230 = vmor %vm228, %vm229
          %v231 = vsel %vm230, %v223, %v227
          %v232 = vand.u32 2147483647, %v206
          %vm233 = vcmp.eq.f32.partialorder %v232, 8.507059e+37
          %v234 = vand.u32 %v206, 2147483648
          %v235 = vor.u32 1.1754944e-38, %v234
          %v236 = vsel %vm233, %v235, %v231
          %v237 = vmul.f32 0.0, %v236
          %v238 = vmul.f32 %v237, %v237
          %v239 = vadd.f32 %v222, %v238
          %v240 = vrcp.pop %v206
          %v241 = vmul.f32 %v206, %v240
          %v242 = vsub.f32 1.0, %v241
          %v243 = vmul.f32 %v240, %v242
          %v244 = vadd.f32 %v240, %v243
          %vm245 = vweird.f32 %v206
          %vm246 = vweird.f32 %v240
          %vm247 = vmor %vm245, %vm246
          %v248 = vsel %vm247, %v240, %v244
          %v249 = vand.u32 2147483647, %v206
          %vm250 = vcmp.eq.f32.partialorder %v249, 8.507059e+37
          %v251 = vand.u32 %v206, 2147483648
          %v252 = vor.u32 1.1754944e-38, %v251
          %v253 = vsel %vm250, %v252, %v248
          %v254 = vmul.f32 %v205, %v253
          %v255 = vmul.f32 %v254, %v254
          %v256 = vadd.f32 %v239, %v255
          %vm257 = vcmp.eq.f32.partialorder %v206, 0.0
          %v258 = vrsqrt.pop %v256
          %v259 = vmul.f32 %v258, %v256
          %v260 = vmul.f32 %v259, %v258
          %v261 = vmul.f32 0.5, %v260
          %v262 = vsub.f32 1.5, %v261
          %v263 = vmul.f32 %v258, %v262
          %v264 = vmul.f32 %v256, %v263
          %vm265 = vcmp.eq.f32.partialorder %v256, inf
          %v266 = vsel %vm265, %v256, %v264
          %vm267 = vcmp.eq.f32.partialorder %v256, 0.0
          %v268 = vand.u32 %v256, 2147483648
          %v269 = vsel %vm267, %v268, %v266
          %v270 = vmul.f32 %v206, %v269
          %v271 = vsel %vm257, 0.0, %v270
          %vm272 = vcmp.lt.f32.partialorder %v202, 0.0
          %v273 = vxor.u32 %v271, 2147483648
          %v274 = vsel %vm272, %v271, %v273
          %v275 = vsub.f32 %v274, %v202
          %v276 = vrcp.pop %v274
          %v277 = vmul.f32 %v274, %v276
          %v278 = vsub.f32 1.0, %v277
          %v279 = vmul.f32 %v276, %v278
          %v280 = vadd.f32 %v276, %v279
          %vm281 = vweird.f32 %v274
          %vm282 = vweird.f32 %v276
          %vm283 = vmor %vm281, %vm282
          %v284 = vsel %vm283, %v276, %v280
          %v285 = vand.u32 2147483647, %v274
          %vm286 = vcmp.eq.f32.partialorder %v285, 8.507059e+37
          %v287 = vand.u32 %v274, 2147483648
          %v288 = vor.u32 1.1754944e-38, %v287
          %v289 = vsel %vm286, %v288, %v284
          %v290 = vmul.f32 %v275, %v289
          %v291 = vsel %vm196, %v202, %v274
          %v292 = vsel %vm196, 0.0, %v290
          %v293 = vsub.f32 %v202, %v291
          %s294 = smov [#allocation2]
          %v295 = vlaneseq
          %v296 = vshrl.u32 %v295, 7
          %v297 = vmov %v296
          %v298 = vld [vmem:[%s294] sm:$0xff]
          %v300 = vstv %s163
          %vm301 = vcmp.gt.s32.totalorder %v297, %v300
          %vm302 = vcmp.lt.s32.totalorder %v297, 3
          %vm303 = vmand %vm301, %vm302
          %v304 = vsel %vm303, %v298, 0.0
          %v305 = vrcp.pop %v293
          %v306 = vmul.f32 %v293, %v305
          %v307 = vsub.f32 1.0, %v306
          %v308 = vmul.f32 %v305, %v307
          %v309 = vadd.f32 %v305, %v308
          %vm310 = vweird.f32 %v293
          %vm311 = vweird.f32 %v305
          %vm312 = vmor %vm310, %vm311
          %v313 = vsel %vm312, %v305, %v309
          %v314 = vand.u32 2147483647, %v293
          %vm315 = vcmp.eq.f32.partialorder %v314, 8.507059e+37
          %v316 = vand.u32 %v293, 2147483648
          %v317 = vor.u32 1.1754944e-38, %v316
          %v318 = vsel %vm315, %v317, %v313
          %v319 = vmul.f32 %v304, %v318
          %v320 = vsel %vm196, 0.0, %v319
          %v321 = vstv %s163
          %v322 = vlaneseq
          %v323 = vand.u32 %v322, 127
          %vm324 = vcmp.eq.s32.totalorder %v323, %v321
          %v325 = vsel %vm324, %v320, 0.0
          %326 = vadd.xlane.f32.xlu0 %v325
          %v327 = vpop.xlane.xlu0 %326
          %328 = vst [vmem:[#allocation6] sm:$0xff] %v327
          %s329 = scalar_lea.vmem [#allocation6], %s163
          %330 = vst [vmem:[%s329] sm:$0x1] 1.0
          %v331 = vstv %s163
          %v332 = vlaneseq
          %v333 = vand.u32 %v332, 127
          %vm334 = vcmp.eq.s32.totalorder %v333, %v331
          %v335 = vsel %vm334, %v292, 0.0
          %336 = vadd.xlane.f32.xlu0 %v335
          %v337 = vpop.xlane.xlu0 %336
          %v338 = vstv %s163
          %v339 = vlaneseq
          %v340 = vand.u32 %v339, 127
          %vm341 = vcmp.eq.s32.totalorder %v340, %v338
          %v342 = vld [vmem:[%s158] ss:$0 sm:$0xff]
          %v343 = vsel %vm341, %v337, %v342
          %344 = vst [vmem:[%s158] sm:$0x1] %v343
          %s345 = smov [#allocation2]
          %s346 = smov [#allocation6]
          %v347 = vlaneseq
          %v348 = vshrl.u32 %v347, 7
          %v349 = vmov %v348
          %v351 = vld [vmem:[%s346] sm:$0xff]
          %v352 = vld [vmem:[%s345] sm:$0xff]
          %v353 = vmul.f32 %v351, %v352
          %vm354 = vcmp.lt.s32.totalorder %v349, 3
          %v355 = vsel %vm354, %v353, 0.0
          %v356 = vrot.slane %v355, 4
          %v357 = vadd.f32 %v355, %v356
          %v358 = vrot.slane %v357, 2
          %v359 = vadd.f32 %v357, %v358
          %v360 = vrot.slane %v359, 1
          %v361 = vadd.f32 %v359, %v360
          %s362 = smov %s345
          %s363 = smov %s346
          %v364 = vlaneseq
          %v365 = vshrl.u32 %v364, 7
          %v366 = vmov %v365
          %v367 = vmul.f32 %v361, %v337
          %v369 = vlaneseq
          %v370 = vand.u32 %v369, 127
          %v371 = vld [vmem:[%s363] sm:$0xff]
          %v372 = vmul.f32 %v371, %v367
          %v373 = vld [vmem:[%s362] sm:$0xff]
          %v374 = vstv %s163
          %vm375 = vcmp.gt.s32.totalorder %v370, %v374
          %v376 = vsub.f32 %v373, %v372
          %v377 = vsel %vm375, %v376, %v373
          %v378 = vstv %s163
          %v379 = vlaneseq
          %v380 = vand.u32 %v379, 127
          %vm381 = vcmp.eq.s32.totalorder %v380, %v378
          %v382 = vstv %s163
          %vm383 = vcmp.ge.s32.totalorder %v366, %v382
          %vm384 = vmand %vm381, %vm383
          %v385 = vsel %vm384, %v371, %v377
          %386 = vst [vmem:[%s362] sm:$0xff] %v385
          %s387 = scalar_lea.vmem %s362, %s163
          %v388 = vld [vmem:[%s387] ss:$0 sm:$0xff]
          %v389 = vstv %s163
          %v390 = vlaneseq
          %v391 = vand.u32 %v390, 127
          %vm392 = vcmp.eq.s32.totalorder %v391, %v389
          %v393 = vsel %vm392, %v291, %v388
          %394 = vst [vmem:[%s387] sm:$0x1] %v393
        $region55: #{custom-call.16} parent=49 // loop_footer
          %s167 = sadd.s32 1, %s163
        $region56: #{custom-call.16} parent=49 // loop_footer_branch
          %162 = sbr.rel target = $region52
        $region57: #{custom-call.16} parent=49 // loop_exit
          _
        %s396 = ssub.s32 16, 1
        %v397 = vld [vmem:[#allocation2] sm:%s396]
        %s399 = ssub.s32 16, 1
        %400 = vst [vmem:[%s140] sm:%s399] %v397
        %s402 = ssub.s32 4, 1
        %v403 = vld [vmem:[#allocation4] sm:%s402]
        %s405 = ssub.s32 4, 1
        %406 = vst [vmem:[%s146] sm:%s405] %v403
        %s407 = sand.u32 %s10, 1
        %s408 = sand.u32 %s10, 1
        %s409 = smul.addr %s408, 4
        %s410 = scalar_lea.vmem [#allocation3], %s409
        %s411 = sand.u32 %s49, 1
        %s412 = sand.u32 %s49, 1
        %s413 = smul.addr %s412, 2
        %s414 = scalar_lea.vmem [#allocation5], %s413
        %s415 = sadd.s32 %s17, %s16
        %s416 = sadd.s32 %s415, %s15
        %s417 = smul.addr %s416, 4
        %s418 = scalar_lea.vmem %s1, %s417
        // Predicated region
        $region58: #{custom-call.16} parent=49 // pred_check
          _
        $region59: #{custom-call.16} parent=49 // pred_check_branch
          %420 = sbr.rel (0) target = $region61
        $region60: #{custom-call.16} parent=49 // pred_region
          // Predicated region
          $region62: #{custom-call.16} parent=60 // pred_check
            _
          $region63: #{custom-call.16} parent=60 // pred_check_branch
            %422 = sbr.rel target = $region65
          $region64: #{custom-call.16} parent=60 // pred_region
            // Predicated region
            $region77: #{custom-call.16} parent=64 // pred_check
              _
            $region78: #{custom-call.16} parent=64 // pred_check_branch
              %438 = sbr.rel (0) target = $region80
            $region79: #{custom-call.16} parent=64 // pred_region
              %s440 = ssub.s32 16, 1
              loop: start=0, step=1, limit=1
              $region81: #{custom-call.16} parent=79 // loop_pre_header
                _
              $region82: #{custom-call.16} parent=79 // loop_header
                %s442 = sphi 0, %s446
                %p443 = scmp.ge.s32.totalorder %s442, 1
                %s447 = sphi %s410, %s410
                %s448 = sphi %s418, %s418
              $region83: #{custom-call.16} parent=79 // loop_header_branch
                %445 = sbr.rel (%p443) target = $region87
              $region84: #{custom-call.16} parent=79 // loop_body
                %v449 = vld [vmem:[%s447] sm:%s440]
                %450 = vst [vmem:[%s448] sm:%s440] %v449
              $region85: #{custom-call.16} parent=79 // loop_footer
                %s446 = sadd.s32 1, %s442
              $region86: #{custom-call.16} parent=79 // loop_footer_branch
                %441 = sbr.rel target = $region82
              $region87: #{custom-call.16} parent=79 // loop_exit
                _
            $region80: #{custom-call.16} parent=64 // pred_fallthru
              _
          $region65: #{custom-call.16} parent=60 // pred_fallthru
            _
          // Predicated region
          $region66: #{custom-call.16} parent=60 // pred_check
            _
          $region67: #{custom-call.16} parent=60 // pred_check_branch
            %424 = sbr.rel (0) target = $region69
          $region68: #{custom-call.16} parent=60 // pred_region
            %s426 = ssub.s32 16, 1
            loop: start=0, step=1, limit=1
            $region70: #{custom-call.16} parent=68 // loop_pre_header
              _
            $region71: #{custom-call.16} parent=68 // loop_header
              %s428 = sphi 0, %s432
              %p429 = scmp.ge.s32.totalorder %s428, 1
              %s433 = sphi %s410, %s410
              %s434 = sphi %s418, %s418
            $region72: #{custom-call.16} parent=68 // loop_header_branch
              %431 = sbr.rel (%p429) target = $region76
            $region73: #{custom-call.16} parent=68 // loop_body
              %v435 = vld [vmem:[%s433] sm:%s426]
              %436 = vst [vmem:[%s434] sm:%s426] %v435
            $region74: #{custom-call.16} parent=68 // loop_footer
              %s432 = sadd.s32 1, %s428
            $region75: #{custom-call.16} parent=68 // loop_footer_branch
              %427 = sbr.rel target = $region71
            $region76: #{custom-call.16} parent=68 // loop_exit
              _
          $region69: #{custom-call.16} parent=60 // pred_fallthru
            _
        $region61: #{custom-call.16} parent=49 // pred_fallthru
          _
        %451 = vnop
        // Predicated region
        $region88: #{custom-call.16} parent=49 // pred_check
          %p452 = pneg %p59
        $region89: #{custom-call.16} parent=49 // pred_check_branch
          %454 = sbr.rel (%p452) target = $region91
        $region90: #{custom-call.16} parent=49 // pred_region
          %p455 = scmp.lt.s32.totalorder %s15, 0
          %s456 = ssub.s32 0, %s15
          %s457 = scalar_select %p455, %s456, %s15
          %s458 = sshrl.u32 %s457, 3
          %s459 = ssub.s32 0, %s458
          %s460 = scalar_select %p455, %s459, %s458
          %s461 = smul.addr %s460, 2
          %s462 = scalar_lea.vmem %s2, %s461
          // Predicated region
          $region92: #{custom-call.16} parent=90 // pred_check
            _
          $region93: #{custom-call.16} parent=90 // pred_check_branch
            %464 = sbr.rel (0) target = $region95
          $region94: #{custom-call.16} parent=90 // pred_region
            // Predicated region
            $region96: #{custom-call.16} parent=94 // pred_check
              _
            $region97: #{custom-call.16} parent=94 // pred_check_branch
              %466 = sbr.rel target = $region99
            $region98: #{custom-call.16} parent=94 // pred_region
              // Predicated region
              $region111: #{custom-call.16} parent=98 // pred_check
                _
              $region112: #{custom-call.16} parent=98 // pred_check_branch
                %482 = sbr.rel (0) target = $region114
              $region113: #{custom-call.16} parent=98 // pred_region
                %s484 = ssub.s32 4, 1
                loop: start=0, step=1, limit=1
                $region115: #{custom-call.16} parent=113 // loop_pre_header
                  _
                $region116: #{custom-call.16} parent=113 // loop_header
                  %s486 = sphi 0, %s490
                  %p487 = scmp.ge.s32.totalorder %s486, 1
                  %s491 = sphi %s414, %s414
                  %s492 = sphi %s462, %s462
                $region117: #{custom-call.16} parent=113 // loop_header_branch
                  %489 = sbr.rel (%p487) target = $region121
                $region118: #{custom-call.16} parent=113 // loop_body
                  %v493 = vld [vmem:[%s491] sm:%s484]
                  %494 = vst [vmem:[%s492] sm:%s484] %v493
                $region119: #{custom-call.16} parent=113 // loop_footer
                  %s490 = sadd.s32 1, %s486
                $region120: #{custom-call.16} parent=113 // loop_footer_branch
                  %485 = sbr.rel target = $region116
                $region121: #{custom-call.16} parent=113 // loop_exit
                  _
              $region114: #{custom-call.16} parent=98 // pred_fallthru
                _
            $region99: #{custom-call.16} parent=94 // pred_fallthru
              _
            // Predicated region
            $region100: #{custom-call.16} parent=94 // pred_check
              _
            $region101: #{custom-call.16} parent=94 // pred_check_branch
              %468 = sbr.rel (0) target = $region103
            $region102: #{custom-call.16} parent=94 // pred_region
              %s470 = ssub.s32 4, 1
              loop: start=0, step=1, limit=1
              $region104: #{custom-call.16} parent=102 // loop_pre_header
                _
              $region105: #{custom-call.16} parent=102 // loop_header
                %s472 = sphi 0, %s476
                %p473 = scmp.ge.s32.totalorder %s472, 1
                %s477 = sphi %s414, %s414
                %s478 = sphi %s462, %s462
              $region106: #{custom-call.16} parent=102 // loop_header_branch
                %475 = sbr.rel (%p473) target = $region110
              $region107: #{custom-call.16} parent=102 // loop_body
                %v479 = vld [vmem:[%s477] sm:%s470]
                %480 = vst [vmem:[%s478] sm:%s470] %v479
              $region108: #{custom-call.16} parent=102 // loop_footer
                %s476 = sadd.s32 1, %s472
              $region109: #{custom-call.16} parent=102 // loop_footer_branch
                %471 = sbr.rel target = $region105
              $region110: #{custom-call.16} parent=102 // loop_exit
                _
            $region103: #{custom-call.16} parent=94 // pred_fallthru
              _
          $region95: #{custom-call.16} parent=90 // pred_fallthru
            _
          %495 = vnop
        $region91: #{custom-call.16} parent=49 // pred_fallthru
          _
      $region50: #{custom-call.16} parent=5 // pred_fallthru
        _
      %p496 = scmp.le.s32.totalorder 2, %s5
      // Predicated region
      $region122: #{custom-call.16} parent=5 // pred_check
        %p497 = pneg %p496
      $region123: #{custom-call.16} parent=5 // pred_check_branch
        %499 = sbr.rel (%p497) target = $region125
      $region124: #{custom-call.16} parent=5 // pred_region
        %s500 = ssub.s32 %s5, 2
        %s501 = sand.u32 %s11, 1
        %s502 = sand.u32 %s11, 1
        %s503 = smul.addr %s502, 4
        %s504 = scalar_lea.vmem [#allocation3], %s503
        // Predicated region
        $region126: #{custom-call.16} parent=124 // pred_check
          %p505 = pneg %p65
        $region127: #{custom-call.16} parent=124 // pred_check_branch
          %507 = sbr.rel (%p505) target = $region129
        $region128: #{custom-call.16} parent=124 // pred_region
          %s508 = sand.u32 %s50, 1
          %s509 = sand.u32 %s50, 1
          %s510 = smul.addr %s509, 2
          %s511 = scalar_lea.vmem [#allocation5], %s510
        $region129: #{custom-call.16} parent=124 // pred_fallthru
          _
      $region125: #{custom-call.16} parent=5 // pred_fallthru
        _
    $region6: #{custom-call.16} parent=1 // loop_footer
      %s9 = sadd.s32 1, %s5
    $region7: #{custom-call.16} parent=1 // loop_footer_branch
      %4 = sbr.rel target = $region3
    $region8: #{custom-call.16} parent=1 // loop_exit
      _

</llo_original>
